<compile_context>
chip_gen: v7x
topology: tpu7x:2x2x1
jax: 0.10.0
libtpu: 0.0.40
codegen_flags: <defaults>
</compile_context>

<pallas_src>
import functools

import jax
import jax.numpy as jnp
from jax.experimental import pallas as pl
from jax.experimental.pallas import tpu as pltpu


# ----------------------------------------------------------------------------
# VMEM-aware planning helpers
# ----------------------------------------------------------------------------

def _round_up(a, b):
    return -(-a // b) * b


def _vmem_budget_bytes():
    """(scratch/tile budget, scoped vmem limit) derived from the chip."""
    cap = 64 * 1024 * 1024                      # conservative default (v7x)
    try:
        info = pltpu.get_tpu_info()
        cap = int(getattr(info, "vmem_capacity_bytes", cap)) or cap
    except Exception:
        pass
    budget = min(cap * 3 // 8, 48 * 1024 * 1024)    # ~24 MiB on v7x, 48 on v6e
    limit = min(cap * 3 // 4, 100 * 1024 * 1024)
    return budget, limit


def _plan_tiles(M, R, K9, budget):
    """Pick (tm, Mp, keep_y): biggest lane tile that fits the VMEM budget."""
    m_full = _round_up(M, 128)

    def need(tm, mp, keep_y):
        return (4 * R * K9              # resident merged weights
                + 8 * K9 * tm           # double-buffered X9 blocks
                + 8 * R * tm            # double-buffered z blocks
                + (4 * R * mp if keep_y else 0)   # resident conv output
                + 64 * R + (1 << 16))

    # Preferred: one M-tile (G == 1), conv output resident in VMEM.
    if need(m_full, m_full, True) <= budget:
        return m_full, m_full, True
    # Otherwise tile the lane axis; keep y resident across tiles if it still
    # fits, else recompute the GEMM in the normalization pass.
    tm = 2048
    while tm > 128 and need(tm, _round_up(M, tm), False) > budget:
        tm //= 2
    mp = _round_up(M, tm)
    keep_y = need(tm, mp, True) <= budget
    return tm, mp, keep_y


# ----------------------------------------------------------------------------
# Kernels
# ----------------------------------------------------------------------------

def _first_block_kernel(x_ref, w_ref, gamma_ref, beta_ref, o_ref, *,
                        no, count, eps):
    """1x1 -> 4x4 ConvTranspose + BatchNorm + ReLU, fully fused, one step.

    x: (B, nz); w: (nz, 16*no) with columns ordered (tap, channel);
    gamma/beta: (1, 16*no) tiled per tap; o: (B, 16*no)."""
    y = jnp.dot(x_ref[...], w_ref[...], preferred_element_type=jnp.float32)
    csum = jnp.sum(y, axis=0, keepdims=True)                  # (1, 16*no)
    csq = jnp.sum(y * y, axis=0, keepdims=True)
    # Pool the 16 spatial taps per channel: columns are tap-major with period
    # `no`, so summing all 16 cyclic lane-rolls by multiples of `no` yields
    # the per-channel pooled value already replicated at every column.
    pooled_s, pooled_q = csum, csq
    for k in range(1, 16):
        pooled_s = pooled_s + pltpu.roll(csum, k * no, axis=1)
        pooled_q = pooled_q + pltpu.roll(csq, k * no, axis=1)
    inv_n = 1.0 / count
    mean = pooled_s * inv_n
    var = jnp.maximum(pooled_q * inv_n - mean * mean, 0.0)
    scale = gamma_ref[...] * jax.lax.rsqrt(var + eps)
    shift = beta_ref[...] - mean * scale
    o_ref[...] = jnp.maximum(y * scale + shift, 0.0)


def _fused_conv_bn_act_kernel(wm_ref, x_ref, gamma_ref, beta_ref, z_ref,
                              yacc_ref, ssum_ref, ssq_ref, *,
                              no_p, tm, count, eps, apply_bn, act, keep_y):
    """Fused stride-2 ConvTranspose (phase-merged GEMM) + BN + activation.

    Grid = (npass, G).  Pass 0 accumulates global per-channel sum/sumsq while
    stashing the conv output in VMEM scratch; pass 1 finalizes scale/shift and
    writes the normalized, activated, lane-dense output tiles."""
    s = pl.program_id(0)
    g = pl.program_id(1)

    def _activate(v):
        if act == "relu":
            return jnp.maximum(v, 0.0)
        if act == "tanh":
            return jnp.tanh(v)
        return v

    if not apply_bn:                         # single-pass path (final layer)
        y = jnp.dot(wm_ref[...], x_ref[...], preferred_element_type=jnp.float32)
        z_ref[...] = _activate(y)
        return

    @pl.when(s == 0)
    def _pass0():
        @pl.when(g == 0)
        def _init():
            ssum_ref[...] = jnp.zeros_like(ssum_ref)
            ssq_ref[...] = jnp.zeros_like(ssq_ref)
        y = jnp.dot(wm_ref[...], x_ref[...], preferred_element_type=jnp.float32)
        if keep_y:
            off = pl.multiple_of(g * tm, tm)
            yacc_ref[:, pl.ds(off, tm)] = y
        # Per-row (phase, channel) partial stats; zero-padded M columns are
        # exactly zero so they do not perturb the sums.
        ssum_ref[...] += jnp.sum(y, axis=1, keepdims=True)
        ssq_ref[...] += jnp.sum(y * y, axis=1, keepdims=True)

    @pl.when(s == 1)
    def _pass1():
        @pl.when(g == 0)
        def _finalize():
            ps = ssum_ref[...]
            pq = ssq_ref[...]
            # Pool the 4 phases per channel (rows are phase-major, period
            # no_p, no_p % 8 == 0 so these are tile-aligned sublane slices).
            pooled_s = (ps[0:no_p] + ps[no_p:2 * no_p]
                        + ps[2 * no_p:3 * no_p] + ps[3 * no_p:4 * no_p])
            pooled_q = (pq[0:no_p] + pq[no_p:2 * no_p]
                        + pq[2 * no_p:3 * no_p] + pq[3 * no_p:4 * no_p])
            pooled_s = jnp.concatenate([pooled_s] * 4, axis=0)
            pooled_q = jnp.concatenate([pooled_q] * 4, axis=0)
            inv_n = 1.0 / count
            mean = pooled_s * inv_n
            var = jnp.maximum(pooled_q * inv_n - mean * mean, 0.0)
            scale = gamma_ref[...] * jax.lax.rsqrt(var + eps)
            shift = beta_ref[...] - mean * scale
            ssum_ref[...] = scale            # reuse scratch for scale/shift
            ssq_ref[...] = shift
        if keep_y:
            off = pl.multiple_of(g * tm, tm)
            y = yacc_ref[:, pl.ds(off, tm)]
        else:
            y = jnp.dot(wm_ref[...], x_ref[...],
                        preferred_element_type=jnp.float32)
        z_ref[...] = _activate(y * ssum_ref[...] + ssq_ref[...])


# ----------------------------------------------------------------------------
# Layer wrappers (JAX glue is only padding / slicing / tiny reshapes)
# ----------------------------------------------------------------------------

# ConvTranspose2d(k=4, s=2, p=1): output row oh = 2*t + pa uses kernel row i
# and input row t + dr for the (i, dr) pairs below (same table for columns).
_TAPS = {0: ((1, 0), (3, -1)),    # even output rows/cols
         1: ((2, 0), (0, +1))}    # odd output rows/cols


def _gen_block_first(x2, w, gamma, beta, *, eps=1e-5):
    """ConvTranspose2d(nz, no, 4, 1, 0) on 1x1 input + BatchNorm2d + ReLU.

    x2: (B, nz).  Returns channel-major (no, B, 4, 4)."""
    B, nz = x2.shape
    nz_w, no, kh, kw = w.shape
    assert nz == nz_w and kh == 4 and kw == 4
    cols = kh * kw * no
    # Columns ordered (i, j, co) -> lane-dense output width 16*no.
    wr = w.astype(jnp.float32).transpose(0, 2, 3, 1).reshape(nz, cols)
    gr = jnp.tile(gamma.astype(jnp.float32), kh * kw).reshape(1, cols)
    br = jnp.tile(beta.astype(jnp.float32), kh * kw).reshape(1, cols)
    _, vmem_limit = _vmem_budget_bytes()
    kern = functools.partial(_first_block_kernel, no=no,
                             count=float(B * kh * kw), eps=eps)
    full = lambda i: (0, 0)
    y = pl.pallas_call(
        kern,
        out_shape=jax.ShapeDtypeStruct((B, cols), jnp.float32),
        grid=(1,),
        in_specs=[pl.BlockSpec((B, nz), full),
                  pl.BlockSpec((nz, cols), full),
                  pl.BlockSpec((1, cols), full),
                  pl.BlockSpec((1, cols), full)],
        out_specs=pl.BlockSpec((B, cols), full),
        compiler_params=pltpu.CompilerParams(
            dimension_semantics=("arbitrary",),
            vmem_limit_bytes=vmem_limit),
    )(x2.astype(jnp.float32), wr, gr, br)
    # columns (i, j, co) -> channel-major (no, B, 4, 4) for the next layer
    return y.reshape(B, kh, kw, no).transpose(3, 0, 1, 2)


def _gen_block_stride2(h, w, gamma, beta, *, apply_bn, act, eps=1e-5):
    """ConvTranspose2d(ni, no, 4, 2, 1, bias=False) [+ BatchNorm2d] + act.

    h: channel-major (ni, B, IH, IW).  Returns channel-major (no, B, 2IH, 2IW)."""
    ni, B, IH, IW = h.shape
    ni_w, no, kh, kw = w.shape
    assert ni == ni_w and kh == 4 and kw == 4
    OH, OW = 2 * IH, 2 * IW
    M = B * IH * IW
    no_p = _round_up(no, 8)
    R = 4 * no_p
    K9 = 9 * ni

    budget, vmem_limit = _vmem_budget_bytes()
    tm, Mp, keep_y = _plan_tiles(M, R, K9, budget)
    G = Mp // tm

    # --- glue: single padded input -> 9 shifted (ni, M) slabs ---------------
    # TODO(synk): the 9 shifted copies are still materialized in HBM (~2.25x
    # the layer output); building them in-kernel from one padded DMA would
    # remove that traffic but needs per-row slicing at these small widths.
    hp = jnp.pad(h.astype(jnp.float32), ((0, 0), (0, 0), (1, 1), (1, 1)))
    slabs = []
    for dr in (-1, 0, 1):
        for dc in (-1, 0, 1):
            slabs.append(hp[:, :, 1 + dr:1 + dr + IH, 1 + dc:1 + dc + IW]
                         .reshape(ni, M))
    x9 = jnp.concatenate(slabs, axis=0)                        # (9*ni, M)
    if Mp != M:
        x9 = jnp.pad(x9, ((0, 0), (0, Mp - M)))

    # --- glue: phase-merged, channel-padded weight matrix (R, 9*ni) ---------
    wm = jnp.zeros((4, no, 9, ni), jnp.float32)
    for pa in (0, 1):
        for pb in (0, 1):
            p = 2 * pa + pb
            for i, dr in _TAPS[pa]:
                for j, dc in _TAPS[pb]:
                    sidx = (dr + 1) * 3 + (dc + 1)
                    wm = wm.at[p, :, sidx, :].set(
                        w[:, :, i, j].astype(jnp.float32).T)
    wm = jnp.pad(wm, ((0, 0), (0, no_p - no), (0, 0), (0, 0))).reshape(R, K9)

    if gamma is None:
        gamma = jnp.ones((no,), jnp.float32)
    if beta is None:
        beta = jnp.zeros((no,), jnp.float32)
    g_rows = jnp.tile(jnp.pad(gamma.astype(jnp.float32), (0, no_p - no)),
                      4).reshape(R, 1)
    b_rows = jnp.tile(jnp.pad(beta.astype(jnp.float32), (0, no_p - no)),
                      4).reshape(R, 1)

    # --- fused conv-as-GEMM + global-stat BatchNorm + activation ------------
    npass = 2 if apply_bn else 1
    # During pass 1 the X9 / output index maps avoid re-fetching / writing
    # back stale blocks (outputs are only flushed once they hold pass-1 data).
    x_map = ((lambda s, g: (0, g * (1 - s))) if (apply_bn and keep_y)
             else (lambda s, g: (0, g)))
    z_map = (lambda s, g: (0, g * s)) if apply_bn else (lambda s, g: (0, g))
    wide = lambda s, g: (0, 0)
    yacc_shape = (R, Mp) if (apply_bn and keep_y) else (8, 128)
    recompute = apply_bn and not keep_y
    kern = functools.partial(
        _fused_conv_bn_act_kernel, no_p=no_p, tm=tm,
        count=float(B * OH * OW), eps=eps, apply_bn=apply_bn, act=act,
        keep_y=keep_y)
    cost = pl.CostEstimate(
        flops=2 * R * K9 * Mp * (2 if recompute else 1),
        transcendentals=(R * Mp) if act == "tanh" else 0,
        bytes_accessed=4 * int(R * K9 + K9 * Mp * (2 if recompute else 1)
                               + R * Mp + 4 * R),
    )
    # TODO(synk): BN's global stats force both grid axes to "arbitrary"; a
    # per-core partial-stats + cross-core combine would restore megacore
    # parallelism on v7x for the BN layers.
    z = pl.pallas_call(
        kern,
        out_shape=jax.ShapeDtypeStruct((R, Mp), jnp.float32),
        grid=(npass, G),
        in_specs=[pl.BlockSpec((R, K9), wide),
                  pl.BlockSpec((K9, tm), x_map),
                  pl.BlockSpec((R, 1), wide),
                  pl.BlockSpec((R, 1), wide)],
        out_specs=pl.BlockSpec((R, tm), z_map),
        scratch_shapes=[pltpu.VMEM(yacc_shape, jnp.float32),
                        pltpu.VMEM((R, 1), jnp.float32),
                        pltpu.VMEM((R, 1), jnp.float32)],
        compiler_params=pltpu.CompilerParams(
            dimension_semantics=(("arbitrary", "arbitrary") if apply_bn
                                 else ("arbitrary", "parallel")),
            vmem_limit_bytes=vmem_limit),
        cost_estimate=cost,
    )(wm, x9, g_rows, b_rows)

    # --- glue: drop padding, interleave the 4 phases (stride-2 scatter) -----
    z = z[:, :M].reshape(2, 2, no_p, B, IH, IW)[:, :, :no]
    z = z.transpose(2, 3, 4, 0, 5, 1).reshape(no, B, OH, OW)
    return z


def generator_forward(x, params):
    """DCGAN Generator.  params = 5 tuples (w, gamma, beta); the last block
    has gamma = beta = None (plain ConvTranspose2d + Tanh)."""
    # TODO(synk): PyTorch BatchNorm2d in training mode also updates
    # running_mean/running_var (unbiased); those buffers are not produced here.
    # TODO(synk): GEMM inputs are kept in f32 to preserve the 3e-3 max-abs
    # check; bf16 operands (f32 accumulate) would halve DMA bytes at scale.
    B = x.shape[0]
    w0, g0, b0 = params[0]
    h = _gen_block_first(x.reshape(B, -1), w0, g0, b0)      # (nf*8, B, 4, 4)
    for w, g, b in params[1:4]:
        h = _gen_block_stride2(h, w, g, b, apply_bn=True, act="relu")
    wf, _, _ = params[4]
    h = _gen_block_stride2(h, wf, None, None, apply_bn=False, act="tanh")
    # Activations stay channel-major (C, B, H, W) between layers; convert to
    # NCHW once at the network output.
    return jnp.transpose(h, (1, 0, 2, 3))


def init_generator_params(key, nz, nf, nc):
    """Mirrors init_weights: conv ~ N(0, 0.02); BN weight ~ N(1, 0.02), bias 0."""
    dims = [(nz, nf * 8), (nf * 8, nf * 4), (nf * 4, nf * 2), (nf * 2, nf),
            (nf, nc)]
    keys = jax.random.split(key, 2 * len(dims))
    params = []
    for idx, (ci, co) in enumerate(dims):
        w = 0.02 * jax.random.normal(keys[2 * idx], (ci, co, 4, 4),
                                     dtype=jnp.float32)
        if idx < len(dims) - 1:
            gamma = 1.0 + 0.02 * jax.random.normal(keys[2 * idx + 1], (co,),
                                                   dtype=jnp.float32)
            beta = jnp.zeros((co,), jnp.float32)
            params.append((w, gamma, beta))
        else:
            params.append((w, None, None))
    return params


# ----------------------------------------------------------------------------
# Pure-JAX reference (for correctness verification only)
# ----------------------------------------------------------------------------

def _conv_transpose_ref(x, w, stride, pad):
    k = w.shape[2]
    w_conv = jnp.flip(w, axis=(2, 3)).transpose(1, 0, 2, 3)
    return jax.lax.conv_general_dilated(
        x, w_conv, window_strides=(1, 1),
        padding=[(k - 1 - pad, k - 1 - pad)] * 2,
        lhs_dilation=(stride, stride),
        dimension_numbers=("NCHW", "OIHW", "NCHW"),
        precision=jax.lax.Precision.HIGHEST)


def _generator_ref(x, params, eps=1e-5):
    cfg = [(1, 0), (2, 1), (2, 1), (2, 1), (2, 1)]
    h = x
    for idx, ((w, g, b), (s, p)) in enumerate(zip(params, cfg)):
        h = _conv_transpose_ref(h, w, s, p)
        if idx < 4:
            mean = jnp.mean(h, axis=(0, 2, 3), keepdims=True)
            var = jnp.mean((h - mean) ** 2, axis=(0, 2, 3), keepdims=True)
            h = (h - mean) * jax.lax.rsqrt(var + eps)
            h = h * g.reshape(1, -1, 1, 1) + b.reshape(1, -1, 1, 1)
            h = jnp.maximum(h, 0.0)
        else:
            h = jnp.tanh(h)
    return h


if __name__ == "__main__":
    key = jax.random.PRNGKey(0)
    k_x, k_p = jax.random.split(key)

    B, nz, nf, nc = 2, 8, 8, 3             # small DCGAN generator
    x = jax.random.normal(k_x, (B, nz, 1, 1), dtype=jnp.float32)
    params = init_generator_params(k_p, nz, nf, nc)

    fwd = jax.jit(generator_forward)
    out = fwd(x, params)
    jax.block_until_ready(out)
    assert out.shape == (B, nc, 64, 64), out.shape

    ref = _generator_ref(x, params)
    err = float(jnp.max(jnp.abs(out - ref)))
    assert err < 3e-3, f"mismatch vs pure-JAX reference: {err}"
    print("KERNEL_OK")
</pallas_src>

<mosaic_0001>
module attributes {stable_mosaic.version = 11 : i64} {
  func.func @_first_block_kernel(%arg0: i32, %arg1: memref<2x8xf32, #tpu.memory_space<vmem>>, %arg2: memref<8x1024xf32, #tpu.memory_space<vmem>>, %arg3: memref<1x1024xf32, #tpu.memory_space<vmem>>, %arg4: memref<1x1024xf32, #tpu.memory_space<vmem>>, %arg5: memref<2x1024xf32, #tpu.memory_space<vmem>>) attributes {dimension_semantics = [#tpu.dimension_semantics<arbitrary>], iteration_bounds = array<i64: 1>, scalar_prefetch = 0 : i64, scratch_operands = 0 : i64, tpu.core_type = #tpu.core_type<tc>, window_params = [{pipeline_mode = #tpu.pipeline_mode<synchronous>, transform_indices = @transform_0, window_bounds = array<i64: 2, 8>}, {pipeline_mode = #tpu.pipeline_mode<synchronous>, transform_indices = @transform_1, window_bounds = array<i64: 8, 1024>}, {pipeline_mode = #tpu.pipeline_mode<synchronous>, transform_indices = @transform_2, window_bounds = array<i64: 1, 1024>}, {pipeline_mode = #tpu.pipeline_mode<synchronous>, transform_indices = @transform_3, window_bounds = array<i64: 1, 1024>}, {pipeline_mode = #tpu.pipeline_mode<synchronous>, transform_indices = @transform_4, window_bounds = array<i64: 2, 1024>}]} {
    %c0 = arith.constant 0 : index
    %c0_0 = arith.constant 0 : index
    %0 = vector.load %arg1[%c0, %c0_0] : memref<2x8xf32, #tpu.memory_space<vmem>>, vector<2x8xf32>
    %c0_1 = arith.constant 0 : index
    %c0_2 = arith.constant 0 : index
    %1 = vector.load %arg2[%c0_1, %c0_2] : memref<8x1024xf32, #tpu.memory_space<vmem>>, vector<8x1024xf32>
    %cst = arith.constant dense<0.000000e+00> : vector<2x1024xf32>
    %2 = tpu.matmul %0, %1, %cst {dimension_numbers = #tpu.dot_dimension_numbers<[1], [0], [0], [1], [0, 0, 1, 1], [], []>} : vector<2x8xf32>, vector<8x1024xf32>, vector<2x1024xf32> -> vector<2x1024xf32>
    %cst_3 = arith.constant dense<0.000000e+00> : vector<1024xf32>
    %3 = vector.multi_reduction <add>, %2, %cst_3 [0] : vector<2x1024xf32> to vector<1024xf32>
    %4 = vector.shape_cast %3 : vector<1024xf32> to vector<1x1024xf32>
    %5 = arith.mulf %2, %2 : vector<2x1024xf32>
    %cst_4 = arith.constant dense<0.000000e+00> : vector<1024xf32>
    %6 = vector.multi_reduction <add>, %5, %cst_4 [0] : vector<2x1024xf32> to vector<1024xf32>
    %7 = vector.shape_cast %6 : vector<1024xf32> to vector<1x1024xf32>
    %c64_i32 = arith.constant 64 : i32
    %8 = tpu.dynamic_rotate %4 by %c64_i32 dim 1 : vector<1x1024xf32>, i32 -> vector<1x1024xf32>
    %9 = arith.addf %4, %8 : vector<1x1024xf32>
    %c64_i32_5 = arith.constant 64 : i32
    %10 = tpu.dynamic_rotate %7 by %c64_i32_5 dim 1 : vector<1x1024xf32>, i32 -> vector<1x1024xf32>
    %11 = arith.addf %7, %10 : vector<1x1024xf32>
    %c128_i32 = arith.constant 128 : i32
    %12 = tpu.dynamic_rotate %4 by %c128_i32 dim 1 : vector<1x1024xf32>, i32 -> vector<1x1024xf32>
    %13 = arith.addf %9, %12 : vector<1x1024xf32>
    %c128_i32_6 = arith.constant 128 : i32
    %14 = tpu.dynamic_rotate %7 by %c128_i32_6 dim 1 : vector<1x1024xf32>, i32 -> vector<1x1024xf32>
    %15 = arith.addf %11, %14 : vector<1x1024xf32>
    %c192_i32 = arith.constant 192 : i32
    %16 = tpu.dynamic_rotate %4 by %c192_i32 dim 1 : vector<1x1024xf32>, i32 -> vector<1x1024xf32>
    %17 = arith.addf %13, %16 : vector<1x1024xf32>
    %c192_i32_7 = arith.constant 192 : i32
    %18 = tpu.dynamic_rotate %7 by %c192_i32_7 dim 1 : vector<1x1024xf32>, i32 -> vector<1x1024xf32>
    %19 = arith.addf %15, %18 : vector<1x1024xf32>
    %c256_i32 = arith.constant 256 : i32
    %20 = tpu.dynamic_rotate %4 by %c256_i32 dim 1 : vector<1x1024xf32>, i32 -> vector<1x1024xf32>
    %21 = arith.addf %17, %20 : vector<1x1024xf32>
    %c256_i32_8 = arith.constant 256 : i32
    %22 = tpu.dynamic_rotate %7 by %c256_i32_8 dim 1 : vector<1x1024xf32>, i32 -> vector<1x1024xf32>
    %23 = arith.addf %19, %22 : vector<1x1024xf32>
    %c320_i32 = arith.constant 320 : i32
    %24 = tpu.dynamic_rotate %4 by %c320_i32 dim 1 : vector<1x1024xf32>, i32 -> vector<1x1024xf32>
    %25 = arith.addf %21, %24 : vector<1x1024xf32>
    %c320_i32_9 = arith.constant 320 : i32
    %26 = tpu.dynamic_rotate %7 by %c320_i32_9 dim 1 : vector<1x1024xf32>, i32 -> vector<1x1024xf32>
    %27 = arith.addf %23, %26 : vector<1x1024xf32>
    %c384_i32 = arith.constant 384 : i32
    %28 = tpu.dynamic_rotate %4 by %c384_i32 dim 1 : vector<1x1024xf32>, i32 -> vector<1x1024xf32>
    %29 = arith.addf %25, %28 : vector<1x1024xf32>
    %c384_i32_10 = arith.constant 384 : i32
    %30 = tpu.dynamic_rotate %7 by %c384_i32_10 dim 1 : vector<1x1024xf32>, i32 -> vector<1x1024xf32>
    %31 = arith.addf %27, %30 : vector<1x1024xf32>
    %c448_i32 = arith.constant 448 : i32
    %32 = tpu.dynamic_rotate %4 by %c448_i32 dim 1 : vector<1x1024xf32>, i32 -> vector<1x1024xf32>
    %33 = arith.addf %29, %32 : vector<1x1024xf32>
    %c448_i32_11 = arith.constant 448 : i32
    %34 = tpu.dynamic_rotate %7 by %c448_i32_11 dim 1 : vector<1x1024xf32>, i32 -> vector<1x1024xf32>
    %35 = arith.addf %31, %34 : vector<1x1024xf32>
    %c512_i32 = arith.constant 512 : i32
    %36 = tpu.dynamic_rotate %4 by %c512_i32 dim 1 : vector<1x1024xf32>, i32 -> vector<1x1024xf32>
    %37 = arith.addf %33, %36 : vector<1x1024xf32>
    %c512_i32_12 = arith.constant 512 : i32
    %38 = tpu.dynamic_rotate %7 by %c512_i32_12 dim 1 : vector<1x1024xf32>, i32 -> vector<1x1024xf32>
    %39 = arith.addf %35, %38 : vector<1x1024xf32>
    %c576_i32 = arith.constant 576 : i32
    %40 = tpu.dynamic_rotate %4 by %c576_i32 dim 1 : vector<1x1024xf32>, i32 -> vector<1x1024xf32>
    %41 = arith.addf %37, %40 : vector<1x1024xf32>
    %c576_i32_13 = arith.constant 576 : i32
    %42 = tpu.dynamic_rotate %7 by %c576_i32_13 dim 1 : vector<1x1024xf32>, i32 -> vector<1x1024xf32>
    %43 = arith.addf %39, %42 : vector<1x1024xf32>
    %c640_i32 = arith.constant 640 : i32
    %44 = tpu.dynamic_rotate %4 by %c640_i32 dim 1 : vector<1x1024xf32>, i32 -> vector<1x1024xf32>
    %45 = arith.addf %41, %44 : vector<1x1024xf32>
    %c640_i32_14 = arith.constant 640 : i32
    %46 = tpu.dynamic_rotate %7 by %c640_i32_14 dim 1 : vector<1x1024xf32>, i32 -> vector<1x1024xf32>
    %47 = arith.addf %43, %46 : vector<1x1024xf32>
    %c704_i32 = arith.constant 704 : i32
    %48 = tpu.dynamic_rotate %4 by %c704_i32 dim 1 : vector<1x1024xf32>, i32 -> vector<1x1024xf32>
    %49 = arith.addf %45, %48 : vector<1x1024xf32>
    %c704_i32_15 = arith.constant 704 : i32
    %50 = tpu.dynamic_rotate %7 by %c704_i32_15 dim 1 : vector<1x1024xf32>, i32 -> vector<1x1024xf32>
    %51 = arith.addf %47, %50 : vector<1x1024xf32>
    %c768_i32 = arith.constant 768 : i32
    %52 = tpu.dynamic_rotate %4 by %c768_i32 dim 1 : vector<1x1024xf32>, i32 -> vector<1x1024xf32>
    %53 = arith.addf %49, %52 : vector<1x1024xf32>
    %c768_i32_16 = arith.constant 768 : i32
    %54 = tpu.dynamic_rotate %7 by %c768_i32_16 dim 1 : vector<1x1024xf32>, i32 -> vector<1x1024xf32>
    %55 = arith.addf %51, %54 : vector<1x1024xf32>
    %c832_i32 = arith.constant 832 : i32
    %56 = tpu.dynamic_rotate %4 by %c832_i32 dim 1 : vector<1x1024xf32>, i32 -> vector<1x1024xf32>
    %57 = arith.addf %53, %56 : vector<1x1024xf32>
    %c832_i32_17 = arith.constant 832 : i32
    %58 = tpu.dynamic_rotate %7 by %c832_i32_17 dim 1 : vector<1x1024xf32>, i32 -> vector<1x1024xf32>
    %59 = arith.addf %55, %58 : vector<1x1024xf32>
    %c896_i32 = arith.constant 896 : i32
    %60 = tpu.dynamic_rotate %4 by %c896_i32 dim 1 : vector<1x1024xf32>, i32 -> vector<1x1024xf32>
    %61 = arith.addf %57, %60 : vector<1x1024xf32>
    %c896_i32_18 = arith.constant 896 : i32
    %62 = tpu.dynamic_rotate %7 by %c896_i32_18 dim 1 : vector<1x1024xf32>, i32 -> vector<1x1024xf32>
    %63 = arith.addf %59, %62 : vector<1x1024xf32>
    %c960_i32 = arith.constant 960 : i32
    %64 = tpu.dynamic_rotate %4 by %c960_i32 dim 1 : vector<1x1024xf32>, i32 -> vector<1x1024xf32>
    %65 = arith.addf %61, %64 : vector<1x1024xf32>
    %c960_i32_19 = arith.constant 960 : i32
    %66 = tpu.dynamic_rotate %7 by %c960_i32_19 dim 1 : vector<1x1024xf32>, i32 -> vector<1x1024xf32>
    %67 = arith.addf %63, %66 : vector<1x1024xf32>
    %cst_20 = arith.constant 3.125000e-02 : f32
    %68 = vector.broadcast %cst_20 : f32 to vector<1x1024xf32>
    %69 = arith.mulf %65, %68 : vector<1x1024xf32>
    %cst_21 = arith.constant 3.125000e-02 : f32
    %70 = vector.broadcast %cst_21 : f32 to vector<1x1024xf32>
    %71 = arith.mulf %67, %70 : vector<1x1024xf32>
    %72 = arith.mulf %69, %69 : vector<1x1024xf32>
    %73 = arith.subf %71, %72 : vector<1x1024xf32>
    %cst_22 = arith.constant 0.000000e+00 : f32
    %74 = vector.broadcast %cst_22 : f32 to vector<1x1024xf32>
    %75 = arith.maximumf %73, %74 : vector<1x1024xf32>
    %c0_23 = arith.constant 0 : index
    %c0_24 = arith.constant 0 : index
    %76 = vector.load %arg3[%c0_23, %c0_24] : memref<1x1024xf32, #tpu.memory_space<vmem>>, vector<1x1024xf32>
    %cst_25 = arith.constant 9.99999974E-6 : f32
    %77 = vector.broadcast %cst_25 : f32 to vector<1x1024xf32>
    %78 = arith.addf %75, %77 : vector<1x1024xf32>
    %79 = math.rsqrt %78 : vector<1x1024xf32>
    %80 = arith.mulf %76, %79 : vector<1x1024xf32>
    %c0_26 = arith.constant 0 : index
    %c0_27 = arith.constant 0 : index
    %81 = vector.load %arg4[%c0_26, %c0_27] : memref<1x1024xf32, #tpu.memory_space<vmem>>, vector<1x1024xf32>
    %82 = arith.mulf %69, %80 : vector<1x1024xf32>
    %83 = arith.subf %81, %82 : vector<1x1024xf32>
    %84 = vector.broadcast %80 : vector<1x1024xf32> to vector<2x1024xf32>
    %85 = arith.mulf %2, %84 : vector<2x1024xf32>
    %86 = vector.broadcast %83 : vector<1x1024xf32> to vector<2x1024xf32>
    %87 = arith.addf %85, %86 : vector<2x1024xf32>
    %cst_28 = arith.constant 0.000000e+00 : f32
    %88 = vector.broadcast %cst_28 : f32 to vector<2x1024xf32>
    %89 = arith.maximumf %87, %88 : vector<2x1024xf32>
    %c0_29 = arith.constant 0 : index
    %c0_30 = arith.constant 0 : index
    %90 = vector.load %arg5[%c0_29, %c0_30] : memref<2x1024xf32, #tpu.memory_space<vmem>>, vector<2x1024xf32>
    tpu.vector_store %arg5[%c0_29, %c0_30], %89 {strides = array<i32>} : memref<2x1024xf32, #tpu.memory_space<vmem>>, vector<2x1024xf32>,
    return
  }
  func.func @transform_0(%arg0: i32) -> (i32, i32) {
    %c0_i32 = arith.constant 0 : i32
    %c0_i32_0 = arith.constant 0 : i32
    %c0_i32_1 = arith.constant 0 : i32
    return %c0_i32, %c0_i32_0 : i32, i32
  }
  func.func @transform_1(%arg0: i32) -> (i32, i32) {
    %c0_i32 = arith.constant 0 : i32
    %c0_i32_0 = arith.constant 0 : i32
    %c0_i32_1 = arith.constant 0 : i32
    return %c0_i32, %c0_i32_0 : i32, i32
  }
  func.func @transform_2(%arg0: i32) -> (i32, i32) {
    %c0_i32 = arith.constant 0 : i32
    %c0_i32_0 = arith.constant 0 : i32
    %c0_i32_1 = arith.constant 0 : i32
    return %c0_i32, %c0_i32_0 : i32, i32
  }
  func.func @transform_3(%arg0: i32) -> (i32, i32) {
    %c0_i32 = arith.constant 0 : i32
    %c0_i32_0 = arith.constant 0 : i32
    %c0_i32_1 = arith.constant 0 : i32
    return %c0_i32, %c0_i32_0 : i32, i32
  }
  func.func @transform_4(%arg0: i32) -> (i32, i32) {
    %c0_i32 = arith.constant 0 : i32
    %c0_i32_0 = arith.constant 0 : i32
    %c0_i32_1 = arith.constant 0 : i32
    return %c0_i32, %c0_i32_0 : i32, i32
  }
}

module attributes {stable_mosaic.version = 11 : i64} {
  func.func @_fused_conv_bn_act_kernel(%arg0: i32, %arg1: i32, %arg2: memref<128x576xf32, #tpu.memory_space<vmem>>, %arg3: memref<576x128xf32, #tpu.memory_space<vmem>>, %arg4: memref<128x1xf32, #tpu.memory_space<vmem>>, %arg5: memref<128x1xf32, #tpu.memory_space<vmem>>, %arg6: memref<128x128xf32, #tpu.memory_space<vmem>>, %arg7: memref<128x128xf32, #tpu.memory_space<vmem>>, %arg8: memref<128x1xf32, #tpu.memory_space<vmem>>, %arg9: memref<128x1xf32, #tpu.memory_space<vmem>>) attributes {dimension_semantics = [#tpu.dimension_semantics<arbitrary>, #tpu.dimension_semantics<arbitrary>], iteration_bounds = array<i64: 2, 1>, scalar_prefetch = 0 : i64, scratch_operands = 3 : i64, tpu.core_type = #tpu.core_type<tc>, window_params = [{pipeline_mode = #tpu.pipeline_mode<synchronous>, transform_indices = @transform_0, window_bounds = array<i64: 128, 576>}, {transform_indices = @transform_1, window_bounds = array<i64: 576, 128>}, {pipeline_mode = #tpu.pipeline_mode<synchronous>, transform_indices = @transform_2, window_bounds = array<i64: 128, 1>}, {pipeline_mode = #tpu.pipeline_mode<synchronous>, transform_indices = @transform_3, window_bounds = array<i64: 128, 1>}, {transform_indices = @transform_4, window_bounds = array<i64: 128, 128>}]} {
    %c0_i32 = arith.constant 0 : i32
    %0 = arith.cmpi eq, %arg0, %c0_i32 : i32
    %1 = arith.extui %0 : i1 to i32
    %c0_i32_0 = arith.constant 0 : i32
    %2 = arith.cmpi ne, %1, %c0_i32_0 : i32
    scf.if %2 {
      %c0_i32_2 = arith.constant 0 : i32
      %6 = arith.cmpi eq, %arg1, %c0_i32_2 : i32
      %7 = arith.extui %6 : i1 to i32
      %c0_i32_3 = arith.constant 0 : i32
      %8 = arith.cmpi ne, %7, %c0_i32_3 : i32
      scf.if %8 {
        %cst_18 = arith.constant 0.000000e+00 : f32
        %27 = vector.broadcast %cst_18 : f32 to vector<128x1xf32>
        %c0_19 = arith.constant 0 : index
        %c0_20 = arith.constant 0 : index
        %28 = vector.load %arg8[%c0_19, %c0_20] : memref<128x1xf32, #tpu.memory_space<vmem>>, vector<128x1xf32>
        tpu.vector_store %arg8[%c0_19, %c0_20], %27 {strides = array<i32>} : memref<128x1xf32, #tpu.memory_space<vmem>>, vector<128x1xf32>,
        %cst_21 = arith.constant 0.000000e+00 : f32
        %29 = vector.broadcast %cst_21 : f32 to vector<128x1xf32>
        %c0_22 = arith.constant 0 : index
        %c0_23 = arith.constant 0 : index
        %30 = vector.load %arg9[%c0_22, %c0_23] : memref<128x1xf32, #tpu.memory_space<vmem>>, vector<128x1xf32>
        tpu.vector_store %arg9[%c0_22, %c0_23], %29 {strides = array<i32>} : memref<128x1xf32, #tpu.memory_space<vmem>>, vector<128x1xf32>,
      } else {
      }
      %c0 = arith.constant 0 : index
      %c0_4 = arith.constant 0 : index
      %9 = vector.load %arg2[%c0, %c0_4] : memref<128x576xf32, #tpu.memory_space<vmem>>, vector<128x576xf32>
      %c0_5 = arith.constant 0 : index
      %c0_6 = arith.constant 0 : index
      %10 = vector.load %arg3[%c0_5, %c0_6] : memref<576x128xf32, #tpu.memory_space<vmem>>, vector<576x128xf32>
      %cst = arith.constant dense<0.000000e+00> : vector<128x128xf32>
      %11 = tpu.matmul %9, %10, %cst {dimension_numbers = #tpu.dot_dimension_numbers<[1], [0], [0], [1], [0, 0, 1, 1], [], []>} : vector<128x576xf32>, vector<576x128xf32>, vector<128x128xf32> -> vector<128x128xf32>
      %c128_i32 = arith.constant 128 : i32
      %12 = arith.muli %arg1, %c128_i32 : i32
      %13 = tpu.assume_multiple %12, 128 : i32
      %c0_7 = arith.constant 0 : index
      %14 = arith.index_cast %13 : i32 to index
      %15 = vector.load %arg7[%c0_7, %14] : memref<128x128xf32, #tpu.memory_space<vmem>>, vector<128x128xf32>
      tpu.vector_store %arg7[%c0_7, %14], %11 {strides = array<i32>} : memref<128x128xf32, #tpu.memory_space<vmem>>, vector<128x128xf32>,
      %c0_8 = arith.constant 0 : index
      %c0_9 = arith.constant 0 : index
      %16 = vector.load %arg8[%c0_8, %c0_9] : memref<128x1xf32, #tpu.memory_space<vmem>>, vector<128x1xf32>
      %cst_10 = arith.constant dense<0.000000e+00> : vector<128xf32>
      %17 = vector.multi_reduction <add>, %11, %cst_10 [1] : vector<128x128xf32> to vector<128xf32>
      %18 = vector.shape_cast %17 : vector<128xf32> to vector<128x1xf32>
      %19 = arith.addf %16, %18 : vector<128x1xf32>
      %c0_11 = arith.constant 0 : index
      %c0_12 = arith.constant 0 : index
      %20 = vector.load %arg8[%c0_11, %c0_12] : memref<128x1xf32, #tpu.memory_space<vmem>>, vector<128x1xf32>
      tpu.vector_store %arg8[%c0_11, %c0_12], %19 {strides = array<i32>} : memref<128x1xf32, #tpu.memory_space<vmem>>, vector<128x1xf32>,
      %c0_13 = arith.constant 0 : index
      %c0_14 = arith.constant 0 : index
      %21 = vector.load %arg9[%c0_13, %c0_14] : memref<128x1xf32, #tpu.memory_space<vmem>>, vector<128x1xf32>
      %22 = arith.mulf %11, %11 : vector<128x128xf32>
      %cst_15 = arith.constant dense<0.000000e+00> : vector<128xf32>
      %23 = vector.multi_reduction <add>, %22, %cst_15 [1] : vector<128x128xf32> to vector<128xf32>
      %24 = vector.shape_cast %23 : vector<128xf32> to vector<128x1xf32>
      %25 = arith.addf %21, %24 : vector<128x1xf32>
      %c0_16 = arith.constant 0 : index
      %c0_17 = arith.constant 0 : index
      %26 = vector.load %arg9[%c0_16, %c0_17] : memref<128x1xf32, #tpu.memory_space<vmem>>, vector<128x1xf32>
      tpu.vector_store %arg9[%c0_16, %c0_17], %25 {strides = array<i32>} : memref<128x1xf32, #tpu.memory_space<vmem>>, vector<128x1xf32>,
    } else {
    }
    %c1_i32 = arith.constant 1 : i32
    %3 = arith.cmpi eq, %arg0, %c1_i32 : i32
    %4 = arith.extui %3 : i1 to i32
    %c0_i32_1 = arith.constant 0 : i32
    %5 = arith.cmpi ne, %4, %c0_i32_1 : i32
    scf.if %5 {
      %c0_i32_2 = arith.constant 0 : i32
      %6 = arith.cmpi eq, %arg1, %c0_i32_2 : i32
      %7 = arith.extui %6 : i1 to i32
      %c0_i32_3 = arith.constant 0 : i32
      %8 = arith.cmpi ne, %7, %c0_i32_3 : i32
      scf.if %8 {
        %c0_10 = arith.constant 0 : index
        %c0_11 = arith.constant 0 : index
        %22 = vector.load %arg8[%c0_10, %c0_11] : memref<128x1xf32, #tpu.memory_space<vmem>>, vector<128x1xf32>
        %c0_12 = arith.constant 0 : index
        %c0_13 = arith.constant 0 : index
        %23 = vector.load %arg9[%c0_12, %c0_13] : memref<128x1xf32, #tpu.memory_space<vmem>>, vector<128x1xf32>
        %24 = vector.extract_strided_slice %22 {offsets = [0, 0], sizes = [32, 1], strides = [1, 1]} : vector<128x1xf32> to vector<32x1xf32>
        %25 = vector.extract_strided_slice %22 {offsets = [32, 0], sizes = [32, 1], strides = [1, 1]} : vector<128x1xf32> to vector<32x1xf32>
        %26 = arith.addf %24, %25 : vector<32x1xf32>
        %27 = vector.extract_strided_slice %22 {offsets = [64, 0], sizes = [32, 1], strides = [1, 1]} : vector<128x1xf32> to vector<32x1xf32>
        %28 = arith.addf %26, %27 : vector<32x1xf32>
        %29 = vector.extract_strided_slice %22 {offsets = [96, 0], sizes = [32, 1], strides = [1, 1]} : vector<128x1xf32> to vector<32x1xf32>
        %30 = arith.addf %28, %29 : vector<32x1xf32>
        %31 = vector.extract_strided_slice %23 {offsets = [0, 0], sizes = [32, 1], strides = [1, 1]} : vector<128x1xf32> to vector<32x1xf32>
        %32 = vector.extract_strided_slice %23 {offsets = [32, 0], sizes = [32, 1], strides = [1, 1]} : vector<128x1xf32> to vector<32x1xf32>
        %33 = arith.addf %31, %32 : vector<32x1xf32>
        %34 = vector.extract_strided_slice %23 {offsets = [64, 0], sizes = [32, 1], strides = [1, 1]} : vector<128x1xf32> to vector<32x1xf32>
        %35 = arith.addf %33, %34 : vector<32x1xf32>
        %36 = vector.extract_strided_slice %23 {offsets = [96, 0], sizes = [32, 1], strides = [1, 1]} : vector<128x1xf32> to vector<32x1xf32>
        %37 = arith.addf %35, %36 : vector<32x1xf32>
        %38 = tpu.concatenate %30, %30, %30, %30 in 0 : vector<32x1xf32>, vector<32x1xf32>, vector<32x1xf32>, vector<32x1xf32> -> vector<128x1xf32>
        %39 = tpu.concatenate %37, %37, %37, %37 in 0 : vector<32x1xf32>, vector<32x1xf32>, vector<32x1xf32>, vector<32x1xf32> -> vector<128x1xf32>
        %cst_14 = arith.constant 7.812500e-03 : f32
        %40 = vector.broadcast %cst_14 : f32 to vector<128x1xf32>
        %41 = arith.mulf %38, %40 : vector<128x1xf32>
        %cst_15 = arith.constant 7.812500e-03 : f32
        %42 = vector.broadcast %cst_15 : f32 to vector<128x1xf32>
        %43 = arith.mulf %39, %42 : vector<128x1xf32>
        %44 = arith.mulf %41, %41 : vector<128x1xf32>
        %45 = arith.subf %43, %44 : vector<128x1xf32>
        %cst_16 = arith.constant 0.000000e+00 : f32
        %46 = vector.broadcast %cst_16 : f32 to vector<128x1xf32>
        %47 = arith.maximumf %45, %46 : vector<128x1xf32>
        %c0_17 = arith.constant 0 : index
        %c0_18 = arith.constant 0 : index
        %48 = vector.load %arg4[%c0_17, %c0_18] : memref<128x1xf32, #tpu.memory_space<vmem>>, vector<128x1xf32>
        %cst_19 = arith.constant 9.99999974E-6 : f32
        %49 = vector.broadcast %cst_19 : f32 to vector<128x1xf32>
        %50 = arith.addf %47, %49 : vector<128x1xf32>
        %51 = math.rsqrt %50 : vector<128x1xf32>
        %52 = arith.mulf %48, %51 : vector<128x1xf32>
        %c0_20 = arith.constant 0 : index
        %c0_21 = arith.constant 0 : index
        %53 = vector.load %arg5[%c0_20, %c0_21] : memref<128x1xf32, #tpu.memory_space<vmem>>, vector<128x1xf32>
        %54 = arith.mulf %41, %52 : vector<128x1xf32>
        %55 = arith.subf %53, %54 : vector<128x1xf32>
        %c0_22 = arith.constant 0 : index
        %c0_23 = arith.constant 0 : index
        %56 = vector.load %arg8[%c0_22, %c0_23] : memref<128x1xf32, #tpu.memory_space<vmem>>, vector<128x1xf32>
        tpu.vector_store %arg8[%c0_22, %c0_23], %52 {strides = array<i32>} : memref<128x1xf32, #tpu.memory_space<vmem>>, vector<128x1xf32>,
        %c0_24 = arith.constant 0 : index
        %c0_25 = arith.constant 0 : index
        %57 = vector.load %arg9[%c0_24, %c0_25] : memref<128x1xf32, #tpu.memory_space<vmem>>, vector<128x1xf32>
        tpu.vector_store %arg9[%c0_24, %c0_25], %55 {strides = array<i32>} : memref<128x1xf32, #tpu.memory_space<vmem>>, vector<128x1xf32>,
      } else {
      }
      %c128_i32 = arith.constant 128 : i32
      %9 = arith.muli %arg1, %c128_i32 : i32
      %10 = tpu.assume_multiple %9, 128 : i32
      %c0 = arith.constant 0 : index
      %11 = arith.index_cast %10 : i32 to index
      %12 = vector.load %arg7[%c0, %11] : memref<128x128xf32, #tpu.memory_space<vmem>>, vector<128x128xf32>
      %c0_4 = arith.constant 0 : index
      %c0_5 = arith.constant 0 : index
      %13 = vector.load %arg8[%c0_4, %c0_5] : memref<128x1xf32, #tpu.memory_space<vmem>>, vector<128x1xf32>
      %14 = vector.broadcast %13 : vector<128x1xf32> to vector<128x128xf32>
      %15 = arith.mulf %12, %14 : vector<128x128xf32>
      %c0_6 = arith.constant 0 : index
      %c0_7 = arith.constant 0 : index
      %16 = vector.load %arg9[%c0_6, %c0_7] : memref<128x1xf32, #tpu.memory_space<vmem>>, vector<128x1xf32>
      %17 = vector.broadcast %16 : vector<128x1xf32> to vector<128x128xf32>
      %18 = arith.addf %15, %17 : vector<128x128xf32>
      %cst = arith.constant 0.000000e+00 : f32
      %19 = vector.broadcast %cst : f32 to vector<128x128xf32>
      %20 = arith.maximumf %18, %19 : vector<128x128xf32>
      %c0_8 = arith.constant 0 : index
      %c0_9 = arith.constant 0 : index
      %21 = vector.load %arg6[%c0_8, %c0_9] : memref<128x128xf32, #tpu.memory_space<vmem>>, vector<128x128xf32>
      tpu.vector_store %arg6[%c0_8, %c0_9], %20 {strides = array<i32>} : memref<128x128xf32, #tpu.memory_space<vmem>>, vector<128x128xf32>,
    } else {
    }
    return
  }
  func.func @transform_0(%arg0: i32, %arg1: i32) -> (i32, i32) {
    %c0_i32 = arith.constant 0 : i32
    %c0_i32_0 = arith.constant 0 : i32
    %c0_i32_1 = arith.constant 0 : i32
    return %c0_i32, %c0_i32_0 : i32, i32
  }
  func.func @transform_1(%arg0: i32, %arg1: i32) -> (i32, i32) {
    %c1_i32 = arith.constant 1 : i32
    %0 = arith.subi %c1_i32, %arg0 : i32
    %1 = arith.muli %arg1, %0 : i32
    %c0_i32 = arith.constant 0 : i32
    %c0_i32_0 = arith.constant 0 : i32
    return %c0_i32, %1 : i32, i32
  }
  func.func @transform_2(%arg0: i32, %arg1: i32) -> (i32, i32) {
    %c0_i32 = arith.constant 0 : i32
    %c0_i32_0 = arith.constant 0 : i32
    %c0_i32_1 = arith.constant 0 : i32
    return %c0_i32, %c0_i32_0 : i32, i32
  }
  func.func @transform_3(%arg0: i32, %arg1: i32) -> (i32, i32) {
    %c0_i32 = arith.constant 0 : i32
    %c0_i32_0 = arith.constant 0 : i32
    %c0_i32_1 = arith.constant 0 : i32
    return %c0_i32, %c0_i32_0 : i32, i32
  }
  func.func @transform_4(%arg0: i32, %arg1: i32) -> (i32, i32) {
    %0 = arith.muli %arg1, %arg0 : i32
    %c0_i32 = arith.constant 0 : i32
    %c0_i32_0 = arith.constant 0 : i32
    return %c0_i32, %0 : i32, i32
  }
}

module attributes {stable_mosaic.version = 11 : i64} {
  func.func @_fused_conv_bn_act_kernel(%arg0: i32, %arg1: i32, %arg2: memref<64x288xf32, #tpu.memory_space<vmem>>, %arg3: memref<288x128xf32, #tpu.memory_space<vmem>>, %arg4: memref<64x1xf32, #tpu.memory_space<vmem>>, %arg5: memref<64x1xf32, #tpu.memory_space<vmem>>, %arg6: memref<64x128xf32, #tpu.memory_space<vmem>>, %arg7: memref<64x128xf32, #tpu.memory_space<vmem>>, %arg8: memref<64x1xf32, #tpu.memory_space<vmem>>, %arg9: memref<64x1xf32, #tpu.memory_space<vmem>>) attributes {dimension_semantics = [#tpu.dimension_semantics<arbitrary>, #tpu.dimension_semantics<arbitrary>], iteration_bounds = array<i64: 2, 1>, scalar_prefetch = 0 : i64, scratch_operands = 3 : i64, tpu.core_type = #tpu.core_type<tc>, window_params = [{pipeline_mode = #tpu.pipeline_mode<synchronous>, transform_indices = @transform_0, window_bounds = array<i64: 64, 288>}, {transform_indices = @transform_1, window_bounds = array<i64: 288, 128>}, {pipeline_mode = #tpu.pipeline_mode<synchronous>, transform_indices = @transform_2, window_bounds = array<i64: 64, 1>}, {pipeline_mode = #tpu.pipeline_mode<synchronous>, transform_indices = @transform_3, window_bounds = array<i64: 64, 1>}, {transform_indices = @transform_4, window_bounds = array<i64: 64, 128>}]} {
    %c0_i32 = arith.constant 0 : i32
    %0 = arith.cmpi eq, %arg0, %c0_i32 : i32
    %1 = arith.extui %0 : i1 to i32
    %c0_i32_0 = arith.constant 0 : i32
    %2 = arith.cmpi ne, %1, %c0_i32_0 : i32
    scf.if %2 {
      %c0_i32_2 = arith.constant 0 : i32
      %6 = arith.cmpi eq, %arg1, %c0_i32_2 : i32
      %7 = arith.extui %6 : i1 to i32
      %c0_i32_3 = arith.constant 0 : i32
      %8 = arith.cmpi ne, %7, %c0_i32_3 : i32
      scf.if %8 {
        %cst_18 = arith.constant 0.000000e+00 : f32
        %27 = vector.broadcast %cst_18 : f32 to vector<64x1xf32>
        %c0_19 = arith.constant 0 : index
        %c0_20 = arith.constant 0 : index
        %28 = vector.load %arg8[%c0_19, %c0_20] : memref<64x1xf32, #tpu.memory_space<vmem>>, vector<64x1xf32>
        tpu.vector_store %arg8[%c0_19, %c0_20], %27 {strides = array<i32>} : memref<64x1xf32, #tpu.memory_space<vmem>>, vector<64x1xf32>,
        %cst_21 = arith.constant 0.000000e+00 : f32
        %29 = vector.broadcast %cst_21 : f32 to vector<64x1xf32>
        %c0_22 = arith.constant 0 : index
        %c0_23 = arith.constant 0 : index
        %30 = vector.load %arg9[%c0_22, %c0_23] : memref<64x1xf32, #tpu.memory_space<vmem>>, vector<64x1xf32>
        tpu.vector_store %arg9[%c0_22, %c0_23], %29 {strides = array<i32>} : memref<64x1xf32, #tpu.memory_space<vmem>>, vector<64x1xf32>,
      } else {
      }
      %c0 = arith.constant 0 : index
      %c0_4 = arith.constant 0 : index
      %9 = vector.load %arg2[%c0, %c0_4] : memref<64x288xf32, #tpu.memory_space<vmem>>, vector<64x288xf32>
      %c0_5 = arith.constant 0 : index
      %c0_6 = arith.constant 0 : index
      %10 = vector.load %arg3[%c0_5, %c0_6] : memref<288x128xf32, #tpu.memory_space<vmem>>, vector<288x128xf32>
      %cst = arith.constant dense<0.000000e+00> : vector<64x128xf32>
      %11 = tpu.matmul %9, %10, %cst {dimension_numbers = #tpu.dot_dimension_numbers<[1], [0], [0], [1], [0, 0, 1, 1], [], []>} : vector<64x288xf32>, vector<288x128xf32>, vector<64x128xf32> -> vector<64x128xf32>
      %c128_i32 = arith.constant 128 : i32
      %12 = arith.muli %arg1, %c128_i32 : i32
      %13 = tpu.assume_multiple %12, 128 : i32
      %c0_7 = arith.constant 0 : index
      %14 = arith.index_cast %13 : i32 to index
      %15 = vector.load %arg7[%c0_7, %14] : memref<64x128xf32, #tpu.memory_space<vmem>>, vector<64x128xf32>
      tpu.vector_store %arg7[%c0_7, %14], %11 {strides = array<i32>} : memref<64x128xf32, #tpu.memory_space<vmem>>, vector<64x128xf32>,
      %c0_8 = arith.constant 0 : index
      %c0_9 = arith.constant 0 : index
      %16 = vector.load %arg8[%c0_8, %c0_9] : memref<64x1xf32, #tpu.memory_space<vmem>>, vector<64x1xf32>
      %cst_10 = arith.constant dense<0.000000e+00> : vector<64xf32>
      %17 = vector.multi_reduction <add>, %11, %cst_10 [1] : vector<64x128xf32> to vector<64xf32>
      %18 = vector.shape_cast %17 : vector<64xf32> to vector<64x1xf32>
      %19 = arith.addf %16, %18 : vector<64x1xf32>
      %c0_11 = arith.constant 0 : index
      %c0_12 = arith.constant 0 : index
      %20 = vector.load %arg8[%c0_11, %c0_12] : memref<64x1xf32, #tpu.memory_space<vmem>>, vector<64x1xf32>
      tpu.vector_store %arg8[%c0_11, %c0_12], %19 {strides = array<i32>} : memref<64x1xf32, #tpu.memory_space<vmem>>, vector<64x1xf32>,
      %c0_13 = arith.constant 0 : index
      %c0_14 = arith.constant 0 : index
      %21 = vector.load %arg9[%c0_13, %c0_14] : memref<64x1xf32, #tpu.memory_space<vmem>>, vector<64x1xf32>
      %22 = arith.mulf %11, %11 : vector<64x128xf32>
      %cst_15 = arith.constant dense<0.000000e+00> : vector<64xf32>
      %23 = vector.multi_reduction <add>, %22, %cst_15 [1] : vector<64x128xf32> to vector<64xf32>
      %24 = vector.shape_cast %23 : vector<64xf32> to vector<64x1xf32>
      %25 = arith.addf %21, %24 : vector<64x1xf32>
      %c0_16 = arith.constant 0 : index
      %c0_17 = arith.constant 0 : index
      %26 = vector.load %arg9[%c0_16, %c0_17] : memref<64x1xf32, #tpu.memory_space<vmem>>, vector<64x1xf32>
      tpu.vector_store %arg9[%c0_16, %c0_17], %25 {strides = array<i32>} : memref<64x1xf32, #tpu.memory_space<vmem>>, vector<64x1xf32>,
    } else {
    }
    %c1_i32 = arith.constant 1 : i32
    %3 = arith.cmpi eq, %arg0, %c1_i32 : i32
    %4 = arith.extui %3 : i1 to i32
    %c0_i32_1 = arith.constant 0 : i32
    %5 = arith.cmpi ne, %4, %c0_i32_1 : i32
    scf.if %5 {
      %c0_i32_2 = arith.constant 0 : i32
      %6 = arith.cmpi eq, %arg1, %c0_i32_2 : i32
      %7 = arith.extui %6 : i1 to i32
      %c0_i32_3 = arith.constant 0 : i32
      %8 = arith.cmpi ne, %7, %c0_i32_3 : i32
      scf.if %8 {
        %c0_10 = arith.constant 0 : index
        %c0_11 = arith.constant 0 : index
        %22 = vector.load %arg8[%c0_10, %c0_11] : memref<64x1xf32, #tpu.memory_space<vmem>>, vector<64x1xf32>
        %c0_12 = arith.constant 0 : index
        %c0_13 = arith.constant 0 : index
        %23 = vector.load %arg9[%c0_12, %c0_13] : memref<64x1xf32, #tpu.memory_space<vmem>>, vector<64x1xf32>
        %24 = vector.extract_strided_slice %22 {offsets = [0, 0], sizes = [16, 1], strides = [1, 1]} : vector<64x1xf32> to vector<16x1xf32>
        %25 = vector.extract_strided_slice %22 {offsets = [16, 0], sizes = [16, 1], strides = [1, 1]} : vector<64x1xf32> to vector<16x1xf32>
        %26 = arith.addf %24, %25 : vector<16x1xf32>
        %27 = vector.extract_strided_slice %22 {offsets = [32, 0], sizes = [16, 1], strides = [1, 1]} : vector<64x1xf32> to vector<16x1xf32>
        %28 = arith.addf %26, %27 : vector<16x1xf32>
        %29 = vector.extract_strided_slice %22 {offsets = [48, 0], sizes = [16, 1], strides = [1, 1]} : vector<64x1xf32> to vector<16x1xf32>
        %30 = arith.addf %28, %29 : vector<16x1xf32>
        %31 = vector.extract_strided_slice %23 {offsets = [0, 0], sizes = [16, 1], strides = [1, 1]} : vector<64x1xf32> to vector<16x1xf32>
        %32 = vector.extract_strided_slice %23 {offsets = [16, 0], sizes = [16, 1], strides = [1, 1]} : vector<64x1xf32> to vector<16x1xf32>
        %33 = arith.addf %31, %32 : vector<16x1xf32>
        %34 = vector.extract_strided_slice %23 {offsets = [32, 0], sizes = [16, 1], strides = [1, 1]} : vector<64x1xf32> to vector<16x1xf32>
        %35 = arith.addf %33, %34 : vector<16x1xf32>
        %36 = vector.extract_strided_slice %23 {offsets = [48, 0], sizes = [16, 1], strides = [1, 1]} : vector<64x1xf32> to vector<16x1xf32>
        %37 = arith.addf %35, %36 : vector<16x1xf32>
        %38 = tpu.concatenate %30, %30, %30, %30 in 0 : vector<16x1xf32>, vector<16x1xf32>, vector<16x1xf32>, vector<16x1xf32> -> vector<64x1xf32>
        %39 = tpu.concatenate %37, %37, %37, %37 in 0 : vector<16x1xf32>, vector<16x1xf32>, vector<16x1xf32>, vector<16x1xf32> -> vector<64x1xf32>
        %cst_14 = arith.constant 0.001953125 : f32
        %40 = vector.broadcast %cst_14 : f32 to vector<64x1xf32>
        %41 = arith.mulf %38, %40 : vector<64x1xf32>
        %cst_15 = arith.constant 0.001953125 : f32
        %42 = vector.broadcast %cst_15 : f32 to vector<64x1xf32>
        %43 = arith.mulf %39, %42 : vector<64x1xf32>
        %44 = arith.mulf %41, %41 : vector<64x1xf32>
        %45 = arith.subf %43, %44 : vector<64x1xf32>
        %cst_16 = arith.constant 0.000000e+00 : f32
        %46 = vector.broadcast %cst_16 : f32 to vector<64x1xf32>
        %47 = arith.maximumf %45, %46 : vector<64x1xf32>
        %c0_17 = arith.constant 0 : index
        %c0_18 = arith.constant 0 : index
        %48 = vector.load %arg4[%c0_17, %c0_18] : memref<64x1xf32, #tpu.memory_space<vmem>>, vector<64x1xf32>
        %cst_19 = arith.constant 9.99999974E-6 : f32
        %49 = vector.broadcast %cst_19 : f32 to vector<64x1xf32>
        %50 = arith.addf %47, %49 : vector<64x1xf32>
        %51 = math.rsqrt %50 : vector<64x1xf32>
        %52 = arith.mulf %48, %51 : vector<64x1xf32>
        %c0_20 = arith.constant 0 : index
        %c0_21 = arith.constant 0 : index
        %53 = vector.load %arg5[%c0_20, %c0_21] : memref<64x1xf32, #tpu.memory_space<vmem>>, vector<64x1xf32>
        %54 = arith.mulf %41, %52 : vector<64x1xf32>
        %55 = arith.subf %53, %54 : vector<64x1xf32>
        %c0_22 = arith.constant 0 : index
        %c0_23 = arith.constant 0 : index
        %56 = vector.load %arg8[%c0_22, %c0_23] : memref<64x1xf32, #tpu.memory_space<vmem>>, vector<64x1xf32>
        tpu.vector_store %arg8[%c0_22, %c0_23], %52 {strides = array<i32>} : memref<64x1xf32, #tpu.memory_space<vmem>>, vector<64x1xf32>,
        %c0_24 = arith.constant 0 : index
        %c0_25 = arith.constant 0 : index
        %57 = vector.load %arg9[%c0_24, %c0_25] : memref<64x1xf32, #tpu.memory_space<vmem>>, vector<64x1xf32>
        tpu.vector_store %arg9[%c0_24, %c0_25], %55 {strides = array<i32>} : memref<64x1xf32, #tpu.memory_space<vmem>>, vector<64x1xf32>,
      } else {
      }
      %c128_i32 = arith.constant 128 : i32
      %9 = arith.muli %arg1, %c128_i32 : i32
      %10 = tpu.assume_multiple %9, 128 : i32
      %c0 = arith.constant 0 : index
      %11 = arith.index_cast %10 : i32 to index
      %12 = vector.load %arg7[%c0, %11] : memref<64x128xf32, #tpu.memory_space<vmem>>, vector<64x128xf32>
      %c0_4 = arith.constant 0 : index
      %c0_5 = arith.constant 0 : index
      %13 = vector.load %arg8[%c0_4, %c0_5] : memref<64x1xf32, #tpu.memory_space<vmem>>, vector<64x1xf32>
      %14 = vector.broadcast %13 : vector<64x1xf32> to vector<64x128xf32>
      %15 = arith.mulf %12, %14 : vector<64x128xf32>
      %c0_6 = arith.constant 0 : index
      %c0_7 = arith.constant 0 : index
      %16 = vector.load %arg9[%c0_6, %c0_7] : memref<64x1xf32, #tpu.memory_space<vmem>>, vector<64x1xf32>
      %17 = vector.broadcast %16 : vector<64x1xf32> to vector<64x128xf32>
      %18 = arith.addf %15, %17 : vector<64x128xf32>
      %cst = arith.constant 0.000000e+00 : f32
      %19 = vector.broadcast %cst : f32 to vector<64x128xf32>
      %20 = arith.maximumf %18, %19 : vector<64x128xf32>
      %c0_8 = arith.constant 0 : index
      %c0_9 = arith.constant 0 : index
      %21 = vector.load %arg6[%c0_8, %c0_9] : memref<64x128xf32, #tpu.memory_space<vmem>>, vector<64x128xf32>
      tpu.vector_store %arg6[%c0_8, %c0_9], %20 {strides = array<i32>} : memref<64x128xf32, #tpu.memory_space<vmem>>, vector<64x128xf32>,
    } else {
    }
    return
  }
  func.func @transform_0(%arg0: i32, %arg1: i32) -> (i32, i32) {
    %c0_i32 = arith.constant 0 : i32
    %c0_i32_0 = arith.constant 0 : i32
    %c0_i32_1 = arith.constant 0 : i32
    return %c0_i32, %c0_i32_0 : i32, i32
  }
  func.func @transform_1(%arg0: i32, %arg1: i32) -> (i32, i32) {
    %c1_i32 = arith.constant 1 : i32
    %0 = arith.subi %c1_i32, %arg0 : i32
    %1 = arith.muli %arg1, %0 : i32
    %c0_i32 = arith.constant 0 : i32
    %c0_i32_0 = arith.constant 0 : i32
    return %c0_i32, %1 : i32, i32
  }
  func.func @transform_2(%arg0: i32, %arg1: i32) -> (i32, i32) {
    %c0_i32 = arith.constant 0 : i32
    %c0_i32_0 = arith.constant 0 : i32
    %c0_i32_1 = arith.constant 0 : i32
    return %c0_i32, %c0_i32_0 : i32, i32
  }
  func.func @transform_3(%arg0: i32, %arg1: i32) -> (i32, i32) {
    %c0_i32 = arith.constant 0 : i32
    %c0_i32_0 = arith.constant 0 : i32
    %c0_i32_1 = arith.constant 0 : i32
    return %c0_i32, %c0_i32_0 : i32, i32
  }
  func.func @transform_4(%arg0: i32, %arg1: i32) -> (i32, i32) {
    %0 = arith.muli %arg1, %arg0 : i32
    %c0_i32 = arith.constant 0 : i32
    %c0_i32_0 = arith.constant 0 : i32
    return %c0_i32, %0 : i32, i32
  }
}

module attributes {stable_mosaic.version = 11 : i64} {
  func.func @_fused_conv_bn_act_kernel(%arg0: i32, %arg1: i32, %arg2: memref<32x144xf32, #tpu.memory_space<vmem>>, %arg3: memref<144x512xf32, #tpu.memory_space<vmem>>, %arg4: memref<32x1xf32, #tpu.memory_space<vmem>>, %arg5: memref<32x1xf32, #tpu.memory_space<vmem>>, %arg6: memref<32x512xf32, #tpu.memory_space<vmem>>, %arg7: memref<32x512xf32, #tpu.memory_space<vmem>>, %arg8: memref<32x1xf32, #tpu.memory_space<vmem>>, %arg9: memref<32x1xf32, #tpu.memory_space<vmem>>) attributes {dimension_semantics = [#tpu.dimension_semantics<arbitrary>, #tpu.dimension_semantics<arbitrary>], iteration_bounds = array<i64: 2, 1>, scalar_prefetch = 0 : i64, scratch_operands = 3 : i64, tpu.core_type = #tpu.core_type<tc>, window_params = [{pipeline_mode = #tpu.pipeline_mode<synchronous>, transform_indices = @transform_0, window_bounds = array<i64: 32, 144>}, {transform_indices = @transform_1, window_bounds = array<i64: 144, 512>}, {pipeline_mode = #tpu.pipeline_mode<synchronous>, transform_indices = @transform_2, window_bounds = array<i64: 32, 1>}, {pipeline_mode = #tpu.pipeline_mode<synchronous>, transform_indices = @transform_3, window_bounds = array<i64: 32, 1>}, {transform_indices = @transform_4, window_bounds = array<i64: 32, 512>}]} {
    %c0_i32 = arith.constant 0 : i32
    %0 = arith.cmpi eq, %arg0, %c0_i32 : i32
    %1 = arith.extui %0 : i1 to i32
    %c0_i32_0 = arith.constant 0 : i32
    %2 = arith.cmpi ne, %1, %c0_i32_0 : i32
    scf.if %2 {
      %c0_i32_2 = arith.constant 0 : i32
      %6 = arith.cmpi eq, %arg1, %c0_i32_2 : i32
      %7 = arith.extui %6 : i1 to i32
      %c0_i32_3 = arith.constant 0 : i32
      %8 = arith.cmpi ne, %7, %c0_i32_3 : i32
      scf.if %8 {
        %cst_18 = arith.constant 0.000000e+00 : f32
        %27 = vector.broadcast %cst_18 : f32 to vector<32x1xf32>
        %c0_19 = arith.constant 0 : index
        %c0_20 = arith.constant 0 : index
        %28 = vector.load %arg8[%c0_19, %c0_20] : memref<32x1xf32, #tpu.memory_space<vmem>>, vector<32x1xf32>
        tpu.vector_store %arg8[%c0_19, %c0_20], %27 {strides = array<i32>} : memref<32x1xf32, #tpu.memory_space<vmem>>, vector<32x1xf32>,
        %cst_21 = arith.constant 0.000000e+00 : f32
        %29 = vector.broadcast %cst_21 : f32 to vector<32x1xf32>
        %c0_22 = arith.constant 0 : index
        %c0_23 = arith.constant 0 : index
        %30 = vector.load %arg9[%c0_22, %c0_23] : memref<32x1xf32, #tpu.memory_space<vmem>>, vector<32x1xf32>
        tpu.vector_store %arg9[%c0_22, %c0_23], %29 {strides = array<i32>} : memref<32x1xf32, #tpu.memory_space<vmem>>, vector<32x1xf32>,
      } else {
      }
      %c0 = arith.constant 0 : index
      %c0_4 = arith.constant 0 : index
      %9 = vector.load %arg2[%c0, %c0_4] : memref<32x144xf32, #tpu.memory_space<vmem>>, vector<32x144xf32>
      %c0_5 = arith.constant 0 : index
      %c0_6 = arith.constant 0 : index
      %10 = vector.load %arg3[%c0_5, %c0_6] : memref<144x512xf32, #tpu.memory_space<vmem>>, vector<144x512xf32>
      %cst = arith.constant dense<0.000000e+00> : vector<32x512xf32>
      %11 = tpu.matmul %9, %10, %cst {dimension_numbers = #tpu.dot_dimension_numbers<[1], [0], [0], [1], [0, 0, 1, 1], [], []>} : vector<32x144xf32>, vector<144x512xf32>, vector<32x512xf32> -> vector<32x512xf32>
      %c512_i32 = arith.constant 512 : i32
      %12 = arith.muli %arg1, %c512_i32 : i32
      %13 = tpu.assume_multiple %12, 512 : i32
      %c0_7 = arith.constant 0 : index
      %14 = arith.index_cast %13 : i32 to index
      %15 = vector.load %arg7[%c0_7, %14] : memref<32x512xf32, #tpu.memory_space<vmem>>, vector<32x512xf32>
      tpu.vector_store %arg7[%c0_7, %14], %11 {strides = array<i32>} : memref<32x512xf32, #tpu.memory_space<vmem>>, vector<32x512xf32>,
      %c0_8 = arith.constant 0 : index
      %c0_9 = arith.constant 0 : index
      %16 = vector.load %arg8[%c0_8, %c0_9] : memref<32x1xf32, #tpu.memory_space<vmem>>, vector<32x1xf32>
      %cst_10 = arith.constant dense<0.000000e+00> : vector<32xf32>
      %17 = vector.multi_reduction <add>, %11, %cst_10 [1] : vector<32x512xf32> to vector<32xf32>
      %18 = vector.shape_cast %17 : vector<32xf32> to vector<32x1xf32>
      %19 = arith.addf %16, %18 : vector<32x1xf32>
      %c0_11 = arith.constant 0 : index
      %c0_12 = arith.constant 0 : index
      %20 = vector.load %arg8[%c0_11, %c0_12] : memref<32x1xf32, #tpu.memory_space<vmem>>, vector<32x1xf32>
      tpu.vector_store %arg8[%c0_11, %c0_12], %19 {strides = array<i32>} : memref<32x1xf32, #tpu.memory_space<vmem>>, vector<32x1xf32>,
      %c0_13 = arith.constant 0 : index
      %c0_14 = arith.constant 0 : index
      %21 = vector.load %arg9[%c0_13, %c0_14] : memref<32x1xf32, #tpu.memory_space<vmem>>, vector<32x1xf32>
      %22 = arith.mulf %11, %11 : vector<32x512xf32>
      %cst_15 = arith.constant dense<0.000000e+00> : vector<32xf32>
      %23 = vector.multi_reduction <add>, %22, %cst_15 [1] : vector<32x512xf32> to vector<32xf32>
      %24 = vector.shape_cast %23 : vector<32xf32> to vector<32x1xf32>
      %25 = arith.addf %21, %24 : vector<32x1xf32>
      %c0_16 = arith.constant 0 : index
      %c0_17 = arith.constant 0 : index
      %26 = vector.load %arg9[%c0_16, %c0_17] : memref<32x1xf32, #tpu.memory_space<vmem>>, vector<32x1xf32>
      tpu.vector_store %arg9[%c0_16, %c0_17], %25 {strides = array<i32>} : memref<32x1xf32, #tpu.memory_space<vmem>>, vector<32x1xf32>,
    } else {
    }
    %c1_i32 = arith.constant 1 : i32
    %3 = arith.cmpi eq, %arg0, %c1_i32 : i32
    %4 = arith.extui %3 : i1 to i32
    %c0_i32_1 = arith.constant 0 : i32
    %5 = arith.cmpi ne, %4, %c0_i32_1 : i32
    scf.if %5 {
      %c0_i32_2 = arith.constant 0 : i32
      %6 = arith.cmpi eq, %arg1, %c0_i32_2 : i32
      %7 = arith.extui %6 : i1 to i32
      %c0_i32_3 = arith.constant 0 : i32
      %8 = arith.cmpi ne, %7, %c0_i32_3 : i32
      scf.if %8 {
        %c0_10 = arith.constant 0 : index
        %c0_11 = arith.constant 0 : index
        %22 = vector.load %arg8[%c0_10, %c0_11] : memref<32x1xf32, #tpu.memory_space<vmem>>, vector<32x1xf32>
        %c0_12 = arith.constant 0 : index
        %c0_13 = arith.constant 0 : index
        %23 = vector.load %arg9[%c0_12, %c0_13] : memref<32x1xf32, #tpu.memory_space<vmem>>, vector<32x1xf32>
        %24 = vector.extract_strided_slice %22 {offsets = [0, 0], sizes = [8, 1], strides = [1, 1]} : vector<32x1xf32> to vector<8x1xf32>
        %25 = vector.extract_strided_slice %22 {offsets = [8, 0], sizes = [8, 1], strides = [1, 1]} : vector<32x1xf32> to vector<8x1xf32>
        %26 = arith.addf %24, %25 : vector<8x1xf32>
        %27 = vector.extract_strided_slice %22 {offsets = [16, 0], sizes = [8, 1], strides = [1, 1]} : vector<32x1xf32> to vector<8x1xf32>
        %28 = arith.addf %26, %27 : vector<8x1xf32>
        %29 = vector.extract_strided_slice %22 {offsets = [24, 0], sizes = [8, 1], strides = [1, 1]} : vector<32x1xf32> to vector<8x1xf32>
        %30 = arith.addf %28, %29 : vector<8x1xf32>
        %31 = vector.extract_strided_slice %23 {offsets = [0, 0], sizes = [8, 1], strides = [1, 1]} : vector<32x1xf32> to vector<8x1xf32>
        %32 = vector.extract_strided_slice %23 {offsets = [8, 0], sizes = [8, 1], strides = [1, 1]} : vector<32x1xf32> to vector<8x1xf32>
        %33 = arith.addf %31, %32 : vector<8x1xf32>
        %34 = vector.extract_strided_slice %23 {offsets = [16, 0], sizes = [8, 1], strides = [1, 1]} : vector<32x1xf32> to vector<8x1xf32>
        %35 = arith.addf %33, %34 : vector<8x1xf32>
        %36 = vector.extract_strided_slice %23 {offsets = [24, 0], sizes = [8, 1], strides = [1, 1]} : vector<32x1xf32> to vector<8x1xf32>
        %37 = arith.addf %35, %36 : vector<8x1xf32>
        %38 = tpu.concatenate %30, %30, %30, %30 in 0 : vector<8x1xf32>, vector<8x1xf32>, vector<8x1xf32>, vector<8x1xf32> -> vector<32x1xf32>
        %39 = tpu.concatenate %37, %37, %37, %37 in 0 : vector<8x1xf32>, vector<8x1xf32>, vector<8x1xf32>, vector<8x1xf32> -> vector<32x1xf32>
        %cst_14 = arith.constant 4.8828125E-4 : f32
        %40 = vector.broadcast %cst_14 : f32 to vector<32x1xf32>
        %41 = arith.mulf %38, %40 : vector<32x1xf32>
        %cst_15 = arith.constant 4.8828125E-4 : f32
        %42 = vector.broadcast %cst_15 : f32 to vector<32x1xf32>
        %43 = arith.mulf %39, %42 : vector<32x1xf32>
        %44 = arith.mulf %41, %41 : vector<32x1xf32>
        %45 = arith.subf %43, %44 : vector<32x1xf32>
        %cst_16 = arith.constant 0.000000e+00 : f32
        %46 = vector.broadcast %cst_16 : f32 to vector<32x1xf32>
        %47 = arith.maximumf %45, %46 : vector<32x1xf32>
        %c0_17 = arith.constant 0 : index
        %c0_18 = arith.constant 0 : index
        %48 = vector.load %arg4[%c0_17, %c0_18] : memref<32x1xf32, #tpu.memory_space<vmem>>, vector<32x1xf32>
        %cst_19 = arith.constant 9.99999974E-6 : f32
        %49 = vector.broadcast %cst_19 : f32 to vector<32x1xf32>
        %50 = arith.addf %47, %49 : vector<32x1xf32>
        %51 = math.rsqrt %50 : vector<32x1xf32>
        %52 = arith.mulf %48, %51 : vector<32x1xf32>
        %c0_20 = arith.constant 0 : index
        %c0_21 = arith.constant 0 : index
        %53 = vector.load %arg5[%c0_20, %c0_21] : memref<32x1xf32, #tpu.memory_space<vmem>>, vector<32x1xf32>
        %54 = arith.mulf %41, %52 : vector<32x1xf32>
        %55 = arith.subf %53, %54 : vector<32x1xf32>
        %c0_22 = arith.constant 0 : index
        %c0_23 = arith.constant 0 : index
        %56 = vector.load %arg8[%c0_22, %c0_23] : memref<32x1xf32, #tpu.memory_space<vmem>>, vector<32x1xf32>
        tpu.vector_store %arg8[%c0_22, %c0_23], %52 {strides = array<i32>} : memref<32x1xf32, #tpu.memory_space<vmem>>, vector<32x1xf32>,
        %c0_24 = arith.constant 0 : index
        %c0_25 = arith.constant 0 : index
        %57 = vector.load %arg9[%c0_24, %c0_25] : memref<32x1xf32, #tpu.memory_space<vmem>>, vector<32x1xf32>
        tpu.vector_store %arg9[%c0_24, %c0_25], %55 {strides = array<i32>} : memref<32x1xf32, #tpu.memory_space<vmem>>, vector<32x1xf32>,
      } else {
      }
      %c512_i32 = arith.constant 512 : i32
      %9 = arith.muli %arg1, %c512_i32 : i32
      %10 = tpu.assume_multiple %9, 512 : i32
      %c0 = arith.constant 0 : index
      %11 = arith.index_cast %10 : i32 to index
      %12 = vector.load %arg7[%c0, %11] : memref<32x512xf32, #tpu.memory_space<vmem>>, vector<32x512xf32>
      %c0_4 = arith.constant 0 : index
      %c0_5 = arith.constant 0 : index
      %13 = vector.load %arg8[%c0_4, %c0_5] : memref<32x1xf32, #tpu.memory_space<vmem>>, vector<32x1xf32>
      %14 = vector.broadcast %13 : vector<32x1xf32> to vector<32x512xf32>
      %15 = arith.mulf %12, %14 : vector<32x512xf32>
      %c0_6 = arith.constant 0 : index
      %c0_7 = arith.constant 0 : index
      %16 = vector.load %arg9[%c0_6, %c0_7] : memref<32x1xf32, #tpu.memory_space<vmem>>, vector<32x1xf32>
      %17 = vector.broadcast %16 : vector<32x1xf32> to vector<32x512xf32>
      %18 = arith.addf %15, %17 : vector<32x512xf32>
      %cst = arith.constant 0.000000e+00 : f32
      %19 = vector.broadcast %cst : f32 to vector<32x512xf32>
      %20 = arith.maximumf %18, %19 : vector<32x512xf32>
      %c0_8 = arith.constant 0 : index
      %c0_9 = arith.constant 0 : index
      %21 = vector.load %arg6[%c0_8, %c0_9] : memref<32x512xf32, #tpu.memory_space<vmem>>, vector<32x512xf32>
      tpu.vector_store %arg6[%c0_8, %c0_9], %20 {strides = array<i32>} : memref<32x512xf32, #tpu.memory_space<vmem>>, vector<32x512xf32>,
    } else {
    }
    return
  }
  func.func @transform_0(%arg0: i32, %arg1: i32) -> (i32, i32) {
    %c0_i32 = arith.constant 0 : i32
    %c0_i32_0 = arith.constant 0 : i32
    %c0_i32_1 = arith.constant 0 : i32
    return %c0_i32, %c0_i32_0 : i32, i32
  }
  func.func @transform_1(%arg0: i32, %arg1: i32) -> (i32, i32) {
    %c1_i32 = arith.constant 1 : i32
    %0 = arith.subi %c1_i32, %arg0 : i32
    %1 = arith.muli %arg1, %0 : i32
    %c0_i32 = arith.constant 0 : i32
    %c0_i32_0 = arith.constant 0 : i32
    return %c0_i32, %1 : i32, i32
  }
  func.func @transform_2(%arg0: i32, %arg1: i32) -> (i32, i32) {
    %c0_i32 = arith.constant 0 : i32
    %c0_i32_0 = arith.constant 0 : i32
    %c0_i32_1 = arith.constant 0 : i32
    return %c0_i32, %c0_i32_0 : i32, i32
  }
  func.func @transform_3(%arg0: i32, %arg1: i32) -> (i32, i32) {
    %c0_i32 = arith.constant 0 : i32
    %c0_i32_0 = arith.constant 0 : i32
    %c0_i32_1 = arith.constant 0 : i32
    return %c0_i32, %c0_i32_0 : i32, i32
  }
  func.func @transform_4(%arg0: i32, %arg1: i32) -> (i32, i32) {
    %0 = arith.muli %arg1, %arg0 : i32
    %c0_i32 = arith.constant 0 : i32
    %c0_i32_0 = arith.constant 0 : i32
    return %c0_i32, %0 : i32, i32
  }
}

module attributes {stable_mosaic.version = 11 : i64} {
  func.func @_fused_conv_bn_act_kernel(%arg0: i32, %arg1: i32, %arg2: memref<32x72xf32, #tpu.memory_space<vmem>>, %arg3: memref<72x2048xf32, #tpu.memory_space<vmem>>, %arg4: memref<32x1xf32, #tpu.memory_space<vmem>>, %arg5: memref<32x1xf32, #tpu.memory_space<vmem>>, %arg6: memref<32x2048xf32, #tpu.memory_space<vmem>>, %arg7: memref<8x128xf32, #tpu.memory_space<vmem>>, %arg8: memref<32x1xf32, #tpu.memory_space<vmem>>, %arg9: memref<32x1xf32, #tpu.memory_space<vmem>>) attributes {dimension_semantics = [#tpu.dimension_semantics<arbitrary>, #tpu.dimension_semantics<parallel>], iteration_bounds = array<i64: 1, 1>, scalar_prefetch = 0 : i64, scratch_operands = 3 : i64, tpu.core_type = #tpu.core_type<tc>, window_params = [{pipeline_mode = #tpu.pipeline_mode<synchronous>, transform_indices = @transform_0, window_bounds = array<i64: 32, 72>}, {transform_indices = @transform_1, window_bounds = array<i64: 72, 2048>}, {pipeline_mode = #tpu.pipeline_mode<synchronous>, transform_indices = @transform_2, window_bounds = array<i64: 32, 1>}, {pipeline_mode = #tpu.pipeline_mode<synchronous>, transform_indices = @transform_3, window_bounds = array<i64: 32, 1>}, {transform_indices = @transform_4, window_bounds = array<i64: 32, 2048>}]} {
    %c0 = arith.constant 0 : index
    %c0_0 = arith.constant 0 : index
    %0 = vector.load %arg2[%c0, %c0_0] : memref<32x72xf32, #tpu.memory_space<vmem>>, vector<32x72xf32>
    %c0_1 = arith.constant 0 : index
    %c0_2 = arith.constant 0 : index
    %1 = vector.load %arg3[%c0_1, %c0_2] : memref<72x2048xf32, #tpu.memory_space<vmem>>, vector<72x2048xf32>
    %cst = arith.constant dense<0.000000e+00> : vector<32x2048xf32>
    %2 = tpu.matmul %0, %1, %cst {dimension_numbers = #tpu.dot_dimension_numbers<[1], [0], [0], [1], [0, 0, 1, 1], [], []>} : vector<32x72xf32>, vector<72x2048xf32>, vector<32x2048xf32> -> vector<32x2048xf32>
    %3 = math.tanh %2 : vector<32x2048xf32>
    %c0_3 = arith.constant 0 : index
    %c0_4 = arith.constant 0 : index
    %4 = vector.load %arg6[%c0_3, %c0_4] : memref<32x2048xf32, #tpu.memory_space<vmem>>, vector<32x2048xf32>
    tpu.vector_store %arg6[%c0_3, %c0_4], %3 {strides = array<i32>} : memref<32x2048xf32, #tpu.memory_space<vmem>>, vector<32x2048xf32>,
    return
  }
  func.func @transform_0(%arg0: i32, %arg1: i32) -> (i32, i32) {
    %c0_i32 = arith.constant 0 : i32
    %c0_i32_0 = arith.constant 0 : i32
    %c0_i32_1 = arith.constant 0 : i32
    return %c0_i32, %c0_i32_0 : i32, i32
  }
  func.func @transform_1(%arg0: i32, %arg1: i32) -> (i32, i32) {
    %c0_i32 = arith.constant 0 : i32
    %c0_i32_0 = arith.constant 0 : i32
    return %c0_i32, %arg1 : i32, i32
  }
  func.func @transform_2(%arg0: i32, %arg1: i32) -> (i32, i32) {
    %c0_i32 = arith.constant 0 : i32
    %c0_i32_0 = arith.constant 0 : i32
    %c0_i32_1 = arith.constant 0 : i32
    return %c0_i32, %c0_i32_0 : i32, i32
  }
  func.func @transform_3(%arg0: i32, %arg1: i32) -> (i32, i32) {
    %c0_i32 = arith.constant 0 : i32
    %c0_i32_0 = arith.constant 0 : i32
    %c0_i32_1 = arith.constant 0 : i32
    return %c0_i32, %c0_i32_0 : i32, i32
  }
  func.func @transform_4(%arg0: i32, %arg1: i32) -> (i32, i32) {
    %c0_i32 = arith.constant 0 : i32
    %c0_i32_0 = arith.constant 0 : i32
    return %c0_i32, %arg1 : i32, i32
  }
}

</mosaic_0001>

<llo_original>
// kernel: tile.53
$region0: #{tile.53}
  #allocation0 [shape = 's32[1]{0}', space=sflag, size = 0x4, scoped, tag = 'scoped memory for tile.53']
  %s0 = inlined_call_operand.vmem [shape: f32[64], index: 0, kind: input, shape index: {}]
  %s1 = inlined_call_operand.vmem [shape: f32[16,64], index: 1, kind: output, shape index: {}]
  // Predicated region
  $region2: #{tile.53} parent=0 // pred_check
    _
  $region3: #{tile.53} parent=0 // pred_check_branch
    %3 = sbr.rel (0) target = $region5
  $region4: #{tile.53} parent=0 // pred_region
    _
  $region5: #{tile.53} parent=0 // pred_fallthru
    _
  %v4 = vld [vmem:[%s0] ss:$0 sm:$0xff]
  %5 = vst [vmem:[%s1] sm:$0xff] %v4
  %s6 = scalar_lea.vmem %s1, 8
  %7 = vst [vmem:[%s6] sm:$0xff] %v4

// kernel: tile.54
$region0: #{tile.54}
  %s0 = inlined_call_operand.vmem [shape: f32[16,64], index: 0, kind: input, shape index: {}]
  %s1 = inlined_call_operand.vmem [shape: f32[1,1024], index: 1, kind: output, shape index: {}]
  $region1: #{tile.54} parent=0
    #allocation0 [shape = 'u8[32768]{0}', space=vmem, size = 0x8000, scoped, tag = 'scoped mem for output reshape']
    %v2 = vld [vmem:[%s0] ss:$2 sm:$0xff]
    %vm3 = vcmask 523264
    %4 = vst.msk [vmem:[#allocation0] ss:$8 sm:$0xf] %vm3, %v2
    %5 = vst.msk [vmem:[#allocation0] ss:$8 sm:$0xf0] %vm3, %v2
    %s6 = scalar_lea.vmem %s0, 1
    %v7 = vld [vmem:[%s6] ss:$2 sm:$0xff]
    %8 = vrot.lane.b32.xlu0 %v7, 64
    %v9 = vpop.permute.xlu0 %8
    %vm10 = vcmask 1048064
    %11 = vst.msk [vmem:[#allocation0] ss:$8 sm:$0xf] %vm10, %v9
    %12 = vst.msk [vmem:[#allocation0] ss:$8 sm:$0xf0] %vm10, %v9
    %s14 = sshllo.u32 0, 1
    %v16 = vld [vmem:[#allocation0] sm:%s14]
    %s17 = sshllo.u32 0, 1
    %18 = vst [vmem:[%s1] sm:%s17] %v16
    %s19 = scalar_lea.vmem [#allocation0], 8
    %v20 = vld [vmem:[%s19] sm:%s14]
    %s21 = sshllo.u32 0, 1
    %s22 = scalar_lea.vmem %s1, 1
    %23 = vst [vmem:[%s22] sm:%s21] %v20
    %s24 = scalar_lea.vmem [#allocation0], 16
    %v25 = vld [vmem:[%s24] sm:%s14]
    %s26 = sshllo.u32 0, 1
    %s27 = smul.addr 1, 2
    %s28 = scalar_lea.vmem %s1, %s27
    %29 = vst [vmem:[%s28] sm:%s26] %v25
    %s30 = scalar_lea.vmem [#allocation0], 24
    %v31 = vld [vmem:[%s30] sm:%s14]
    %s32 = sshllo.u32 0, 1
    %s33 = smul.addr 1, 3
    %s34 = scalar_lea.vmem %s1, %s33
    %35 = vst [vmem:[%s34] sm:%s32] %v31
    %s36 = scalar_lea.vmem [#allocation0], 32
    %v37 = vld [vmem:[%s36] sm:%s14]
    %s38 = sshllo.u32 0, 1
    %s39 = smul.addr 1, 4
    %s40 = scalar_lea.vmem %s1, %s39
    %41 = vst [vmem:[%s40] sm:%s38] %v37
    %s42 = scalar_lea.vmem [#allocation0], 40
    %v43 = vld [vmem:[%s42] sm:%s14]
    %s44 = sshllo.u32 0, 1
    %s45 = smul.addr 1, 5
    %s46 = scalar_lea.vmem %s1, %s45
    %47 = vst [vmem:[%s46] sm:%s44] %v43
    %s48 = scalar_lea.vmem [#allocation0], 48
    %v49 = vld [vmem:[%s48] sm:%s14]
    %s50 = sshllo.u32 0, 1
    %s51 = smul.addr 1, 6
    %s52 = scalar_lea.vmem %s1, %s51
    %53 = vst [vmem:[%s52] sm:%s50] %v49
    %s54 = scalar_lea.vmem [#allocation0], 56
    %v55 = vld [vmem:[%s54] sm:%s14]
    %s56 = sshllo.u32 0, 1
    %s57 = smul.addr 1, 7
    %s58 = scalar_lea.vmem %s1, %s57
    %59 = vst [vmem:[%s58] sm:%s56] %v55

// kernel: tile.63
$region0: #{tile.63}
  #allocation0 [shape = 's32[1]{0}', space=sflag, size = 0x4, scoped, tag = 'scoped memory for tile.63']
  %s0 = inlined_call_operand.vmem [shape: f32[32], index: 0, kind: input, shape index: {}]
  %s1 = inlined_call_operand.vmem [shape: f32[4,32], index: 1, kind: output, shape index: {}]
  // Predicated region
  $region2: #{tile.63} parent=0 // pred_check
    _
  $region3: #{tile.63} parent=0 // pred_check_branch
    %3 = sbr.rel (0) target = $region5
  $region4: #{tile.63} parent=0 // pred_region
    _
  $region5: #{tile.63} parent=0 // pred_fallthru
    _
  %v4 = vld [vmem:[%s0] ss:$0 sm:$0xff]
  %5 = vst [vmem:[%s1] sm:$0xf] %v4

// kernel: tile.0
$region0: #{tile.0}
  %s0 = inlined_call_operand.vmem [shape: f32[4,32], index: 0, kind: input, shape index: {}]
  %s1 = inlined_call_operand.vmem [shape: f32[128,1], index: 1, kind: output, shape index: {}]
  $region1: #{tile.0} parent=0
    #allocation0 [shape = 'u8[4096]{0}', space=vmem, size = 0x1000, scoped, tag = 'scoped mem for input reshape']
    %s3 = sshllo.u32 0, 4
    %v4 = vld [vmem:[%s0] sm:%s3]
    %5 = vst [vmem:[#allocation0] sm:%s3] %v4
    %v6 = vld [vmem:[#allocation0] sm:$0xf]
    %vm7 = vcmask 7168
    %8 = vst.msk [vmem:[%s1] sm:$0x1] %vm7, %v6
    %s9 = scalar_lea.vmem %s1, 31
    %10 = vst.msk [vmem:[%s9] sm:$0x2] %vm7, %v6
    %s11 = scalar_lea.vmem %s1, 62
    %12 = vst.msk [vmem:[%s11] sm:$0x4] %vm7, %v6
    %s13 = scalar_lea.vmem %s1, 93
    %14 = vst.msk [vmem:[%s13] sm:$0x8] %vm7, %v6
    %v15 = vld [vmem:[#allocation0] sm:$0xf]
    %16 = vrot.lane.b32.xlu0 %v15, 127
    %v17 = vpop.permute.xlu0 %16
    %vm18 = vcmask 7168
    %s19 = scalar_lea.vmem %s1, 1
    %20 = vst.msk [vmem:[%s19] sm:$0x1] %vm18, %v17
    %s21 = scalar_lea.vmem %s1, 32
    %22 = vst.msk [vmem:[%s21] sm:$0x2] %vm18, %v17
    %s23 = scalar_lea.vmem %s1, 63
    %24 = vst.msk [vmem:[%s23] sm:$0x4] %vm18, %v17
    %s25 = scalar_lea.vmem %s1, 94
    %26 = vst.msk [vmem:[%s25] sm:$0x8] %vm18, %v17
    %v27 = vld [vmem:[#allocation0] sm:$0xf]
    %28 = vrot.lane.b32.xlu0 %v27, 126
    %v29 = vpop.permute.xlu0 %28
    %vm30 = vcmask 7168
    %s31 = scalar_lea.vmem %s1, 2
    %32 = vst.msk [vmem:[%s31] sm:$0x1] %vm30, %v29
    %s33 = scalar_lea.vmem %s1, 33
    %34 = vst.msk [vmem:[%s33] sm:$0x2] %vm30, %v29
    %s35 = scalar_lea.vmem %s1, 64
    %36 = vst.msk [vmem:[%s35] sm:$0x4] %vm30, %v29
    %s37 = scalar_lea.vmem %s1, 95
    %38 = vst.msk [vmem:[%s37] sm:$0x8] %vm30, %v29
    %v39 = vld [vmem:[#allocation0] sm:$0xf]
    %40 = vrot.lane.b32.xlu0 %v39, 125
    %v41 = vpop.permute.xlu0 %40
    %vm42 = vcmask 7168
    %s43 = scalar_lea.vmem %s1, 3
    %44 = vst.msk [vmem:[%s43] sm:$0x1] %vm42, %v41
    %s45 = scalar_lea.vmem %s1, 34
    %46 = vst.msk [vmem:[%s45] sm:$0x2] %vm42, %v41
    %s47 = scalar_lea.vmem %s1, 65
    %48 = vst.msk [vmem:[%s47] sm:$0x4] %vm42, %v41
    %s49 = scalar_lea.vmem %s1, 96
    %50 = vst.msk [vmem:[%s49] sm:$0x8] %vm42, %v41
    %v51 = vld [vmem:[#allocation0] sm:$0xf]
    %52 = vrot.lane.b32.xlu0 %v51, 124
    %v53 = vpop.permute.xlu0 %52
    %vm54 = vcmask 7168
    %s55 = scalar_lea.vmem %s1, 4
    %56 = vst.msk [vmem:[%s55] sm:$0x1] %vm54, %v53
    %s57 = scalar_lea.vmem %s1, 35
    %58 = vst.msk [vmem:[%s57] sm:$0x2] %vm54, %v53
    %s59 = scalar_lea.vmem %s1, 66
    %60 = vst.msk [vmem:[%s59] sm:$0x4] %vm54, %v53
    %s61 = scalar_lea.vmem %s1, 97
    %62 = vst.msk [vmem:[%s61] sm:$0x8] %vm54, %v53
    %v63 = vld [vmem:[#allocation0] sm:$0xf]
    %64 = vrot.lane.b32.xlu0 %v63, 123
    %v65 = vpop.permute.xlu0 %64
    %vm66 = vcmask 7168
    %s67 = scalar_lea.vmem %s1, 5
    %68 = vst.msk [vmem:[%s67] sm:$0x1] %vm66, %v65
    %s69 = scalar_lea.vmem %s1, 36
    %70 = vst.msk [vmem:[%s69] sm:$0x2] %vm66, %v65
    %s71 = scalar_lea.vmem %s1, 67
    %72 = vst.msk [vmem:[%s71] sm:$0x4] %vm66, %v65
    %s73 = scalar_lea.vmem %s1, 98
    %74 = vst.msk [vmem:[%s73] sm:$0x8] %vm66, %v65
    %v75 = vld [vmem:[#allocation0] sm:$0xf]
    %76 = vrot.lane.b32.xlu0 %v75, 122
    %v77 = vpop.permute.xlu0 %76
    %vm78 = vcmask 7168
    %s79 = scalar_lea.vmem %s1, 6
    %80 = vst.msk [vmem:[%s79] sm:$0x1] %vm78, %v77
    %s81 = scalar_lea.vmem %s1, 37
    %82 = vst.msk [vmem:[%s81] sm:$0x2] %vm78, %v77
    %s83 = scalar_lea.vmem %s1, 68
    %84 = vst.msk [vmem:[%s83] sm:$0x4] %vm78, %v77
    %s85 = scalar_lea.vmem %s1, 99
    %86 = vst.msk [vmem:[%s85] sm:$0x8] %vm78, %v77
    %v87 = vld [vmem:[#allocation0] sm:$0xf]
    %88 = vrot.lane.b32.xlu0 %v87, 121
    %v89 = vpop.permute.xlu0 %88
    %vm90 = vcmask 7168
    %s91 = scalar_lea.vmem %s1, 7
    %92 = vst.msk [vmem:[%s91] sm:$0x1] %vm90, %v89
    %s93 = scalar_lea.vmem %s1, 38
    %94 = vst.msk [vmem:[%s93] sm:$0x2] %vm90, %v89
    %s95 = scalar_lea.vmem %s1, 69
    %96 = vst.msk [vmem:[%s95] sm:$0x4] %vm90, %v89
    %s97 = scalar_lea.vmem %s1, 100
    %98 = vst.msk [vmem:[%s97] sm:$0x8] %vm90, %v89
    %v99 = vld [vmem:[#allocation0] sm:$0xf]
    %100 = vrot.lane.b32.xlu0 %v99, 120
    %v101 = vpop.permute.xlu0 %100
    %vm102 = vcmask 7168
    %s103 = scalar_lea.vmem %s1, 8
    %104 = vst.msk [vmem:[%s103] sm:$0x1] %vm102, %v101
    %s105 = scalar_lea.vmem %s1, 39
    %106 = vst.msk [vmem:[%s105] sm:$0x2] %vm102, %v101
    %s107 = scalar_lea.vmem %s1, 70
    %108 = vst.msk [vmem:[%s107] sm:$0x4] %vm102, %v101
    %s109 = scalar_lea.vmem %s1, 101
    %110 = vst.msk [vmem:[%s109] sm:$0x8] %vm102, %v101
    %v111 = vld [vmem:[#allocation0] sm:$0xf]
    %112 = vrot.lane.b32.xlu0 %v111, 119
    %v113 = vpop.permute.xlu0 %112
    %vm114 = vcmask 7168
    %s115 = scalar_lea.vmem %s1, 9
    %116 = vst.msk [vmem:[%s115] sm:$0x1] %vm114, %v113
    %s117 = scalar_lea.vmem %s1, 40
    %118 = vst.msk [vmem:[%s117] sm:$0x2] %vm114, %v113
    %s119 = scalar_lea.vmem %s1, 71
    %120 = vst.msk [vmem:[%s119] sm:$0x4] %vm114, %v113
    %s121 = scalar_lea.vmem %s1, 102
    %122 = vst.msk [vmem:[%s121] sm:$0x8] %vm114, %v113
    %v123 = vld [vmem:[#allocation0] sm:$0xf]
    %124 = vrot.lane.b32.xlu0 %v123, 118
    %v125 = vpop.permute.xlu0 %124
    %vm126 = vcmask 7168
    %s127 = scalar_lea.vmem %s1, 10
    %128 = vst.msk [vmem:[%s127] sm:$0x1] %vm126, %v125
    %s129 = scalar_lea.vmem %s1, 41
    %130 = vst.msk [vmem:[%s129] sm:$0x2] %vm126, %v125
    %s131 = scalar_lea.vmem %s1, 72
    %132 = vst.msk [vmem:[%s131] sm:$0x4] %vm126, %v125
    %s133 = scalar_lea.vmem %s1, 103
    %134 = vst.msk [vmem:[%s133] sm:$0x8] %vm126, %v125
    %v135 = vld [vmem:[#allocation0] sm:$0xf]
    %136 = vrot.lane.b32.xlu0 %v135, 117
    %v137 = vpop.permute.xlu0 %136
    %vm138 = vcmask 7168
    %s139 = scalar_lea.vmem %s1, 11
    %140 = vst.msk [vmem:[%s139] sm:$0x1] %vm138, %v137
    %s141 = scalar_lea.vmem %s1, 42
    %142 = vst.msk [vmem:[%s141] sm:$0x2] %vm138, %v137
    %s143 = scalar_lea.vmem %s1, 73
    %144 = vst.msk [vmem:[%s143] sm:$0x4] %vm138, %v137
    %s145 = scalar_lea.vmem %s1, 104
    %146 = vst.msk [vmem:[%s145] sm:$0x8] %vm138, %v137
    %v147 = vld [vmem:[#allocation0] sm:$0xf]
    %148 = vrot.lane.b32.xlu0 %v147, 116
    %v149 = vpop.permute.xlu0 %148
    %vm150 = vcmask 7168
    %s151 = scalar_lea.vmem %s1, 12
    %152 = vst.msk [vmem:[%s151] sm:$0x1] %vm150, %v149
    %s153 = scalar_lea.vmem %s1, 43
    %154 = vst.msk [vmem:[%s153] sm:$0x2] %vm150, %v149
    %s155 = scalar_lea.vmem %s1, 74
    %156 = vst.msk [vmem:[%s155] sm:$0x4] %vm150, %v149
    %s157 = scalar_lea.vmem %s1, 105
    %158 = vst.msk [vmem:[%s157] sm:$0x8] %vm150, %v149
    %v159 = vld [vmem:[#allocation0] sm:$0xf]
    %160 = vrot.lane.b32.xlu0 %v159, 115
    %v161 = vpop.permute.xlu0 %160
    %vm162 = vcmask 7168
    %s163 = scalar_lea.vmem %s1, 13
    %164 = vst.msk [vmem:[%s163] sm:$0x1] %vm162, %v161
    %s165 = scalar_lea.vmem %s1, 44
    %166 = vst.msk [vmem:[%s165] sm:$0x2] %vm162, %v161
    %s167 = scalar_lea.vmem %s1, 75
    %168 = vst.msk [vmem:[%s167] sm:$0x4] %vm162, %v161
    %s169 = scalar_lea.vmem %s1, 106
    %170 = vst.msk [vmem:[%s169] sm:$0x8] %vm162, %v161
    %v171 = vld [vmem:[#allocation0] sm:$0xf]
    %172 = vrot.lane.b32.xlu0 %v171, 114
    %v173 = vpop.permute.xlu0 %172
    %vm174 = vcmask 7168
    %s175 = scalar_lea.vmem %s1, 14
    %176 = vst.msk [vmem:[%s175] sm:$0x1] %vm174, %v173
    %s177 = scalar_lea.vmem %s1, 45
    %178 = vst.msk [vmem:[%s177] sm:$0x2] %vm174, %v173
    %s179 = scalar_lea.vmem %s1, 76
    %180 = vst.msk [vmem:[%s179] sm:$0x4] %vm174, %v173
    %s181 = scalar_lea.vmem %s1, 107
    %182 = vst.msk [vmem:[%s181] sm:$0x8] %vm174, %v173
    %v183 = vld [vmem:[#allocation0] sm:$0xf]
    %184 = vrot.lane.b32.xlu0 %v183, 113
    %v185 = vpop.permute.xlu0 %184
    %vm186 = vcmask 7168
    %s187 = scalar_lea.vmem %s1, 15
    %188 = vst.msk [vmem:[%s187] sm:$0x1] %vm186, %v185
    %s189 = scalar_lea.vmem %s1, 46
    %190 = vst.msk [vmem:[%s189] sm:$0x2] %vm186, %v185
    %s191 = scalar_lea.vmem %s1, 77
    %192 = vst.msk [vmem:[%s191] sm:$0x4] %vm186, %v185
    %s193 = scalar_lea.vmem %s1, 108
    %194 = vst.msk [vmem:[%s193] sm:$0x8] %vm186, %v185
    %v195 = vld [vmem:[#allocation0] sm:$0xf]
    %196 = vrot.lane.b32.xlu0 %v195, 112
    %v197 = vpop.permute.xlu0 %196
    %vm198 = vcmask 7168
    %s199 = scalar_lea.vmem %s1, 16
    %200 = vst.msk [vmem:[%s199] sm:$0x1] %vm198, %v197
    %s201 = scalar_lea.vmem %s1, 47
    %202 = vst.msk [vmem:[%s201] sm:$0x2] %vm198, %v197
    %s203 = scalar_lea.vmem %s1, 78
    %204 = vst.msk [vmem:[%s203] sm:$0x4] %vm198, %v197
    %s205 = scalar_lea.vmem %s1, 109
    %206 = vst.msk [vmem:[%s205] sm:$0x8] %vm198, %v197
    %v207 = vld [vmem:[#allocation0] sm:$0xf]
    %208 = vrot.lane.b32.xlu0 %v207, 111
    %v209 = vpop.permute.xlu0 %208
    %vm210 = vcmask 7168
    %s211 = scalar_lea.vmem %s1, 17
    %212 = vst.msk [vmem:[%s211] sm:$0x1] %vm210, %v209
    %s213 = scalar_lea.vmem %s1, 48
    %214 = vst.msk [vmem:[%s213] sm:$0x2] %vm210, %v209
    %s215 = scalar_lea.vmem %s1, 79
    %216 = vst.msk [vmem:[%s215] sm:$0x4] %vm210, %v209
    %s217 = scalar_lea.vmem %s1, 110
    %218 = vst.msk [vmem:[%s217] sm:$0x8] %vm210, %v209
    %v219 = vld [vmem:[#allocation0] sm:$0xf]
    %220 = vrot.lane.b32.xlu0 %v219, 110
    %v221 = vpop.permute.xlu0 %220
    %vm222 = vcmask 7168
    %s223 = scalar_lea.vmem %s1, 18
    %224 = vst.msk [vmem:[%s223] sm:$0x1] %vm222, %v221
    %s225 = scalar_lea.vmem %s1, 49
    %226 = vst.msk [vmem:[%s225] sm:$0x2] %vm222, %v221
    %s227 = scalar_lea.vmem %s1, 80
    %228 = vst.msk [vmem:[%s227] sm:$0x4] %vm222, %v221
    %s229 = scalar_lea.vmem %s1, 111
    %230 = vst.msk [vmem:[%s229] sm:$0x8] %vm222, %v221
    %v231 = vld [vmem:[#allocation0] sm:$0xf]
    %232 = vrot.lane.b32.xlu0 %v231, 109
    %v233 = vpop.permute.xlu0 %232
    %vm234 = vcmask 7168
    %s235 = scalar_lea.vmem %s1, 19
    %236 = vst.msk [vmem:[%s235] sm:$0x1] %vm234, %v233
    %s237 = scalar_lea.vmem %s1, 50
    %238 = vst.msk [vmem:[%s237] sm:$0x2] %vm234, %v233
    %s239 = scalar_lea.vmem %s1, 81
    %240 = vst.msk [vmem:[%s239] sm:$0x4] %vm234, %v233
    %s241 = scalar_lea.vmem %s1, 112
    %242 = vst.msk [vmem:[%s241] sm:$0x8] %vm234, %v233
    %v243 = vld [vmem:[#allocation0] sm:$0xf]
    %244 = vrot.lane.b32.xlu0 %v243, 108
    %v245 = vpop.permute.xlu0 %244
    %vm246 = vcmask 7168
    %s247 = scalar_lea.vmem %s1, 20
    %248 = vst.msk [vmem:[%s247] sm:$0x1] %vm246, %v245
    %s249 = scalar_lea.vmem %s1, 51
    %250 = vst.msk [vmem:[%s249] sm:$0x2] %vm246, %v245
    %s251 = scalar_lea.vmem %s1, 82
    %252 = vst.msk [vmem:[%s251] sm:$0x4] %vm246, %v245
    %s253 = scalar_lea.vmem %s1, 113
    %254 = vst.msk [vmem:[%s253] sm:$0x8] %vm246, %v245
    %v255 = vld [vmem:[#allocation0] sm:$0xf]
    %256 = vrot.lane.b32.xlu0 %v255, 107
    %v257 = vpop.permute.xlu0 %256
    %vm258 = vcmask 7168
    %s259 = scalar_lea.vmem %s1, 21
    %260 = vst.msk [vmem:[%s259] sm:$0x1] %vm258, %v257
    %s261 = scalar_lea.vmem %s1, 52
    %262 = vst.msk [vmem:[%s261] sm:$0x2] %vm258, %v257
    %s263 = scalar_lea.vmem %s1, 83
    %264 = vst.msk [vmem:[%s263] sm:$0x4] %vm258, %v257
    %s265 = scalar_lea.vmem %s1, 114
    %266 = vst.msk [vmem:[%s265] sm:$0x8] %vm258, %v257
    %v267 = vld [vmem:[#allocation0] sm:$0xf]
    %268 = vrot.lane.b32.xlu0 %v267, 106
    %v269 = vpop.permute.xlu0 %268
    %vm270 = vcmask 7168
    %s271 = scalar_lea.vmem %s1, 22
    %272 = vst.msk [vmem:[%s271] sm:$0x1] %vm270, %v269
    %s273 = scalar_lea.vmem %s1, 53
    %274 = vst.msk [vmem:[%s273] sm:$0x2] %vm270, %v269
    %s275 = scalar_lea.vmem %s1, 84
    %276 = vst.msk [vmem:[%s275] sm:$0x4] %vm270, %v269
    %s277 = scalar_lea.vmem %s1, 115
    %278 = vst.msk [vmem:[%s277] sm:$0x8] %vm270, %v269
    %v279 = vld [vmem:[#allocation0] sm:$0xf]
    %280 = vrot.lane.b32.xlu0 %v279, 105
    %v281 = vpop.permute.xlu0 %280
    %vm282 = vcmask 7168
    %s283 = scalar_lea.vmem %s1, 23
    %284 = vst.msk [vmem:[%s283] sm:$0x1] %vm282, %v281
    %s285 = scalar_lea.vmem %s1, 54
    %286 = vst.msk [vmem:[%s285] sm:$0x2] %vm282, %v281
    %s287 = scalar_lea.vmem %s1, 85
    %288 = vst.msk [vmem:[%s287] sm:$0x4] %vm282, %v281
    %s289 = scalar_lea.vmem %s1, 116
    %290 = vst.msk [vmem:[%s289] sm:$0x8] %vm282, %v281
    %v291 = vld [vmem:[#allocation0] sm:$0xf]
    %292 = vrot.lane.b32.xlu0 %v291, 104
    %v293 = vpop.permute.xlu0 %292
    %vm294 = vcmask 7168
    %s295 = scalar_lea.vmem %s1, 24
    %296 = vst.msk [vmem:[%s295] sm:$0x1] %vm294, %v293
    %s297 = scalar_lea.vmem %s1, 55
    %298 = vst.msk [vmem:[%s297] sm:$0x2] %vm294, %v293
    %s299 = scalar_lea.vmem %s1, 86
    %300 = vst.msk [vmem:[%s299] sm:$0x4] %vm294, %v293
    %s301 = scalar_lea.vmem %s1, 117
    %302 = vst.msk [vmem:[%s301] sm:$0x8] %vm294, %v293
    %v303 = vld [vmem:[#allocation0] sm:$0xf]
    %304 = vrot.lane.b32.xlu0 %v303, 103
    %v305 = vpop.permute.xlu0 %304
    %vm306 = vcmask 7168
    %s307 = scalar_lea.vmem %s1, 25
    %308 = vst.msk [vmem:[%s307] sm:$0x1] %vm306, %v305
    %s309 = scalar_lea.vmem %s1, 56
    %310 = vst.msk [vmem:[%s309] sm:$0x2] %vm306, %v305
    %s311 = scalar_lea.vmem %s1, 87
    %312 = vst.msk [vmem:[%s311] sm:$0x4] %vm306, %v305
    %s313 = scalar_lea.vmem %s1, 118
    %314 = vst.msk [vmem:[%s313] sm:$0x8] %vm306, %v305
    %v315 = vld [vmem:[#allocation0] sm:$0xf]
    %316 = vrot.lane.b32.xlu0 %v315, 102
    %v317 = vpop.permute.xlu0 %316
    %vm318 = vcmask 7168
    %s319 = scalar_lea.vmem %s1, 26
    %320 = vst.msk [vmem:[%s319] sm:$0x1] %vm318, %v317
    %s321 = scalar_lea.vmem %s1, 57
    %322 = vst.msk [vmem:[%s321] sm:$0x2] %vm318, %v317
    %s323 = scalar_lea.vmem %s1, 88
    %324 = vst.msk [vmem:[%s323] sm:$0x4] %vm318, %v317
    %s325 = scalar_lea.vmem %s1, 119
    %326 = vst.msk [vmem:[%s325] sm:$0x8] %vm318, %v317
    %v327 = vld [vmem:[#allocation0] sm:$0xf]
    %328 = vrot.lane.b32.xlu0 %v327, 101
    %v329 = vpop.permute.xlu0 %328
    %vm330 = vcmask 7168
    %s331 = scalar_lea.vmem %s1, 27
    %332 = vst.msk [vmem:[%s331] sm:$0x1] %vm330, %v329
    %s333 = scalar_lea.vmem %s1, 58
    %334 = vst.msk [vmem:[%s333] sm:$0x2] %vm330, %v329
    %s335 = scalar_lea.vmem %s1, 89
    %336 = vst.msk [vmem:[%s335] sm:$0x4] %vm330, %v329
    %s337 = scalar_lea.vmem %s1, 120
    %338 = vst.msk [vmem:[%s337] sm:$0x8] %vm330, %v329
    %v339 = vld [vmem:[#allocation0] sm:$0xf]
    %340 = vrot.lane.b32.xlu0 %v339, 100
    %v341 = vpop.permute.xlu0 %340
    %vm342 = vcmask 7168
    %s343 = scalar_lea.vmem %s1, 28
    %344 = vst.msk [vmem:[%s343] sm:$0x1] %vm342, %v341
    %s345 = scalar_lea.vmem %s1, 59
    %346 = vst.msk [vmem:[%s345] sm:$0x2] %vm342, %v341
    %s347 = scalar_lea.vmem %s1, 90
    %348 = vst.msk [vmem:[%s347] sm:$0x4] %vm342, %v341
    %s349 = scalar_lea.vmem %s1, 121
    %350 = vst.msk [vmem:[%s349] sm:$0x8] %vm342, %v341
    %v351 = vld [vmem:[#allocation0] sm:$0xf]
    %352 = vrot.lane.b32.xlu0 %v351, 99
    %v353 = vpop.permute.xlu0 %352
    %vm354 = vcmask 7168
    %s355 = scalar_lea.vmem %s1, 29
    %356 = vst.msk [vmem:[%s355] sm:$0x1] %vm354, %v353
    %s357 = scalar_lea.vmem %s1, 60
    %358 = vst.msk [vmem:[%s357] sm:$0x2] %vm354, %v353
    %s359 = scalar_lea.vmem %s1, 91
    %360 = vst.msk [vmem:[%s359] sm:$0x4] %vm354, %v353
    %s361 = scalar_lea.vmem %s1, 122
    %362 = vst.msk [vmem:[%s361] sm:$0x8] %vm354, %v353
    %v363 = vld [vmem:[#allocation0] sm:$0xf]
    %364 = vrot.lane.b32.xlu0 %v363, 98
    %v365 = vpop.permute.xlu0 %364
    %vm366 = vcmask 7168
    %s367 = scalar_lea.vmem %s1, 30
    %368 = vst.msk [vmem:[%s367] sm:$0x1] %vm366, %v365
    %s369 = scalar_lea.vmem %s1, 61
    %370 = vst.msk [vmem:[%s369] sm:$0x2] %vm366, %v365
    %s371 = scalar_lea.vmem %s1, 92
    %372 = vst.msk [vmem:[%s371] sm:$0x4] %vm366, %v365
    %s373 = scalar_lea.vmem %s1, 123
    %374 = vst.msk [vmem:[%s373] sm:$0x8] %vm366, %v365
    %v375 = vld [vmem:[#allocation0] sm:$0xf]
    %376 = vrot.lane.b32.xlu0 %v375, 97
    %v377 = vpop.permute.xlu0 %376
    %vm378 = vcmask 7168
    %s379 = scalar_lea.vmem %s1, 31
    %380 = vst.msk [vmem:[%s379] sm:$0x1] %vm378, %v377
    %s381 = scalar_lea.vmem %s1, 62
    %382 = vst.msk [vmem:[%s381] sm:$0x2] %vm378, %v377
    %s383 = scalar_lea.vmem %s1, 93
    %384 = vst.msk [vmem:[%s383] sm:$0x4] %vm378, %v377
    %s385 = scalar_lea.vmem %s1, 124
    %386 = vst.msk [vmem:[%s385] sm:$0x8] %vm378, %v377

// kernel: generator_forward.5
$region0: #{generator_forward.5}
  #allocation0 [shape = 'u32[]', space=smem, size = 0x4, offset = 0x4, fixed_abs, tag = 'smem constant byte address 0x4 - core index']
  #allocation1 [shape = 'u32[144,128]{1,0:T(1,128)}', space=vmem, size = 0x12000, scoped, tag = 'internal scratch']
  %s0 = inlined_call_operand.vmem [shape: f32[2,8], index: 0, kind: input, shape index: {}]
  %s1 = inlined_call_operand.vmem [shape: f32[8,1024], index: 1, kind: input, shape index: {}]
  %s2 = inlined_call_operand.vmem [shape: f32[1,1024], index: 2, kind: input, shape index: {}]
  %s3 = inlined_call_operand.vmem [shape: f32[1,1024], index: 3, kind: input, shape index: {}]
  %s4 = inlined_call_operand.vmem [shape: f32[2,1024], index: 4, kind: output, shape index: {}]
  %s5 = sld [smem:[#allocation0]]
  $region26: #{generator_forward.5} parent=0
    _
  %s7 = ssub.s32 1, %s5
  %s8 = scalar_select 0, %s7, %s5
  // Predicated region
  $region2: #{generator_forward.5} parent=0 // pred_check
    _
  $region3: #{generator_forward.5} parent=0 // pred_check_branch
    %10 = sbr.rel (0) target = $region5
  $region4: #{generator_forward.5} parent=0 // pred_region
    _
  $region5: #{generator_forward.5} parent=0 // pred_fallthru
    _
  // Predicated region
  $region6: #{generator_forward.5} parent=0 // pred_check
    _
  $region7: #{generator_forward.5} parent=0 // pred_check_branch
    %12 = sbr.rel (0) target = $region9
  $region8: #{generator_forward.5} parent=0 // pred_region
    _
  $region9: #{generator_forward.5} parent=0 // pred_fallthru
    _
  // Predicated region
  $region10: #{generator_forward.5} parent=0 // pred_check
    _
  $region11: #{generator_forward.5} parent=0 // pred_check_branch
    %14 = sbr.rel (0) target = $region13
  $region12: #{generator_forward.5} parent=0 // pred_region
    _
  $region13: #{generator_forward.5} parent=0 // pred_fallthru
    _
  // Predicated region
  $region14: #{generator_forward.5} parent=0 // pred_check
    _
  $region15: #{generator_forward.5} parent=0 // pred_check_branch
    %16 = sbr.rel (0) target = $region17
  $region16: #{generator_forward.5} parent=0 // pred_region
    _
  $region17: #{generator_forward.5} parent=0 // pred_fallthru
    _
  %v17 = vld [vmem:[%s0] sm:$0x3]
  %v18 = vld [vmem:[%s1] sm:$0xff]
  %v19 = vld [vmem:[%s1 + $0x8] sm:$0xff]
  %v20 = vld [vmem:[%s1 + $0x10] sm:$0xff]
  %v21 = vld [vmem:[%s1 + $0x18] sm:$0xff]
  %v22 = vld [vmem:[%s1 + $0x20] sm:$0xff]
  %v23 = vld [vmem:[%s1 + $0x28] sm:$0xff]
  %v24 = vld [vmem:[%s1 + $0x30] sm:$0xff]
  %v25 = vld [vmem:[%s1 + $0x38] sm:$0xff]
  %vm26 = vcmask 64512
  %v28 = vsel %vm26, %v17, 0
  %30 = vmatprep.subr.mxu0 %v19
  %31 = vmatpush1.msra.mxu0 %v18
  %32 = vmatprep.subr.mxu0 0.0
  %33 = vmatpush1.msra.mxu0 0.0
  %34 = vmatprep.subr.mxu0 0.0
  %35 = vmatpush1.msra.mxu0 0.0
  %36 = vmatprep.subr.mxu0 0.0
  %37 = vmatpush1.msra.mxu0 0.0
  %38 = vmatprep.subr.mxu0 0.0
  %39 = vmatpush1.msra.mxu0 0.0
  %40 = vmatprep.subr.mxu0 0.0
  %41 = vmatpush1.msra.mxu0 0.0
  %42 = vmatprep.subr.mxu0 0.0
  %43 = vmatpush1.msra.mxu0 0.0
  %44 = vmatprep.subr.mxu0 0.0
  %45 = vmatpush1.msra.mxu0 0.0
  %46 = vmatprep.subr.mxu0 0.0
  %47 = vmatpush1.msra.mxu0 0.0
  %48 = vmatprep.subr.mxu0 0.0
  %49 = vmatpush1.msra.mxu0 0.0
  %50 = vmatprep.subr.mxu0 0.0
  %51 = vmatpush1.msra.mxu0 0.0
  %52 = vmatprep.subr.mxu0 0.0
  %53 = vmatpush1.msra.mxu0 0.0
  %54 = vmatprep.subr.mxu0 0.0
  %55 = vmatpush1.msra.mxu0 0.0
  %56 = vmatprep.subr.mxu0 0.0
  %57 = vmatpush1.msra.mxu0 0.0
  %58 = vmatprep.subr.mxu0 0.0
  %59 = vmatpush1.msra.mxu0 0.0
  %60 = vmatprep.subr.mxu0 0.0
  %61 = vmatpush1.msra.mxu0 0.0
  %62 = vmatprep.subr.mxu0 0.0
  %63 = vmatpush1.msra.mxu0 0.0
  %64 = vmatprep.subr.mxu0 0.0
  %65 = vmatpush1.msra.mxu0 0.0
  %66 = vmatprep.subr.mxu0 0.0
  %67 = vmatpush1.msra.mxu0 0.0
  %68 = vmatprep.subr.mxu0 0.0
  %69 = vmatpush1.msra.mxu0 0.0
  %70 = vmatprep.subr.mxu0 0.0
  %71 = vmatpush1.msra.mxu0 0.0
  %72 = vmatprep.subr.mxu0 0.0
  %73 = vmatpush1.msra.mxu0 0.0
  %74 = vmatprep.subr.mxu0 0.0
  %75 = vmatpush1.msra.mxu0 0.0
  %76 = vmatprep.subr.mxu0 0.0
  %77 = vmatpush1.msra.mxu0 0.0
  %78 = vmatprep.subr.mxu0 0.0
  %79 = vmatpush1.msra.mxu0 0.0
  %80 = vmatprep.subr.mxu0 0.0
  %81 = vmatpush1.msra.mxu0 0.0
  %82 = vmatprep.subr.mxu0 0.0
  %83 = vmatpush1.msra.mxu0 0.0
  %84 = vmatprep.subr.mxu0 0.0
  %85 = vmatpush1.msra.mxu0 0.0
  %86 = vmatprep.subr.mxu0 0.0
  %87 = vmatpush1.msra.mxu0 0.0
  %88 = vmatprep.subr.mxu0 0.0
  %89 = vmatpush1.msra.mxu0 0.0
  %90 = vmatprep.subr.mxu0 0.0
  %91 = vmatpush1.msra.mxu0 0.0
  %92 = vmatprep.subr.mxu0 0.0
  %93 = vmatpush1.msra.mxu0 0.0
  %94 = vmatprep.mubr.f32.mxu0 0.0
  %95 = vmatmul.mubr.f32.gmra.mrb[0].mxu0 %v28
  %v96 = vpop.f32.mrb[0].mxu0
  %v97 = vadd.f32 0.0, %v96
  %v98 = vpop.f32.mrb[0].mxu0
  %v99 = vadd.f32 0.0, %v98
  %100 = vdwg.mxu0
  %101 = vmatprep.subr.mxu0 %v21
  %102 = vmatpush1.msra.mxu0 %v20
  %103 = vmatprep.subr.mxu0 0.0
  %104 = vmatpush1.msra.mxu0 0.0
  %105 = vmatprep.subr.mxu0 0.0
  %106 = vmatpush1.msra.mxu0 0.0
  %107 = vmatprep.subr.mxu0 0.0
  %108 = vmatpush1.msra.mxu0 0.0
  %109 = vmatprep.subr.mxu0 0.0
  %110 = vmatpush1.msra.mxu0 0.0
  %111 = vmatprep.subr.mxu0 0.0
  %112 = vmatpush1.msra.mxu0 0.0
  %113 = vmatprep.subr.mxu0 0.0
  %114 = vmatpush1.msra.mxu0 0.0
  %115 = vmatprep.subr.mxu0 0.0
  %116 = vmatpush1.msra.mxu0 0.0
  %117 = vmatprep.subr.mxu0 0.0
  %118 = vmatpush1.msra.mxu0 0.0
  %119 = vmatprep.subr.mxu0 0.0
  %120 = vmatpush1.msra.mxu0 0.0
  %121 = vmatprep.subr.mxu0 0.0
  %122 = vmatpush1.msra.mxu0 0.0
  %123 = vmatprep.subr.mxu0 0.0
  %124 = vmatpush1.msra.mxu0 0.0
  %125 = vmatprep.subr.mxu0 0.0
  %126 = vmatpush1.msra.mxu0 0.0
  %127 = vmatprep.subr.mxu0 0.0
  %128 = vmatpush1.msra.mxu0 0.0
  %129 = vmatprep.subr.mxu0 0.0
  %130 = vmatpush1.msra.mxu0 0.0
  %131 = vmatprep.subr.mxu0 0.0
  %132 = vmatpush1.msra.mxu0 0.0
  %133 = vmatprep.subr.mxu0 0.0
  %134 = vmatpush1.msra.mxu0 0.0
  %135 = vmatprep.subr.mxu0 0.0
  %136 = vmatpush1.msra.mxu0 0.0
  %137 = vmatprep.subr.mxu0 0.0
  %138 = vmatpush1.msra.mxu0 0.0
  %139 = vmatprep.subr.mxu0 0.0
  %140 = vmatpush1.msra.mxu0 0.0
  %141 = vmatprep.subr.mxu0 0.0
  %142 = vmatpush1.msra.mxu0 0.0
  %143 = vmatprep.subr.mxu0 0.0
  %144 = vmatpush1.msra.mxu0 0.0
  %145 = vmatprep.subr.mxu0 0.0
  %146 = vmatpush1.msra.mxu0 0.0
  %147 = vmatprep.subr.mxu0 0.0
  %148 = vmatpush1.msra.mxu0 0.0
  %149 = vmatprep.subr.mxu0 0.0
  %150 = vmatpush1.msra.mxu0 0.0
  %151 = vmatprep.subr.mxu0 0.0
  %152 = vmatpush1.msra.mxu0 0.0
  %153 = vmatprep.subr.mxu0 0.0
  %154 = vmatpush1.msra.mxu0 0.0
  %155 = vmatprep.subr.mxu0 0.0
  %156 = vmatpush1.msra.mxu0 0.0
  %157 = vmatprep.subr.mxu0 0.0
  %158 = vmatpush1.msra.mxu0 0.0
  %159 = vmatprep.subr.mxu0 0.0
  %160 = vmatpush1.msra.mxu0 0.0
  %161 = vmatprep.subr.mxu0 0.0
  %162 = vmatpush1.msra.mxu0 0.0
  %163 = vmatprep.subr.mxu0 0.0
  %164 = vmatpush1.msra.mxu0 0.0
  %165 = vmatprep.mubr.f32.mxu0 0.0
  %166 = vmatmul.mubr.f32.gmra.mrb[0].mxu0 %v28
  %v167 = vpop.f32.mrb[0].mxu0
  %v168 = vadd.f32 0.0, %v167
  %v169 = vpop.f32.mrb[0].mxu0
  %v170 = vadd.f32 0.0, %v169
  %171 = vdwg.mxu0
  %172 = vmatprep.subr.mxu0 %v23
  %173 = vmatpush1.msra.mxu0 %v22
  %174 = vmatprep.subr.mxu0 0.0
  %175 = vmatpush1.msra.mxu0 0.0
  %176 = vmatprep.subr.mxu0 0.0
  %177 = vmatpush1.msra.mxu0 0.0
  %178 = vmatprep.subr.mxu0 0.0
  %179 = vmatpush1.msra.mxu0 0.0
  %180 = vmatprep.subr.mxu0 0.0
  %181 = vmatpush1.msra.mxu0 0.0
  %182 = vmatprep.subr.mxu0 0.0
  %183 = vmatpush1.msra.mxu0 0.0
  %184 = vmatprep.subr.mxu0 0.0
  %185 = vmatpush1.msra.mxu0 0.0
  %186 = vmatprep.subr.mxu0 0.0
  %187 = vmatpush1.msra.mxu0 0.0
  %188 = vmatprep.subr.mxu0 0.0
  %189 = vmatpush1.msra.mxu0 0.0
  %190 = vmatprep.subr.mxu0 0.0
  %191 = vmatpush1.msra.mxu0 0.0
  %192 = vmatprep.subr.mxu0 0.0
  %193 = vmatpush1.msra.mxu0 0.0
  %194 = vmatprep.subr.mxu0 0.0
  %195 = vmatpush1.msra.mxu0 0.0
  %196 = vmatprep.subr.mxu0 0.0
  %197 = vmatpush1.msra.mxu0 0.0
  %198 = vmatprep.subr.mxu0 0.0
  %199 = vmatpush1.msra.mxu0 0.0
  %200 = vmatprep.subr.mxu0 0.0
  %201 = vmatpush1.msra.mxu0 0.0
  %202 = vmatprep.subr.mxu0 0.0
  %203 = vmatpush1.msra.mxu0 0.0
  %204 = vmatprep.subr.mxu0 0.0
  %205 = vmatpush1.msra.mxu0 0.0
  %206 = vmatprep.subr.mxu0 0.0
  %207 = vmatpush1.msra.mxu0 0.0
  %208 = vmatprep.subr.mxu0 0.0
  %209 = vmatpush1.msra.mxu0 0.0
  %210 = vmatprep.subr.mxu0 0.0
  %211 = vmatpush1.msra.mxu0 0.0
  %212 = vmatprep.subr.mxu0 0.0
  %213 = vmatpush1.msra.mxu0 0.0
  %214 = vmatprep.subr.mxu0 0.0
  %215 = vmatpush1.msra.mxu0 0.0
  %216 = vmatprep.subr.mxu0 0.0
  %217 = vmatpush1.msra.mxu0 0.0
  %218 = vmatprep.subr.mxu0 0.0
  %219 = vmatpush1.msra.mxu0 0.0
  %220 = vmatprep.subr.mxu0 0.0
  %221 = vmatpush1.msra.mxu0 0.0
  %222 = vmatprep.subr.mxu0 0.0
  %223 = vmatpush1.msra.mxu0 0.0
  %224 = vmatprep.subr.mxu0 0.0
  %225 = vmatpush1.msra.mxu0 0.0
  %226 = vmatprep.subr.mxu0 0.0
  %227 = vmatpush1.msra.mxu0 0.0
  %228 = vmatprep.subr.mxu0 0.0
  %229 = vmatpush1.msra.mxu0 0.0
  %230 = vmatprep.subr.mxu0 0.0
  %231 = vmatpush1.msra.mxu0 0.0
  %232 = vmatprep.subr.mxu0 0.0
  %233 = vmatpush1.msra.mxu0 0.0
  %234 = vmatprep.subr.mxu0 0.0
  %235 = vmatpush1.msra.mxu0 0.0
  %236 = vmatprep.mubr.f32.mxu0 0.0
  %237 = vmatmul.mubr.f32.gmra.mrb[0].mxu0 %v28
  %v238 = vpop.f32.mrb[0].mxu0
  %v239 = vadd.f32 0.0, %v238
  %v240 = vpop.f32.mrb[0].mxu0
  %v241 = vadd.f32 0.0, %v240
  %242 = vdwg.mxu0
  %243 = vmatprep.subr.mxu0 %v25
  %244 = vmatpush1.msra.mxu0 %v24
  %245 = vmatprep.subr.mxu0 0.0
  %246 = vmatpush1.msra.mxu0 0.0
  %247 = vmatprep.subr.mxu0 0.0
  %248 = vmatpush1.msra.mxu0 0.0
  %249 = vmatprep.subr.mxu0 0.0
  %250 = vmatpush1.msra.mxu0 0.0
  %251 = vmatprep.subr.mxu0 0.0
  %252 = vmatpush1.msra.mxu0 0.0
  %253 = vmatprep.subr.mxu0 0.0
  %254 = vmatpush1.msra.mxu0 0.0
  %255 = vmatprep.subr.mxu0 0.0
  %256 = vmatpush1.msra.mxu0 0.0
  %257 = vmatprep.subr.mxu0 0.0
  %258 = vmatpush1.msra.mxu0 0.0
  %259 = vmatprep.subr.mxu0 0.0
  %260 = vmatpush1.msra.mxu0 0.0
  %261 = vmatprep.subr.mxu0 0.0
  %262 = vmatpush1.msra.mxu0 0.0
  %263 = vmatprep.subr.mxu0 0.0
  %264 = vmatpush1.msra.mxu0 0.0
  %265 = vmatprep.subr.mxu0 0.0
  %266 = vmatpush1.msra.mxu0 0.0
  %267 = vmatprep.subr.mxu0 0.0
  %268 = vmatpush1.msra.mxu0 0.0
  %269 = vmatprep.subr.mxu0 0.0
  %270 = vmatpush1.msra.mxu0 0.0
  %271 = vmatprep.subr.mxu0 0.0
  %272 = vmatpush1.msra.mxu0 0.0
  %273 = vmatprep.subr.mxu0 0.0
  %274 = vmatpush1.msra.mxu0 0.0
  %275 = vmatprep.subr.mxu0 0.0
  %276 = vmatpush1.msra.mxu0 0.0
  %277 = vmatprep.subr.mxu0 0.0
  %278 = vmatpush1.msra.mxu0 0.0
  %279 = vmatprep.subr.mxu0 0.0
  %280 = vmatpush1.msra.mxu0 0.0
  %281 = vmatprep.subr.mxu0 0.0
  %282 = vmatpush1.msra.mxu0 0.0
  %283 = vmatprep.subr.mxu0 0.0
  %284 = vmatpush1.msra.mxu0 0.0
  %285 = vmatprep.subr.mxu0 0.0
  %286 = vmatpush1.msra.mxu0 0.0
  %287 = vmatprep.subr.mxu0 0.0
  %288 = vmatpush1.msra.mxu0 0.0
  %289 = vmatprep.subr.mxu0 0.0
  %290 = vmatpush1.msra.mxu0 0.0
  %291 = vmatprep.subr.mxu0 0.0
  %292 = vmatpush1.msra.mxu0 0.0
  %293 = vmatprep.subr.mxu0 0.0
  %294 = vmatpush1.msra.mxu0 0.0
  %295 = vmatprep.subr.mxu0 0.0
  %296 = vmatpush1.msra.mxu0 0.0
  %297 = vmatprep.subr.mxu0 0.0
  %298 = vmatpush1.msra.mxu0 0.0
  %299 = vmatprep.subr.mxu0 0.0
  %300 = vmatpush1.msra.mxu0 0.0
  %301 = vmatprep.subr.mxu0 0.0
  %302 = vmatpush1.msra.mxu0 0.0
  %303 = vmatprep.subr.mxu0 0.0
  %304 = vmatpush1.msra.mxu0 0.0
  %305 = vmatprep.subr.mxu0 0.0
  %306 = vmatpush1.msra.mxu0 0.0
  %307 = vmatprep.mubr.f32.mxu0 0.0
  %308 = vmatmul.mubr.f32.gmra.mrb[0].mxu0 %v28
  %v309 = vpop.f32.mrb[0].mxu0
  %v310 = vadd.f32 0.0, %v309
  %v311 = vpop.f32.mrb[0].mxu0
  %v312 = vadd.f32 0.0, %v311
  %313 = vdwg.mxu0
  %vm314 = vcmask 1041408
  %v315 = vsel %vm314, %v97, 0.0
  %v316 = vrot.slane %v315, 4
  %v317 = vadd.f32 %v315, %v316
  %v318 = vrot.slane %v317, 2
  %v319 = vadd.f32 %v317, %v318
  %v320 = vrot.slane %v319, 1
  %v321 = vadd.f32 %v319, %v320
  %v322 = vsel %vm314, %v99, 0.0
  %v323 = vrot.slane %v322, 4
  %v324 = vadd.f32 %v322, %v323
  %v325 = vrot.slane %v324, 2
  %v326 = vadd.f32 %v324, %v325
  %v327 = vrot.slane %v326, 1
  %v328 = vadd.f32 %v326, %v327
  %v329 = vsel %vm314, %v168, 0.0
  %v330 = vrot.slane %v329, 4
  %v331 = vadd.f32 %v329, %v330
  %v332 = vrot.slane %v331, 2
  %v333 = vadd.f32 %v331, %v332
  %v334 = vrot.slane %v333, 1
  %v335 = vadd.f32 %v333, %v334
  %v336 = vsel %vm314, %v170, 0.0
  %v337 = vrot.slane %v336, 4
  %v338 = vadd.f32 %v336, %v337
  %v339 = vrot.slane %v338, 2
  %v340 = vadd.f32 %v338, %v339
  %v341 = vrot.slane %v340, 1
  %v342 = vadd.f32 %v340, %v341
  %v343 = vsel %vm314, %v239, 0.0
  %v344 = vrot.slane %v343, 4
  %v345 = vadd.f32 %v343, %v344
  %v346 = vrot.slane %v345, 2
  %v347 = vadd.f32 %v345, %v346
  %v348 = vrot.slane %v347, 1
  %v349 = vadd.f32 %v347, %v348
  %v350 = vsel %vm314, %v241, 0.0
  %v351 = vrot.slane %v350, 4
  %v352 = vadd.f32 %v350, %v351
  %v353 = vrot.slane %v352, 2
  %v354 = vadd.f32 %v352, %v353
  %v355 = vrot.slane %v354, 1
  %v356 = vadd.f32 %v354, %v355
  %v357 = vsel %vm314, %v310, 0.0
  %v358 = vrot.slane %v357, 4
  %v359 = vadd.f32 %v357, %v358
  %v360 = vrot.slane %v359, 2
  %v361 = vadd.f32 %v359, %v360
  %v362 = vrot.slane %v361, 1
  %v363 = vadd.f32 %v361, %v362
  %v364 = vsel %vm314, %v312, 0.0
  %v365 = vrot.slane %v364, 4
  %v366 = vadd.f32 %v364, %v365
  %v367 = vrot.slane %v366, 2
  %v368 = vadd.f32 %v366, %v367
  %v369 = vrot.slane %v368, 1
  %v370 = vadd.f32 %v368, %v369
  %v371 = vmul.f32 %v97, %v97
  %v372 = vmul.f32 %v99, %v99
  %v373 = vmul.f32 %v168, %v168
  %v374 = vmul.f32 %v170, %v170
  %v375 = vmul.f32 %v239, %v239
  %v376 = vmul.f32 %v241, %v241
  %v377 = vmul.f32 %v310, %v310
  %v378 = vmul.f32 %v312, %v312
  %v379 = vsel %vm314, %v371, 0.0
  %v380 = vrot.slane %v379, 4
  %v381 = vadd.f32 %v379, %v380
  %v382 = vrot.slane %v381, 2
  %v383 = vadd.f32 %v381, %v382
  %v384 = vrot.slane %v383, 1
  %v385 = vadd.f32 %v383, %v384
  %v386 = vsel %vm314, %v372, 0.0
  %v387 = vrot.slane %v386, 4
  %v388 = vadd.f32 %v386, %v387
  %v389 = vrot.slane %v388, 2
  %v390 = vadd.f32 %v388, %v389
  %v391 = vrot.slane %v390, 1
  %v392 = vadd.f32 %v390, %v391
  %v393 = vsel %vm314, %v373, 0.0
  %v394 = vrot.slane %v393, 4
  %v395 = vadd.f32 %v393, %v394
  %v396 = vrot.slane %v395, 2
  %v397 = vadd.f32 %v395, %v396
  %v398 = vrot.slane %v397, 1
  %v399 = vadd.f32 %v397, %v398
  %v400 = vsel %vm314, %v374, 0.0
  %v401 = vrot.slane %v400, 4
  %v402 = vadd.f32 %v400, %v401
  %v403 = vrot.slane %v402, 2
  %v404 = vadd.f32 %v402, %v403
  %v405 = vrot.slane %v404, 1
  %v406 = vadd.f32 %v404, %v405
  %v407 = vsel %vm314, %v375, 0.0
  %v408 = vrot.slane %v407, 4
  %v409 = vadd.f32 %v407, %v408
  %v410 = vrot.slane %v409, 2
  %v411 = vadd.f32 %v409, %v410
  %v412 = vrot.slane %v411, 1
  %v413 = vadd.f32 %v411, %v412
  %v414 = vsel %vm314, %v376, 0.0
  %v415 = vrot.slane %v414, 4
  %v416 = vadd.f32 %v414, %v415
  %v417 = vrot.slane %v416, 2
  %v418 = vadd.f32 %v416, %v417
  %v419 = vrot.slane %v418, 1
  %v420 = vadd.f32 %v418, %v419
  %v421 = vsel %vm314, %v377, 0.0
  %v422 = vrot.slane %v421, 4
  %v423 = vadd.f32 %v421, %v422
  %v424 = vrot.slane %v423, 2
  %v425 = vadd.f32 %v423, %v424
  %v426 = vrot.slane %v425, 1
  %v427 = vadd.f32 %v425, %v426
  %v428 = vsel %vm314, %v378, 0.0
  %v429 = vrot.slane %v428, 4
  %v430 = vadd.f32 %v428, %v429
  %v431 = vrot.slane %v430, 2
  %v432 = vadd.f32 %v430, %v431
  %v433 = vrot.slane %v432, 1
  %v434 = vadd.f32 %v432, %v433
  %435 = vrot.lane.b32.xlu0 %v321, 64
  %v436 = vpop.permute.xlu0 %435
  %437 = vrot.lane.b32.xlu0 %v328, 64
  %v438 = vpop.permute.xlu0 %437
  %439 = vrot.lane.b32.xlu0 %v335, 64
  %v440 = vpop.permute.xlu0 %439
  %441 = vrot.lane.b32.xlu0 %v342, 64
  %v442 = vpop.permute.xlu0 %441
  %443 = vrot.lane.b32.xlu0 %v349, 64
  %v444 = vpop.permute.xlu0 %443
  %445 = vrot.lane.b32.xlu0 %v356, 64
  %v446 = vpop.permute.xlu0 %445
  %447 = vrot.lane.b32.xlu0 %v363, 64
  %v448 = vpop.permute.xlu0 %447
  %449 = vrot.lane.b32.xlu0 %v370, 64
  %v450 = vpop.permute.xlu0 %449
  %v451 = vlaneseq
  %v452 = vand.u32 %v451, 127
  %vm453 = vcmp.lt.s32.totalorder %v452, 64
  %v454 = vsel %vm453, %v448, %v450
  %v455 = vsel %vm453, %v446, %v448
  %v456 = vsel %vm453, %v444, %v446
  %v457 = vsel %vm453, %v442, %v444
  %v458 = vsel %vm453, %v440, %v442
  %v459 = vsel %vm453, %v438, %v440
  %v460 = vsel %vm453, %v436, %v438
  %v461 = vsel %vm453, %v450, %v436
  %v462 = vadd.f32 %v321, %v461
  %v463 = vadd.f32 %v328, %v460
  %v464 = vadd.f32 %v335, %v459
  %v465 = vadd.f32 %v342, %v458
  %v466 = vadd.f32 %v349, %v457
  %v467 = vadd.f32 %v356, %v456
  %v468 = vadd.f32 %v363, %v455
  %v469 = vadd.f32 %v370, %v454
  %470 = vrot.lane.b32.xlu0 %v385, 64
  %v471 = vpop.permute.xlu0 %470
  %472 = vrot.lane.b32.xlu0 %v392, 64
  %v473 = vpop.permute.xlu0 %472
  %474 = vrot.lane.b32.xlu0 %v399, 64
  %v475 = vpop.permute.xlu0 %474
  %476 = vrot.lane.b32.xlu0 %v406, 64
  %v477 = vpop.permute.xlu0 %476
  %478 = vrot.lane.b32.xlu0 %v413, 64
  %v479 = vpop.permute.xlu0 %478
  %480 = vrot.lane.b32.xlu0 %v420, 64
  %v481 = vpop.permute.xlu0 %480
  %482 = vrot.lane.b32.xlu0 %v427, 64
  %v483 = vpop.permute.xlu0 %482
  %484 = vrot.lane.b32.xlu0 %v434, 64
  %v485 = vpop.permute.xlu0 %484
  %v486 = vsel %vm453, %v483, %v485
  %v487 = vsel %vm453, %v481, %v483
  %v488 = vsel %vm453, %v479, %v481
  %v489 = vsel %vm453, %v477, %v479
  %v490 = vsel %vm453, %v475, %v477
  %v491 = vsel %vm453, %v473, %v475
  %v492 = vsel %vm453, %v471, %v473
  %v493 = vsel %vm453, %v485, %v471
  %v494 = vadd.f32 %v385, %v493
  %v495 = vadd.f32 %v392, %v492
  %v496 = vadd.f32 %v399, %v491
  %v497 = vadd.f32 %v406, %v490
  %v498 = vadd.f32 %v413, %v489
  %v499 = vadd.f32 %v420, %v488
  %v500 = vadd.f32 %v427, %v487
  %v501 = vadd.f32 %v434, %v486
  %v502 = vadd.f32 %v462, %v370
  %v503 = vadd.f32 %v463, %v321
  %v504 = vadd.f32 %v464, %v328
  %v505 = vadd.f32 %v465, %v335
  %v506 = vadd.f32 %v466, %v342
  %v507 = vadd.f32 %v467, %v349
  %v508 = vadd.f32 %v468, %v356
  %v509 = vadd.f32 %v469, %v363
  %v510 = vadd.f32 %v494, %v434
  %v511 = vadd.f32 %v495, %v385
  %v512 = vadd.f32 %v496, %v392
  %v513 = vadd.f32 %v497, %v399
  %v514 = vadd.f32 %v498, %v406
  %v515 = vadd.f32 %v499, %v413
  %v516 = vadd.f32 %v500, %v420
  %v517 = vadd.f32 %v501, %v427
  %v518 = vadd.f32 %v502, %v454
  %v519 = vadd.f32 %v503, %v461
  %v520 = vadd.f32 %v504, %v460
  %v521 = vadd.f32 %v505, %v459
  %v522 = vadd.f32 %v506, %v458
  %v523 = vadd.f32 %v507, %v457
  %v524 = vadd.f32 %v508, %v456
  %v525 = vadd.f32 %v509, %v455
  %v526 = vadd.f32 %v510, %v486
  %v527 = vadd.f32 %v511, %v493
  %v528 = vadd.f32 %v512, %v492
  %v529 = vadd.f32 %v513, %v491
  %v530 = vadd.f32 %v514, %v490
  %v531 = vadd.f32 %v515, %v489
  %v532 = vadd.f32 %v516, %v488
  %v533 = vadd.f32 %v517, %v487
  %v534 = vadd.f32 %v518, %v363
  %v535 = vadd.f32 %v519, %v370
  %v536 = vadd.f32 %v520, %v321
  %v537 = vadd.f32 %v521, %v328
  %v538 = vadd.f32 %v522, %v335
  %v539 = vadd.f32 %v523, %v342
  %v540 = vadd.f32 %v524, %v349
  %v541 = vadd.f32 %v525, %v356
  %v542 = vadd.f32 %v526, %v427
  %v543 = vadd.f32 %v527, %v434
  %v544 = vadd.f32 %v528, %v385
  %v545 = vadd.f32 %v529, %v392
  %v546 = vadd.f32 %v530, %v399
  %v547 = vadd.f32 %v531, %v406
  %v548 = vadd.f32 %v532, %v413
  %v549 = vadd.f32 %v533, %v420
  %v550 = vadd.f32 %v534, %v455
  %v551 = vadd.f32 %v535, %v454
  %v552 = vadd.f32 %v536, %v461
  %v553 = vadd.f32 %v537, %v460
  %v554 = vadd.f32 %v538, %v459
  %v555 = vadd.f32 %v539, %v458
  %v556 = vadd.f32 %v540, %v457
  %v557 = vadd.f32 %v541, %v456
  %v558 = vadd.f32 %v542, %v487
  %v559 = vadd.f32 %v543, %v486
  %v560 = vadd.f32 %v544, %v493
  %v561 = vadd.f32 %v545, %v492
  %v562 = vadd.f32 %v546, %v491
  %v563 = vadd.f32 %v547, %v490
  %v564 = vadd.f32 %v548, %v489
  %v565 = vadd.f32 %v549, %v488
  %v566 = vadd.f32 %v550, %v356
  %v567 = vadd.f32 %v551, %v363
  %v568 = vadd.f32 %v552, %v370
  %v569 = vadd.f32 %v553, %v321
  %v570 = vadd.f32 %v554, %v328
  %v571 = vadd.f32 %v555, %v335
  %v572 = vadd.f32 %v556, %v342
  %v573 = vadd.f32 %v557, %v349
  %v574 = vadd.f32 %v558, %v420
  %v575 = vadd.f32 %v559, %v427
  %v576 = vadd.f32 %v560, %v434
  %v577 = vadd.f32 %v561, %v385
  %v578 = vadd.f32 %v562, %v392
  %v579 = vadd.f32 %v563, %v399
  %v580 = vadd.f32 %v564, %v406
  %v581 = vadd.f32 %v565, %v413
  %v582 = vadd.f32 %v566, %v456
  %v583 = vadd.f32 %v567, %v455
  %v584 = vadd.f32 %v568, %v454
  %v585 = vadd.f32 %v569, %v461
  %v586 = vadd.f32 %v570, %v460
  %v587 = vadd.f32 %v571, %v459
  %v588 = vadd.f32 %v572, %v458
  %v589 = vadd.f32 %v573, %v457
  %v590 = vadd.f32 %v574, %v488
  %v591 = vadd.f32 %v575, %v487
  %v592 = vadd.f32 %v576, %v486
  %v593 = vadd.f32 %v577, %v493
  %v594 = vadd.f32 %v578, %v492
  %v595 = vadd.f32 %v579, %v491
  %v596 = vadd.f32 %v580, %v490
  %v597 = vadd.f32 %v581, %v489
  %v598 = vadd.f32 %v582, %v349
  %v599 = vadd.f32 %v583, %v356
  %v600 = vadd.f32 %v584, %v363
  %v601 = vadd.f32 %v585, %v370
  %v602 = vadd.f32 %v586, %v321
  %v603 = vadd.f32 %v587, %v328
  %v604 = vadd.f32 %v588, %v335
  %v605 = vadd.f32 %v589, %v342
  %v606 = vadd.f32 %v590, %v413
  %v607 = vadd.f32 %v591, %v420
  %v608 = vadd.f32 %v592, %v427
  %v609 = vadd.f32 %v593, %v434
  %v610 = vadd.f32 %v594, %v385
  %v611 = vadd.f32 %v595, %v392
  %v612 = vadd.f32 %v596, %v399
  %v613 = vadd.f32 %v597, %v406
  %v614 = vadd.f32 %v598, %v457
  %v615 = vadd.f32 %v599, %v456
  %v616 = vadd.f32 %v600, %v455
  %v617 = vadd.f32 %v601, %v454
  %v618 = vadd.f32 %v602, %v461
  %v619 = vadd.f32 %v603, %v460
  %v620 = vadd.f32 %v604, %v459
  %v621 = vadd.f32 %v605, %v458
  %v622 = vadd.f32 %v606, %v489
  %v623 = vadd.f32 %v607, %v488
  %v624 = vadd.f32 %v608, %v487
  %v625 = vadd.f32 %v609, %v486
  %v626 = vadd.f32 %v610, %v493
  %v627 = vadd.f32 %v611, %v492
  %v628 = vadd.f32 %v612, %v491
  %v629 = vadd.f32 %v613, %v490
  %v630 = vadd.f32 %v614, %v342
  %v631 = vadd.f32 %v615, %v349
  %v632 = vadd.f32 %v616, %v356
  %v633 = vadd.f32 %v617, %v363
  %v634 = vadd.f32 %v618, %v370
  %v635 = vadd.f32 %v619, %v321
  %v636 = vadd.f32 %v620, %v328
  %v637 = vadd.f32 %v621, %v335
  %v638 = vadd.f32 %v622, %v406
  %v639 = vadd.f32 %v623, %v413
  %v640 = vadd.f32 %v624, %v420
  %v641 = vadd.f32 %v625, %v427
  %v642 = vadd.f32 %v626, %v434
  %v643 = vadd.f32 %v627, %v385
  %v644 = vadd.f32 %v628, %v392
  %v645 = vadd.f32 %v629, %v399
  %v646 = vadd.f32 %v630, %v458
  %v647 = vadd.f32 %v631, %v457
  %v648 = vadd.f32 %v632, %v456
  %v649 = vadd.f32 %v633, %v455
  %v650 = vadd.f32 %v634, %v454
  %v651 = vadd.f32 %v635, %v461
  %v652 = vadd.f32 %v636, %v460
  %v653 = vadd.f32 %v637, %v459
  %v654 = vadd.f32 %v638, %v490
  %v655 = vadd.f32 %v639, %v489
  %v656 = vadd.f32 %v640, %v488
  %v657 = vadd.f32 %v641, %v487
  %v658 = vadd.f32 %v642, %v486
  %v659 = vadd.f32 %v643, %v493
  %v660 = vadd.f32 %v644, %v492
  %v661 = vadd.f32 %v645, %v491
  %v662 = vadd.f32 %v646, %v335
  %v663 = vadd.f32 %v647, %v342
  %v664 = vadd.f32 %v648, %v349
  %v665 = vadd.f32 %v649, %v356
  %v666 = vadd.f32 %v650, %v363
  %v667 = vadd.f32 %v651, %v370
  %v668 = vadd.f32 %v652, %v321
  %v669 = vadd.f32 %v653, %v328
  %v670 = vadd.f32 %v654, %v399
  %v671 = vadd.f32 %v655, %v406
  %v672 = vadd.f32 %v656, %v413
  %v673 = vadd.f32 %v657, %v420
  %v674 = vadd.f32 %v658, %v427
  %v675 = vadd.f32 %v659, %v434
  %v676 = vadd.f32 %v660, %v385
  %v677 = vadd.f32 %v661, %v392
  %v678 = vadd.f32 %v662, %v459
  %v679 = vadd.f32 %v663, %v458
  %v680 = vadd.f32 %v664, %v457
  %v681 = vadd.f32 %v665, %v456
  %v682 = vadd.f32 %v666, %v455
  %v683 = vadd.f32 %v667, %v454
  %v684 = vadd.f32 %v668, %v461
  %v685 = vadd.f32 %v669, %v460
  %v686 = vadd.f32 %v670, %v491
  %v687 = vadd.f32 %v671, %v490
  %v688 = vadd.f32 %v672, %v489
  %v689 = vadd.f32 %v673, %v488
  %v690 = vadd.f32 %v674, %v487
  %v691 = vadd.f32 %v675, %v486
  %v692 = vadd.f32 %v676, %v493
  %v693 = vadd.f32 %v677, %v492
  %v694 = vadd.f32 %v678, %v328
  %v695 = vadd.f32 %v679, %v335
  %v696 = vadd.f32 %v680, %v342
  %v697 = vadd.f32 %v681, %v349
  %v698 = vadd.f32 %v682, %v356
  %v699 = vadd.f32 %v683, %v363
  %v700 = vadd.f32 %v684, %v370
  %v701 = vadd.f32 %v685, %v321
  %v702 = vadd.f32 %v686, %v392
  %v703 = vadd.f32 %v687, %v399
  %v704 = vadd.f32 %v688, %v406
  %v705 = vadd.f32 %v689, %v413
  %v706 = vadd.f32 %v690, %v420
  %v707 = vadd.f32 %v691, %v427
  %v708 = vadd.f32 %v692, %v434
  %v709 = vadd.f32 %v693, %v385
  %v710 = vadd.f32 %v694, %v460
  %v711 = vadd.f32 %v695, %v459
  %v712 = vadd.f32 %v696, %v458
  %v713 = vadd.f32 %v697, %v457
  %v714 = vadd.f32 %v698, %v456
  %v715 = vadd.f32 %v699, %v455
  %v716 = vadd.f32 %v700, %v454
  %v717 = vadd.f32 %v701, %v461
  %v718 = vadd.f32 %v702, %v492
  %v719 = vadd.f32 %v703, %v491
  %v720 = vadd.f32 %v704, %v490
  %v721 = vadd.f32 %v705, %v489
  %v722 = vadd.f32 %v706, %v488
  %v723 = vadd.f32 %v707, %v487
  %v724 = vadd.f32 %v708, %v486
  %v725 = vadd.f32 %v709, %v493
  %v726 = vmul.f32 %v710, 0.03125
  %v727 = vmul.f32 %v711, 0.03125
  %v728 = vmul.f32 %v712, 0.03125
  %v729 = vmul.f32 %v713, 0.03125
  %v730 = vmul.f32 %v714, 0.03125
  %v731 = vmul.f32 %v715, 0.03125
  %v732 = vmul.f32 %v716, 0.03125
  %v733 = vmul.f32 %v717, 0.03125
  %v734 = vmul.f32 %v718, 0.03125
  %v735 = vmul.f32 %v719, 0.03125
  %v736 = vmul.f32 %v720, 0.03125
  %v737 = vmul.f32 %v721, 0.03125
  %v738 = vmul.f32 %v722, 0.03125
  %v739 = vmul.f32 %v723, 0.03125
  %v740 = vmul.f32 %v724, 0.03125
  %v741 = vmul.f32 %v725, 0.03125
  %v742 = vmul.f32 %v726, %v726
  %v743 = vmul.f32 %v727, %v727
  %v744 = vmul.f32 %v728, %v728
  %v745 = vmul.f32 %v729, %v729
  %v746 = vmul.f32 %v730, %v730
  %v747 = vmul.f32 %v731, %v731
  %v748 = vmul.f32 %v732, %v732
  %v749 = vmul.f32 %v733, %v733
  %v750 = vsub.f32 %v734, %v742
  %v751 = vsub.f32 %v735, %v743
  %v752 = vsub.f32 %v736, %v744
  %v753 = vsub.f32 %v737, %v745
  %v754 = vsub.f32 %v738, %v746
  %v755 = vsub.f32 %v739, %v747
  %v756 = vsub.f32 %v740, %v748
  %v757 = vsub.f32 %v741, %v749
  %v758 = vmax.f32 %v750, 0.0
  %v759 = vmax.f32 %v751, 0.0
  %v760 = vmax.f32 %v752, 0.0
  %v761 = vmax.f32 %v753, 0.0
  %v762 = vmax.f32 %v754, 0.0
  %v763 = vmax.f32 %v755, 0.0
  %v764 = vmax.f32 %v756, 0.0
  %v765 = vmax.f32 %v757, 0.0
  %v766 = vld [vmem:[%s2] sm:$0xff]
  %v767 = vadd.f32 %v758, 1e-05
  %v768 = vadd.f32 %v759, 1e-05
  %v769 = vadd.f32 %v760, 1e-05
  %v770 = vadd.f32 %v761, 1e-05
  %v771 = vadd.f32 %v762, 1e-05
  %v772 = vadd.f32 %v763, 1e-05
  %v773 = vadd.f32 %v764, 1e-05
  %v774 = vadd.f32 %v765, 1e-05
  %v775 = vrsqrt.pop %v767
  %v776 = vrsqrt.pop %v768
  %v777 = vrsqrt.pop %v769
  %v778 = vrsqrt.pop %v770
  %v779 = vrsqrt.pop %v771
  %v780 = vrsqrt.pop %v772
  %v781 = vrsqrt.pop %v773
  %v782 = vrsqrt.pop %v774
  %v791 = vcombine.low %v775, %v776
  %v792 = vcombine.low %v777, %v778
  %v793 = vcombine.low %v779, %v780
  %v794 = vcombine.low %v781, %v782
  %v796 = vunpack.c.l.s4 1966171168
  %v797 = vunpack.c.0.s8 %v796
  %v798 = vlaneseq
  %v799 = vshrl.u32 %v798, 7
  %v800 = vsub.s32 %v797, %v799
  %v801 = vrot.slane %v791, %v800
  %v803 = vunpack.c.l.s4 1966171168
  %v804 = vunpack.c.0.s8 %v803
  %v805 = vlaneseq
  %v806 = vshrl.u32 %v805, 7
  %v807 = vsub.s32 %v804, %v806
  %v808 = vrot.slane %v792, %v807
  %v810 = vunpack.c.l.s4 1966171168
  %v811 = vunpack.c.0.s8 %v810
  %v812 = vlaneseq
  %v813 = vshrl.u32 %v812, 7
  %v814 = vsub.s32 %v811, %v813
  %v815 = vrot.slane %v793, %v814
  %v817 = vunpack.c.l.s4 1966171168
  %v818 = vunpack.c.0.s8 %v817
  %v819 = vlaneseq
  %v820 = vshrl.u32 %v819, 7
  %v821 = vsub.s32 %v818, %v820
  %v822 = vrot.slane %v794, %v821
  %v823 = vcombine.low %v801, %v808
  %v824 = vcombine.low %v815, %v822
  %v826 = vunpack.c.l.s4 1966171168
  %v827 = vunpack.c.0.s8 %v826
  %v828 = vlaneseq
  %v829 = vshrl.u32 %v828, 7
  %v830 = vsub.s32 %v827, %v829
  %v831 = vrot.slane %v823, %v830
  %v833 = vunpack.c.l.s4 1966171168
  %v834 = vunpack.c.0.s8 %v833
  %v835 = vlaneseq
  %v836 = vshrl.u32 %v835, 7
  %v837 = vsub.s32 %v834, %v836
  %v838 = vrot.slane %v824, %v837
  %v839 = vcombine.low %v831, %v838
  %v841 = vmul.f32 %v766, %v839
  %v842 = vld [vmem:[%s3] sm:$0xff]
  %v844 = vlaneseq
  %v845 = vshrl.u32 %v844, 7
  %v846 = vsub.s32 0, %v845
  %v847 = vrot.slane %v841, %v846
  %v848 = vlaneseq
  %v849 = vshrl.u32 %v848, 7
  %v850 = vsub.s32 1, %v849
  %v851 = vrot.slane %v841, %v850
  %v852 = vlaneseq
  %v853 = vshrl.u32 %v852, 7
  %v854 = vsub.s32 2, %v853
  %v855 = vrot.slane %v841, %v854
  %v856 = vlaneseq
  %v857 = vshrl.u32 %v856, 7
  %v858 = vsub.s32 3, %v857
  %v859 = vrot.slane %v841, %v858
  %v860 = vlaneseq
  %v861 = vshrl.u32 %v860, 7
  %v862 = vsub.s32 4, %v861
  %v863 = vrot.slane %v841, %v862
  %v864 = vlaneseq
  %v865 = vshrl.u32 %v864, 7
  %v866 = vsub.s32 5, %v865
  %v867 = vrot.slane %v841, %v866
  %v868 = vlaneseq
  %v869 = vshrl.u32 %v868, 7
  %v870 = vsub.s32 6, %v869
  %v871 = vrot.slane %v841, %v870
  %v872 = vlaneseq
  %v873 = vshrl.u32 %v872, 7
  %v874 = vsub.s32 7, %v873
  %v875 = vrot.slane %v841, %v874
  %v884 = vmul.f32 %v726, %v847
  %v885 = vmul.f32 %v727, %v851
  %v886 = vmul.f32 %v728, %v855
  %v887 = vmul.f32 %v729, %v859
  %v888 = vmul.f32 %v730, %v863
  %v889 = vmul.f32 %v731, %v867
  %v890 = vmul.f32 %v732, %v871
  %v891 = vmul.f32 %v733, %v875
  %v900 = vcombine.low %v884, %v885
  %v901 = vcombine.low %v886, %v887
  %v902 = vcombine.low %v888, %v889
  %v903 = vcombine.low %v890, %v891
  %v905 = vunpack.c.l.s4 1966171168
  %v906 = vunpack.c.0.s8 %v905
  %v907 = vlaneseq
  %v908 = vshrl.u32 %v907, 7
  %v909 = vsub.s32 %v906, %v908
  %v910 = vrot.slane %v900, %v909
  %v912 = vunpack.c.l.s4 1966171168
  %v913 = vunpack.c.0.s8 %v912
  %v914 = vlaneseq
  %v915 = vshrl.u32 %v914, 7
  %v916 = vsub.s32 %v913, %v915
  %v917 = vrot.slane %v901, %v916
  %v919 = vunpack.c.l.s4 1966171168
  %v920 = vunpack.c.0.s8 %v919
  %v921 = vlaneseq
  %v922 = vshrl.u32 %v921, 7
  %v923 = vsub.s32 %v920, %v922
  %v924 = vrot.slane %v902, %v923
  %v926 = vunpack.c.l.s4 1966171168
  %v927 = vunpack.c.0.s8 %v926
  %v928 = vlaneseq
  %v929 = vshrl.u32 %v928, 7
  %v930 = vsub.s32 %v927, %v929
  %v931 = vrot.slane %v903, %v930
  %v932 = vcombine.low %v910, %v917
  %v933 = vcombine.low %v924, %v931
  %v935 = vunpack.c.l.s4 1966171168
  %v936 = vunpack.c.0.s8 %v935
  %v937 = vlaneseq
  %v938 = vshrl.u32 %v937, 7
  %v939 = vsub.s32 %v936, %v938
  %v940 = vrot.slane %v932, %v939
  %v942 = vunpack.c.l.s4 1966171168
  %v943 = vunpack.c.0.s8 %v942
  %v944 = vlaneseq
  %v945 = vshrl.u32 %v944, 7
  %v946 = vsub.s32 %v943, %v945
  %v947 = vrot.slane %v933, %v946
  %v948 = vcombine.low %v940, %v947
  %v950 = vsub.f32 %v842, %v948
  %v951 = vmul.f32 %v97, %v847
  %v952 = vmul.f32 %v99, %v851
  %v953 = vmul.f32 %v168, %v855
  %v954 = vmul.f32 %v170, %v859
  %v955 = vmul.f32 %v239, %v863
  %v956 = vmul.f32 %v241, %v867
  %v957 = vmul.f32 %v310, %v871
  %v958 = vmul.f32 %v312, %v875
  %v960 = vlaneseq
  %v961 = vshrl.u32 %v960, 7
  %v962 = vsub.s32 0, %v961
  %v963 = vrot.slane %v950, %v962
  %v964 = vlaneseq
  %v965 = vshrl.u32 %v964, 7
  %v966 = vsub.s32 1, %v965
  %v967 = vrot.slane %v950, %v966
  %v968 = vlaneseq
  %v969 = vshrl.u32 %v968, 7
  %v970 = vsub.s32 2, %v969
  %v971 = vrot.slane %v950, %v970
  %v972 = vlaneseq
  %v973 = vshrl.u32 %v972, 7
  %v974 = vsub.s32 3, %v973
  %v975 = vrot.slane %v950, %v974
  %v976 = vlaneseq
  %v977 = vshrl.u32 %v976, 7
  %v978 = vsub.s32 4, %v977
  %v979 = vrot.slane %v950, %v978
  %v980 = vlaneseq
  %v981 = vshrl.u32 %v980, 7
  %v982 = vsub.s32 5, %v981
  %v983 = vrot.slane %v950, %v982
  %v984 = vlaneseq
  %v985 = vshrl.u32 %v984, 7
  %v986 = vsub.s32 6, %v985
  %v987 = vrot.slane %v950, %v986
  %v988 = vlaneseq
  %v989 = vshrl.u32 %v988, 7
  %v990 = vsub.s32 7, %v989
  %v991 = vrot.slane %v950, %v990
  %v1000 = vadd.f32 %v951, %v963
  %v1001 = vadd.f32 %v952, %v967
  %v1002 = vadd.f32 %v953, %v971
  %v1003 = vadd.f32 %v954, %v975
  %v1004 = vadd.f32 %v955, %v979
  %v1005 = vadd.f32 %v956, %v983
  %v1006 = vadd.f32 %v957, %v987
  %v1007 = vadd.f32 %v958, %v991
  %v1008 = vmax.f32 %v1000, 0.0
  %v1009 = vmax.f32 %v1001, 0.0
  %v1010 = vmax.f32 %v1002, 0.0
  %v1011 = vmax.f32 %v1003, 0.0
  %v1012 = vmax.f32 %v1004, 0.0
  %v1013 = vmax.f32 %v1005, 0.0
  %v1014 = vmax.f32 %v1006, 0.0
  %v1015 = vmax.f32 %v1007, 0.0
  %v1024 = vcombine.low %v1008, %v1009
  %v1025 = vcombine.low %v1010, %v1011
  %v1027 = vunpack.c.l.s4 1983009808
  %v1028 = vunpack.c.0.s8 %v1027
  %v1029 = vlaneseq
  %v1030 = vshrl.u32 %v1029, 7
  %v1031 = vsub.s32 %v1028, %v1030
  %v1032 = vrot.slane %v1024, %v1031
  %v1034 = vunpack.c.l.s4 1983009808
  %v1035 = vunpack.c.0.s8 %v1034
  %v1036 = vlaneseq
  %v1037 = vshrl.u32 %v1036, 7
  %v1038 = vsub.s32 %v1035, %v1037
  %v1039 = vrot.slane %v1025, %v1038
  %v1040 = vcombine.low %v1032, %v1039
  %v1041 = vcombine.low %v1012, %v1013
  %v1042 = vcombine.low %v1014, %v1015
  %v1044 = vunpack.c.l.s4 1983009808
  %v1045 = vunpack.c.0.s8 %v1044
  %v1046 = vlaneseq
  %v1047 = vshrl.u32 %v1046, 7
  %v1048 = vsub.s32 %v1045, %v1047
  %v1049 = vrot.slane %v1041, %v1048
  %v1051 = vunpack.c.l.s4 1983009808
  %v1052 = vunpack.c.0.s8 %v1051
  %v1053 = vlaneseq
  %v1054 = vshrl.u32 %v1053, 7
  %v1055 = vsub.s32 %v1052, %v1054
  %v1056 = vrot.slane %v1042, %v1055
  %v1057 = vcombine.low %v1049, %v1056
  %1060 = vst [vmem:[%s4] sm:$0xff] %v1040
  %1061 = vst [vmem:[%s4 + $0x8] sm:$0xff] %v1057
  // Predicated region
  $region18: #{generator_forward.5} parent=0 // pred_check
    _
  $region19: #{generator_forward.5} parent=0 // pred_check_branch
    %1063 = sbr.rel (0) target = $region21
  $region20: #{generator_forward.5} parent=0 // pred_region
    _
  $region21: #{generator_forward.5} parent=0 // pred_fallthru
    _
  // Predicated region
  $region22: #{generator_forward.5} parent=0 // pred_check
    _
  $region23: #{generator_forward.5} parent=0 // pred_check_branch
    %1065 = sbr.rel (0) target = $region25
  $region24: #{generator_forward.5} parent=0 // pred_region
    _
  $region25: #{generator_forward.5} parent=0 // pred_fallthru
    _

// kernel: tile.73
$region0: #{tile.73}
  #allocation0 [shape = 's32[1]{0}', space=sflag, size = 0x4, scoped, tag = 'scoped memory for tile.73']
  %s0 = inlined_call_operand.vmem [shape: f32[16], index: 0, kind: input, shape index: {}]
  %s1 = inlined_call_operand.vmem [shape: f32[4,16], index: 1, kind: output, shape index: {}]
  // Predicated region
  $region2: #{tile.73} parent=0 // pred_check
    _
  $region3: #{tile.73} parent=0 // pred_check_branch
    %3 = sbr.rel (0) target = $region5
  $region4: #{tile.73} parent=0 // pred_region
    _
  $region5: #{tile.73} parent=0 // pred_fallthru
    _
  %v4 = vld [vmem:[%s0] ss:$0 sm:$0xff]
  %5 = vst [vmem:[%s1] sm:$0xf] %v4

// kernel: tile.2
$region0: #{tile.2}
  %s0 = inlined_call_operand.vmem [shape: f32[4,16], index: 0, kind: input, shape index: {}]
  %s1 = inlined_call_operand.vmem [shape: f32[64,1], index: 1, kind: output, shape index: {}]
  $region1: #{tile.2} parent=0
    #allocation0 [shape = 'u8[4096]{0}', space=vmem, size = 0x1000, scoped, tag = 'scoped mem for input reshape']
    %s3 = sshllo.u32 0, 4
    %v4 = vld [vmem:[%s0] sm:%s3]
    %5 = vst [vmem:[#allocation0] sm:%s3] %v4
    %v6 = vld [vmem:[#allocation0] sm:$0xf]
    %vm7 = vcmask 7168
    %8 = vst.msk [vmem:[%s1] ss:$16 sm:$0x3] %vm7, %v6
    %9 = vst.msk [vmem:[%s1] ss:$16 sm:$0xc] %vm7, %v6
    %v10 = vld [vmem:[#allocation0] sm:$0xf]
    %11 = vrot.lane.b32.xlu0 %v10, 127
    %v12 = vpop.permute.xlu0 %11
    %vm13 = vcmask 7168
    %s14 = scalar_lea.vmem %s1, 1
    %15 = vst.msk [vmem:[%s14] ss:$16 sm:$0x3] %vm13, %v12
    %s16 = scalar_lea.vmem %s1, 1
    %17 = vst.msk [vmem:[%s16] ss:$16 sm:$0xc] %vm13, %v12
    %v18 = vld [vmem:[#allocation0] sm:$0xf]
    %19 = vrot.lane.b32.xlu0 %v18, 126
    %v20 = vpop.permute.xlu0 %19
    %vm21 = vcmask 7168
    %s22 = scalar_lea.vmem %s1, 2
    %23 = vst.msk [vmem:[%s22] ss:$16 sm:$0x3] %vm21, %v20
    %s24 = scalar_lea.vmem %s1, 2
    %25 = vst.msk [vmem:[%s24] ss:$16 sm:$0xc] %vm21, %v20
    %v26 = vld [vmem:[#allocation0] sm:$0xf]
    %27 = vrot.lane.b32.xlu0 %v26, 125
    %v28 = vpop.permute.xlu0 %27
    %vm29 = vcmask 7168
    %s30 = scalar_lea.vmem %s1, 3
    %31 = vst.msk [vmem:[%s30] ss:$16 sm:$0x3] %vm29, %v28
    %s32 = scalar_lea.vmem %s1, 3
    %33 = vst.msk [vmem:[%s32] ss:$16 sm:$0xc] %vm29, %v28
    %v34 = vld [vmem:[#allocation0] sm:$0xf]
    %35 = vrot.lane.b32.xlu0 %v34, 124
    %v36 = vpop.permute.xlu0 %35
    %vm37 = vcmask 7168
    %s38 = scalar_lea.vmem %s1, 4
    %39 = vst.msk [vmem:[%s38] ss:$16 sm:$0x3] %vm37, %v36
    %s40 = scalar_lea.vmem %s1, 4
    %41 = vst.msk [vmem:[%s40] ss:$16 sm:$0xc] %vm37, %v36
    %v42 = vld [vmem:[#allocation0] sm:$0xf]
    %43 = vrot.lane.b32.xlu0 %v42, 123
    %v44 = vpop.permute.xlu0 %43
    %vm45 = vcmask 7168
    %s46 = scalar_lea.vmem %s1, 5
    %47 = vst.msk [vmem:[%s46] ss:$16 sm:$0x3] %vm45, %v44
    %s48 = scalar_lea.vmem %s1, 5
    %49 = vst.msk [vmem:[%s48] ss:$16 sm:$0xc] %vm45, %v44
    %v50 = vld [vmem:[#allocation0] sm:$0xf]
    %51 = vrot.lane.b32.xlu0 %v50, 122
    %v52 = vpop.permute.xlu0 %51
    %vm53 = vcmask 7168
    %s54 = scalar_lea.vmem %s1, 6
    %55 = vst.msk [vmem:[%s54] ss:$16 sm:$0x3] %vm53, %v52
    %s56 = scalar_lea.vmem %s1, 6
    %57 = vst.msk [vmem:[%s56] ss:$16 sm:$0xc] %vm53, %v52
    %v58 = vld [vmem:[#allocation0] sm:$0xf]
    %59 = vrot.lane.b32.xlu0 %v58, 121
    %v60 = vpop.permute.xlu0 %59
    %vm61 = vcmask 7168
    %s62 = scalar_lea.vmem %s1, 7
    %63 = vst.msk [vmem:[%s62] ss:$16 sm:$0x3] %vm61, %v60
    %s64 = scalar_lea.vmem %s1, 7
    %65 = vst.msk [vmem:[%s64] ss:$16 sm:$0xc] %vm61, %v60
    %v66 = vld [vmem:[#allocation0] sm:$0xf]
    %67 = vrot.lane.b32.xlu0 %v66, 120
    %v68 = vpop.permute.xlu0 %67
    %vm69 = vcmask 7168
    %s70 = scalar_lea.vmem %s1, 8
    %71 = vst.msk [vmem:[%s70] ss:$16 sm:$0x3] %vm69, %v68
    %s72 = scalar_lea.vmem %s1, 8
    %73 = vst.msk [vmem:[%s72] ss:$16 sm:$0xc] %vm69, %v68
    %v74 = vld [vmem:[#allocation0] sm:$0xf]
    %75 = vrot.lane.b32.xlu0 %v74, 119
    %v76 = vpop.permute.xlu0 %75
    %vm77 = vcmask 7168
    %s78 = scalar_lea.vmem %s1, 9
    %79 = vst.msk [vmem:[%s78] ss:$16 sm:$0x3] %vm77, %v76
    %s80 = scalar_lea.vmem %s1, 9
    %81 = vst.msk [vmem:[%s80] ss:$16 sm:$0xc] %vm77, %v76
    %v82 = vld [vmem:[#allocation0] sm:$0xf]
    %83 = vrot.lane.b32.xlu0 %v82, 118
    %v84 = vpop.permute.xlu0 %83
    %vm85 = vcmask 7168
    %s86 = scalar_lea.vmem %s1, 10
    %87 = vst.msk [vmem:[%s86] ss:$16 sm:$0x3] %vm85, %v84
    %s88 = scalar_lea.vmem %s1, 10
    %89 = vst.msk [vmem:[%s88] ss:$16 sm:$0xc] %vm85, %v84
    %v90 = vld [vmem:[#allocation0] sm:$0xf]
    %91 = vrot.lane.b32.xlu0 %v90, 117
    %v92 = vpop.permute.xlu0 %91
    %vm93 = vcmask 7168
    %s94 = scalar_lea.vmem %s1, 11
    %95 = vst.msk [vmem:[%s94] ss:$16 sm:$0x3] %vm93, %v92
    %s96 = scalar_lea.vmem %s1, 11
    %97 = vst.msk [vmem:[%s96] ss:$16 sm:$0xc] %vm93, %v92
    %v98 = vld [vmem:[#allocation0] sm:$0xf]
    %99 = vrot.lane.b32.xlu0 %v98, 116
    %v100 = vpop.permute.xlu0 %99
    %vm101 = vcmask 7168
    %s102 = scalar_lea.vmem %s1, 12
    %103 = vst.msk [vmem:[%s102] ss:$16 sm:$0x3] %vm101, %v100
    %s104 = scalar_lea.vmem %s1, 12
    %105 = vst.msk [vmem:[%s104] ss:$16 sm:$0xc] %vm101, %v100
    %v106 = vld [vmem:[#allocation0] sm:$0xf]
    %107 = vrot.lane.b32.xlu0 %v106, 115
    %v108 = vpop.permute.xlu0 %107
    %vm109 = vcmask 7168
    %s110 = scalar_lea.vmem %s1, 13
    %111 = vst.msk [vmem:[%s110] ss:$16 sm:$0x3] %vm109, %v108
    %s112 = scalar_lea.vmem %s1, 13
    %113 = vst.msk [vmem:[%s112] ss:$16 sm:$0xc] %vm109, %v108
    %v114 = vld [vmem:[#allocation0] sm:$0xf]
    %115 = vrot.lane.b32.xlu0 %v114, 114
    %v116 = vpop.permute.xlu0 %115
    %vm117 = vcmask 7168
    %s118 = scalar_lea.vmem %s1, 14
    %119 = vst.msk [vmem:[%s118] ss:$16 sm:$0x3] %vm117, %v116
    %s120 = scalar_lea.vmem %s1, 14
    %121 = vst.msk [vmem:[%s120] ss:$16 sm:$0xc] %vm117, %v116
    %v122 = vld [vmem:[#allocation0] sm:$0xf]
    %123 = vrot.lane.b32.xlu0 %v122, 113
    %v124 = vpop.permute.xlu0 %123
    %vm125 = vcmask 7168
    %s126 = scalar_lea.vmem %s1, 15
    %127 = vst.msk [vmem:[%s126] ss:$16 sm:$0x3] %vm125, %v124
    %s128 = scalar_lea.vmem %s1, 15
    %129 = vst.msk [vmem:[%s128] ss:$16 sm:$0xc] %vm125, %v124

// kernel: generator_forward.6
$region0: #{generator_forward.6}
  #allocation0 [shape = 'u32[]', space=smem, size = 0x4, offset = 0x4, fixed_abs, tag = 'smem constant byte address 0x4 - core index']
  #allocation1 [shape = 'u32[144,128]{1,0:T(1,128)}', space=vmem, size = 0x12000, scoped, tag = 'internal scratch']
  #allocation2 [shape = 'f32[128,128]{1,0:T(8,128)}', space=vmem, size = 0x10000, scoped, tag = 'scratch operand']
  #allocation3 [shape = 'f32[128,1]{1,0:T(8,128)}', space=vmem, size = 0x10000, scoped, tag = 'scratch operand']
  #allocation4 [shape = 'f32[128,1]{1,0:T(8,128)}', space=vmem, size = 0x10000, scoped, tag = 'scratch operand']
  %s0 = inlined_call_operand.vmem [shape: f32[128,576], index: 0, kind: input, shape index: {}]
  %s1 = inlined_call_operand.vmem [shape: f32[576,128], index: 1, kind: input, shape index: {}]
  %s2 = inlined_call_operand.vmem [shape: f32[128,1], index: 2, kind: input, shape index: {}]
  %s3 = inlined_call_operand.vmem [shape: f32[128,1], index: 3, kind: input, shape index: {}]
  %s4 = inlined_call_operand.vmem [shape: f32[128,128], index: 4, kind: output, shape index: {}]
  %s5 = sld [smem:[#allocation0]]
  $region65: #{generator_forward.6} parent=0
    _
  %s7 = ssub.s32 1, %s5
  %s8 = scalar_select 0, %s7, %s5
  loop: start=0, step=1, limit=4
  $region2: #{generator_forward.6} parent=0 // loop_pre_header
    _
  $region3: #{generator_forward.6} parent=0 // loop_header
    %s10 = sphi 0, %s14
    %p11 = scmp.ge.s32.totalorder %s10, 4
    %s17 = sphi 0, %s29
    %s18 = sphi 0, %s25
    %s19 = sphi 0, %s17
    %s20 = sphi 0, %s18
    %s21 = sphi 0, %s19
    %s22 = sphi 0, %s20
    %s30 = sphi 0, %s30
    %s32 = sphi 0, %s30
    %s33 = sphi 0, %s32
    %s47 = sphi 0, %s33
    %s57 = sphi 0, %s59
    %s60 = sphi 0, %s57
    %s61 = sphi 0, %s60
    %s77 = sphi 0, %s61
    %s81 = sphi 0, %s81
    %s83 = sphi 0, %s81
    %s84 = sphi 0, %s83
    %s98 = sphi 0, %s84
    %s102 = sphi 0, %s102
    %s104 = sphi 0, %s102
    %s105 = sphi 0, %s104
    %s119 = sphi 0, %s105
    %s127 = sphi 0, %s129
    %s130 = sphi 0, %s127
    %s131 = sphi 0, %s130
    %s147 = sphi 0, %s131
  $region4: #{generator_forward.6} parent=0 // loop_header_branch
    %13 = sbr.rel (%p11) target = $region8
  $region5: #{generator_forward.6} parent=0 // loop_body
    %s15 = ssub.s32 %s10, 1
    %s16 = ssub.s32 %s10, 2
    %s23 = sadd.s32 1, %s18
    %p24 = scmp.ge.s32.totalorder %s23, 1
    %s25 = scalar_select %p24, 0, %s23
    %s26 = sadd.s32 1, %s17
    %s27 = scalar_select %p24, %s26, %s17
    %p28 = scmp.ge.s32.totalorder %s27, 2
    %s29 = scalar_select %p28, 0, %s27
    %s31 = sadd.s32 %s30, 1
    %p34 = scmp.eq.s32.totalorder %s10, 1
    %p35 = scmp.ne.s32.totalorder %s30, %s32
    %p36 = scmp.eq.s32.totalorder %s10, 0
    %p37 = por %p35, %p36
    %p38 = scmp.ne.s32.totalorder %s30, %s32
    %p39 = scmp.eq.s32.totalorder %s15, 1
    %p40 = por %p38, %p39
    %p41 = scmp.ne.s32.totalorder %s32, %s33
    %p42 = scmp.eq.s32.totalorder %s15, 0
    %p43 = por %p41, %p42
    %p44 = scmp.ne.s32.totalorder %s32, %s33
    %p45 = scmp.eq.s32.totalorder %s16, 1
    %p46 = por %p44, %p45
    %p48 = scmp.ne.s32.totalorder %s33, %s47
    %p49 = scmp.eq.s32.totalorder %s16, 0
    %p50 = por %p48, %p49
    %s51 = ssub.s32 1, %s17
    %s52 = smul.u32 %s18, %s51
    %s53 = ssub.s32 1, %s29
    %s54 = smul.u32 %s25, %s53
    %s55 = ssub.s32 %s52, %s54
    %p56 = scmp.eq.s32.totalorder %s55, 0
    %s58 = sadd.s32 %s57, 1
    %s59 = scalar_select %p56, %s57, %s58
    %p62 = pneg %p56
    %p63 = scmp.eq.s32.totalorder %s10, 1
    %p64 = por %p62, %p63
    %p65 = scmp.ne.s32.totalorder %s57, %s60
    %p66 = scmp.eq.s32.totalorder %s10, 0
    %p67 = por %p65, %p66
    %p68 = scmp.ne.s32.totalorder %s57, %s60
    %p69 = scmp.eq.s32.totalorder %s15, 1
    %p70 = por %p68, %p69
    %p71 = scmp.ne.s32.totalorder %s60, %s61
    %p72 = scmp.eq.s32.totalorder %s15, 0
    %p73 = por %p71, %p72
    %p74 = scmp.ne.s32.totalorder %s60, %s61
    %p75 = scmp.eq.s32.totalorder %s16, 1
    %p76 = por %p74, %p75
    %p78 = scmp.ne.s32.totalorder %s61, %s77
    %p79 = scmp.eq.s32.totalorder %s16, 0
    %p80 = por %p78, %p79
    %s82 = sadd.s32 %s81, 1
    %p85 = scmp.eq.s32.totalorder %s10, 1
    %p86 = scmp.ne.s32.totalorder %s81, %s83
    %p87 = scmp.eq.s32.totalorder %s10, 0
    %p88 = por %p86, %p87
    %p89 = scmp.ne.s32.totalorder %s81, %s83
    %p90 = scmp.eq.s32.totalorder %s15, 1
    %p91 = por %p89, %p90
    %p92 = scmp.ne.s32.totalorder %s83, %s84
    %p93 = scmp.eq.s32.totalorder %s15, 0
    %p94 = por %p92, %p93
    %p95 = scmp.ne.s32.totalorder %s83, %s84
    %p96 = scmp.eq.s32.totalorder %s16, 1
    %p97 = por %p95, %p96
    %p99 = scmp.ne.s32.totalorder %s84, %s98
    %p100 = scmp.eq.s32.totalorder %s16, 0
    %p101 = por %p99, %p100
    %s103 = sadd.s32 %s102, 1
    %p106 = scmp.eq.s32.totalorder %s10, 1
    %p107 = scmp.ne.s32.totalorder %s102, %s104
    %p108 = scmp.eq.s32.totalorder %s10, 0
    %p109 = por %p107, %p108
    %p110 = scmp.ne.s32.totalorder %s102, %s104
    %p111 = scmp.eq.s32.totalorder %s15, 1
    %p112 = por %p110, %p111
    %p113 = scmp.ne.s32.totalorder %s104, %s105
    %p114 = scmp.eq.s32.totalorder %s15, 0
    %p115 = por %p113, %p114
    %p116 = scmp.ne.s32.totalorder %s104, %s105
    %p117 = scmp.eq.s32.totalorder %s16, 1
    %p118 = por %p116, %p117
    %p120 = scmp.ne.s32.totalorder %s105, %s119
    %p121 = scmp.eq.s32.totalorder %s16, 0
    %p122 = por %p120, %p121
    %s123 = smul.u32 %s18, %s17
    %s124 = smul.u32 %s25, %s29
    %s125 = ssub.s32 %s123, %s124
    %p126 = scmp.eq.s32.totalorder %s125, 0
    %s128 = sadd.s32 %s127, 1
    %s129 = scalar_select %p126, %s127, %s128
    %p132 = pneg %p126
    %p133 = scmp.eq.s32.totalorder %s10, 1
    %p134 = por %p132, %p133
    %p135 = scmp.ne.s32.totalorder %s127, %s130
    %p136 = scmp.eq.s32.totalorder %s10, 0
    %p137 = por %p135, %p136
    %p138 = scmp.ne.s32.totalorder %s127, %s130
    %p139 = scmp.eq.s32.totalorder %s15, 1
    %p140 = por %p138, %p139
    %p141 = scmp.ne.s32.totalorder %s130, %s131
    %p142 = scmp.eq.s32.totalorder %s15, 0
    %p143 = por %p141, %p142
    %p144 = scmp.ne.s32.totalorder %s130, %s131
    %p145 = scmp.eq.s32.totalorder %s16, 1
    %p146 = por %p144, %p145
    %p148 = scmp.ne.s32.totalorder %s131, %s147
    %p149 = scmp.eq.s32.totalorder %s16, 0
    %p150 = por %p148, %p149
    %p151 = scmp.le.s32.totalorder 1, %s10
    %p152 = scmp.lt.s32.totalorder %s10, 3
    %p153 = pnand %p151, %p152
    %p154 = pneg %p153
    // Predicated region
    $region9: #{generator_forward.6} parent=5 // pred_check
      _
    $region10: #{generator_forward.6} parent=5 // pred_check_branch
      %156 = sbr.rel (%p153) target = $region12
    $region11: #{generator_forward.6} parent=5 // pred_region
      %s157 = ssub.s32 %s10, 1
      // Predicated region
      $region13: #{generator_forward.6} parent=11 // pred_check
        %p158 = pneg %p43
      $region14: #{generator_forward.6} parent=11 // pred_check_branch
        %160 = sbr.rel (%p158) target = $region16
      $region15: #{generator_forward.6} parent=11 // pred_region
        _
      $region16: #{generator_forward.6} parent=11 // pred_fallthru
        _
      // Predicated region
      $region17: #{generator_forward.6} parent=11 // pred_check
        %p161 = pneg %p94
      $region18: #{generator_forward.6} parent=11 // pred_check_branch
        %163 = sbr.rel (%p161) target = $region20
      $region19: #{generator_forward.6} parent=11 // pred_region
        _
      $region20: #{generator_forward.6} parent=11 // pred_fallthru
        _
      // Predicated region
      $region21: #{generator_forward.6} parent=11 // pred_check
        %p164 = pneg %p115
      $region22: #{generator_forward.6} parent=11 // pred_check_branch
        %166 = sbr.rel (%p164) target = $region24
      $region23: #{generator_forward.6} parent=11 // pred_region
        _
      $region24: #{generator_forward.6} parent=11 // pred_fallthru
        _
    $region12: #{generator_forward.6} parent=5 // pred_fallthru
      _
    %p167 = scmp.lt.s32.totalorder %s10, 2
    // Predicated region
    $region25: #{generator_forward.6} parent=5 // pred_check
      %p168 = pneg %p167
    $region26: #{generator_forward.6} parent=5 // pred_check_branch
      %170 = sbr.rel (%p168) target = $region28
    $region27: #{generator_forward.6} parent=5 // pred_region
      // Predicated region
      $region29: #{generator_forward.6} parent=27 // pred_check
        %p171 = pneg %p67
      $region30: #{generator_forward.6} parent=27 // pred_check_branch
        %173 = sbr.rel (%p171) target = $region32
      $region31: #{generator_forward.6} parent=27 // pred_region
        %s174 = ssub.s32 1, %s17
        %s175 = smul.u32 %s18, %s174
        %p176 = scmp.lt.s32.totalorder %s175, 0
        %s177 = scalar_select %p176, %s175, 0
        %s178 = smul.addr %s177, 8
        %s179 = scalar_lea.vmem %s1, %s178
        %s180 = ssub.s32 1, %s17
        %s181 = smul.u32 %s18, %s180
      $region32: #{generator_forward.6} parent=27 // pred_fallthru
        _
    $region28: #{generator_forward.6} parent=5 // pred_fallthru
      _
    %p182 = scmp.le.s32.totalorder 1, %s10
    %p183 = scmp.lt.s32.totalorder %s10, 3
    %p184 = pnand %p182, %p183
    %p185 = pneg %p184
    // Predicated region
    $region33: #{generator_forward.6} parent=5 // pred_check
      _
    $region34: #{generator_forward.6} parent=5 // pred_check_branch
      %187 = sbr.rel (%p184) target = $region36
    $region35: #{generator_forward.6} parent=5 // pred_region
      %s188 = ssub.s32 %s10, 1
      %p189 = pneg %p43
      %p190 = pneg %p40
      %s191 = ssub.s32 1, %s19
      %s192 = smul.u32 %s20, %s191
      %p193 = scmp.lt.s32.totalorder %s192, 0
      %s194 = scalar_select %p193, %s192, 0
      %s195 = smul.addr %s194, 8
      %s196 = scalar_lea.vmem %s1, %s195
      %p197 = pneg %p73
      %p198 = pneg %p70
      %p199 = pneg %p94
      %p200 = pneg %p91
      %p201 = pneg %p115
      %p202 = pneg %p112
      %p203 = pneg %p143
      %p204 = pneg %p140
      %s205 = smul.u32 %s20, %s19
      %p206 = scmp.lt.s32.totalorder %s205, 0
      %s207 = scalar_select %p206, %s205, 0
      %s208 = smul.addr %s207, 8
      %s209 = scalar_lea.vmem %s4, %s208
      %s210 = ssub.s32 1, %s19
      %s211 = smul.u32 %s20, %s210
      %p212 = scmp.lt.s32.totalorder %s211, 0
      %s213 = scalar_select %p212, %s211, 0
      %s214 = smul.addr %s213, 8
      %s215 = scalar_lea.vmem %s1, %s214
      %s216 = ssub.s32 1, %s19
      %s217 = smul.u32 %s20, %s216
      %s218 = smul.u32 %s20, %s19
      %p219 = scmp.lt.s32.totalorder %s218, 0
      %s220 = scalar_select %p219, %s218, 0
      %s221 = smul.addr %s220, 8
      %s222 = scalar_lea.vmem %s4, %s221
      %s223 = smul.u32 %s20, %s19
      %p224 = scmp.eq.s32.totalorder %s19, 0
      // Predicated region
      $region37: #{generator_forward.6} parent=35 // pred_check
        %p225 = pneg %p224
      $region38: #{generator_forward.6} parent=35 // pred_check_branch
        %227 = sbr.rel (%p225) target = $region40
      $region39: #{generator_forward.6} parent=35 // pred_region
        %p228 = scmp.eq.s32.totalorder %s20, 0
        // Predicated region
        $region41: #{generator_forward.6} parent=39 // pred_check
          %p229 = pneg %p228
        $region42: #{generator_forward.6} parent=39 // pred_check_branch
          %231 = sbr.rel (%p229) target = $region44
        $region43: #{generator_forward.6} parent=39 // pred_region
          %vm232 = vcmask 7168
          %233 = vst.msk [vmem:[#allocation3] sm:$0xff] %vm232, 0.0
          %234 = vst.msk [vmem:[#allocation3 + $0x8] sm:$0xff] %vm232, 0.0
          %235 = vst.msk [vmem:[#allocation3 + $0x10] sm:$0xff] %vm232, 0.0
          %236 = vst.msk [vmem:[#allocation3 + $0x18] sm:$0xff] %vm232, 0.0
          %237 = vst.msk [vmem:[#allocation3 + $0x20] sm:$0xff] %vm232, 0.0
          %238 = vst.msk [vmem:[#allocation3 + $0x28] sm:$0xff] %vm232, 0.0
          %239 = vst.msk [vmem:[#allocation3 + $0x30] sm:$0xff] %vm232, 0.0
          %240 = vst.msk [vmem:[#allocation3 + $0x38] sm:$0xff] %vm232, 0.0
          %241 = vst.msk [vmem:[#allocation3 + $0x40] sm:$0xff] %vm232, 0.0
          %242 = vst.msk [vmem:[#allocation3 + $0x48] sm:$0xff] %vm232, 0.0
          %243 = vst.msk [vmem:[#allocation3 + $0x50] sm:$0xff] %vm232, 0.0
          %244 = vst.msk [vmem:[#allocation3 + $0x58] sm:$0xff] %vm232, 0.0
          %245 = vst.msk [vmem:[#allocation3 + $0x60] sm:$0xff] %vm232, 0.0
          %246 = vst.msk [vmem:[#allocation3 + $0x68] sm:$0xff] %vm232, 0.0
          %247 = vst.msk [vmem:[#allocation3 + $0x70] sm:$0xff] %vm232, 0.0
          %248 = vst.msk [vmem:[#allocation3 + $0x78] sm:$0xff] %vm232, 0.0
          %249 = vst.msk [vmem:[#allocation4] sm:$0xff] %vm232, 0.0
          %250 = vst.msk [vmem:[#allocation4 + $0x8] sm:$0xff] %vm232, 0.0
          %251 = vst.msk [vmem:[#allocation4 + $0x10] sm:$0xff] %vm232, 0.0
          %252 = vst.msk [vmem:[#allocation4 + $0x18] sm:$0xff] %vm232, 0.0
          %253 = vst.msk [vmem:[#allocation4 + $0x20] sm:$0xff] %vm232, 0.0
          %254 = vst.msk [vmem:[#allocation4 + $0x28] sm:$0xff] %vm232, 0.0
          %255 = vst.msk [vmem:[#allocation4 + $0x30] sm:$0xff] %vm232, 0.0
          %256 = vst.msk [vmem:[#allocation4 + $0x38] sm:$0xff] %vm232, 0.0
          %257 = vst.msk [vmem:[#allocation4 + $0x40] sm:$0xff] %vm232, 0.0
          %258 = vst.msk [vmem:[#allocation4 + $0x48] sm:$0xff] %vm232, 0.0
          %259 = vst.msk [vmem:[#allocation4 + $0x50] sm:$0xff] %vm232, 0.0
          %260 = vst.msk [vmem:[#allocation4 + $0x58] sm:$0xff] %vm232, 0.0
          %261 = vst.msk [vmem:[#allocation4 + $0x60] sm:$0xff] %vm232, 0.0
          %262 = vst.msk [vmem:[#allocation4 + $0x68] sm:$0xff] %vm232, 0.0
          %263 = vst.msk [vmem:[#allocation4 + $0x70] sm:$0xff] %vm232, 0.0
          %264 = vst.msk [vmem:[#allocation4 + $0x78] sm:$0xff] %vm232, 0.0
        $region44: #{generator_forward.6} parent=39 // pred_fallthru
          _
        %v265 = vld [vmem:[%s0] sm:$0xff]
        %v266 = vld [vmem:[%s0 + $0x8] sm:$0xff]
        %v267 = vld [vmem:[%s0 + $0x10] sm:$0xff]
        %v268 = vld [vmem:[%s0 + $0x18] sm:$0xff]
        %v269 = vld [vmem:[%s0 + $0x20] sm:$0xff]
        %v270 = vld [vmem:[%s0 + $0x28] sm:$0xff]
        %v271 = vld [vmem:[%s0 + $0x30] sm:$0xff]
        %v272 = vld [vmem:[%s0 + $0x38] sm:$0xff]
        %v273 = vld [vmem:[%s0 + $0x40] sm:$0xff]
        %v274 = vld [vmem:[%s0 + $0x48] sm:$0xff]
        %v275 = vld [vmem:[%s0 + $0x50] sm:$0xff]
        %v276 = vld [vmem:[%s0 + $0x58] sm:$0xff]
        %v277 = vld [vmem:[%s0 + $0x60] sm:$0xff]
        %v278 = vld [vmem:[%s0 + $0x68] sm:$0xff]
        %v279 = vld [vmem:[%s0 + $0x70] sm:$0xff]
        %v280 = vld [vmem:[%s0 + $0x78] sm:$0xff]
        %v281 = vld [vmem:[%s0 + $0x80] sm:$0xff]
        %v282 = vld [vmem:[%s0 + $0x88] sm:$0xff]
        %v283 = vld [vmem:[%s0 + $0x90] sm:$0xff]
        %v284 = vld [vmem:[%s0 + $0x98] sm:$0xff]
        %v285 = vld [vmem:[%s0 + $0xa0] sm:$0xff]
        %v286 = vld [vmem:[%s0 + $0xa8] sm:$0xff]
        %v287 = vld [vmem:[%s0 + $0xb0] sm:$0xff]
        %v288 = vld [vmem:[%s0 + $0xb8] sm:$0xff]
        %v289 = vld [vmem:[%s0 + $0xc0] sm:$0xff]
        %v290 = vld [vmem:[%s0 + $0xc8] sm:$0xff]
        %v291 = vld [vmem:[%s0 + $0xd0] sm:$0xff]
        %v292 = vld [vmem:[%s0 + $0xd8] sm:$0xff]
        %v293 = vld [vmem:[%s0 + $0xe0] sm:$0xff]
        %v294 = vld [vmem:[%s0 + $0xe8] sm:$0xff]
        %v295 = vld [vmem:[%s0 + $0xf0] sm:$0xff]
        %v296 = vld [vmem:[%s0 + $0xf8] sm:$0xff]
        %v297 = vld [vmem:[%s0 + $0x100] sm:$0xff]
        %v298 = vld [vmem:[%s0 + $0x108] sm:$0xff]
        %v299 = vld [vmem:[%s0 + $0x110] sm:$0xff]
        %v300 = vld [vmem:[%s0 + $0x118] sm:$0xff]
        %v301 = vld [vmem:[%s0 + $0x120] sm:$0xff]
        %v302 = vld [vmem:[%s0 + $0x128] sm:$0xff]
        %v303 = vld [vmem:[%s0 + $0x130] sm:$0xff]
        %v304 = vld [vmem:[%s0 + $0x138] sm:$0xff]
        %v305 = vld [vmem:[%s0 + $0x140] sm:$0xff]
        %v306 = vld [vmem:[%s0 + $0x148] sm:$0xff]
        %v307 = vld [vmem:[%s0 + $0x150] sm:$0xff]
        %v308 = vld [vmem:[%s0 + $0x158] sm:$0xff]
        %v309 = vld [vmem:[%s0 + $0x160] sm:$0xff]
        %v310 = vld [vmem:[%s0 + $0x168] sm:$0xff]
        %v311 = vld [vmem:[%s0 + $0x170] sm:$0xff]
        %v312 = vld [vmem:[%s0 + $0x178] sm:$0xff]
        %v313 = vld [vmem:[%s0 + $0x180] sm:$0xff]
        %v314 = vld [vmem:[%s0 + $0x188] sm:$0xff]
        %v315 = vld [vmem:[%s0 + $0x190] sm:$0xff]
        %v316 = vld [vmem:[%s0 + $0x198] sm:$0xff]
        %v317 = vld [vmem:[%s0 + $0x1a0] sm:$0xff]
        %v318 = vld [vmem:[%s0 + $0x1a8] sm:$0xff]
        %v319 = vld [vmem:[%s0 + $0x1b0] sm:$0xff]
        %v320 = vld [vmem:[%s0 + $0x1b8] sm:$0xff]
        %v321 = vld [vmem:[%s0 + $0x1c0] sm:$0xff]
        %v322 = vld [vmem:[%s0 + $0x1c8] sm:$0xff]
        %v323 = vld [vmem:[%s0 + $0x1d0] sm:$0xff]
        %v324 = vld [vmem:[%s0 + $0x1d8] sm:$0xff]
        %v325 = vld [vmem:[%s0 + $0x1e0] sm:$0xff]
        %v326 = vld [vmem:[%s0 + $0x1e8] sm:$0xff]
        %v327 = vld [vmem:[%s0 + $0x1f0] sm:$0xff]
        %v328 = vld [vmem:[%s0 + $0x1f8] sm:$0xff]
        %v329 = vld [vmem:[%s0 + $0x200] sm:$0xff]
        %v330 = vld [vmem:[%s0 + $0x208] sm:$0xff]
        %v331 = vld [vmem:[%s0 + $0x210] sm:$0xff]
        %v332 = vld [vmem:[%s0 + $0x218] sm:$0xff]
        %v333 = vld [vmem:[%s0 + $0x220] sm:$0xff]
        %v334 = vld [vmem:[%s0 + $0x228] sm:$0xff]
        %v335 = vld [vmem:[%s0 + $0x230] sm:$0xff]
        %v336 = vld [vmem:[%s0 + $0x238] sm:$0xff]
        %v337 = vld [vmem:[%s0 + $0x240] sm:$0xff]
        %v338 = vld [vmem:[%s0 + $0x248] sm:$0xff]
        %v339 = vld [vmem:[%s0 + $0x250] sm:$0xff]
        %v340 = vld [vmem:[%s0 + $0x258] sm:$0xff]
        %v341 = vld [vmem:[%s0 + $0x260] sm:$0xff]
        %v342 = vld [vmem:[%s0 + $0x268] sm:$0xff]
        %v343 = vld [vmem:[%s0 + $0x270] sm:$0xff]
        %v344 = vld [vmem:[%s0 + $0x278] sm:$0xff]
        %v345 = vld [vmem:[%s215] sm:$0xff]
        %v346 = vld [vmem:[%s215 + $0x8] sm:$0xff]
        %v347 = vld [vmem:[%s215 + $0x10] sm:$0xff]
        %v348 = vld [vmem:[%s215 + $0x18] sm:$0xff]
        %v349 = vld [vmem:[%s215 + $0x20] sm:$0xff]
        %v350 = vld [vmem:[%s215 + $0x28] sm:$0xff]
        %v351 = vld [vmem:[%s215 + $0x30] sm:$0xff]
        %v352 = vld [vmem:[%s215 + $0x38] sm:$0xff]
        %v353 = vld [vmem:[%s215 + $0x40] sm:$0xff]
        %v354 = vld [vmem:[%s215 + $0x48] sm:$0xff]
        %v355 = vld [vmem:[%s215 + $0x50] sm:$0xff]
        %v356 = vld [vmem:[%s215 + $0x58] sm:$0xff]
        %v357 = vld [vmem:[%s215 + $0x60] sm:$0xff]
        %v358 = vld [vmem:[%s215 + $0x68] sm:$0xff]
        %v359 = vld [vmem:[%s215 + $0x70] sm:$0xff]
        %v360 = vld [vmem:[%s215 + $0x78] sm:$0xff]
        %v361 = vld [vmem:[%s215 + $0x80] sm:$0xff]
        %v362 = vld [vmem:[%s215 + $0x88] sm:$0xff]
        %v363 = vld [vmem:[%s215 + $0x90] sm:$0xff]
        %v364 = vld [vmem:[%s215 + $0x98] sm:$0xff]
        %v365 = vld [vmem:[%s215 + $0xa0] sm:$0xff]
        %v366 = vld [vmem:[%s215 + $0xa8] sm:$0xff]
        %v367 = vld [vmem:[%s215 + $0xb0] sm:$0xff]
        %v368 = vld [vmem:[%s215 + $0xb8] sm:$0xff]
        %v369 = vld [vmem:[%s215 + $0xc0] sm:$0xff]
        %v370 = vld [vmem:[%s215 + $0xc8] sm:$0xff]
        %v371 = vld [vmem:[%s215 + $0xd0] sm:$0xff]
        %v372 = vld [vmem:[%s215 + $0xd8] sm:$0xff]
        %v373 = vld [vmem:[%s215 + $0xe0] sm:$0xff]
        %v374 = vld [vmem:[%s215 + $0xe8] sm:$0xff]
        %v375 = vld [vmem:[%s215 + $0xf0] sm:$0xff]
        %v376 = vld [vmem:[%s215 + $0xf8] sm:$0xff]
        %v377 = vld [vmem:[%s215 + $0x100] sm:$0xff]
        %v378 = vld [vmem:[%s215 + $0x108] sm:$0xff]
        %v379 = vld [vmem:[%s215 + $0x110] sm:$0xff]
        %v380 = vld [vmem:[%s215 + $0x118] sm:$0xff]
        %v381 = vld [vmem:[%s215 + $0x120] sm:$0xff]
        %v382 = vld [vmem:[%s215 + $0x128] sm:$0xff]
        %v383 = vld [vmem:[%s215 + $0x130] sm:$0xff]
        %v384 = vld [vmem:[%s215 + $0x138] sm:$0xff]
        %v385 = vld [vmem:[%s215 + $0x140] sm:$0xff]
        %v386 = vld [vmem:[%s215 + $0x148] sm:$0xff]
        %v387 = vld [vmem:[%s215 + $0x150] sm:$0xff]
        %v388 = vld [vmem:[%s215 + $0x158] sm:$0xff]
        %v389 = vld [vmem:[%s215 + $0x160] sm:$0xff]
        %v390 = vld [vmem:[%s215 + $0x168] sm:$0xff]
        %v391 = vld [vmem:[%s215 + $0x170] sm:$0xff]
        %v392 = vld [vmem:[%s215 + $0x178] sm:$0xff]
        %v393 = vld [vmem:[%s215 + $0x180] sm:$0xff]
        %v394 = vld [vmem:[%s215 + $0x188] sm:$0xff]
        %v395 = vld [vmem:[%s215 + $0x190] sm:$0xff]
        %v396 = vld [vmem:[%s215 + $0x198] sm:$0xff]
        %v397 = vld [vmem:[%s215 + $0x1a0] sm:$0xff]
        %v398 = vld [vmem:[%s215 + $0x1a8] sm:$0xff]
        %v399 = vld [vmem:[%s215 + $0x1b0] sm:$0xff]
        %v400 = vld [vmem:[%s215 + $0x1b8] sm:$0xff]
        %v401 = vld [vmem:[%s215 + $0x1c0] sm:$0xff]
        %v402 = vld [vmem:[%s215 + $0x1c8] sm:$0xff]
        %v403 = vld [vmem:[%s215 + $0x1d0] sm:$0xff]
        %v404 = vld [vmem:[%s215 + $0x1d8] sm:$0xff]
        %v405 = vld [vmem:[%s215 + $0x1e0] sm:$0xff]
        %v406 = vld [vmem:[%s215 + $0x1e8] sm:$0xff]
        %v407 = vld [vmem:[%s215 + $0x1f0] sm:$0xff]
        %v408 = vld [vmem:[%s215 + $0x1f8] sm:$0xff]
        %v409 = vld [vmem:[%s215 + $0x200] sm:$0xff]
        %v410 = vld [vmem:[%s215 + $0x208] sm:$0xff]
        %v411 = vld [vmem:[%s215 + $0x210] sm:$0xff]
        %v412 = vld [vmem:[%s215 + $0x218] sm:$0xff]
        %v413 = vld [vmem:[%s215 + $0x220] sm:$0xff]
        %v414 = vld [vmem:[%s215 + $0x228] sm:$0xff]
        %v415 = vld [vmem:[%s215 + $0x230] sm:$0xff]
        %v416 = vld [vmem:[%s215 + $0x238] sm:$0xff]
        %vm417 = vcmask 523264
        %v419 = vsel %vm417, %v269, 0
        %v422 = vsel %vm417, %v274, 0
        %v425 = vsel %vm417, %v279, 0
        %v428 = vsel %vm417, %v284, 0
        %v431 = vsel %vm417, %v289, 0
        %v434 = vsel %vm417, %v294, 0
        %v437 = vsel %vm417, %v299, 0
        %v440 = vsel %vm417, %v304, 0
        %v443 = vsel %vm417, %v309, 0
        %v446 = vsel %vm417, %v314, 0
        %v449 = vsel %vm417, %v319, 0
        %v452 = vsel %vm417, %v324, 0
        %v455 = vsel %vm417, %v329, 0
        %v458 = vsel %vm417, %v334, 0
        %v461 = vsel %vm417, %v339, 0
        %v464 = vsel %vm417, %v344, 0
        %466 = vmatprep.subr.mxu0 0.0
        %467 = vmatpush1.msra.mxu0 %v345
        %468 = vmatprep.subr.mxu0 0.0
        %469 = vmatpush1.msra.mxu0 %v346
        %470 = vmatprep.subr.mxu0 0.0
        %471 = vmatpush1.msra.mxu0 %v347
        %472 = vmatprep.subr.mxu0 0.0
        %473 = vmatpush1.msra.mxu0 %v348
        %474 = vmatprep.subr.mxu0 0.0
        %475 = vmatpush1.msra.mxu0 %v349
        %476 = vmatprep.subr.mxu0 0.0
        %477 = vmatpush1.msra.mxu0 %v350
        %478 = vmatprep.subr.mxu0 0.0
        %479 = vmatpush1.msra.mxu0 %v351
        %480 = vmatprep.subr.mxu0 0.0
        %481 = vmatpush1.msra.mxu0 %v352
        %482 = vmatprep.subr.mxu0 0.0
        %483 = vmatpush1.msra.mxu0 %v353
        %484 = vmatprep.subr.mxu0 0.0
        %485 = vmatpush1.msra.mxu0 %v354
        %486 = vmatprep.subr.mxu0 0.0
        %487 = vmatpush1.msra.mxu0 %v355
        %488 = vmatprep.subr.mxu0 0.0
        %489 = vmatpush1.msra.mxu0 %v356
        %490 = vmatprep.subr.mxu0 0.0
        %491 = vmatpush1.msra.mxu0 %v357
        %492 = vmatprep.subr.mxu0 0.0
        %493 = vmatpush1.msra.mxu0 %v358
        %494 = vmatprep.subr.mxu0 0.0
        %495 = vmatpush1.msra.mxu0 %v359
        %496 = vmatprep.subr.mxu0 0.0
        %497 = vmatpush1.msra.mxu0 %v360
        %498 = vmatprep.subr.mxu0 0.0
        %499 = vmatpush1.msra.mxu0 %v361
        %500 = vmatprep.subr.mxu0 0.0
        %501 = vmatpush1.msra.mxu0 %v362
        %502 = vmatprep.subr.mxu0 0.0
        %503 = vmatpush1.msra.mxu0 %v363
        %504 = vmatprep.subr.mxu0 0.0
        %505 = vmatpush1.msra.mxu0 %v364
        %506 = vmatprep.subr.mxu0 0.0
        %507 = vmatpush1.msra.mxu0 %v365
        %508 = vmatprep.subr.mxu0 0.0
        %509 = vmatpush1.msra.mxu0 %v366
        %510 = vmatprep.subr.mxu0 0.0
        %511 = vmatpush1.msra.mxu0 %v367
        %512 = vmatprep.subr.mxu0 0.0
        %513 = vmatpush1.msra.mxu0 %v368
        %514 = vmatprep.subr.mxu0 0.0
        %515 = vmatpush1.msra.mxu0 %v369
        %516 = vmatprep.subr.mxu0 0.0
        %517 = vmatpush1.msra.mxu0 %v370
        %518 = vmatprep.subr.mxu0 0.0
        %519 = vmatpush1.msra.mxu0 %v371
        %520 = vmatprep.subr.mxu0 0.0
        %521 = vmatpush1.msra.mxu0 %v372
        %522 = vmatprep.subr.mxu0 0.0
        %523 = vmatpush1.msra.mxu0 %v373
        %524 = vmatprep.subr.mxu0 0.0
        %525 = vmatpush1.msra.mxu0 %v374
        %526 = vmatprep.subr.mxu0 0.0
        %527 = vmatpush1.msra.mxu0 %v375
        %528 = vmatprep.subr.mxu0 0.0
        %529 = vmatpush1.msra.mxu0 %v376
        %530 = vmatprep.mubr.f32.mxu0 %v266
        %531 = vmatmul.mubr.f32.gmra.mrb[0].mxu0 %v265
        %v532 = vpop.f32.mrb[0].mxu0
        %v533 = vadd.f32 0.0, %v532
        %v534 = vpop.f32.mrb[0].mxu0
        %535 = vmatprep.mubr.f32.mxu0 %v271
        %536 = vmatmul.mubr.f32.gmra.mrb[0].mxu0 %v270
        %v537 = vpop.f32.mrb[0].mxu0
        %v538 = vadd.f32 0.0, %v537
        %v539 = vpop.f32.mrb[0].mxu0
        %540 = vmatprep.mubr.f32.mxu0 %v276
        %541 = vmatmul.mubr.f32.gmra.mrb[0].mxu0 %v275
        %v542 = vpop.f32.mrb[0].mxu0
        %v543 = vadd.f32 0.0, %v542
        %v544 = vpop.f32.mrb[0].mxu0
        %545 = vmatprep.mubr.f32.mxu0 %v281
        %546 = vmatmul.mubr.f32.gmra.mrb[0].mxu0 %v280
        %v547 = vpop.f32.mrb[0].mxu0
        %v548 = vadd.f32 0.0, %v547
        %v549 = vpop.f32.mrb[0].mxu0
        %550 = vmatprep.mubr.f32.mxu0 %v286
        %551 = vmatmul.mubr.f32.gmra.mrb[0].mxu0 %v285
        %v552 = vpop.f32.mrb[0].mxu0
        %v553 = vadd.f32 0.0, %v552
        %v554 = vpop.f32.mrb[0].mxu0
        %555 = vmatprep.mubr.f32.mxu0 %v291
        %556 = vmatmul.mubr.f32.gmra.mrb[0].mxu0 %v290
        %v557 = vpop.f32.mrb[0].mxu0
        %v558 = vadd.f32 0.0, %v557
        %v559 = vpop.f32.mrb[0].mxu0
        %560 = vmatprep.mubr.f32.mxu0 %v296
        %561 = vmatmul.mubr.f32.gmra.mrb[0].mxu0 %v295
        %v562 = vpop.f32.mrb[0].mxu0
        %v563 = vadd.f32 0.0, %v562
        %v564 = vpop.f32.mrb[0].mxu0
        %565 = vmatprep.mubr.f32.mxu0 %v301
        %566 = vmatmul.mubr.f32.gmra.mrb[0].mxu0 %v300
        %v567 = vpop.f32.mrb[0].mxu0
        %v568 = vadd.f32 0.0, %v567
        %v569 = vpop.f32.mrb[0].mxu0
        %570 = vmatprep.mubr.f32.mxu0 %v306
        %571 = vmatmul.mubr.f32.gmra.mrb[0].mxu0 %v305
        %v572 = vpop.f32.mrb[0].mxu0
        %v573 = vadd.f32 0.0, %v572
        %v574 = vpop.f32.mrb[0].mxu0
        %575 = vmatprep.mubr.f32.mxu0 %v311
        %576 = vmatmul.mubr.f32.gmra.mrb[0].mxu0 %v310
        %v577 = vpop.f32.mrb[0].mxu0
        %v578 = vadd.f32 0.0, %v577
        %v579 = vpop.f32.mrb[0].mxu0
        %580 = vmatprep.mubr.f32.mxu0 %v316
        %581 = vmatmul.mubr.f32.gmra.mrb[0].mxu0 %v315
        %v582 = vpop.f32.mrb[0].mxu0
        %v583 = vadd.f32 0.0, %v582
        %v584 = vpop.f32.mrb[0].mxu0
        %585 = vmatprep.mubr.f32.mxu0 %v321
        %586 = vmatmul.mubr.f32.gmra.mrb[0].mxu0 %v320
        %v587 = vpop.f32.mrb[0].mxu0
        %v588 = vadd.f32 0.0, %v587
        %v589 = vpop.f32.mrb[0].mxu0
        %590 = vmatprep.mubr.f32.mxu0 %v326
        %591 = vmatmul.mubr.f32.gmra.mrb[0].mxu0 %v325
        %v592 = vpop.f32.mrb[0].mxu0
        %v593 = vadd.f32 0.0, %v592
        %v594 = vpop.f32.mrb[0].mxu0
        %595 = vmatprep.mubr.f32.mxu0 %v331
        %596 = vmatmul.mubr.f32.gmra.mrb[0].mxu0 %v330
        %v597 = vpop.f32.mrb[0].mxu0
        %v598 = vadd.f32 0.0, %v597
        %v599 = vpop.f32.mrb[0].mxu0
        %600 = vmatprep.mubr.f32.mxu0 %v336
        %601 = vmatmul.mubr.f32.gmra.mrb[0].mxu0 %v335
        %v602 = vpop.f32.mrb[0].mxu0
        %v603 = vadd.f32 0.0, %v602
        %v604 = vpop.f32.mrb[0].mxu0
        %605 = vmatprep.mubr.f32.mxu0 %v341
        %606 = vmatmul.mubr.f32.gmra.mrb[0].mxu0 %v340
        %v607 = vpop.f32.mrb[0].mxu0
        %v608 = vadd.f32 0.0, %v607
        %v609 = vpop.f32.mrb[0].mxu0
        %610 = vdwg.mxu0
        %611 = vmatprep.subr.mxu0 0.0
        %612 = vmatpush1.msra.mxu0 %v377
        %613 = vmatprep.subr.mxu0 0.0
        %614 = vmatpush1.msra.mxu0 %v378
        %615 = vmatprep.subr.mxu0 0.0
        %616 = vmatpush1.msra.mxu0 %v379
        %617 = vmatprep.subr.mxu0 0.0
        %618 = vmatpush1.msra.mxu0 %v380
        %619 = vmatprep.subr.mxu0 0.0
        %620 = vmatpush1.msra.mxu0 %v381
        %621 = vmatprep.subr.mxu0 0.0
        %622 = vmatpush1.msra.mxu0 %v382
        %623 = vmatprep.subr.mxu0 0.0
        %624 = vmatpush1.msra.mxu0 %v383
        %625 = vmatprep.subr.mxu0 0.0
        %626 = vmatpush1.msra.mxu0 %v384
        %627 = vmatprep.subr.mxu0 0.0
        %628 = vmatpush1.msra.mxu0 %v385
        %629 = vmatprep.subr.mxu0 0.0
        %630 = vmatpush1.msra.mxu0 %v386
        %631 = vmatprep.subr.mxu0 0.0
        %632 = vmatpush1.msra.mxu0 %v387
        %633 = vmatprep.subr.mxu0 0.0
        %634 = vmatpush1.msra.mxu0 %v388
        %635 = vmatprep.subr.mxu0 0.0
        %636 = vmatpush1.msra.mxu0 %v389
        %637 = vmatprep.subr.mxu0 0.0
        %638 = vmatpush1.msra.mxu0 %v390
        %639 = vmatprep.subr.mxu0 0.0
        %640 = vmatpush1.msra.mxu0 %v391
        %641 = vmatprep.subr.mxu0 0.0
        %642 = vmatpush1.msra.mxu0 %v392
        %643 = vmatprep.subr.mxu0 0.0
        %644 = vmatpush1.msra.mxu0 %v393
        %645 = vmatprep.subr.mxu0 0.0
        %646 = vmatpush1.msra.mxu0 %v394
        %647 = vmatprep.subr.mxu0 0.0
        %648 = vmatpush1.msra.mxu0 %v395
        %649 = vmatprep.subr.mxu0 0.0
        %650 = vmatpush1.msra.mxu0 %v396
        %651 = vmatprep.subr.mxu0 0.0
        %652 = vmatpush1.msra.mxu0 %v397
        %653 = vmatprep.subr.mxu0 0.0
        %654 = vmatpush1.msra.mxu0 %v398
        %655 = vmatprep.subr.mxu0 0.0
        %656 = vmatpush1.msra.mxu0 %v399
        %657 = vmatprep.subr.mxu0 0.0
        %658 = vmatpush1.msra.mxu0 %v400
        %659 = vmatprep.subr.mxu0 0.0
        %660 = vmatpush1.msra.mxu0 %v401
        %661 = vmatprep.subr.mxu0 0.0
        %662 = vmatpush1.msra.mxu0 %v402
        %663 = vmatprep.subr.mxu0 0.0
        %664 = vmatpush1.msra.mxu0 %v403
        %665 = vmatprep.subr.mxu0 0.0
        %666 = vmatpush1.msra.mxu0 %v404
        %667 = vmatprep.subr.mxu0 0.0
        %668 = vmatpush1.msra.mxu0 %v405
        %669 = vmatprep.subr.mxu0 0.0
        %670 = vmatpush1.msra.mxu0 %v406
        %671 = vmatprep.subr.mxu0 0.0
        %672 = vmatpush1.msra.mxu0 %v407
        %673 = vmatprep.subr.mxu0 0.0
        %674 = vmatpush1.msra.mxu0 %v408
        %675 = vmatprep.mubr.f32.mxu0 %v268
        %676 = vmatmul.mubr.f32.gmra.mrb[0].mxu0 %v267
        %v677 = vpop.f32.mrb[0].mxu0
        %v678 = vadd.f32 %v533, %v677
        %v679 = vpop.f32.mrb[0].mxu0
        %680 = vmatprep.mubr.f32.mxu0 %v273
        %681 = vmatmul.mubr.f32.gmra.mrb[0].mxu0 %v272
        %v682 = vpop.f32.mrb[0].mxu0
        %v683 = vadd.f32 %v538, %v682
        %v684 = vpop.f32.mrb[0].mxu0
        %685 = vmatprep.mubr.f32.mxu0 %v278
        %686 = vmatmul.mubr.f32.gmra.mrb[0].mxu0 %v277
        %v687 = vpop.f32.mrb[0].mxu0
        %v688 = vadd.f32 %v543, %v687
        %v689 = vpop.f32.mrb[0].mxu0
        %690 = vmatprep.mubr.f32.mxu0 %v283
        %691 = vmatmul.mubr.f32.gmra.mrb[0].mxu0 %v282
        %v692 = vpop.f32.mrb[0].mxu0
        %v693 = vadd.f32 %v548, %v692
        %v694 = vpop.f32.mrb[0].mxu0
        %695 = vmatprep.mubr.f32.mxu0 %v288
        %696 = vmatmul.mubr.f32.gmra.mrb[0].mxu0 %v287
        %v697 = vpop.f32.mrb[0].mxu0
        %v698 = vadd.f32 %v553, %v697
        %v699 = vpop.f32.mrb[0].mxu0
        %700 = vmatprep.mubr.f32.mxu0 %v293
        %701 = vmatmul.mubr.f32.gmra.mrb[0].mxu0 %v292
        %v702 = vpop.f32.mrb[0].mxu0
        %v703 = vadd.f32 %v558, %v702
        %v704 = vpop.f32.mrb[0].mxu0
        %705 = vmatprep.mubr.f32.mxu0 %v298
        %706 = vmatmul.mubr.f32.gmra.mrb[0].mxu0 %v297
        %v707 = vpop.f32.mrb[0].mxu0
        %v708 = vadd.f32 %v563, %v707
        %v709 = vpop.f32.mrb[0].mxu0
        %710 = vmatprep.mubr.f32.mxu0 %v303
        %711 = vmatmul.mubr.f32.gmra.mrb[0].mxu0 %v302
        %v712 = vpop.f32.mrb[0].mxu0
        %v713 = vadd.f32 %v568, %v712
        %v714 = vpop.f32.mrb[0].mxu0
        %715 = vmatprep.mubr.f32.mxu0 %v308
        %716 = vmatmul.mubr.f32.gmra.mrb[0].mxu0 %v307
        %v717 = vpop.f32.mrb[0].mxu0
        %v718 = vadd.f32 %v573, %v717
        %v719 = vpop.f32.mrb[0].mxu0
        %720 = vmatprep.mubr.f32.mxu0 %v313
        %721 = vmatmul.mubr.f32.gmra.mrb[0].mxu0 %v312
        %v722 = vpop.f32.mrb[0].mxu0
        %v723 = vadd.f32 %v578, %v722
        %v724 = vpop.f32.mrb[0].mxu0
        %725 = vmatprep.mubr.f32.mxu0 %v318
        %726 = vmatmul.mubr.f32.gmra.mrb[0].mxu0 %v317
        %v727 = vpop.f32.mrb[0].mxu0
        %v728 = vadd.f32 %v583, %v727
        %v729 = vpop.f32.mrb[0].mxu0
        %730 = vmatprep.mubr.f32.mxu0 %v323
        %731 = vmatmul.mubr.f32.gmra.mrb[0].mxu0 %v322
        %v732 = vpop.f32.mrb[0].mxu0
        %v733 = vadd.f32 %v588, %v732
        %v734 = vpop.f32.mrb[0].mxu0
        %735 = vmatprep.mubr.f32.mxu0 %v328
        %736 = vmatmul.mubr.f32.gmra.mrb[0].mxu0 %v327
        %v737 = vpop.f32.mrb[0].mxu0
        %v738 = vadd.f32 %v593, %v737
        %v739 = vpop.f32.mrb[0].mxu0
        %740 = vmatprep.mubr.f32.mxu0 %v333
        %741 = vmatmul.mubr.f32.gmra.mrb[0].mxu0 %v332
        %v742 = vpop.f32.mrb[0].mxu0
        %v743 = vadd.f32 %v598, %v742
        %v744 = vpop.f32.mrb[0].mxu0
        %745 = vmatprep.mubr.f32.mxu0 %v338
        %746 = vmatmul.mubr.f32.gmra.mrb[0].mxu0 %v337
        %v747 = vpop.f32.mrb[0].mxu0
        %v748 = vadd.f32 %v603, %v747
        %v749 = vpop.f32.mrb[0].mxu0
        %750 = vmatprep.mubr.f32.mxu0 %v343
        %751 = vmatmul.mubr.f32.gmra.mrb[0].mxu0 %v342
        %v752 = vpop.f32.mrb[0].mxu0
        %v753 = vadd.f32 %v608, %v752
        %v754 = vpop.f32.mrb[0].mxu0
        %755 = vdwg.mxu0
        %756 = vmatprep.subr.mxu0 0.0
        %757 = vmatpush1.msra.mxu0 %v409
        %758 = vmatprep.subr.mxu0 0.0
        %759 = vmatpush1.msra.mxu0 %v410
        %760 = vmatprep.subr.mxu0 0.0
        %761 = vmatpush1.msra.mxu0 %v411
        %762 = vmatprep.subr.mxu0 0.0
        %763 = vmatpush1.msra.mxu0 %v412
        %764 = vmatprep.subr.mxu0 0.0
        %765 = vmatpush1.msra.mxu0 %v413
        %766 = vmatprep.subr.mxu0 0.0
        %767 = vmatpush1.msra.mxu0 %v414
        %768 = vmatprep.subr.mxu0 0.0
        %769 = vmatpush1.msra.mxu0 %v415
        %770 = vmatprep.subr.mxu0 0.0
        %771 = vmatpush1.msra.mxu0 %v416
        %772 = vmatprep.subr.mxu0 0.0
        %773 = vmatpush1.msra.mxu0 0.0
        %774 = vmatprep.subr.mxu0 0.0
        %775 = vmatpush1.msra.mxu0 0.0
        %776 = vmatprep.subr.mxu0 0.0
        %777 = vmatpush1.msra.mxu0 0.0
        %778 = vmatprep.subr.mxu0 0.0
        %779 = vmatpush1.msra.mxu0 0.0
        %780 = vmatprep.subr.mxu0 0.0
        %781 = vmatpush1.msra.mxu0 0.0
        %782 = vmatprep.subr.mxu0 0.0
        %783 = vmatpush1.msra.mxu0 0.0
        %784 = vmatprep.subr.mxu0 0.0
        %785 = vmatpush1.msra.mxu0 0.0
        %786 = vmatprep.subr.mxu0 0.0
        %787 = vmatpush1.msra.mxu0 0.0
        %788 = vmatprep.subr.mxu0 0.0
        %789 = vmatpush1.msra.mxu0 0.0
        %790 = vmatprep.subr.mxu0 0.0
        %791 = vmatpush1.msra.mxu0 0.0
        %792 = vmatprep.subr.mxu0 0.0
        %793 = vmatpush1.msra.mxu0 0.0
        %794 = vmatprep.subr.mxu0 0.0
        %795 = vmatpush1.msra.mxu0 0.0
        %796 = vmatprep.subr.mxu0 0.0
        %797 = vmatpush1.msra.mxu0 0.0
        %798 = vmatprep.subr.mxu0 0.0
        %799 = vmatpush1.msra.mxu0 0.0
        %800 = vmatprep.subr.mxu0 0.0
        %801 = vmatpush1.msra.mxu0 0.0
        %802 = vmatprep.subr.mxu0 0.0
        %803 = vmatpush1.msra.mxu0 0.0
        %804 = vmatprep.subr.mxu0 0.0
        %805 = vmatpush1.msra.mxu0 0.0
        %806 = vmatprep.subr.mxu0 0.0
        %807 = vmatpush1.msra.mxu0 0.0
        %808 = vmatprep.subr.mxu0 0.0
        %809 = vmatpush1.msra.mxu0 0.0
        %810 = vmatprep.subr.mxu0 0.0
        %811 = vmatpush1.msra.mxu0 0.0
        %812 = vmatprep.subr.mxu0 0.0
        %813 = vmatpush1.msra.mxu0 0.0
        %814 = vmatprep.subr.mxu0 0.0
        %815 = vmatpush1.msra.mxu0 0.0
        %816 = vmatprep.subr.mxu0 0.0
        %817 = vmatpush1.msra.mxu0 0.0
        %818 = vmatprep.subr.mxu0 0.0
        %819 = vmatpush1.msra.mxu0 0.0
        %820 = vmatprep.mubr.f32.mxu0 0.0
        %821 = vmatmul.mubr.f32.gmra.mrb[0].mxu0 %v419
        %v822 = vpop.f32.mrb[0].mxu0
        %v823 = vadd.f32 %v678, %v822
        %v824 = vpop.f32.mrb[0].mxu0
        %825 = vmatprep.mubr.f32.mxu0 0.0
        %826 = vmatmul.mubr.f32.gmra.mrb[0].mxu0 %v422
        %v827 = vpop.f32.mrb[0].mxu0
        %v828 = vadd.f32 %v683, %v827
        %v829 = vpop.f32.mrb[0].mxu0
        %830 = vmatprep.mubr.f32.mxu0 0.0
        %831 = vmatmul.mubr.f32.gmra.mrb[0].mxu0 %v425
        %v832 = vpop.f32.mrb[0].mxu0
        %v833 = vadd.f32 %v688, %v832
        %v834 = vpop.f32.mrb[0].mxu0
        %835 = vmatprep.mubr.f32.mxu0 0.0
        %836 = vmatmul.mubr.f32.gmra.mrb[0].mxu0 %v428
        %v837 = vpop.f32.mrb[0].mxu0
        %v838 = vadd.f32 %v693, %v837
        %v839 = vpop.f32.mrb[0].mxu0
        %840 = vmatprep.mubr.f32.mxu0 0.0
        %841 = vmatmul.mubr.f32.gmra.mrb[0].mxu0 %v431
        %v842 = vpop.f32.mrb[0].mxu0
        %v843 = vadd.f32 %v698, %v842
        %v844 = vpop.f32.mrb[0].mxu0
        %845 = vmatprep.mubr.f32.mxu0 0.0
        %846 = vmatmul.mubr.f32.gmra.mrb[0].mxu0 %v434
        %v847 = vpop.f32.mrb[0].mxu0
        %v848 = vadd.f32 %v703, %v847
        %v849 = vpop.f32.mrb[0].mxu0
        %850 = vmatprep.mubr.f32.mxu0 0.0
        %851 = vmatmul.mubr.f32.gmra.mrb[0].mxu0 %v437
        %v852 = vpop.f32.mrb[0].mxu0
        %v853 = vadd.f32 %v708, %v852
        %v854 = vpop.f32.mrb[0].mxu0
        %855 = vmatprep.mubr.f32.mxu0 0.0
        %856 = vmatmul.mubr.f32.gmra.mrb[0].mxu0 %v440
        %v857 = vpop.f32.mrb[0].mxu0
        %v858 = vadd.f32 %v713, %v857
        %v859 = vpop.f32.mrb[0].mxu0
        %860 = vmatprep.mubr.f32.mxu0 0.0
        %861 = vmatmul.mubr.f32.gmra.mrb[0].mxu0 %v443
        %v862 = vpop.f32.mrb[0].mxu0
        %v863 = vadd.f32 %v718, %v862
        %v864 = vpop.f32.mrb[0].mxu0
        %865 = vmatprep.mubr.f32.mxu0 0.0
        %866 = vmatmul.mubr.f32.gmra.mrb[0].mxu0 %v446
        %v867 = vpop.f32.mrb[0].mxu0
        %v868 = vadd.f32 %v723, %v867
        %v869 = vpop.f32.mrb[0].mxu0
        %870 = vmatprep.mubr.f32.mxu0 0.0
        %871 = vmatmul.mubr.f32.gmra.mrb[0].mxu0 %v449
        %v872 = vpop.f32.mrb[0].mxu0
        %v873 = vadd.f32 %v728, %v872
        %v874 = vpop.f32.mrb[0].mxu0
        %875 = vmatprep.mubr.f32.mxu0 0.0
        %876 = vmatmul.mubr.f32.gmra.mrb[0].mxu0 %v452
        %v877 = vpop.f32.mrb[0].mxu0
        %v878 = vadd.f32 %v733, %v877
        %v879 = vpop.f32.mrb[0].mxu0
        %880 = vmatprep.mubr.f32.mxu0 0.0
        %881 = vmatmul.mubr.f32.gmra.mrb[0].mxu0 %v455
        %v882 = vpop.f32.mrb[0].mxu0
        %v883 = vadd.f32 %v738, %v882
        %v884 = vpop.f32.mrb[0].mxu0
        %885 = vmatprep.mubr.f32.mxu0 0.0
        %886 = vmatmul.mubr.f32.gmra.mrb[0].mxu0 %v458
        %v887 = vpop.f32.mrb[0].mxu0
        %v888 = vadd.f32 %v743, %v887
        %v889 = vpop.f32.mrb[0].mxu0
        %890 = vmatprep.mubr.f32.mxu0 0.0
        %891 = vmatmul.mubr.f32.gmra.mrb[0].mxu0 %v461
        %v892 = vpop.f32.mrb[0].mxu0
        %v893 = vadd.f32 %v748, %v892
        %v894 = vpop.f32.mrb[0].mxu0
        %895 = vmatprep.mubr.f32.mxu0 0.0
        %896 = vmatmul.mubr.f32.gmra.mrb[0].mxu0 %v464
        %v897 = vpop.f32.mrb[0].mxu0
        %v898 = vadd.f32 %v753, %v897
        %v899 = vpop.f32.mrb[0].mxu0
        %900 = vdwg.mxu0
        %s901 = smul.u32 %s20, 128
        %s902 = sshra.s32 %s901, 7
        %s903 = sand.u32 %s901, 127
        %s904 = scalar_lea.vmem [#allocation2], %s902
        %905 = vst [vmem:[%s904] sm:$0xff] %v823
        %906 = vst [vmem:[%s904 + $0x8] sm:$0xff] %v828
        %907 = vst [vmem:[%s904 + $0x10] sm:$0xff] %v833
        %908 = vst [vmem:[%s904 + $0x18] sm:$0xff] %v838
        %909 = vst [vmem:[%s904 + $0x20] sm:$0xff] %v843
        %910 = vst [vmem:[%s904 + $0x28] sm:$0xff] %v848
        %911 = vst [vmem:[%s904 + $0x30] sm:$0xff] %v853
        %912 = vst [vmem:[%s904 + $0x38] sm:$0xff] %v858
        %913 = vst [vmem:[%s904 + $0x40] sm:$0xff] %v863
        %914 = vst [vmem:[%s904 + $0x48] sm:$0xff] %v868
        %915 = vst [vmem:[%s904 + $0x50] sm:$0xff] %v873
        %916 = vst [vmem:[%s904 + $0x58] sm:$0xff] %v878
        %917 = vst [vmem:[%s904 + $0x60] sm:$0xff] %v883
        %918 = vst [vmem:[%s904 + $0x68] sm:$0xff] %v888
        %919 = vst [vmem:[%s904 + $0x70] sm:$0xff] %v893
        %920 = vst [vmem:[%s904 + $0x78] sm:$0xff] %v898
        %v921 = vld [vmem:[#allocation3] sm:$0xff]
        %v922 = vld [vmem:[#allocation3 + $0x8] sm:$0xff]
        %v923 = vld [vmem:[#allocation3 + $0x10] sm:$0xff]
        %v924 = vld [vmem:[#allocation3 + $0x18] sm:$0xff]
        %v925 = vld [vmem:[#allocation3 + $0x20] sm:$0xff]
        %v926 = vld [vmem:[#allocation3 + $0x28] sm:$0xff]
        %v927 = vld [vmem:[#allocation3 + $0x30] sm:$0xff]
        %v928 = vld [vmem:[#allocation3 + $0x38] sm:$0xff]
        %v929 = vld [vmem:[#allocation3 + $0x40] sm:$0xff]
        %v930 = vld [vmem:[#allocation3 + $0x48] sm:$0xff]
        %v931 = vld [vmem:[#allocation3 + $0x50] sm:$0xff]
        %v932 = vld [vmem:[#allocation3 + $0x58] sm:$0xff]
        %v933 = vld [vmem:[#allocation3 + $0x60] sm:$0xff]
        %v934 = vld [vmem:[#allocation3 + $0x68] sm:$0xff]
        %v935 = vld [vmem:[#allocation3 + $0x70] sm:$0xff]
        %v936 = vld [vmem:[#allocation3 + $0x78] sm:$0xff]
        %937 = vadd.xlane.f32.xlu0 %v823
        %v938 = vpop.xlane.xlu0 %937
        %939 = vadd.xlane.f32.xlu0 %v828
        %v940 = vpop.xlane.xlu0 %939
        %941 = vadd.xlane.f32.xlu0 %v833
        %v942 = vpop.xlane.xlu0 %941
        %943 = vadd.xlane.f32.xlu0 %v838
        %v944 = vpop.xlane.xlu0 %943
        %945 = vadd.xlane.f32.xlu0 %v843
        %v946 = vpop.xlane.xlu0 %945
        %947 = vadd.xlane.f32.xlu0 %v848
        %v948 = vpop.xlane.xlu0 %947
        %949 = vadd.xlane.f32.xlu0 %v853
        %v950 = vpop.xlane.xlu0 %949
        %951 = vadd.xlane.f32.xlu0 %v858
        %v952 = vpop.xlane.xlu0 %951
        %953 = vadd.xlane.f32.xlu0 %v863
        %v954 = vpop.xlane.xlu0 %953
        %955 = vadd.xlane.f32.xlu0 %v868
        %v956 = vpop.xlane.xlu0 %955
        %957 = vadd.xlane.f32.xlu0 %v873
        %v958 = vpop.xlane.xlu0 %957
        %959 = vadd.xlane.f32.xlu0 %v878
        %v960 = vpop.xlane.xlu0 %959
        %961 = vadd.xlane.f32.xlu0 %v883
        %v962 = vpop.xlane.xlu0 %961
        %963 = vadd.xlane.f32.xlu0 %v888
        %v964 = vpop.xlane.xlu0 %963
        %965 = vadd.xlane.f32.xlu0 %v893
        %v966 = vpop.xlane.xlu0 %965
        %967 = vadd.xlane.f32.xlu0 %v898
        %v968 = vpop.xlane.xlu0 %967
        %v969 = vadd.f32 %v921, %v938
        %v970 = vadd.f32 %v922, %v940
        %v971 = vadd.f32 %v923, %v942
        %v972 = vadd.f32 %v924, %v944
        %v973 = vadd.f32 %v925, %v946
        %v974 = vadd.f32 %v926, %v948
        %v975 = vadd.f32 %v927, %v950
        %v976 = vadd.f32 %v928, %v952
        %v977 = vadd.f32 %v929, %v954
        %v978 = vadd.f32 %v930, %v956
        %v979 = vadd.f32 %v931, %v958
        %v980 = vadd.f32 %v932, %v960
        %v981 = vadd.f32 %v933, %v962
        %v982 = vadd.f32 %v934, %v964
        %v983 = vadd.f32 %v935, %v966
        %v984 = vadd.f32 %v936, %v968
        %vm985 = vcmask 7168
        %986 = vst.msk [vmem:[#allocation3] sm:$0xff] %vm985, %v969
        %987 = vst.msk [vmem:[#allocation3 + $0x8] sm:$0xff] %vm985, %v970
        %988 = vst.msk [vmem:[#allocation3 + $0x10] sm:$0xff] %vm985, %v971
        %989 = vst.msk [vmem:[#allocation3 + $0x18] sm:$0xff] %vm985, %v972
        %990 = vst.msk [vmem:[#allocation3 + $0x20] sm:$0xff] %vm985, %v973
        %991 = vst.msk [vmem:[#allocation3 + $0x28] sm:$0xff] %vm985, %v974
        %992 = vst.msk [vmem:[#allocation3 + $0x30] sm:$0xff] %vm985, %v975
        %993 = vst.msk [vmem:[#allocation3 + $0x38] sm:$0xff] %vm985, %v976
        %994 = vst.msk [vmem:[#allocation3 + $0x40] sm:$0xff] %vm985, %v977
        %995 = vst.msk [vmem:[#allocation3 + $0x48] sm:$0xff] %vm985, %v978
        %996 = vst.msk [vmem:[#allocation3 + $0x50] sm:$0xff] %vm985, %v979
        %997 = vst.msk [vmem:[#allocation3 + $0x58] sm:$0xff] %vm985, %v980
        %998 = vst.msk [vmem:[#allocation3 + $0x60] sm:$0xff] %vm985, %v981
        %999 = vst.msk [vmem:[#allocation3 + $0x68] sm:$0xff] %vm985, %v982
        %1000 = vst.msk [vmem:[#allocation3 + $0x70] sm:$0xff] %vm985, %v983
        %1001 = vst.msk [vmem:[#allocation3 + $0x78] sm:$0xff] %vm985, %v984
        %v1002 = vld [vmem:[#allocation4] sm:$0xff]
        %v1003 = vld [vmem:[#allocation4 + $0x8] sm:$0xff]
        %v1004 = vld [vmem:[#allocation4 + $0x10] sm:$0xff]
        %v1005 = vld [vmem:[#allocation4 + $0x18] sm:$0xff]
        %v1006 = vld [vmem:[#allocation4 + $0x20] sm:$0xff]
        %v1007 = vld [vmem:[#allocation4 + $0x28] sm:$0xff]
        %v1008 = vld [vmem:[#allocation4 + $0x30] sm:$0xff]
        %v1009 = vld [vmem:[#allocation4 + $0x38] sm:$0xff]
        %v1010 = vld [vmem:[#allocation4 + $0x40] sm:$0xff]
        %v1011 = vld [vmem:[#allocation4 + $0x48] sm:$0xff]
        %v1012 = vld [vmem:[#allocation4 + $0x50] sm:$0xff]
        %v1013 = vld [vmem:[#allocation4 + $0x58] sm:$0xff]
        %v1014 = vld [vmem:[#allocation4 + $0x60] sm:$0xff]
        %v1015 = vld [vmem:[#allocation4 + $0x68] sm:$0xff]
        %v1016 = vld [vmem:[#allocation4 + $0x70] sm:$0xff]
        %v1017 = vld [vmem:[#allocation4 + $0x78] sm:$0xff]
        %v1018 = vmul.f32 %v823, %v823
        %v1019 = vmul.f32 %v828, %v828
        %v1020 = vmul.f32 %v833, %v833
        %v1021 = vmul.f32 %v838, %v838
        %v1022 = vmul.f32 %v843, %v843
        %v1023 = vmul.f32 %v848, %v848
        %v1024 = vmul.f32 %v853, %v853
        %v1025 = vmul.f32 %v858, %v858
        %v1026 = vmul.f32 %v863, %v863
        %v1027 = vmul.f32 %v868, %v868
        %v1028 = vmul.f32 %v873, %v873
        %v1029 = vmul.f32 %v878, %v878
        %v1030 = vmul.f32 %v883, %v883
        %v1031 = vmul.f32 %v888, %v888
        %v1032 = vmul.f32 %v893, %v893
        %v1033 = vmul.f32 %v898, %v898
        %1034 = vadd.xlane.f32.xlu0 %v1018
        %v1035 = vpop.xlane.xlu0 %1034
        %1036 = vadd.xlane.f32.xlu0 %v1019
        %v1037 = vpop.xlane.xlu0 %1036
        %1038 = vadd.xlane.f32.xlu0 %v1020
        %v1039 = vpop.xlane.xlu0 %1038
        %1040 = vadd.xlane.f32.xlu0 %v1021
        %v1041 = vpop.xlane.xlu0 %1040
        %1042 = vadd.xlane.f32.xlu0 %v1022
        %v1043 = vpop.xlane.xlu0 %1042
        %1044 = vadd.xlane.f32.xlu0 %v1023
        %v1045 = vpop.xlane.xlu0 %1044
        %1046 = vadd.xlane.f32.xlu0 %v1024
        %v1047 = vpop.xlane.xlu0 %1046
        %1048 = vadd.xlane.f32.xlu0 %v1025
        %v1049 = vpop.xlane.xlu0 %1048
        %1050 = vadd.xlane.f32.xlu0 %v1026
        %v1051 = vpop.xlane.xlu0 %1050
        %1052 = vadd.xlane.f32.xlu0 %v1027
        %v1053 = vpop.xlane.xlu0 %1052
        %1054 = vadd.xlane.f32.xlu0 %v1028
        %v1055 = vpop.xlane.xlu0 %1054
        %1056 = vadd.xlane.f32.xlu0 %v1029
        %v1057 = vpop.xlane.xlu0 %1056
        %1058 = vadd.xlane.f32.xlu0 %v1030
        %v1059 = vpop.xlane.xlu0 %1058
        %1060 = vadd.xlane.f32.xlu0 %v1031
        %v1061 = vpop.xlane.xlu0 %1060
        %1062 = vadd.xlane.f32.xlu0 %v1032
        %v1063 = vpop.xlane.xlu0 %1062
        %1064 = vadd.xlane.f32.xlu0 %v1033
        %v1065 = vpop.xlane.xlu0 %1064
        %v1066 = vadd.f32 %v1002, %v1035
        %v1067 = vadd.f32 %v1003, %v1037
        %v1068 = vadd.f32 %v1004, %v1039
        %v1069 = vadd.f32 %v1005, %v1041
        %v1070 = vadd.f32 %v1006, %v1043
        %v1071 = vadd.f32 %v1007, %v1045
        %v1072 = vadd.f32 %v1008, %v1047
        %v1073 = vadd.f32 %v1009, %v1049
        %v1074 = vadd.f32 %v1010, %v1051
        %v1075 = vadd.f32 %v1011, %v1053
        %v1076 = vadd.f32 %v1012, %v1055
        %v1077 = vadd.f32 %v1013, %v1057
        %v1078 = vadd.f32 %v1014, %v1059
        %v1079 = vadd.f32 %v1015, %v1061
        %v1080 = vadd.f32 %v1016, %v1063
        %v1081 = vadd.f32 %v1017, %v1065
        %1082 = vst.msk [vmem:[#allocation4] sm:$0xff] %vm985, %v1066
        %1083 = vst.msk [vmem:[#allocation4 + $0x8] sm:$0xff] %vm985, %v1067
        %1084 = vst.msk [vmem:[#allocation4 + $0x10] sm:$0xff] %vm985, %v1068
        %1085 = vst.msk [vmem:[#allocation4 + $0x18] sm:$0xff] %vm985, %v1069
        %1086 = vst.msk [vmem:[#allocation4 + $0x20] sm:$0xff] %vm985, %v1070
        %1087 = vst.msk [vmem:[#allocation4 + $0x28] sm:$0xff] %vm985, %v1071
        %1088 = vst.msk [vmem:[#allocation4 + $0x30] sm:$0xff] %vm985, %v1072
        %1089 = vst.msk [vmem:[#allocation4 + $0x38] sm:$0xff] %vm985, %v1073
        %1090 = vst.msk [vmem:[#allocation4 + $0x40] sm:$0xff] %vm985, %v1074
        %1091 = vst.msk [vmem:[#allocation4 + $0x48] sm:$0xff] %vm985, %v1075
        %1092 = vst.msk [vmem:[#allocation4 + $0x50] sm:$0xff] %vm985, %v1076
        %1093 = vst.msk [vmem:[#allocation4 + $0x58] sm:$0xff] %vm985, %v1077
        %1094 = vst.msk [vmem:[#allocation4 + $0x60] sm:$0xff] %vm985, %v1078
        %1095 = vst.msk [vmem:[#allocation4 + $0x68] sm:$0xff] %vm985, %v1079
        %1096 = vst.msk [vmem:[#allocation4 + $0x70] sm:$0xff] %vm985, %v1080
        %1097 = vst.msk [vmem:[#allocation4 + $0x78] sm:$0xff] %vm985, %v1081
      $region40: #{generator_forward.6} parent=35 // pred_fallthru
        _
      %p1098 = scmp.eq.s32.totalorder %s19, 1
      // Predicated region
      $region45: #{generator_forward.6} parent=35 // pred_check
        %p1099 = pneg %p1098
      $region46: #{generator_forward.6} parent=35 // pred_check_branch
        %1101 = sbr.rel (%p1099) target = $region48
      $region47: #{generator_forward.6} parent=35 // pred_region
        %p1102 = scmp.eq.s32.totalorder %s20, 0
        // Predicated region
        $region49: #{generator_forward.6} parent=47 // pred_check
          %p1103 = pneg %p1102
        $region50: #{generator_forward.6} parent=47 // pred_check_branch
          %1105 = sbr.rel (%p1103) target = $region52
        $region51: #{generator_forward.6} parent=47 // pred_region
          %v1106 = vld [vmem:[#allocation3] sm:$0xff]
          %v1107 = vld [vmem:[#allocation3 + $0x8] sm:$0xff]
          %v1108 = vld [vmem:[#allocation3 + $0x10] sm:$0xff]
          %v1109 = vld [vmem:[#allocation3 + $0x18] sm:$0xff]
          %v1110 = vld [vmem:[#allocation3 + $0x20] sm:$0xff]
          %v1111 = vld [vmem:[#allocation3 + $0x28] sm:$0xff]
          %v1112 = vld [vmem:[#allocation3 + $0x30] sm:$0xff]
          %v1113 = vld [vmem:[#allocation3 + $0x38] sm:$0xff]
          %v1114 = vld [vmem:[#allocation3 + $0x40] sm:$0xff]
          %v1115 = vld [vmem:[#allocation3 + $0x48] sm:$0xff]
          %v1116 = vld [vmem:[#allocation3 + $0x50] sm:$0xff]
          %v1117 = vld [vmem:[#allocation3 + $0x58] sm:$0xff]
          %v1118 = vld [vmem:[#allocation3 + $0x60] sm:$0xff]
          %v1119 = vld [vmem:[#allocation3 + $0x68] sm:$0xff]
          %v1120 = vld [vmem:[#allocation3 + $0x70] sm:$0xff]
          %v1121 = vld [vmem:[#allocation3 + $0x78] sm:$0xff]
          %v1122 = vld [vmem:[#allocation4] sm:$0xff]
          %v1123 = vld [vmem:[#allocation4 + $0x8] sm:$0xff]
          %v1124 = vld [vmem:[#allocation4 + $0x10] sm:$0xff]
          %v1125 = vld [vmem:[#allocation4 + $0x18] sm:$0xff]
          %v1126 = vld [vmem:[#allocation4 + $0x20] sm:$0xff]
          %v1127 = vld [vmem:[#allocation4 + $0x28] sm:$0xff]
          %v1128 = vld [vmem:[#allocation4 + $0x30] sm:$0xff]
          %v1129 = vld [vmem:[#allocation4 + $0x38] sm:$0xff]
          %v1130 = vld [vmem:[#allocation4 + $0x40] sm:$0xff]
          %v1131 = vld [vmem:[#allocation4 + $0x48] sm:$0xff]
          %v1132 = vld [vmem:[#allocation4 + $0x50] sm:$0xff]
          %v1133 = vld [vmem:[#allocation4 + $0x58] sm:$0xff]
          %v1134 = vld [vmem:[#allocation4 + $0x60] sm:$0xff]
          %v1135 = vld [vmem:[#allocation4 + $0x68] sm:$0xff]
          %v1136 = vld [vmem:[#allocation4 + $0x70] sm:$0xff]
          %v1137 = vld [vmem:[#allocation4 + $0x78] sm:$0xff]
          %v1138 = vadd.f32 %v1106, %v1110
          %v1139 = vadd.f32 %v1107, %v1111
          %v1140 = vadd.f32 %v1108, %v1112
          %v1141 = vadd.f32 %v1109, %v1113
          %v1142 = vadd.f32 %v1138, %v1114
          %v1143 = vadd.f32 %v1139, %v1115
          %v1144 = vadd.f32 %v1140, %v1116
          %v1145 = vadd.f32 %v1141, %v1117
          %v1146 = vadd.f32 %v1142, %v1118
          %v1147 = vadd.f32 %v1143, %v1119
          %v1148 = vadd.f32 %v1144, %v1120
          %v1149 = vadd.f32 %v1145, %v1121
          %v1150 = vadd.f32 %v1122, %v1126
          %v1151 = vadd.f32 %v1123, %v1127
          %v1152 = vadd.f32 %v1124, %v1128
          %v1153 = vadd.f32 %v1125, %v1129
          %v1154 = vadd.f32 %v1150, %v1130
          %v1155 = vadd.f32 %v1151, %v1131
          %v1156 = vadd.f32 %v1152, %v1132
          %v1157 = vadd.f32 %v1153, %v1133
          %v1158 = vadd.f32 %v1154, %v1134
          %v1159 = vadd.f32 %v1155, %v1135
          %v1160 = vadd.f32 %v1156, %v1136
          %v1161 = vadd.f32 %v1157, %v1137
          %v1162 = vmul.f32 %v1146, 0.0078125
          %v1163 = vmul.f32 %v1147, 0.0078125
          %v1164 = vmul.f32 %v1148, 0.0078125
          %v1165 = vmul.f32 %v1149, 0.0078125
          %v1166 = vmul.f32 %v1158, 0.0078125
          %v1167 = vmul.f32 %v1159, 0.0078125
          %v1168 = vmul.f32 %v1160, 0.0078125
          %v1169 = vmul.f32 %v1161, 0.0078125
          %v1170 = vmul.f32 %v1162, %v1162
          %v1171 = vmul.f32 %v1163, %v1163
          %v1172 = vmul.f32 %v1164, %v1164
          %v1173 = vmul.f32 %v1165, %v1165
          %v1174 = vsub.f32 %v1166, %v1170
          %v1175 = vsub.f32 %v1167, %v1171
          %v1176 = vsub.f32 %v1168, %v1172
          %v1177 = vsub.f32 %v1169, %v1173
          %v1178 = vmax.f32 %v1174, 0.0
          %v1179 = vmax.f32 %v1175, 0.0
          %v1180 = vmax.f32 %v1176, 0.0
          %v1181 = vmax.f32 %v1177, 0.0
          %v1182 = vld [vmem:[%s2] sm:$0xff]
          %v1183 = vld [vmem:[%s2 + $0x8] sm:$0xff]
          %v1184 = vld [vmem:[%s2 + $0x10] sm:$0xff]
          %v1185 = vld [vmem:[%s2 + $0x18] sm:$0xff]
          %v1186 = vld [vmem:[%s2 + $0x20] sm:$0xff]
          %v1187 = vld [vmem:[%s2 + $0x28] sm:$0xff]
          %v1188 = vld [vmem:[%s2 + $0x30] sm:$0xff]
          %v1189 = vld [vmem:[%s2 + $0x38] sm:$0xff]
          %v1190 = vld [vmem:[%s2 + $0x40] sm:$0xff]
          %v1191 = vld [vmem:[%s2 + $0x48] sm:$0xff]
          %v1192 = vld [vmem:[%s2 + $0x50] sm:$0xff]
          %v1193 = vld [vmem:[%s2 + $0x58] sm:$0xff]
          %v1194 = vld [vmem:[%s2 + $0x60] sm:$0xff]
          %v1195 = vld [vmem:[%s2 + $0x68] sm:$0xff]
          %v1196 = vld [vmem:[%s2 + $0x70] sm:$0xff]
          %v1197 = vld [vmem:[%s2 + $0x78] sm:$0xff]
          %v1198 = vadd.f32 %v1178, 1e-05
          %v1199 = vadd.f32 %v1179, 1e-05
          %v1200 = vadd.f32 %v1180, 1e-05
          %v1201 = vadd.f32 %v1181, 1e-05
          %v1202 = vrsqrt.pop %v1198
          %v1203 = vrsqrt.pop %v1199
          %v1204 = vrsqrt.pop %v1200
          %v1205 = vrsqrt.pop %v1201
          %v1206 = vmul.f32 %v1182, %v1202
          %v1207 = vmul.f32 %v1183, %v1203
          %v1208 = vmul.f32 %v1184, %v1204
          %v1209 = vmul.f32 %v1185, %v1205
          %v1210 = vmul.f32 %v1186, %v1202
          %v1211 = vmul.f32 %v1187, %v1203
          %v1212 = vmul.f32 %v1188, %v1204
          %v1213 = vmul.f32 %v1189, %v1205
          %v1214 = vmul.f32 %v1190, %v1202
          %v1215 = vmul.f32 %v1191, %v1203
          %v1216 = vmul.f32 %v1192, %v1204
          %v1217 = vmul.f32 %v1193, %v1205
          %v1218 = vmul.f32 %v1194, %v1202
          %v1219 = vmul.f32 %v1195, %v1203
          %v1220 = vmul.f32 %v1196, %v1204
          %v1221 = vmul.f32 %v1197, %v1205
          %v1222 = vld [vmem:[%s3] sm:$0xff]
          %v1223 = vld [vmem:[%s3 + $0x8] sm:$0xff]
          %v1224 = vld [vmem:[%s3 + $0x10] sm:$0xff]
          %v1225 = vld [vmem:[%s3 + $0x18] sm:$0xff]
          %v1226 = vld [vmem:[%s3 + $0x20] sm:$0xff]
          %v1227 = vld [vmem:[%s3 + $0x28] sm:$0xff]
          %v1228 = vld [vmem:[%s3 + $0x30] sm:$0xff]
          %v1229 = vld [vmem:[%s3 + $0x38] sm:$0xff]
          %v1230 = vld [vmem:[%s3 + $0x40] sm:$0xff]
          %v1231 = vld [vmem:[%s3 + $0x48] sm:$0xff]
          %v1232 = vld [vmem:[%s3 + $0x50] sm:$0xff]
          %v1233 = vld [vmem:[%s3 + $0x58] sm:$0xff]
          %v1234 = vld [vmem:[%s3 + $0x60] sm:$0xff]
          %v1235 = vld [vmem:[%s3 + $0x68] sm:$0xff]
          %v1236 = vld [vmem:[%s3 + $0x70] sm:$0xff]
          %v1237 = vld [vmem:[%s3 + $0x78] sm:$0xff]
          %v1238 = vmul.f32 %v1162, %v1206
          %v1239 = vmul.f32 %v1163, %v1207
          %v1240 = vmul.f32 %v1164, %v1208
          %v1241 = vmul.f32 %v1165, %v1209
          %v1242 = vmul.f32 %v1162, %v1210
          %v1243 = vmul.f32 %v1163, %v1211
          %v1244 = vmul.f32 %v1164, %v1212
          %v1245 = vmul.f32 %v1165, %v1213
          %v1246 = vmul.f32 %v1162, %v1214
          %v1247 = vmul.f32 %v1163, %v1215
          %v1248 = vmul.f32 %v1164, %v1216
          %v1249 = vmul.f32 %v1165, %v1217
          %v1250 = vmul.f32 %v1162, %v1218
          %v1251 = vmul.f32 %v1163, %v1219
          %v1252 = vmul.f32 %v1164, %v1220
          %v1253 = vmul.f32 %v1165, %v1221
          %v1254 = vsub.f32 %v1222, %v1238
          %v1255 = vsub.f32 %v1223, %v1239
          %v1256 = vsub.f32 %v1224, %v1240
          %v1257 = vsub.f32 %v1225, %v1241
          %v1258 = vsub.f32 %v1226, %v1242
          %v1259 = vsub.f32 %v1227, %v1243
          %v1260 = vsub.f32 %v1228, %v1244
          %v1261 = vsub.f32 %v1229, %v1245
          %v1262 = vsub.f32 %v1230, %v1246
          %v1263 = vsub.f32 %v1231, %v1247
          %v1264 = vsub.f32 %v1232, %v1248
          %v1265 = vsub.f32 %v1233, %v1249
          %v1266 = vsub.f32 %v1234, %v1250
          %v1267 = vsub.f32 %v1235, %v1251
          %v1268 = vsub.f32 %v1236, %v1252
          %v1269 = vsub.f32 %v1237, %v1253
          %vm1270 = vcmask 7168
          %1271 = vst.msk [vmem:[#allocation3] sm:$0xff] %vm1270, %v1206
          %1272 = vst.msk [vmem:[#allocation3 + $0x8] sm:$0xff] %vm1270, %v1207
          %1273 = vst.msk [vmem:[#allocation3 + $0x10] sm:$0xff] %vm1270, %v1208
          %1274 = vst.msk [vmem:[#allocation3 + $0x18] sm:$0xff] %vm1270, %v1209
          %1275 = vst.msk [vmem:[#allocation3 + $0x20] sm:$0xff] %vm1270, %v1210
          %1276 = vst.msk [vmem:[#allocation3 + $0x28] sm:$0xff] %vm1270, %v1211
          %1277 = vst.msk [vmem:[#allocation3 + $0x30] sm:$0xff] %vm1270, %v1212
          %1278 = vst.msk [vmem:[#allocation3 + $0x38] sm:$0xff] %vm1270, %v1213
          %1279 = vst.msk [vmem:[#allocation3 + $0x40] sm:$0xff] %vm1270, %v1214
          %1280 = vst.msk [vmem:[#allocation3 + $0x48] sm:$0xff] %vm1270, %v1215
          %1281 = vst.msk [vmem:[#allocation3 + $0x50] sm:$0xff] %vm1270, %v1216
          %1282 = vst.msk [vmem:[#allocation3 + $0x58] sm:$0xff] %vm1270, %v1217
          %1283 = vst.msk [vmem:[#allocation3 + $0x60] sm:$0xff] %vm1270, %v1218
          %1284 = vst.msk [vmem:[#allocation3 + $0x68] sm:$0xff] %vm1270, %v1219
          %1285 = vst.msk [vmem:[#allocation3 + $0x70] sm:$0xff] %vm1270, %v1220
          %1286 = vst.msk [vmem:[#allocation3 + $0x78] sm:$0xff] %vm1270, %v1221
          %1287 = vst.msk [vmem:[#allocation4] sm:$0xff] %vm1270, %v1254
          %1288 = vst.msk [vmem:[#allocation4 + $0x8] sm:$0xff] %vm1270, %v1255
          %1289 = vst.msk [vmem:[#allocation4 + $0x10] sm:$0xff] %vm1270, %v1256
          %1290 = vst.msk [vmem:[#allocation4 + $0x18] sm:$0xff] %vm1270, %v1257
          %1291 = vst.msk [vmem:[#allocation4 + $0x20] sm:$0xff] %vm1270, %v1258
          %1292 = vst.msk [vmem:[#allocation4 + $0x28] sm:$0xff] %vm1270, %v1259
          %1293 = vst.msk [vmem:[#allocation4 + $0x30] sm:$0xff] %vm1270, %v1260
          %1294 = vst.msk [vmem:[#allocation4 + $0x38] sm:$0xff] %vm1270, %v1261
          %1295 = vst.msk [vmem:[#allocation4 + $0x40] sm:$0xff] %vm1270, %v1262
          %1296 = vst.msk [vmem:[#allocation4 + $0x48] sm:$0xff] %vm1270, %v1263
          %1297 = vst.msk [vmem:[#allocation4 + $0x50] sm:$0xff] %vm1270, %v1264
          %1298 = vst.msk [vmem:[#allocation4 + $0x58] sm:$0xff] %vm1270, %v1265
          %1299 = vst.msk [vmem:[#allocation4 + $0x60] sm:$0xff] %vm1270, %v1266
          %1300 = vst.msk [vmem:[#allocation4 + $0x68] sm:$0xff] %vm1270, %v1267
          %1301 = vst.msk [vmem:[#allocation4 + $0x70] sm:$0xff] %vm1270, %v1268
          %1302 = vst.msk [vmem:[#allocation4 + $0x78] sm:$0xff] %vm1270, %v1269
        $region52: #{generator_forward.6} parent=47 // pred_fallthru
          _
        %s1303 = smul.u32 %s20, 128
        %s1304 = sshra.s32 %s1303, 7
        %s1305 = sand.u32 %s1303, 127
        %s1306 = scalar_lea.vmem [#allocation2], %s1304
        %v1307 = vld [vmem:[%s1306] sm:$0xff]
        %v1308 = vld [vmem:[%s1306 + $0x8] sm:$0xff]
        %v1309 = vld [vmem:[%s1306 + $0x10] sm:$0xff]
        %v1310 = vld [vmem:[%s1306 + $0x18] sm:$0xff]
        %v1311 = vld [vmem:[%s1306 + $0x20] sm:$0xff]
        %v1312 = vld [vmem:[%s1306 + $0x28] sm:$0xff]
        %v1313 = vld [vmem:[%s1306 + $0x30] sm:$0xff]
        %v1314 = vld [vmem:[%s1306 + $0x38] sm:$0xff]
        %v1315 = vld [vmem:[%s1306 + $0x40] sm:$0xff]
        %v1316 = vld [vmem:[%s1306 + $0x48] sm:$0xff]
        %v1317 = vld [vmem:[%s1306 + $0x50] sm:$0xff]
        %v1318 = vld [vmem:[%s1306 + $0x58] sm:$0xff]
        %v1319 = vld [vmem:[%s1306 + $0x60] sm:$0xff]
        %v1320 = vld [vmem:[%s1306 + $0x68] sm:$0xff]
        %v1321 = vld [vmem:[%s1306 + $0x70] sm:$0xff]
        %v1322 = vld [vmem:[%s1306 + $0x78] sm:$0xff]
        %v1323 = vld [vmem:[#allocation3] sm:$0xff]
        %v1324 = vld [vmem:[#allocation3 + $0x8] sm:$0xff]
        %v1325 = vld [vmem:[#allocation3 + $0x10] sm:$0xff]
        %v1326 = vld [vmem:[#allocation3 + $0x18] sm:$0xff]
        %v1327 = vld [vmem:[#allocation3 + $0x20] sm:$0xff]
        %v1328 = vld [vmem:[#allocation3 + $0x28] sm:$0xff]
        %v1329 = vld [vmem:[#allocation3 + $0x30] sm:$0xff]
        %v1330 = vld [vmem:[#allocation3 + $0x38] sm:$0xff]
        %v1331 = vld [vmem:[#allocation3 + $0x40] sm:$0xff]
        %v1332 = vld [vmem:[#allocation3 + $0x48] sm:$0xff]
        %v1333 = vld [vmem:[#allocation3 + $0x50] sm:$0xff]
        %v1334 = vld [vmem:[#allocation3 + $0x58] sm:$0xff]
        %v1335 = vld [vmem:[#allocation3 + $0x60] sm:$0xff]
        %v1336 = vld [vmem:[#allocation3 + $0x68] sm:$0xff]
        %v1337 = vld [vmem:[#allocation3 + $0x70] sm:$0xff]
        %v1338 = vld [vmem:[#allocation3 + $0x78] sm:$0xff]
        %1340 = vset.pattern.permute.xlu0 0
        %1341 = vperm.xlu0 %1340, %v1323
        %v1342 = vpop.permute.xlu0 %1341
        %1345 = vset.pattern.permute.xlu0 0
        %1346 = vperm.xlu0 %1345, %v1324
        %v1347 = vpop.permute.xlu0 %1346
        %1350 = vset.pattern.permute.xlu0 0
        %1351 = vperm.xlu0 %1350, %v1325
        %v1352 = vpop.permute.xlu0 %1351
        %1355 = vset.pattern.permute.xlu0 0
        %1356 = vperm.xlu0 %1355, %v1326
        %v1357 = vpop.permute.xlu0 %1356
        %1360 = vset.pattern.permute.xlu0 0
        %1361 = vperm.xlu0 %1360, %v1327
        %v1362 = vpop.permute.xlu0 %1361
        %1365 = vset.pattern.permute.xlu0 0
        %1366 = vperm.xlu0 %1365, %v1328
        %v1367 = vpop.permute.xlu0 %1366
        %1370 = vset.pattern.permute.xlu0 0
        %1371 = vperm.xlu0 %1370, %v1329
        %v1372 = vpop.permute.xlu0 %1371
        %1375 = vset.pattern.permute.xlu0 0
        %1376 = vperm.xlu0 %1375, %v1330
        %v1377 = vpop.permute.xlu0 %1376
        %1380 = vset.pattern.permute.xlu0 0
        %1381 = vperm.xlu0 %1380, %v1331
        %v1382 = vpop.permute.xlu0 %1381
        %1385 = vset.pattern.permute.xlu0 0
        %1386 = vperm.xlu0 %1385, %v1332
        %v1387 = vpop.permute.xlu0 %1386
        %1390 = vset.pattern.permute.xlu0 0
        %1391 = vperm.xlu0 %1390, %v1333
        %v1392 = vpop.permute.xlu0 %1391
        %1395 = vset.pattern.permute.xlu0 0
        %1396 = vperm.xlu0 %1395, %v1334
        %v1397 = vpop.permute.xlu0 %1396
        %1400 = vset.pattern.permute.xlu0 0
        %1401 = vperm.xlu0 %1400, %v1335
        %v1402 = vpop.permute.xlu0 %1401
        %1405 = vset.pattern.permute.xlu0 0
        %1406 = vperm.xlu0 %1405, %v1336
        %v1407 = vpop.permute.xlu0 %1406
        %1410 = vset.pattern.permute.xlu0 0
        %1411 = vperm.xlu0 %1410, %v1337
        %v1412 = vpop.permute.xlu0 %1411
        %1415 = vset.pattern.permute.xlu0 0
        %1416 = vperm.xlu0 %1415, %v1338
        %v1417 = vpop.permute.xlu0 %1416
        %v1419 = vmul.f32 %v1307, %v1342
        %v1420 = vmul.f32 %v1308, %v1347
        %v1421 = vmul.f32 %v1309, %v1352
        %v1422 = vmul.f32 %v1310, %v1357
        %v1423 = vmul.f32 %v1311, %v1362
        %v1424 = vmul.f32 %v1312, %v1367
        %v1425 = vmul.f32 %v1313, %v1372
        %v1426 = vmul.f32 %v1314, %v1377
        %v1427 = vmul.f32 %v1315, %v1382
        %v1428 = vmul.f32 %v1316, %v1387
        %v1429 = vmul.f32 %v1317, %v1392
        %v1430 = vmul.f32 %v1318, %v1397
        %v1431 = vmul.f32 %v1319, %v1402
        %v1432 = vmul.f32 %v1320, %v1407
        %v1433 = vmul.f32 %v1321, %v1412
        %v1434 = vmul.f32 %v1322, %v1417
        %v1435 = vld [vmem:[#allocation4] sm:$0xff]
        %v1436 = vld [vmem:[#allocation4 + $0x8] sm:$0xff]
        %v1437 = vld [vmem:[#allocation4 + $0x10] sm:$0xff]
        %v1438 = vld [vmem:[#allocation4 + $0x18] sm:$0xff]
        %v1439 = vld [vmem:[#allocation4 + $0x20] sm:$0xff]
        %v1440 = vld [vmem:[#allocation4 + $0x28] sm:$0xff]
        %v1441 = vld [vmem:[#allocation4 + $0x30] sm:$0xff]
        %v1442 = vld [vmem:[#allocation4 + $0x38] sm:$0xff]
        %v1443 = vld [vmem:[#allocation4 + $0x40] sm:$0xff]
        %v1444 = vld [vmem:[#allocation4 + $0x48] sm:$0xff]
        %v1445 = vld [vmem:[#allocation4 + $0x50] sm:$0xff]
        %v1446 = vld [vmem:[#allocation4 + $0x58] sm:$0xff]
        %v1447 = vld [vmem:[#allocation4 + $0x60] sm:$0xff]
        %v1448 = vld [vmem:[#allocation4 + $0x68] sm:$0xff]
        %v1449 = vld [vmem:[#allocation4 + $0x70] sm:$0xff]
        %v1450 = vld [vmem:[#allocation4 + $0x78] sm:$0xff]
        %1452 = vset.pattern.permute.xlu0 0
        %1453 = vperm.xlu0 %1452, %v1435
        %v1454 = vpop.permute.xlu0 %1453
        %1457 = vset.pattern.permute.xlu0 0
        %1458 = vperm.xlu0 %1457, %v1436
        %v1459 = vpop.permute.xlu0 %1458
        %1462 = vset.pattern.permute.xlu0 0
        %1463 = vperm.xlu0 %1462, %v1437
        %v1464 = vpop.permute.xlu0 %1463
        %1467 = vset.pattern.permute.xlu0 0
        %1468 = vperm.xlu0 %1467, %v1438
        %v1469 = vpop.permute.xlu0 %1468
        %1472 = vset.pattern.permute.xlu0 0
        %1473 = vperm.xlu0 %1472, %v1439
        %v1474 = vpop.permute.xlu0 %1473
        %1477 = vset.pattern.permute.xlu0 0
        %1478 = vperm.xlu0 %1477, %v1440
        %v1479 = vpop.permute.xlu0 %1478
        %1482 = vset.pattern.permute.xlu0 0
        %1483 = vperm.xlu0 %1482, %v1441
        %v1484 = vpop.permute.xlu0 %1483
        %1487 = vset.pattern.permute.xlu0 0
        %1488 = vperm.xlu0 %1487, %v1442
        %v1489 = vpop.permute.xlu0 %1488
        %1492 = vset.pattern.permute.xlu0 0
        %1493 = vperm.xlu0 %1492, %v1443
        %v1494 = vpop.permute.xlu0 %1493
        %1497 = vset.pattern.permute.xlu0 0
        %1498 = vperm.xlu0 %1497, %v1444
        %v1499 = vpop.permute.xlu0 %1498
        %1502 = vset.pattern.permute.xlu0 0
        %1503 = vperm.xlu0 %1502, %v1445
        %v1504 = vpop.permute.xlu0 %1503
        %1507 = vset.pattern.permute.xlu0 0
        %1508 = vperm.xlu0 %1507, %v1446
        %v1509 = vpop.permute.xlu0 %1508
        %1512 = vset.pattern.permute.xlu0 0
        %1513 = vperm.xlu0 %1512, %v1447
        %v1514 = vpop.permute.xlu0 %1513
        %1517 = vset.pattern.permute.xlu0 0
        %1518 = vperm.xlu0 %1517, %v1448
        %v1519 = vpop.permute.xlu0 %1518
        %1522 = vset.pattern.permute.xlu0 0
        %1523 = vperm.xlu0 %1522, %v1449
        %v1524 = vpop.permute.xlu0 %1523
        %1527 = vset.pattern.permute.xlu0 0
        %1528 = vperm.xlu0 %1527, %v1450
        %v1529 = vpop.permute.xlu0 %1528
        %v1531 = vadd.f32 %v1419, %v1454
        %v1532 = vadd.f32 %v1420, %v1459
        %v1533 = vadd.f32 %v1421, %v1464
        %v1534 = vadd.f32 %v1422, %v1469
        %v1535 = vadd.f32 %v1423, %v1474
        %v1536 = vadd.f32 %v1424, %v1479
        %v1537 = vadd.f32 %v1425, %v1484
        %v1538 = vadd.f32 %v1426, %v1489
        %v1539 = vadd.f32 %v1427, %v1494
        %v1540 = vadd.f32 %v1428, %v1499
        %v1541 = vadd.f32 %v1429, %v1504
        %v1542 = vadd.f32 %v1430, %v1509
        %v1543 = vadd.f32 %v1431, %v1514
        %v1544 = vadd.f32 %v1432, %v1519
        %v1545 = vadd.f32 %v1433, %v1524
        %v1546 = vadd.f32 %v1434, %v1529
        %v1547 = vmax.f32 %v1531, 0.0
        %v1548 = vmax.f32 %v1532, 0.0
        %v1549 = vmax.f32 %v1533, 0.0
        %v1550 = vmax.f32 %v1534, 0.0
        %v1551 = vmax.f32 %v1535, 0.0
        %v1552 = vmax.f32 %v1536, 0.0
        %v1553 = vmax.f32 %v1537, 0.0
        %v1554 = vmax.f32 %v1538, 0.0
        %v1555 = vmax.f32 %v1539, 0.0
        %v1556 = vmax.f32 %v1540, 0.0
        %v1557 = vmax.f32 %v1541, 0.0
        %v1558 = vmax.f32 %v1542, 0.0
        %v1559 = vmax.f32 %v1543, 0.0
        %v1560 = vmax.f32 %v1544, 0.0
        %v1561 = vmax.f32 %v1545, 0.0
        %v1562 = vmax.f32 %v1546, 0.0
        %1563 = vst [vmem:[%s222] sm:$0xff] %v1547
        %1564 = vst [vmem:[%s222 + $0x8] sm:$0xff] %v1548
        %1565 = vst [vmem:[%s222 + $0x10] sm:$0xff] %v1549
        %1566 = vst [vmem:[%s222 + $0x18] sm:$0xff] %v1550
        %1567 = vst [vmem:[%s222 + $0x20] sm:$0xff] %v1551
        %1568 = vst [vmem:[%s222 + $0x28] sm:$0xff] %v1552
        %1569 = vst [vmem:[%s222 + $0x30] sm:$0xff] %v1553
        %1570 = vst [vmem:[%s222 + $0x38] sm:$0xff] %v1554
        %1571 = vst [vmem:[%s222 + $0x40] sm:$0xff] %v1555
        %1572 = vst [vmem:[%s222 + $0x48] sm:$0xff] %v1556
        %1573 = vst [vmem:[%s222 + $0x50] sm:$0xff] %v1557
        %1574 = vst [vmem:[%s222 + $0x58] sm:$0xff] %v1558
        %1575 = vst [vmem:[%s222 + $0x60] sm:$0xff] %v1559
        %1576 = vst [vmem:[%s222 + $0x68] sm:$0xff] %v1560
        %1577 = vst [vmem:[%s222 + $0x70] sm:$0xff] %v1561
        %1578 = vst [vmem:[%s222 + $0x78] sm:$0xff] %v1562
      $region48: #{generator_forward.6} parent=35 // pred_fallthru
        _
      %s1579 = smul.u32 %s20, %s19
      %p1580 = scmp.lt.s32.totalorder %s1579, 0
      %s1581 = scalar_select %p1580, %s1579, 0
      %s1582 = smul.addr %s1581, 8
      %s1583 = scalar_lea.vmem %s4, %s1582
      // Predicated region
      $region53: #{generator_forward.6} parent=35 // pred_check
        %p1584 = pneg %p140
      $region54: #{generator_forward.6} parent=35 // pred_check_branch
        %1586 = sbr.rel (%p1584) target = $region56
      $region55: #{generator_forward.6} parent=35 // pred_region
        %s1587 = smul.u32 %s20, %s19
      $region56: #{generator_forward.6} parent=35 // pred_fallthru
        _
    $region36: #{generator_forward.6} parent=5 // pred_fallthru
      _
    %p1588 = scmp.le.s32.totalorder 2, %s10
    // Predicated region
    $region57: #{generator_forward.6} parent=5 // pred_check
      %p1589 = pneg %p1588
    $region58: #{generator_forward.6} parent=5 // pred_check_branch
      %1591 = sbr.rel (%p1589) target = $region60
    $region59: #{generator_forward.6} parent=5 // pred_region
      %s1592 = ssub.s32 %s10, 2
      // Predicated region
      $region61: #{generator_forward.6} parent=59 // pred_check
        %p1593 = pneg %p146
      $region62: #{generator_forward.6} parent=59 // pred_check_branch
        %1595 = sbr.rel (%p1593) target = $region64
      $region63: #{generator_forward.6} parent=59 // pred_region
        %s1596 = smul.u32 %s22, %s21
        %p1597 = scmp.lt.s32.totalorder %s1596, 0
        %s1598 = scalar_select %p1597, %s1596, 0
        %s1599 = smul.addr %s1598, 8
        %s1600 = scalar_lea.vmem %s4, %s1599
      $region64: #{generator_forward.6} parent=59 // pred_fallthru
        _
    $region60: #{generator_forward.6} parent=5 // pred_fallthru
      _
  $region6: #{generator_forward.6} parent=0 // loop_footer
    %s14 = sadd.s32 1, %s10
  $region7: #{generator_forward.6} parent=0 // loop_footer_branch
    %9 = sbr.rel target = $region3
  $region8: #{generator_forward.6} parent=0 // loop_exit
    _

// kernel: generator_forward.7
$region0: #{generator_forward.7}
  #allocation0 [shape = 'u32[]', space=smem, size = 0x4, offset = 0x4, fixed_abs, tag = 'smem constant byte address 0x4 - core index']
  #allocation1 [shape = 'u32[144,128]{1,0:T(1,128)}', space=vmem, size = 0x12000, scoped, tag = 'internal scratch']
  #allocation2 [shape = 'f32[64,128]{1,0:T(8,128)}', space=vmem, size = 0x8000, scoped, tag = 'scratch operand']
  #allocation3 [shape = 'f32[64,1]{1,0:T(8,128)}', space=vmem, size = 0x8000, scoped, tag = 'scratch operand']
  #allocation4 [shape = 'f32[64,1]{1,0:T(8,128)}', space=vmem, size = 0x8000, scoped, tag = 'scratch operand']
  %s0 = inlined_call_operand.vmem [shape: f32[64,288], index: 0, kind: input, shape index: {}]
  %s1 = inlined_call_operand.vmem [shape: f32[288,128], index: 1, kind: input, shape index: {}]
  %s2 = inlined_call_operand.vmem [shape: f32[64,1], index: 2, kind: input, shape index: {}]
  %s3 = inlined_call_operand.vmem [shape: f32[64,1], index: 3, kind: input, shape index: {}]
  %s4 = inlined_call_operand.vmem [shape: f32[64,128], index: 4, kind: output, shape index: {}]
  %s5 = sld [smem:[#allocation0]]
  $region65: #{generator_forward.7} parent=0
    _
  %s7 = ssub.s32 1, %s5
  %s8 = scalar_select 0, %s7, %s5
  loop: start=0, step=1, limit=4
  $region2: #{generator_forward.7} parent=0 // loop_pre_header
    _
  $region3: #{generator_forward.7} parent=0 // loop_header
    %s10 = sphi 0, %s14
    %p11 = scmp.ge.s32.totalorder %s10, 4
    %s17 = sphi 0, %s29
    %s18 = sphi 0, %s25
    %s19 = sphi 0, %s17
    %s20 = sphi 0, %s18
    %s21 = sphi 0, %s19
    %s22 = sphi 0, %s20
    %s30 = sphi 0, %s30
    %s32 = sphi 0, %s30
    %s33 = sphi 0, %s32
    %s47 = sphi 0, %s33
    %s57 = sphi 0, %s59
    %s60 = sphi 0, %s57
    %s61 = sphi 0, %s60
    %s77 = sphi 0, %s61
    %s81 = sphi 0, %s81
    %s83 = sphi 0, %s81
    %s84 = sphi 0, %s83
    %s98 = sphi 0, %s84
    %s102 = sphi 0, %s102
    %s104 = sphi 0, %s102
    %s105 = sphi 0, %s104
    %s119 = sphi 0, %s105
    %s127 = sphi 0, %s129
    %s130 = sphi 0, %s127
    %s131 = sphi 0, %s130
    %s147 = sphi 0, %s131
  $region4: #{generator_forward.7} parent=0 // loop_header_branch
    %13 = sbr.rel (%p11) target = $region8
  $region5: #{generator_forward.7} parent=0 // loop_body
    %s15 = ssub.s32 %s10, 1
    %s16 = ssub.s32 %s10, 2
    %s23 = sadd.s32 1, %s18
    %p24 = scmp.ge.s32.totalorder %s23, 1
    %s25 = scalar_select %p24, 0, %s23
    %s26 = sadd.s32 1, %s17
    %s27 = scalar_select %p24, %s26, %s17
    %p28 = scmp.ge.s32.totalorder %s27, 2
    %s29 = scalar_select %p28, 0, %s27
    %s31 = sadd.s32 %s30, 1
    %p34 = scmp.eq.s32.totalorder %s10, 1
    %p35 = scmp.ne.s32.totalorder %s30, %s32
    %p36 = scmp.eq.s32.totalorder %s10, 0
    %p37 = por %p35, %p36
    %p38 = scmp.ne.s32.totalorder %s30, %s32
    %p39 = scmp.eq.s32.totalorder %s15, 1
    %p40 = por %p38, %p39
    %p41 = scmp.ne.s32.totalorder %s32, %s33
    %p42 = scmp.eq.s32.totalorder %s15, 0
    %p43 = por %p41, %p42
    %p44 = scmp.ne.s32.totalorder %s32, %s33
    %p45 = scmp.eq.s32.totalorder %s16, 1
    %p46 = por %p44, %p45
    %p48 = scmp.ne.s32.totalorder %s33, %s47
    %p49 = scmp.eq.s32.totalorder %s16, 0
    %p50 = por %p48, %p49
    %s51 = ssub.s32 1, %s17
    %s52 = smul.u32 %s18, %s51
    %s53 = ssub.s32 1, %s29
    %s54 = smul.u32 %s25, %s53
    %s55 = ssub.s32 %s52, %s54
    %p56 = scmp.eq.s32.totalorder %s55, 0
    %s58 = sadd.s32 %s57, 1
    %s59 = scalar_select %p56, %s57, %s58
    %p62 = pneg %p56
    %p63 = scmp.eq.s32.totalorder %s10, 1
    %p64 = por %p62, %p63
    %p65 = scmp.ne.s32.totalorder %s57, %s60
    %p66 = scmp.eq.s32.totalorder %s10, 0
    %p67 = por %p65, %p66
    %p68 = scmp.ne.s32.totalorder %s57, %s60
    %p69 = scmp.eq.s32.totalorder %s15, 1
    %p70 = por %p68, %p69
    %p71 = scmp.ne.s32.totalorder %s60, %s61
    %p72 = scmp.eq.s32.totalorder %s15, 0
    %p73 = por %p71, %p72
    %p74 = scmp.ne.s32.totalorder %s60, %s61
    %p75 = scmp.eq.s32.totalorder %s16, 1
    %p76 = por %p74, %p75
    %p78 = scmp.ne.s32.totalorder %s61, %s77
    %p79 = scmp.eq.s32.totalorder %s16, 0
    %p80 = por %p78, %p79
    %s82 = sadd.s32 %s81, 1
    %p85 = scmp.eq.s32.totalorder %s10, 1
    %p86 = scmp.ne.s32.totalorder %s81, %s83
    %p87 = scmp.eq.s32.totalorder %s10, 0
    %p88 = por %p86, %p87
    %p89 = scmp.ne.s32.totalorder %s81, %s83
    %p90 = scmp.eq.s32.totalorder %s15, 1
    %p91 = por %p89, %p90
    %p92 = scmp.ne.s32.totalorder %s83, %s84
    %p93 = scmp.eq.s32.totalorder %s15, 0
    %p94 = por %p92, %p93
    %p95 = scmp.ne.s32.totalorder %s83, %s84
    %p96 = scmp.eq.s32.totalorder %s16, 1
    %p97 = por %p95, %p96
    %p99 = scmp.ne.s32.totalorder %s84, %s98
    %p100 = scmp.eq.s32.totalorder %s16, 0
    %p101 = por %p99, %p100
    %s103 = sadd.s32 %s102, 1
    %p106 = scmp.eq.s32.totalorder %s10, 1
    %p107 = scmp.ne.s32.totalorder %s102, %s104
    %p108 = scmp.eq.s32.totalorder %s10, 0
    %p109 = por %p107, %p108
    %p110 = scmp.ne.s32.totalorder %s102, %s104
    %p111 = scmp.eq.s32.totalorder %s15, 1
    %p112 = por %p110, %p111
    %p113 = scmp.ne.s32.totalorder %s104, %s105
    %p114 = scmp.eq.s32.totalorder %s15, 0
    %p115 = por %p113, %p114
    %p116 = scmp.ne.s32.totalorder %s104, %s105
    %p117 = scmp.eq.s32.totalorder %s16, 1
    %p118 = por %p116, %p117
    %p120 = scmp.ne.s32.totalorder %s105, %s119
    %p121 = scmp.eq.s32.totalorder %s16, 0
    %p122 = por %p120, %p121
    %s123 = smul.u32 %s18, %s17
    %s124 = smul.u32 %s25, %s29
    %s125 = ssub.s32 %s123, %s124
    %p126 = scmp.eq.s32.totalorder %s125, 0
    %s128 = sadd.s32 %s127, 1
    %s129 = scalar_select %p126, %s127, %s128
    %p132 = pneg %p126
    %p133 = scmp.eq.s32.totalorder %s10, 1
    %p134 = por %p132, %p133
    %p135 = scmp.ne.s32.totalorder %s127, %s130
    %p136 = scmp.eq.s32.totalorder %s10, 0
    %p137 = por %p135, %p136
    %p138 = scmp.ne.s32.totalorder %s127, %s130
    %p139 = scmp.eq.s32.totalorder %s15, 1
    %p140 = por %p138, %p139
    %p141 = scmp.ne.s32.totalorder %s130, %s131
    %p142 = scmp.eq.s32.totalorder %s15, 0
    %p143 = por %p141, %p142
    %p144 = scmp.ne.s32.totalorder %s130, %s131
    %p145 = scmp.eq.s32.totalorder %s16, 1
    %p146 = por %p144, %p145
    %p148 = scmp.ne.s32.totalorder %s131, %s147
    %p149 = scmp.eq.s32.totalorder %s16, 0
    %p150 = por %p148, %p149
    %p151 = scmp.le.s32.totalorder 1, %s10
    %p152 = scmp.lt.s32.totalorder %s10, 3
    %p153 = pnand %p151, %p152
    %p154 = pneg %p153
    // Predicated region
    $region9: #{generator_forward.7} parent=5 // pred_check
      _
    $region10: #{generator_forward.7} parent=5 // pred_check_branch
      %156 = sbr.rel (%p153) target = $region12
    $region11: #{generator_forward.7} parent=5 // pred_region
      %s157 = ssub.s32 %s10, 1
      // Predicated region
      $region13: #{generator_forward.7} parent=11 // pred_check
        %p158 = pneg %p43
      $region14: #{generator_forward.7} parent=11 // pred_check_branch
        %160 = sbr.rel (%p158) target = $region16
      $region15: #{generator_forward.7} parent=11 // pred_region
        _
      $region16: #{generator_forward.7} parent=11 // pred_fallthru
        _
      // Predicated region
      $region17: #{generator_forward.7} parent=11 // pred_check
        %p161 = pneg %p94
      $region18: #{generator_forward.7} parent=11 // pred_check_branch
        %163 = sbr.rel (%p161) target = $region20
      $region19: #{generator_forward.7} parent=11 // pred_region
        _
      $region20: #{generator_forward.7} parent=11 // pred_fallthru
        _
      // Predicated region
      $region21: #{generator_forward.7} parent=11 // pred_check
        %p164 = pneg %p115
      $region22: #{generator_forward.7} parent=11 // pred_check_branch
        %166 = sbr.rel (%p164) target = $region24
      $region23: #{generator_forward.7} parent=11 // pred_region
        _
      $region24: #{generator_forward.7} parent=11 // pred_fallthru
        _
    $region12: #{generator_forward.7} parent=5 // pred_fallthru
      _
    %p167 = scmp.lt.s32.totalorder %s10, 2
    // Predicated region
    $region25: #{generator_forward.7} parent=5 // pred_check
      %p168 = pneg %p167
    $region26: #{generator_forward.7} parent=5 // pred_check_branch
      %170 = sbr.rel (%p168) target = $region28
    $region27: #{generator_forward.7} parent=5 // pred_region
      // Predicated region
      $region29: #{generator_forward.7} parent=27 // pred_check
        %p171 = pneg %p67
      $region30: #{generator_forward.7} parent=27 // pred_check_branch
        %173 = sbr.rel (%p171) target = $region32
      $region31: #{generator_forward.7} parent=27 // pred_region
        %s174 = ssub.s32 1, %s17
        %s175 = smul.u32 %s18, %s174
        %p176 = scmp.lt.s32.totalorder %s175, 0
        %s177 = scalar_select %p176, %s175, 0
        %s178 = smul.addr %s177, 8
        %s179 = scalar_lea.vmem %s1, %s178
        %s180 = ssub.s32 1, %s17
        %s181 = smul.u32 %s18, %s180
      $region32: #{generator_forward.7} parent=27 // pred_fallthru
        _
    $region28: #{generator_forward.7} parent=5 // pred_fallthru
      _
    %p182 = scmp.le.s32.totalorder 1, %s10
    %p183 = scmp.lt.s32.totalorder %s10, 3
    %p184 = pnand %p182, %p183
    %p185 = pneg %p184
    // Predicated region
    $region33: #{generator_forward.7} parent=5 // pred_check
      _
    $region34: #{generator_forward.7} parent=5 // pred_check_branch
      %187 = sbr.rel (%p184) target = $region36
    $region35: #{generator_forward.7} parent=5 // pred_region
      %s188 = ssub.s32 %s10, 1
      %p189 = pneg %p43
      %p190 = pneg %p40
      %s191 = ssub.s32 1, %s19
      %s192 = smul.u32 %s20, %s191
      %p193 = scmp.lt.s32.totalorder %s192, 0
      %s194 = scalar_select %p193, %s192, 0
      %s195 = smul.addr %s194, 8
      %s196 = scalar_lea.vmem %s1, %s195
      %p197 = pneg %p73
      %p198 = pneg %p70
      %p199 = pneg %p94
      %p200 = pneg %p91
      %p201 = pneg %p115
      %p202 = pneg %p112
      %p203 = pneg %p143
      %p204 = pneg %p140
      %s205 = smul.u32 %s20, %s19
      %p206 = scmp.lt.s32.totalorder %s205, 0
      %s207 = scalar_select %p206, %s205, 0
      %s208 = smul.addr %s207, 8
      %s209 = scalar_lea.vmem %s4, %s208
      %s210 = ssub.s32 1, %s19
      %s211 = smul.u32 %s20, %s210
      %p212 = scmp.lt.s32.totalorder %s211, 0
      %s213 = scalar_select %p212, %s211, 0
      %s214 = smul.addr %s213, 8
      %s215 = scalar_lea.vmem %s1, %s214
      %s216 = ssub.s32 1, %s19
      %s217 = smul.u32 %s20, %s216
      %s218 = smul.u32 %s20, %s19
      %p219 = scmp.lt.s32.totalorder %s218, 0
      %s220 = scalar_select %p219, %s218, 0
      %s221 = smul.addr %s220, 8
      %s222 = scalar_lea.vmem %s4, %s221
      %s223 = smul.u32 %s20, %s19
      %p224 = scmp.eq.s32.totalorder %s19, 0
      // Predicated region
      $region37: #{generator_forward.7} parent=35 // pred_check
        %p225 = pneg %p224
      $region38: #{generator_forward.7} parent=35 // pred_check_branch
        %227 = sbr.rel (%p225) target = $region40
      $region39: #{generator_forward.7} parent=35 // pred_region
        %p228 = scmp.eq.s32.totalorder %s20, 0
        // Predicated region
        $region41: #{generator_forward.7} parent=39 // pred_check
          %p229 = pneg %p228
        $region42: #{generator_forward.7} parent=39 // pred_check_branch
          %231 = sbr.rel (%p229) target = $region44
        $region43: #{generator_forward.7} parent=39 // pred_region
          %vm232 = vcmask 7168
          %233 = vst.msk [vmem:[#allocation3] sm:$0xff] %vm232, 0.0
          %234 = vst.msk [vmem:[#allocation3 + $0x8] sm:$0xff] %vm232, 0.0
          %235 = vst.msk [vmem:[#allocation3 + $0x10] sm:$0xff] %vm232, 0.0
          %236 = vst.msk [vmem:[#allocation3 + $0x18] sm:$0xff] %vm232, 0.0
          %237 = vst.msk [vmem:[#allocation3 + $0x20] sm:$0xff] %vm232, 0.0
          %238 = vst.msk [vmem:[#allocation3 + $0x28] sm:$0xff] %vm232, 0.0
          %239 = vst.msk [vmem:[#allocation3 + $0x30] sm:$0xff] %vm232, 0.0
          %240 = vst.msk [vmem:[#allocation3 + $0x38] sm:$0xff] %vm232, 0.0
          %241 = vst.msk [vmem:[#allocation4] sm:$0xff] %vm232, 0.0
          %242 = vst.msk [vmem:[#allocation4 + $0x8] sm:$0xff] %vm232, 0.0
          %243 = vst.msk [vmem:[#allocation4 + $0x10] sm:$0xff] %vm232, 0.0
          %244 = vst.msk [vmem:[#allocation4 + $0x18] sm:$0xff] %vm232, 0.0
          %245 = vst.msk [vmem:[#allocation4 + $0x20] sm:$0xff] %vm232, 0.0
          %246 = vst.msk [vmem:[#allocation4 + $0x28] sm:$0xff] %vm232, 0.0
          %247 = vst.msk [vmem:[#allocation4 + $0x30] sm:$0xff] %vm232, 0.0
          %248 = vst.msk [vmem:[#allocation4 + $0x38] sm:$0xff] %vm232, 0.0
        $region44: #{generator_forward.7} parent=39 // pred_fallthru
          _
        %v249 = vld [vmem:[%s0] sm:$0xff]
        %v250 = vld [vmem:[%s0 + $0x8] sm:$0xff]
        %v251 = vld [vmem:[%s0 + $0x10] sm:$0xff]
        %v252 = vld [vmem:[%s0 + $0x18] sm:$0xff]
        %v253 = vld [vmem:[%s0 + $0x20] sm:$0xff]
        %v254 = vld [vmem:[%s0 + $0x28] sm:$0xff]
        %v255 = vld [vmem:[%s0 + $0x30] sm:$0xff]
        %v256 = vld [vmem:[%s0 + $0x38] sm:$0xff]
        %v257 = vld [vmem:[%s0 + $0x40] sm:$0xff]
        %v258 = vld [vmem:[%s0 + $0x48] sm:$0xff]
        %v259 = vld [vmem:[%s0 + $0x50] sm:$0xff]
        %v260 = vld [vmem:[%s0 + $0x58] sm:$0xff]
        %v261 = vld [vmem:[%s0 + $0x60] sm:$0xff]
        %v262 = vld [vmem:[%s0 + $0x68] sm:$0xff]
        %v263 = vld [vmem:[%s0 + $0x70] sm:$0xff]
        %v264 = vld [vmem:[%s0 + $0x78] sm:$0xff]
        %v265 = vld [vmem:[%s0 + $0x80] sm:$0xff]
        %v266 = vld [vmem:[%s0 + $0x88] sm:$0xff]
        %v267 = vld [vmem:[%s0 + $0x90] sm:$0xff]
        %v268 = vld [vmem:[%s0 + $0x98] sm:$0xff]
        %v269 = vld [vmem:[%s0 + $0xa0] sm:$0xff]
        %v270 = vld [vmem:[%s0 + $0xa8] sm:$0xff]
        %v271 = vld [vmem:[%s0 + $0xb0] sm:$0xff]
        %v272 = vld [vmem:[%s0 + $0xb8] sm:$0xff]
        %v273 = vld [vmem:[%s215] sm:$0xff]
        %v274 = vld [vmem:[%s215 + $0x8] sm:$0xff]
        %v275 = vld [vmem:[%s215 + $0x10] sm:$0xff]
        %v276 = vld [vmem:[%s215 + $0x18] sm:$0xff]
        %v277 = vld [vmem:[%s215 + $0x20] sm:$0xff]
        %v278 = vld [vmem:[%s215 + $0x28] sm:$0xff]
        %v279 = vld [vmem:[%s215 + $0x30] sm:$0xff]
        %v280 = vld [vmem:[%s215 + $0x38] sm:$0xff]
        %v281 = vld [vmem:[%s215 + $0x40] sm:$0xff]
        %v282 = vld [vmem:[%s215 + $0x48] sm:$0xff]
        %v283 = vld [vmem:[%s215 + $0x50] sm:$0xff]
        %v284 = vld [vmem:[%s215 + $0x58] sm:$0xff]
        %v285 = vld [vmem:[%s215 + $0x60] sm:$0xff]
        %v286 = vld [vmem:[%s215 + $0x68] sm:$0xff]
        %v287 = vld [vmem:[%s215 + $0x70] sm:$0xff]
        %v288 = vld [vmem:[%s215 + $0x78] sm:$0xff]
        %v289 = vld [vmem:[%s215 + $0x80] sm:$0xff]
        %v290 = vld [vmem:[%s215 + $0x88] sm:$0xff]
        %v291 = vld [vmem:[%s215 + $0x90] sm:$0xff]
        %v292 = vld [vmem:[%s215 + $0x98] sm:$0xff]
        %v293 = vld [vmem:[%s215 + $0xa0] sm:$0xff]
        %v294 = vld [vmem:[%s215 + $0xa8] sm:$0xff]
        %v295 = vld [vmem:[%s215 + $0xb0] sm:$0xff]
        %v296 = vld [vmem:[%s215 + $0xb8] sm:$0xff]
        %v297 = vld [vmem:[%s215 + $0xc0] sm:$0xff]
        %v298 = vld [vmem:[%s215 + $0xc8] sm:$0xff]
        %v299 = vld [vmem:[%s215 + $0xd0] sm:$0xff]
        %v300 = vld [vmem:[%s215 + $0xd8] sm:$0xff]
        %v301 = vld [vmem:[%s215 + $0xe0] sm:$0xff]
        %v302 = vld [vmem:[%s215 + $0xe8] sm:$0xff]
        %v303 = vld [vmem:[%s215 + $0xf0] sm:$0xff]
        %v304 = vld [vmem:[%s215 + $0xf8] sm:$0xff]
        %v305 = vld [vmem:[%s215 + $0x100] sm:$0xff]
        %v306 = vld [vmem:[%s215 + $0x108] sm:$0xff]
        %v307 = vld [vmem:[%s215 + $0x110] sm:$0xff]
        %v308 = vld [vmem:[%s215 + $0x118] sm:$0xff]
        %vm309 = vcmask 261120
        %v311 = vsel %vm309, %v251, 0
        %v314 = vsel %vm309, %v254, 0
        %v317 = vsel %vm309, %v257, 0
        %v320 = vsel %vm309, %v260, 0
        %v323 = vsel %vm309, %v263, 0
        %v326 = vsel %vm309, %v266, 0
        %v329 = vsel %vm309, %v269, 0
        %v332 = vsel %vm309, %v272, 0
        %334 = vmatprep.subr.mxu0 0.0
        %335 = vmatpush1.msra.mxu0 %v273
        %336 = vmatprep.subr.mxu0 0.0
        %337 = vmatpush1.msra.mxu0 %v274
        %338 = vmatprep.subr.mxu0 0.0
        %339 = vmatpush1.msra.mxu0 %v275
        %340 = vmatprep.subr.mxu0 0.0
        %341 = vmatpush1.msra.mxu0 %v276
        %342 = vmatprep.subr.mxu0 0.0
        %343 = vmatpush1.msra.mxu0 %v277
        %344 = vmatprep.subr.mxu0 0.0
        %345 = vmatpush1.msra.mxu0 %v278
        %346 = vmatprep.subr.mxu0 0.0
        %347 = vmatpush1.msra.mxu0 %v279
        %348 = vmatprep.subr.mxu0 0.0
        %349 = vmatpush1.msra.mxu0 %v280
        %350 = vmatprep.subr.mxu0 0.0
        %351 = vmatpush1.msra.mxu0 %v281
        %352 = vmatprep.subr.mxu0 0.0
        %353 = vmatpush1.msra.mxu0 %v282
        %354 = vmatprep.subr.mxu0 0.0
        %355 = vmatpush1.msra.mxu0 %v283
        %356 = vmatprep.subr.mxu0 0.0
        %357 = vmatpush1.msra.mxu0 %v284
        %358 = vmatprep.subr.mxu0 0.0
        %359 = vmatpush1.msra.mxu0 %v285
        %360 = vmatprep.subr.mxu0 0.0
        %361 = vmatpush1.msra.mxu0 %v286
        %362 = vmatprep.subr.mxu0 0.0
        %363 = vmatpush1.msra.mxu0 %v287
        %364 = vmatprep.subr.mxu0 0.0
        %365 = vmatpush1.msra.mxu0 %v288
        %366 = vmatprep.subr.mxu0 0.0
        %367 = vmatpush1.msra.mxu0 %v289
        %368 = vmatprep.subr.mxu0 0.0
        %369 = vmatpush1.msra.mxu0 %v290
        %370 = vmatprep.subr.mxu0 0.0
        %371 = vmatpush1.msra.mxu0 %v291
        %372 = vmatprep.subr.mxu0 0.0
        %373 = vmatpush1.msra.mxu0 %v292
        %374 = vmatprep.subr.mxu0 0.0
        %375 = vmatpush1.msra.mxu0 %v293
        %376 = vmatprep.subr.mxu0 0.0
        %377 = vmatpush1.msra.mxu0 %v294
        %378 = vmatprep.subr.mxu0 0.0
        %379 = vmatpush1.msra.mxu0 %v295
        %380 = vmatprep.subr.mxu0 0.0
        %381 = vmatpush1.msra.mxu0 %v296
        %382 = vmatprep.subr.mxu0 0.0
        %383 = vmatpush1.msra.mxu0 %v297
        %384 = vmatprep.subr.mxu0 0.0
        %385 = vmatpush1.msra.mxu0 %v298
        %386 = vmatprep.subr.mxu0 0.0
        %387 = vmatpush1.msra.mxu0 %v299
        %388 = vmatprep.subr.mxu0 0.0
        %389 = vmatpush1.msra.mxu0 %v300
        %390 = vmatprep.subr.mxu0 0.0
        %391 = vmatpush1.msra.mxu0 %v301
        %392 = vmatprep.subr.mxu0 0.0
        %393 = vmatpush1.msra.mxu0 %v302
        %394 = vmatprep.subr.mxu0 0.0
        %395 = vmatpush1.msra.mxu0 %v303
        %396 = vmatprep.subr.mxu0 0.0
        %397 = vmatpush1.msra.mxu0 %v304
        %398 = vmatprep.mubr.f32.mxu0 %v250
        %399 = vmatmul.mubr.f32.gmra.mrb[0].mxu0 %v249
        %v400 = vpop.f32.mrb[0].mxu0
        %v401 = vadd.f32 0.0, %v400
        %v402 = vpop.f32.mrb[0].mxu0
        %403 = vmatprep.mubr.f32.mxu0 %v253
        %404 = vmatmul.mubr.f32.gmra.mrb[0].mxu0 %v252
        %v405 = vpop.f32.mrb[0].mxu0
        %v406 = vadd.f32 0.0, %v405
        %v407 = vpop.f32.mrb[0].mxu0
        %408 = vmatprep.mubr.f32.mxu0 %v256
        %409 = vmatmul.mubr.f32.gmra.mrb[0].mxu0 %v255
        %v410 = vpop.f32.mrb[0].mxu0
        %v411 = vadd.f32 0.0, %v410
        %v412 = vpop.f32.mrb[0].mxu0
        %413 = vmatprep.mubr.f32.mxu0 %v259
        %414 = vmatmul.mubr.f32.gmra.mrb[0].mxu0 %v258
        %v415 = vpop.f32.mrb[0].mxu0
        %v416 = vadd.f32 0.0, %v415
        %v417 = vpop.f32.mrb[0].mxu0
        %418 = vmatprep.mubr.f32.mxu0 %v262
        %419 = vmatmul.mubr.f32.gmra.mrb[0].mxu0 %v261
        %v420 = vpop.f32.mrb[0].mxu0
        %v421 = vadd.f32 0.0, %v420
        %v422 = vpop.f32.mrb[0].mxu0
        %423 = vmatprep.mubr.f32.mxu0 %v265
        %424 = vmatmul.mubr.f32.gmra.mrb[0].mxu0 %v264
        %v425 = vpop.f32.mrb[0].mxu0
        %v426 = vadd.f32 0.0, %v425
        %v427 = vpop.f32.mrb[0].mxu0
        %428 = vmatprep.mubr.f32.mxu0 %v268
        %429 = vmatmul.mubr.f32.gmra.mrb[0].mxu0 %v267
        %v430 = vpop.f32.mrb[0].mxu0
        %v431 = vadd.f32 0.0, %v430
        %v432 = vpop.f32.mrb[0].mxu0
        %433 = vmatprep.mubr.f32.mxu0 %v271
        %434 = vmatmul.mubr.f32.gmra.mrb[0].mxu0 %v270
        %v435 = vpop.f32.mrb[0].mxu0
        %v436 = vadd.f32 0.0, %v435
        %v437 = vpop.f32.mrb[0].mxu0
        %438 = vdwg.mxu0
        %439 = vmatprep.subr.mxu0 0.0
        %440 = vmatpush1.msra.mxu0 %v305
        %441 = vmatprep.subr.mxu0 0.0
        %442 = vmatpush1.msra.mxu0 %v306
        %443 = vmatprep.subr.mxu0 0.0
        %444 = vmatpush1.msra.mxu0 %v307
        %445 = vmatprep.subr.mxu0 0.0
        %446 = vmatpush1.msra.mxu0 %v308
        %447 = vmatprep.subr.mxu0 0.0
        %448 = vmatpush1.msra.mxu0 0.0
        %449 = vmatprep.subr.mxu0 0.0
        %450 = vmatpush1.msra.mxu0 0.0
        %451 = vmatprep.subr.mxu0 0.0
        %452 = vmatpush1.msra.mxu0 0.0
        %453 = vmatprep.subr.mxu0 0.0
        %454 = vmatpush1.msra.mxu0 0.0
        %455 = vmatprep.subr.mxu0 0.0
        %456 = vmatpush1.msra.mxu0 0.0
        %457 = vmatprep.subr.mxu0 0.0
        %458 = vmatpush1.msra.mxu0 0.0
        %459 = vmatprep.subr.mxu0 0.0
        %460 = vmatpush1.msra.mxu0 0.0
        %461 = vmatprep.subr.mxu0 0.0
        %462 = vmatpush1.msra.mxu0 0.0
        %463 = vmatprep.subr.mxu0 0.0
        %464 = vmatpush1.msra.mxu0 0.0
        %465 = vmatprep.subr.mxu0 0.0
        %466 = vmatpush1.msra.mxu0 0.0
        %467 = vmatprep.subr.mxu0 0.0
        %468 = vmatpush1.msra.mxu0 0.0
        %469 = vmatprep.subr.mxu0 0.0
        %470 = vmatpush1.msra.mxu0 0.0
        %471 = vmatprep.subr.mxu0 0.0
        %472 = vmatpush1.msra.mxu0 0.0
        %473 = vmatprep.subr.mxu0 0.0
        %474 = vmatpush1.msra.mxu0 0.0
        %475 = vmatprep.subr.mxu0 0.0
        %476 = vmatpush1.msra.mxu0 0.0
        %477 = vmatprep.subr.mxu0 0.0
        %478 = vmatpush1.msra.mxu0 0.0
        %479 = vmatprep.subr.mxu0 0.0
        %480 = vmatpush1.msra.mxu0 0.0
        %481 = vmatprep.subr.mxu0 0.0
        %482 = vmatpush1.msra.mxu0 0.0
        %483 = vmatprep.subr.mxu0 0.0
        %484 = vmatpush1.msra.mxu0 0.0
        %485 = vmatprep.subr.mxu0 0.0
        %486 = vmatpush1.msra.mxu0 0.0
        %487 = vmatprep.subr.mxu0 0.0
        %488 = vmatpush1.msra.mxu0 0.0
        %489 = vmatprep.subr.mxu0 0.0
        %490 = vmatpush1.msra.mxu0 0.0
        %491 = vmatprep.subr.mxu0 0.0
        %492 = vmatpush1.msra.mxu0 0.0
        %493 = vmatprep.subr.mxu0 0.0
        %494 = vmatpush1.msra.mxu0 0.0
        %495 = vmatprep.subr.mxu0 0.0
        %496 = vmatpush1.msra.mxu0 0.0
        %497 = vmatprep.subr.mxu0 0.0
        %498 = vmatpush1.msra.mxu0 0.0
        %499 = vmatprep.subr.mxu0 0.0
        %500 = vmatpush1.msra.mxu0 0.0
        %501 = vmatprep.subr.mxu0 0.0
        %502 = vmatpush1.msra.mxu0 0.0
        %503 = vmatprep.mubr.f32.mxu0 0.0
        %504 = vmatmul.mubr.f32.gmra.mrb[0].mxu0 %v311
        %v505 = vpop.f32.mrb[0].mxu0
        %v506 = vadd.f32 %v401, %v505
        %v507 = vpop.f32.mrb[0].mxu0
        %508 = vmatprep.mubr.f32.mxu0 0.0
        %509 = vmatmul.mubr.f32.gmra.mrb[0].mxu0 %v314
        %v510 = vpop.f32.mrb[0].mxu0
        %v511 = vadd.f32 %v406, %v510
        %v512 = vpop.f32.mrb[0].mxu0
        %513 = vmatprep.mubr.f32.mxu0 0.0
        %514 = vmatmul.mubr.f32.gmra.mrb[0].mxu0 %v317
        %v515 = vpop.f32.mrb[0].mxu0
        %v516 = vadd.f32 %v411, %v515
        %v517 = vpop.f32.mrb[0].mxu0
        %518 = vmatprep.mubr.f32.mxu0 0.0
        %519 = vmatmul.mubr.f32.gmra.mrb[0].mxu0 %v320
        %v520 = vpop.f32.mrb[0].mxu0
        %v521 = vadd.f32 %v416, %v520
        %v522 = vpop.f32.mrb[0].mxu0
        %523 = vmatprep.mubr.f32.mxu0 0.0
        %524 = vmatmul.mubr.f32.gmra.mrb[0].mxu0 %v323
        %v525 = vpop.f32.mrb[0].mxu0
        %v526 = vadd.f32 %v421, %v525
        %v527 = vpop.f32.mrb[0].mxu0
        %528 = vmatprep.mubr.f32.mxu0 0.0
        %529 = vmatmul.mubr.f32.gmra.mrb[0].mxu0 %v326
        %v530 = vpop.f32.mrb[0].mxu0
        %v531 = vadd.f32 %v426, %v530
        %v532 = vpop.f32.mrb[0].mxu0
        %533 = vmatprep.mubr.f32.mxu0 0.0
        %534 = vmatmul.mubr.f32.gmra.mrb[0].mxu0 %v329
        %v535 = vpop.f32.mrb[0].mxu0
        %v536 = vadd.f32 %v431, %v535
        %v537 = vpop.f32.mrb[0].mxu0
        %538 = vmatprep.mubr.f32.mxu0 0.0
        %539 = vmatmul.mubr.f32.gmra.mrb[0].mxu0 %v332
        %v540 = vpop.f32.mrb[0].mxu0
        %v541 = vadd.f32 %v436, %v540
        %v542 = vpop.f32.mrb[0].mxu0
        %543 = vdwg.mxu0
        %s544 = smul.u32 %s20, 128
        %s545 = sshra.s32 %s544, 7
        %s546 = sand.u32 %s544, 127
        %s547 = scalar_lea.vmem [#allocation2], %s545
        %548 = vst [vmem:[%s547] sm:$0xff] %v506
        %549 = vst [vmem:[%s547 + $0x8] sm:$0xff] %v511
        %550 = vst [vmem:[%s547 + $0x10] sm:$0xff] %v516
        %551 = vst [vmem:[%s547 + $0x18] sm:$0xff] %v521
        %552 = vst [vmem:[%s547 + $0x20] sm:$0xff] %v526
        %553 = vst [vmem:[%s547 + $0x28] sm:$0xff] %v531
        %554 = vst [vmem:[%s547 + $0x30] sm:$0xff] %v536
        %555 = vst [vmem:[%s547 + $0x38] sm:$0xff] %v541
        %v556 = vld [vmem:[#allocation3] sm:$0xff]
        %v557 = vld [vmem:[#allocation3 + $0x8] sm:$0xff]
        %v558 = vld [vmem:[#allocation3 + $0x10] sm:$0xff]
        %v559 = vld [vmem:[#allocation3 + $0x18] sm:$0xff]
        %v560 = vld [vmem:[#allocation3 + $0x20] sm:$0xff]
        %v561 = vld [vmem:[#allocation3 + $0x28] sm:$0xff]
        %v562 = vld [vmem:[#allocation3 + $0x30] sm:$0xff]
        %v563 = vld [vmem:[#allocation3 + $0x38] sm:$0xff]
        %564 = vadd.xlane.f32.xlu0 %v506
        %v565 = vpop.xlane.xlu0 %564
        %566 = vadd.xlane.f32.xlu0 %v511
        %v567 = vpop.xlane.xlu0 %566
        %568 = vadd.xlane.f32.xlu0 %v516
        %v569 = vpop.xlane.xlu0 %568
        %570 = vadd.xlane.f32.xlu0 %v521
        %v571 = vpop.xlane.xlu0 %570
        %572 = vadd.xlane.f32.xlu0 %v526
        %v573 = vpop.xlane.xlu0 %572
        %574 = vadd.xlane.f32.xlu0 %v531
        %v575 = vpop.xlane.xlu0 %574
        %576 = vadd.xlane.f32.xlu0 %v536
        %v577 = vpop.xlane.xlu0 %576
        %578 = vadd.xlane.f32.xlu0 %v541
        %v579 = vpop.xlane.xlu0 %578
        %v580 = vadd.f32 %v556, %v565
        %v581 = vadd.f32 %v557, %v567
        %v582 = vadd.f32 %v558, %v569
        %v583 = vadd.f32 %v559, %v571
        %v584 = vadd.f32 %v560, %v573
        %v585 = vadd.f32 %v561, %v575
        %v586 = vadd.f32 %v562, %v577
        %v587 = vadd.f32 %v563, %v579
        %vm588 = vcmask 7168
        %589 = vst.msk [vmem:[#allocation3] sm:$0xff] %vm588, %v580
        %590 = vst.msk [vmem:[#allocation3 + $0x8] sm:$0xff] %vm588, %v581
        %591 = vst.msk [vmem:[#allocation3 + $0x10] sm:$0xff] %vm588, %v582
        %592 = vst.msk [vmem:[#allocation3 + $0x18] sm:$0xff] %vm588, %v583
        %593 = vst.msk [vmem:[#allocation3 + $0x20] sm:$0xff] %vm588, %v584
        %594 = vst.msk [vmem:[#allocation3 + $0x28] sm:$0xff] %vm588, %v585
        %595 = vst.msk [vmem:[#allocation3 + $0x30] sm:$0xff] %vm588, %v586
        %596 = vst.msk [vmem:[#allocation3 + $0x38] sm:$0xff] %vm588, %v587
        %v597 = vld [vmem:[#allocation4] sm:$0xff]
        %v598 = vld [vmem:[#allocation4 + $0x8] sm:$0xff]
        %v599 = vld [vmem:[#allocation4 + $0x10] sm:$0xff]
        %v600 = vld [vmem:[#allocation4 + $0x18] sm:$0xff]
        %v601 = vld [vmem:[#allocation4 + $0x20] sm:$0xff]
        %v602 = vld [vmem:[#allocation4 + $0x28] sm:$0xff]
        %v603 = vld [vmem:[#allocation4 + $0x30] sm:$0xff]
        %v604 = vld [vmem:[#allocation4 + $0x38] sm:$0xff]
        %v605 = vmul.f32 %v506, %v506
        %v606 = vmul.f32 %v511, %v511
        %v607 = vmul.f32 %v516, %v516
        %v608 = vmul.f32 %v521, %v521
        %v609 = vmul.f32 %v526, %v526
        %v610 = vmul.f32 %v531, %v531
        %v611 = vmul.f32 %v536, %v536
        %v612 = vmul.f32 %v541, %v541
        %613 = vadd.xlane.f32.xlu0 %v605
        %v614 = vpop.xlane.xlu0 %613
        %615 = vadd.xlane.f32.xlu0 %v606
        %v616 = vpop.xlane.xlu0 %615
        %617 = vadd.xlane.f32.xlu0 %v607
        %v618 = vpop.xlane.xlu0 %617
        %619 = vadd.xlane.f32.xlu0 %v608
        %v620 = vpop.xlane.xlu0 %619
        %621 = vadd.xlane.f32.xlu0 %v609
        %v622 = vpop.xlane.xlu0 %621
        %623 = vadd.xlane.f32.xlu0 %v610
        %v624 = vpop.xlane.xlu0 %623
        %625 = vadd.xlane.f32.xlu0 %v611
        %v626 = vpop.xlane.xlu0 %625
        %627 = vadd.xlane.f32.xlu0 %v612
        %v628 = vpop.xlane.xlu0 %627
        %v629 = vadd.f32 %v597, %v614
        %v630 = vadd.f32 %v598, %v616
        %v631 = vadd.f32 %v599, %v618
        %v632 = vadd.f32 %v600, %v620
        %v633 = vadd.f32 %v601, %v622
        %v634 = vadd.f32 %v602, %v624
        %v635 = vadd.f32 %v603, %v626
        %v636 = vadd.f32 %v604, %v628
        %637 = vst.msk [vmem:[#allocation4] sm:$0xff] %vm588, %v629
        %638 = vst.msk [vmem:[#allocation4 + $0x8] sm:$0xff] %vm588, %v630
        %639 = vst.msk [vmem:[#allocation4 + $0x10] sm:$0xff] %vm588, %v631
        %640 = vst.msk [vmem:[#allocation4 + $0x18] sm:$0xff] %vm588, %v632
        %641 = vst.msk [vmem:[#allocation4 + $0x20] sm:$0xff] %vm588, %v633
        %642 = vst.msk [vmem:[#allocation4 + $0x28] sm:$0xff] %vm588, %v634
        %643 = vst.msk [vmem:[#allocation4 + $0x30] sm:$0xff] %vm588, %v635
        %644 = vst.msk [vmem:[#allocation4 + $0x38] sm:$0xff] %vm588, %v636
      $region40: #{generator_forward.7} parent=35 // pred_fallthru
        _
      %p645 = scmp.eq.s32.totalorder %s19, 1
      // Predicated region
      $region45: #{generator_forward.7} parent=35 // pred_check
        %p646 = pneg %p645
      $region46: #{generator_forward.7} parent=35 // pred_check_branch
        %648 = sbr.rel (%p646) target = $region48
      $region47: #{generator_forward.7} parent=35 // pred_region
        %p649 = scmp.eq.s32.totalorder %s20, 0
        // Predicated region
        $region49: #{generator_forward.7} parent=47 // pred_check
          %p650 = pneg %p649
        $region50: #{generator_forward.7} parent=47 // pred_check_branch
          %652 = sbr.rel (%p650) target = $region52
        $region51: #{generator_forward.7} parent=47 // pred_region
          %v653 = vld [vmem:[#allocation3] sm:$0xff]
          %v654 = vld [vmem:[#allocation3 + $0x8] sm:$0xff]
          %v655 = vld [vmem:[#allocation3 + $0x10] sm:$0xff]
          %v656 = vld [vmem:[#allocation3 + $0x18] sm:$0xff]
          %v657 = vld [vmem:[#allocation3 + $0x20] sm:$0xff]
          %v658 = vld [vmem:[#allocation3 + $0x28] sm:$0xff]
          %v659 = vld [vmem:[#allocation3 + $0x30] sm:$0xff]
          %v660 = vld [vmem:[#allocation3 + $0x38] sm:$0xff]
          %v661 = vld [vmem:[#allocation4] sm:$0xff]
          %v662 = vld [vmem:[#allocation4 + $0x8] sm:$0xff]
          %v663 = vld [vmem:[#allocation4 + $0x10] sm:$0xff]
          %v664 = vld [vmem:[#allocation4 + $0x18] sm:$0xff]
          %v665 = vld [vmem:[#allocation4 + $0x20] sm:$0xff]
          %v666 = vld [vmem:[#allocation4 + $0x28] sm:$0xff]
          %v667 = vld [vmem:[#allocation4 + $0x30] sm:$0xff]
          %v668 = vld [vmem:[#allocation4 + $0x38] sm:$0xff]
          %v669 = vadd.f32 %v653, %v655
          %v670 = vadd.f32 %v654, %v656
          %v671 = vadd.f32 %v669, %v657
          %v672 = vadd.f32 %v670, %v658
          %v673 = vadd.f32 %v671, %v659
          %v674 = vadd.f32 %v672, %v660
          %v675 = vadd.f32 %v661, %v663
          %v676 = vadd.f32 %v662, %v664
          %v677 = vadd.f32 %v675, %v665
          %v678 = vadd.f32 %v676, %v666
          %v679 = vadd.f32 %v677, %v667
          %v680 = vadd.f32 %v678, %v668
          %v681 = vmul.f32 %v673, 0.001953125
          %v682 = vmul.f32 %v674, 0.001953125
          %v683 = vmul.f32 %v679, 0.001953125
          %v684 = vmul.f32 %v680, 0.001953125
          %v685 = vmul.f32 %v681, %v681
          %v686 = vmul.f32 %v682, %v682
          %v687 = vsub.f32 %v683, %v685
          %v688 = vsub.f32 %v684, %v686
          %v689 = vmax.f32 %v687, 0.0
          %v690 = vmax.f32 %v688, 0.0
          %v691 = vld [vmem:[%s2] sm:$0xff]
          %v692 = vld [vmem:[%s2 + $0x8] sm:$0xff]
          %v693 = vld [vmem:[%s2 + $0x10] sm:$0xff]
          %v694 = vld [vmem:[%s2 + $0x18] sm:$0xff]
          %v695 = vld [vmem:[%s2 + $0x20] sm:$0xff]
          %v696 = vld [vmem:[%s2 + $0x28] sm:$0xff]
          %v697 = vld [vmem:[%s2 + $0x30] sm:$0xff]
          %v698 = vld [vmem:[%s2 + $0x38] sm:$0xff]
          %v699 = vadd.f32 %v689, 1e-05
          %v700 = vadd.f32 %v690, 1e-05
          %v701 = vrsqrt.pop %v699
          %v702 = vrsqrt.pop %v700
          %v703 = vmul.f32 %v691, %v701
          %v704 = vmul.f32 %v692, %v702
          %v705 = vmul.f32 %v693, %v701
          %v706 = vmul.f32 %v694, %v702
          %v707 = vmul.f32 %v695, %v701
          %v708 = vmul.f32 %v696, %v702
          %v709 = vmul.f32 %v697, %v701
          %v710 = vmul.f32 %v698, %v702
          %v711 = vld [vmem:[%s3] sm:$0xff]
          %v712 = vld [vmem:[%s3 + $0x8] sm:$0xff]
          %v713 = vld [vmem:[%s3 + $0x10] sm:$0xff]
          %v714 = vld [vmem:[%s3 + $0x18] sm:$0xff]
          %v715 = vld [vmem:[%s3 + $0x20] sm:$0xff]
          %v716 = vld [vmem:[%s3 + $0x28] sm:$0xff]
          %v717 = vld [vmem:[%s3 + $0x30] sm:$0xff]
          %v718 = vld [vmem:[%s3 + $0x38] sm:$0xff]
          %v719 = vmul.f32 %v681, %v703
          %v720 = vmul.f32 %v682, %v704
          %v721 = vmul.f32 %v681, %v705
          %v722 = vmul.f32 %v682, %v706
          %v723 = vmul.f32 %v681, %v707
          %v724 = vmul.f32 %v682, %v708
          %v725 = vmul.f32 %v681, %v709
          %v726 = vmul.f32 %v682, %v710
          %v727 = vsub.f32 %v711, %v719
          %v728 = vsub.f32 %v712, %v720
          %v729 = vsub.f32 %v713, %v721
          %v730 = vsub.f32 %v714, %v722
          %v731 = vsub.f32 %v715, %v723
          %v732 = vsub.f32 %v716, %v724
          %v733 = vsub.f32 %v717, %v725
          %v734 = vsub.f32 %v718, %v726
          %vm735 = vcmask 7168
          %736 = vst.msk [vmem:[#allocation3] sm:$0xff] %vm735, %v703
          %737 = vst.msk [vmem:[#allocation3 + $0x8] sm:$0xff] %vm735, %v704
          %738 = vst.msk [vmem:[#allocation3 + $0x10] sm:$0xff] %vm735, %v705
          %739 = vst.msk [vmem:[#allocation3 + $0x18] sm:$0xff] %vm735, %v706
          %740 = vst.msk [vmem:[#allocation3 + $0x20] sm:$0xff] %vm735, %v707
          %741 = vst.msk [vmem:[#allocation3 + $0x28] sm:$0xff] %vm735, %v708
          %742 = vst.msk [vmem:[#allocation3 + $0x30] sm:$0xff] %vm735, %v709
          %743 = vst.msk [vmem:[#allocation3 + $0x38] sm:$0xff] %vm735, %v710
          %744 = vst.msk [vmem:[#allocation4] sm:$0xff] %vm735, %v727
          %745 = vst.msk [vmem:[#allocation4 + $0x8] sm:$0xff] %vm735, %v728
          %746 = vst.msk [vmem:[#allocation4 + $0x10] sm:$0xff] %vm735, %v729
          %747 = vst.msk [vmem:[#allocation4 + $0x18] sm:$0xff] %vm735, %v730
          %748 = vst.msk [vmem:[#allocation4 + $0x20] sm:$0xff] %vm735, %v731
          %749 = vst.msk [vmem:[#allocation4 + $0x28] sm:$0xff] %vm735, %v732
          %750 = vst.msk [vmem:[#allocation4 + $0x30] sm:$0xff] %vm735, %v733
          %751 = vst.msk [vmem:[#allocation4 + $0x38] sm:$0xff] %vm735, %v734
        $region52: #{generator_forward.7} parent=47 // pred_fallthru
          _
        %s752 = smul.u32 %s20, 128
        %s753 = sshra.s32 %s752, 7
        %s754 = sand.u32 %s752, 127
        %s755 = scalar_lea.vmem [#allocation2], %s753
        %v756 = vld [vmem:[%s755] sm:$0xff]
        %v757 = vld [vmem:[%s755 + $0x8] sm:$0xff]
        %v758 = vld [vmem:[%s755 + $0x10] sm:$0xff]
        %v759 = vld [vmem:[%s755 + $0x18] sm:$0xff]
        %v760 = vld [vmem:[%s755 + $0x20] sm:$0xff]
        %v761 = vld [vmem:[%s755 + $0x28] sm:$0xff]
        %v762 = vld [vmem:[%s755 + $0x30] sm:$0xff]
        %v763 = vld [vmem:[%s755 + $0x38] sm:$0xff]
        %v764 = vld [vmem:[#allocation3] sm:$0xff]
        %v765 = vld [vmem:[#allocation3 + $0x8] sm:$0xff]
        %v766 = vld [vmem:[#allocation3 + $0x10] sm:$0xff]
        %v767 = vld [vmem:[#allocation3 + $0x18] sm:$0xff]
        %v768 = vld [vmem:[#allocation3 + $0x20] sm:$0xff]
        %v769 = vld [vmem:[#allocation3 + $0x28] sm:$0xff]
        %v770 = vld [vmem:[#allocation3 + $0x30] sm:$0xff]
        %v771 = vld [vmem:[#allocation3 + $0x38] sm:$0xff]
        %773 = vset.pattern.permute.xlu0 0
        %774 = vperm.xlu0 %773, %v764
        %v775 = vpop.permute.xlu0 %774
        %778 = vset.pattern.permute.xlu0 0
        %779 = vperm.xlu0 %778, %v765
        %v780 = vpop.permute.xlu0 %779
        %783 = vset.pattern.permute.xlu0 0
        %784 = vperm.xlu0 %783, %v766
        %v785 = vpop.permute.xlu0 %784
        %788 = vset.pattern.permute.xlu0 0
        %789 = vperm.xlu0 %788, %v767
        %v790 = vpop.permute.xlu0 %789
        %793 = vset.pattern.permute.xlu0 0
        %794 = vperm.xlu0 %793, %v768
        %v795 = vpop.permute.xlu0 %794
        %798 = vset.pattern.permute.xlu0 0
        %799 = vperm.xlu0 %798, %v769
        %v800 = vpop.permute.xlu0 %799
        %803 = vset.pattern.permute.xlu0 0
        %804 = vperm.xlu0 %803, %v770
        %v805 = vpop.permute.xlu0 %804
        %808 = vset.pattern.permute.xlu0 0
        %809 = vperm.xlu0 %808, %v771
        %v810 = vpop.permute.xlu0 %809
        %v812 = vmul.f32 %v756, %v775
        %v813 = vmul.f32 %v757, %v780
        %v814 = vmul.f32 %v758, %v785
        %v815 = vmul.f32 %v759, %v790
        %v816 = vmul.f32 %v760, %v795
        %v817 = vmul.f32 %v761, %v800
        %v818 = vmul.f32 %v762, %v805
        %v819 = vmul.f32 %v763, %v810
        %v820 = vld [vmem:[#allocation4] sm:$0xff]
        %v821 = vld [vmem:[#allocation4 + $0x8] sm:$0xff]
        %v822 = vld [vmem:[#allocation4 + $0x10] sm:$0xff]
        %v823 = vld [vmem:[#allocation4 + $0x18] sm:$0xff]
        %v824 = vld [vmem:[#allocation4 + $0x20] sm:$0xff]
        %v825 = vld [vmem:[#allocation4 + $0x28] sm:$0xff]
        %v826 = vld [vmem:[#allocation4 + $0x30] sm:$0xff]
        %v827 = vld [vmem:[#allocation4 + $0x38] sm:$0xff]
        %829 = vset.pattern.permute.xlu0 0
        %830 = vperm.xlu0 %829, %v820
        %v831 = vpop.permute.xlu0 %830
        %834 = vset.pattern.permute.xlu0 0
        %835 = vperm.xlu0 %834, %v821
        %v836 = vpop.permute.xlu0 %835
        %839 = vset.pattern.permute.xlu0 0
        %840 = vperm.xlu0 %839, %v822
        %v841 = vpop.permute.xlu0 %840
        %844 = vset.pattern.permute.xlu0 0
        %845 = vperm.xlu0 %844, %v823
        %v846 = vpop.permute.xlu0 %845
        %849 = vset.pattern.permute.xlu0 0
        %850 = vperm.xlu0 %849, %v824
        %v851 = vpop.permute.xlu0 %850
        %854 = vset.pattern.permute.xlu0 0
        %855 = vperm.xlu0 %854, %v825
        %v856 = vpop.permute.xlu0 %855
        %859 = vset.pattern.permute.xlu0 0
        %860 = vperm.xlu0 %859, %v826
        %v861 = vpop.permute.xlu0 %860
        %864 = vset.pattern.permute.xlu0 0
        %865 = vperm.xlu0 %864, %v827
        %v866 = vpop.permute.xlu0 %865
        %v868 = vadd.f32 %v812, %v831
        %v869 = vadd.f32 %v813, %v836
        %v870 = vadd.f32 %v814, %v841
        %v871 = vadd.f32 %v815, %v846
        %v872 = vadd.f32 %v816, %v851
        %v873 = vadd.f32 %v817, %v856
        %v874 = vadd.f32 %v818, %v861
        %v875 = vadd.f32 %v819, %v866
        %v876 = vmax.f32 %v868, 0.0
        %v877 = vmax.f32 %v869, 0.0
        %v878 = vmax.f32 %v870, 0.0
        %v879 = vmax.f32 %v871, 0.0
        %v880 = vmax.f32 %v872, 0.0
        %v881 = vmax.f32 %v873, 0.0
        %v882 = vmax.f32 %v874, 0.0
        %v883 = vmax.f32 %v875, 0.0
        %884 = vst [vmem:[%s222] sm:$0xff] %v876
        %885 = vst [vmem:[%s222 + $0x8] sm:$0xff] %v877
        %886 = vst [vmem:[%s222 + $0x10] sm:$0xff] %v878
        %887 = vst [vmem:[%s222 + $0x18] sm:$0xff] %v879
        %888 = vst [vmem:[%s222 + $0x20] sm:$0xff] %v880
        %889 = vst [vmem:[%s222 + $0x28] sm:$0xff] %v881
        %890 = vst [vmem:[%s222 + $0x30] sm:$0xff] %v882
        %891 = vst [vmem:[%s222 + $0x38] sm:$0xff] %v883
      $region48: #{generator_forward.7} parent=35 // pred_fallthru
        _
      %s892 = smul.u32 %s20, %s19
      %p893 = scmp.lt.s32.totalorder %s892, 0
      %s894 = scalar_select %p893, %s892, 0
      %s895 = smul.addr %s894, 8
      %s896 = scalar_lea.vmem %s4, %s895
      // Predicated region
      $region53: #{generator_forward.7} parent=35 // pred_check
        %p897 = pneg %p140
      $region54: #{generator_forward.7} parent=35 // pred_check_branch
        %899 = sbr.rel (%p897) target = $region56
      $region55: #{generator_forward.7} parent=35 // pred_region
        %s900 = smul.u32 %s20, %s19
      $region56: #{generator_forward.7} parent=35 // pred_fallthru
        _
    $region36: #{generator_forward.7} parent=5 // pred_fallthru
      _
    %p901 = scmp.le.s32.totalorder 2, %s10
    // Predicated region
    $region57: #{generator_forward.7} parent=5 // pred_check
      %p902 = pneg %p901
    $region58: #{generator_forward.7} parent=5 // pred_check_branch
      %904 = sbr.rel (%p902) target = $region60
    $region59: #{generator_forward.7} parent=5 // pred_region
      %s905 = ssub.s32 %s10, 2
      // Predicated region
      $region61: #{generator_forward.7} parent=59 // pred_check
        %p906 = pneg %p146
      $region62: #{generator_forward.7} parent=59 // pred_check_branch
        %908 = sbr.rel (%p906) target = $region64
      $region63: #{generator_forward.7} parent=59 // pred_region
        %s909 = smul.u32 %s22, %s21
        %p910 = scmp.lt.s32.totalorder %s909, 0
        %s911 = scalar_select %p910, %s909, 0
        %s912 = smul.addr %s911, 8
        %s913 = scalar_lea.vmem %s4, %s912
      $region64: #{generator_forward.7} parent=59 // pred_fallthru
        _
    $region60: #{generator_forward.7} parent=5 // pred_fallthru
      _
  $region6: #{generator_forward.7} parent=0 // loop_footer
    %s14 = sadd.s32 1, %s10
  $region7: #{generator_forward.7} parent=0 // loop_footer_branch
    %9 = sbr.rel target = $region3
  $region8: #{generator_forward.7} parent=0 // loop_exit
    _

// kernel: tile.83
$region0: #{tile.83}
  #allocation0 [shape = 's32[1]{0}', space=sflag, size = 0x4, scoped, tag = 'scoped memory for tile.83']
  %s0 = inlined_call_operand.vmem [shape: f32[8], index: 0, kind: input, shape index: {}]
  %s1 = inlined_call_operand.vmem [shape: f32[4,8], index: 1, kind: output, shape index: {}]
  // Predicated region
  $region2: #{tile.83} parent=0 // pred_check
    _
  $region3: #{tile.83} parent=0 // pred_check_branch
    %3 = sbr.rel (0) target = $region5
  $region4: #{tile.83} parent=0 // pred_region
    _
  $region5: #{tile.83} parent=0 // pred_fallthru
    _
  %v4 = vld [vmem:[%s0] ss:$0 sm:$0xff]
  %5 = vst [vmem:[%s1] sm:$0xf] %v4

// kernel: tile.4
$region0: #{tile.4}
  %s0 = inlined_call_operand.vmem [shape: f32[4,8], index: 0, kind: input, shape index: {}]
  %s1 = inlined_call_operand.vmem [shape: f32[32,1], index: 1, kind: output, shape index: {}]
  $region1: #{tile.4} parent=0
    #allocation0 [shape = 'u8[4096]{0}', space=vmem, size = 0x1000, scoped, tag = 'scoped mem for input reshape']
    %s3 = sshllo.u32 0, 4
    %v4 = vld [vmem:[%s0] sm:%s3]
    %5 = vst [vmem:[#allocation0] sm:%s3] %v4
    %v6 = vld [vmem:[#allocation0] sm:$0xf]
    %vm7 = vcmask 7168
    %8 = vst.msk [vmem:[%s1] ss:$8 sm:$0xf] %vm7, %v6
    %v9 = vld [vmem:[#allocation0] sm:$0xf]
    %10 = vrot.lane.b32.xlu0 %v9, 127
    %v11 = vpop.permute.xlu0 %10
    %vm12 = vcmask 7168
    %s13 = scalar_lea.vmem %s1, 1
    %14 = vst.msk [vmem:[%s13] ss:$8 sm:$0xf] %vm12, %v11
    %v15 = vld [vmem:[#allocation0] sm:$0xf]
    %16 = vrot.lane.b32.xlu0 %v15, 126
    %v17 = vpop.permute.xlu0 %16
    %vm18 = vcmask 7168
    %s19 = scalar_lea.vmem %s1, 2
    %20 = vst.msk [vmem:[%s19] ss:$8 sm:$0xf] %vm18, %v17
    %v21 = vld [vmem:[#allocation0] sm:$0xf]
    %22 = vrot.lane.b32.xlu0 %v21, 125
    %v23 = vpop.permute.xlu0 %22
    %vm24 = vcmask 7168
    %s25 = scalar_lea.vmem %s1, 3
    %26 = vst.msk [vmem:[%s25] ss:$8 sm:$0xf] %vm24, %v23
    %v27 = vld [vmem:[#allocation0] sm:$0xf]
    %28 = vrot.lane.b32.xlu0 %v27, 124
    %v29 = vpop.permute.xlu0 %28
    %vm30 = vcmask 7168
    %s31 = scalar_lea.vmem %s1, 4
    %32 = vst.msk [vmem:[%s31] ss:$8 sm:$0xf] %vm30, %v29
    %v33 = vld [vmem:[#allocation0] sm:$0xf]
    %34 = vrot.lane.b32.xlu0 %v33, 123
    %v35 = vpop.permute.xlu0 %34
    %vm36 = vcmask 7168
    %s37 = scalar_lea.vmem %s1, 5
    %38 = vst.msk [vmem:[%s37] ss:$8 sm:$0xf] %vm36, %v35
    %v39 = vld [vmem:[#allocation0] sm:$0xf]
    %40 = vrot.lane.b32.xlu0 %v39, 122
    %v41 = vpop.permute.xlu0 %40
    %vm42 = vcmask 7168
    %s43 = scalar_lea.vmem %s1, 6
    %44 = vst.msk [vmem:[%s43] ss:$8 sm:$0xf] %vm42, %v41
    %v45 = vld [vmem:[#allocation0] sm:$0xf]
    %46 = vrot.lane.b32.xlu0 %v45, 121
    %v47 = vpop.permute.xlu0 %46
    %vm48 = vcmask 7168
    %s49 = scalar_lea.vmem %s1, 7
    %50 = vst.msk [vmem:[%s49] ss:$8 sm:$0xf] %vm48, %v47

// kernel: generator_forward.8
$region0: #{generator_forward.8}
  #allocation0 [shape = 'u32[]', space=smem, size = 0x4, offset = 0x4, fixed_abs, tag = 'smem constant byte address 0x4 - core index']
  #allocation1 [shape = 'u32[144,128]{1,0:T(1,128)}', space=vmem, size = 0x12000, scoped, tag = 'internal scratch']
  #allocation2 [shape = 'f32[32,512]{1,0:T(8,128)}', space=vmem, size = 0x10000, scoped, tag = 'scratch operand']
  #allocation3 [shape = 'f32[32,1]{1,0:T(8,128)}', space=vmem, size = 0x4000, scoped, tag = 'scratch operand']
  #allocation4 [shape = 'f32[32,1]{1,0:T(8,128)}', space=vmem, size = 0x4000, scoped, tag = 'scratch operand']
  %s0 = inlined_call_operand.vmem [shape: f32[32,144], index: 0, kind: input, shape index: {}]
  %s1 = inlined_call_operand.vmem [shape: f32[144,512], index: 1, kind: input, shape index: {}]
  %s2 = inlined_call_operand.vmem [shape: f32[32,1], index: 2, kind: input, shape index: {}]
  %s3 = inlined_call_operand.vmem [shape: f32[32,1], index: 3, kind: input, shape index: {}]
  %s4 = inlined_call_operand.vmem [shape: f32[32,512], index: 4, kind: output, shape index: {}]
  %s5 = sld [smem:[#allocation0]]
  $region65: #{generator_forward.8} parent=0
    _
  %s7 = ssub.s32 1, %s5
  %s8 = scalar_select 0, %s7, %s5
  loop: start=0, step=1, limit=4
  $region2: #{generator_forward.8} parent=0 // loop_pre_header
    _
  $region3: #{generator_forward.8} parent=0 // loop_header
    %s10 = sphi 0, %s14
    %p11 = scmp.ge.s32.totalorder %s10, 4
    %s17 = sphi 0, %s29
    %s18 = sphi 0, %s25
    %s19 = sphi 0, %s17
    %s20 = sphi 0, %s18
    %s21 = sphi 0, %s19
    %s22 = sphi 0, %s20
    %s30 = sphi 0, %s30
    %s32 = sphi 0, %s30
    %s33 = sphi 0, %s32
    %s47 = sphi 0, %s33
    %s57 = sphi 0, %s59
    %s60 = sphi 0, %s57
    %s61 = sphi 0, %s60
    %s77 = sphi 0, %s61
    %s81 = sphi 0, %s81
    %s83 = sphi 0, %s81
    %s84 = sphi 0, %s83
    %s98 = sphi 0, %s84
    %s102 = sphi 0, %s102
    %s104 = sphi 0, %s102
    %s105 = sphi 0, %s104
    %s119 = sphi 0, %s105
    %s127 = sphi 0, %s129
    %s130 = sphi 0, %s127
    %s131 = sphi 0, %s130
    %s147 = sphi 0, %s131
  $region4: #{generator_forward.8} parent=0 // loop_header_branch
    %13 = sbr.rel (%p11) target = $region8
  $region5: #{generator_forward.8} parent=0 // loop_body
    %s15 = ssub.s32 %s10, 1
    %s16 = ssub.s32 %s10, 2
    %s23 = sadd.s32 1, %s18
    %p24 = scmp.ge.s32.totalorder %s23, 1
    %s25 = scalar_select %p24, 0, %s23
    %s26 = sadd.s32 1, %s17
    %s27 = scalar_select %p24, %s26, %s17
    %p28 = scmp.ge.s32.totalorder %s27, 2
    %s29 = scalar_select %p28, 0, %s27
    %s31 = sadd.s32 %s30, 1
    %p34 = scmp.eq.s32.totalorder %s10, 1
    %p35 = scmp.ne.s32.totalorder %s30, %s32
    %p36 = scmp.eq.s32.totalorder %s10, 0
    %p37 = por %p35, %p36
    %p38 = scmp.ne.s32.totalorder %s30, %s32
    %p39 = scmp.eq.s32.totalorder %s15, 1
    %p40 = por %p38, %p39
    %p41 = scmp.ne.s32.totalorder %s32, %s33
    %p42 = scmp.eq.s32.totalorder %s15, 0
    %p43 = por %p41, %p42
    %p44 = scmp.ne.s32.totalorder %s32, %s33
    %p45 = scmp.eq.s32.totalorder %s16, 1
    %p46 = por %p44, %p45
    %p48 = scmp.ne.s32.totalorder %s33, %s47
    %p49 = scmp.eq.s32.totalorder %s16, 0
    %p50 = por %p48, %p49
    %s51 = ssub.s32 1, %s17
    %s52 = smul.u32 %s18, %s51
    %s53 = ssub.s32 1, %s29
    %s54 = smul.u32 %s25, %s53
    %s55 = ssub.s32 %s52, %s54
    %p56 = scmp.eq.s32.totalorder %s55, 0
    %s58 = sadd.s32 %s57, 1
    %s59 = scalar_select %p56, %s57, %s58
    %p62 = pneg %p56
    %p63 = scmp.eq.s32.totalorder %s10, 1
    %p64 = por %p62, %p63
    %p65 = scmp.ne.s32.totalorder %s57, %s60
    %p66 = scmp.eq.s32.totalorder %s10, 0
    %p67 = por %p65, %p66
    %p68 = scmp.ne.s32.totalorder %s57, %s60
    %p69 = scmp.eq.s32.totalorder %s15, 1
    %p70 = por %p68, %p69
    %p71 = scmp.ne.s32.totalorder %s60, %s61
    %p72 = scmp.eq.s32.totalorder %s15, 0
    %p73 = por %p71, %p72
    %p74 = scmp.ne.s32.totalorder %s60, %s61
    %p75 = scmp.eq.s32.totalorder %s16, 1
    %p76 = por %p74, %p75
    %p78 = scmp.ne.s32.totalorder %s61, %s77
    %p79 = scmp.eq.s32.totalorder %s16, 0
    %p80 = por %p78, %p79
    %s82 = sadd.s32 %s81, 1
    %p85 = scmp.eq.s32.totalorder %s10, 1
    %p86 = scmp.ne.s32.totalorder %s81, %s83
    %p87 = scmp.eq.s32.totalorder %s10, 0
    %p88 = por %p86, %p87
    %p89 = scmp.ne.s32.totalorder %s81, %s83
    %p90 = scmp.eq.s32.totalorder %s15, 1
    %p91 = por %p89, %p90
    %p92 = scmp.ne.s32.totalorder %s83, %s84
    %p93 = scmp.eq.s32.totalorder %s15, 0
    %p94 = por %p92, %p93
    %p95 = scmp.ne.s32.totalorder %s83, %s84
    %p96 = scmp.eq.s32.totalorder %s16, 1
    %p97 = por %p95, %p96
    %p99 = scmp.ne.s32.totalorder %s84, %s98
    %p100 = scmp.eq.s32.totalorder %s16, 0
    %p101 = por %p99, %p100
    %s103 = sadd.s32 %s102, 1
    %p106 = scmp.eq.s32.totalorder %s10, 1
    %p107 = scmp.ne.s32.totalorder %s102, %s104
    %p108 = scmp.eq.s32.totalorder %s10, 0
    %p109 = por %p107, %p108
    %p110 = scmp.ne.s32.totalorder %s102, %s104
    %p111 = scmp.eq.s32.totalorder %s15, 1
    %p112 = por %p110, %p111
    %p113 = scmp.ne.s32.totalorder %s104, %s105
    %p114 = scmp.eq.s32.totalorder %s15, 0
    %p115 = por %p113, %p114
    %p116 = scmp.ne.s32.totalorder %s104, %s105
    %p117 = scmp.eq.s32.totalorder %s16, 1
    %p118 = por %p116, %p117
    %p120 = scmp.ne.s32.totalorder %s105, %s119
    %p121 = scmp.eq.s32.totalorder %s16, 0
    %p122 = por %p120, %p121
    %s123 = smul.u32 %s18, %s17
    %s124 = smul.u32 %s25, %s29
    %s125 = ssub.s32 %s123, %s124
    %p126 = scmp.eq.s32.totalorder %s125, 0
    %s128 = sadd.s32 %s127, 1
    %s129 = scalar_select %p126, %s127, %s128
    %p132 = pneg %p126
    %p133 = scmp.eq.s32.totalorder %s10, 1
    %p134 = por %p132, %p133
    %p135 = scmp.ne.s32.totalorder %s127, %s130
    %p136 = scmp.eq.s32.totalorder %s10, 0
    %p137 = por %p135, %p136
    %p138 = scmp.ne.s32.totalorder %s127, %s130
    %p139 = scmp.eq.s32.totalorder %s15, 1
    %p140 = por %p138, %p139
    %p141 = scmp.ne.s32.totalorder %s130, %s131
    %p142 = scmp.eq.s32.totalorder %s15, 0
    %p143 = por %p141, %p142
    %p144 = scmp.ne.s32.totalorder %s130, %s131
    %p145 = scmp.eq.s32.totalorder %s16, 1
    %p146 = por %p144, %p145
    %p148 = scmp.ne.s32.totalorder %s131, %s147
    %p149 = scmp.eq.s32.totalorder %s16, 0
    %p150 = por %p148, %p149
    %p151 = scmp.le.s32.totalorder 1, %s10
    %p152 = scmp.lt.s32.totalorder %s10, 3
    %p153 = pnand %p151, %p152
    %p154 = pneg %p153
    // Predicated region
    $region9: #{generator_forward.8} parent=5 // pred_check
      _
    $region10: #{generator_forward.8} parent=5 // pred_check_branch
      %156 = sbr.rel (%p153) target = $region12
    $region11: #{generator_forward.8} parent=5 // pred_region
      %s157 = ssub.s32 %s10, 1
      // Predicated region
      $region13: #{generator_forward.8} parent=11 // pred_check
        %p158 = pneg %p43
      $region14: #{generator_forward.8} parent=11 // pred_check_branch
        %160 = sbr.rel (%p158) target = $region16
      $region15: #{generator_forward.8} parent=11 // pred_region
        _
      $region16: #{generator_forward.8} parent=11 // pred_fallthru
        _
      // Predicated region
      $region17: #{generator_forward.8} parent=11 // pred_check
        %p161 = pneg %p94
      $region18: #{generator_forward.8} parent=11 // pred_check_branch
        %163 = sbr.rel (%p161) target = $region20
      $region19: #{generator_forward.8} parent=11 // pred_region
        _
      $region20: #{generator_forward.8} parent=11 // pred_fallthru
        _
      // Predicated region
      $region21: #{generator_forward.8} parent=11 // pred_check
        %p164 = pneg %p115
      $region22: #{generator_forward.8} parent=11 // pred_check_branch
        %166 = sbr.rel (%p164) target = $region24
      $region23: #{generator_forward.8} parent=11 // pred_region
        _
      $region24: #{generator_forward.8} parent=11 // pred_fallthru
        _
    $region12: #{generator_forward.8} parent=5 // pred_fallthru
      _
    %p167 = scmp.lt.s32.totalorder %s10, 2
    // Predicated region
    $region25: #{generator_forward.8} parent=5 // pred_check
      %p168 = pneg %p167
    $region26: #{generator_forward.8} parent=5 // pred_check_branch
      %170 = sbr.rel (%p168) target = $region28
    $region27: #{generator_forward.8} parent=5 // pred_region
      // Predicated region
      $region29: #{generator_forward.8} parent=27 // pred_check
        %p171 = pneg %p67
      $region30: #{generator_forward.8} parent=27 // pred_check_branch
        %173 = sbr.rel (%p171) target = $region32
      $region31: #{generator_forward.8} parent=27 // pred_region
        %s174 = ssub.s32 1, %s17
        %s175 = smul.u32 %s18, %s174
        %s176 = smul.u32 4, %s175
        %p177 = scmp.lt.s32.totalorder %s176, 3
        %s178 = scalar_select %p177, %s176, 3
        %s179 = smul.addr %s178, 8
        %s180 = scalar_lea.vmem %s1, %s179
        %s181 = ssub.s32 1, %s17
        %s182 = smul.u32 %s18, %s181
        %s183 = smul.u32 4, %s182
      $region32: #{generator_forward.8} parent=27 // pred_fallthru
        _
    $region28: #{generator_forward.8} parent=5 // pred_fallthru
      _
    %p184 = scmp.le.s32.totalorder 1, %s10
    %p185 = scmp.lt.s32.totalorder %s10, 3
    %p186 = pnand %p184, %p185
    %p187 = pneg %p186
    // Predicated region
    $region33: #{generator_forward.8} parent=5 // pred_check
      _
    $region34: #{generator_forward.8} parent=5 // pred_check_branch
      %189 = sbr.rel (%p186) target = $region36
    $region35: #{generator_forward.8} parent=5 // pred_region
      %s190 = ssub.s32 %s10, 1
      %p191 = pneg %p43
      %p192 = pneg %p40
      %s193 = ssub.s32 1, %s19
      %s194 = smul.u32 %s20, %s193
      %s195 = smul.u32 4, %s194
      %p196 = scmp.lt.s32.totalorder %s195, 3
      %s197 = scalar_select %p196, %s195, 3
      %s198 = smul.addr %s197, 8
      %s199 = scalar_lea.vmem %s1, %s198
      %p200 = pneg %p73
      %p201 = pneg %p70
      %p202 = pneg %p94
      %p203 = pneg %p91
      %p204 = pneg %p115
      %p205 = pneg %p112
      %p206 = pneg %p143
      %p207 = pneg %p140
      %s208 = smul.u32 %s20, %s19
      %s209 = smul.u32 4, %s208
      %p210 = scmp.lt.s32.totalorder %s209, 3
      %s211 = scalar_select %p210, %s209, 3
      %s212 = smul.addr %s211, 8
      %s213 = scalar_lea.vmem %s4, %s212
      %s214 = ssub.s32 1, %s19
      %s215 = smul.u32 %s20, %s214
      %s216 = smul.u32 4, %s215
      %p217 = scmp.lt.s32.totalorder %s216, 3
      %s218 = scalar_select %p217, %s216, 3
      %s219 = smul.addr %s218, 8
      %s220 = scalar_lea.vmem %s1, %s219
      %s221 = ssub.s32 1, %s19
      %s222 = smul.u32 %s20, %s221
      %s223 = smul.u32 4, %s222
      %s224 = smul.u32 %s20, %s19
      %s225 = smul.u32 4, %s224
      %p226 = scmp.lt.s32.totalorder %s225, 3
      %s227 = scalar_select %p226, %s225, 3
      %s228 = smul.addr %s227, 8
      %s229 = scalar_lea.vmem %s4, %s228
      %s230 = smul.u32 %s20, %s19
      %s231 = smul.u32 4, %s230
      %p232 = scmp.eq.s32.totalorder %s19, 0
      // Predicated region
      $region37: #{generator_forward.8} parent=35 // pred_check
        %p233 = pneg %p232
      $region38: #{generator_forward.8} parent=35 // pred_check_branch
        %235 = sbr.rel (%p233) target = $region40
      $region39: #{generator_forward.8} parent=35 // pred_region
        %p236 = scmp.eq.s32.totalorder %s20, 0
        // Predicated region
        $region41: #{generator_forward.8} parent=39 // pred_check
          %p237 = pneg %p236
        $region42: #{generator_forward.8} parent=39 // pred_check_branch
          %239 = sbr.rel (%p237) target = $region44
        $region43: #{generator_forward.8} parent=39 // pred_region
          %vm240 = vcmask 7168
          %241 = vst.msk [vmem:[#allocation3] sm:$0xff] %vm240, 0.0
          %242 = vst.msk [vmem:[#allocation3 + $0x8] sm:$0xff] %vm240, 0.0
          %243 = vst.msk [vmem:[#allocation3 + $0x10] sm:$0xff] %vm240, 0.0
          %244 = vst.msk [vmem:[#allocation3 + $0x18] sm:$0xff] %vm240, 0.0
          %245 = vst.msk [vmem:[#allocation4] sm:$0xff] %vm240, 0.0
          %246 = vst.msk [vmem:[#allocation4 + $0x8] sm:$0xff] %vm240, 0.0
          %247 = vst.msk [vmem:[#allocation4 + $0x10] sm:$0xff] %vm240, 0.0
          %248 = vst.msk [vmem:[#allocation4 + $0x18] sm:$0xff] %vm240, 0.0
        $region44: #{generator_forward.8} parent=39 // pred_fallthru
          _
        %v249 = vld [vmem:[%s0] sm:$0xff]
        %v250 = vld [vmem:[%s0 + $0x8] sm:$0xff]
        %v251 = vld [vmem:[%s0 + $0x10] sm:$0xff]
        %v252 = vld [vmem:[%s0 + $0x18] sm:$0xff]
        %v253 = vld [vmem:[%s0 + $0x20] sm:$0xff]
        %v254 = vld [vmem:[%s0 + $0x28] sm:$0xff]
        %v255 = vld [vmem:[%s0 + $0x30] sm:$0xff]
        %v256 = vld [vmem:[%s0 + $0x38] sm:$0xff]
        %v257 = vld [vmem:[%s220] sm:$0xff]
        %v258 = vld [vmem:[%s220 + $0x8] sm:$0xff]
        %v259 = vld [vmem:[%s220 + $0x10] sm:$0xff]
        %v260 = vld [vmem:[%s220 + $0x18] sm:$0xff]
        %v261 = vld [vmem:[%s220 + $0x20] sm:$0xff]
        %v262 = vld [vmem:[%s220 + $0x28] sm:$0xff]
        %v263 = vld [vmem:[%s220 + $0x30] sm:$0xff]
        %v264 = vld [vmem:[%s220 + $0x38] sm:$0xff]
        %v265 = vld [vmem:[%s220 + $0x40] sm:$0xff]
        %v266 = vld [vmem:[%s220 + $0x48] sm:$0xff]
        %v267 = vld [vmem:[%s220 + $0x50] sm:$0xff]
        %v268 = vld [vmem:[%s220 + $0x58] sm:$0xff]
        %v269 = vld [vmem:[%s220 + $0x60] sm:$0xff]
        %v270 = vld [vmem:[%s220 + $0x68] sm:$0xff]
        %v271 = vld [vmem:[%s220 + $0x70] sm:$0xff]
        %v272 = vld [vmem:[%s220 + $0x78] sm:$0xff]
        %v273 = vld [vmem:[%s220 + $0x80] sm:$0xff]
        %v274 = vld [vmem:[%s220 + $0x88] sm:$0xff]
        %v275 = vld [vmem:[%s220 + $0x90] sm:$0xff]
        %v276 = vld [vmem:[%s220 + $0x98] sm:$0xff]
        %v277 = vld [vmem:[%s220 + $0xa0] sm:$0xff]
        %v278 = vld [vmem:[%s220 + $0xa8] sm:$0xff]
        %v279 = vld [vmem:[%s220 + $0xb0] sm:$0xff]
        %v280 = vld [vmem:[%s220 + $0xb8] sm:$0xff]
        %v281 = vld [vmem:[%s220 + $0xc0] sm:$0xff]
        %v282 = vld [vmem:[%s220 + $0xc8] sm:$0xff]
        %v283 = vld [vmem:[%s220 + $0xd0] sm:$0xff]
        %v284 = vld [vmem:[%s220 + $0xd8] sm:$0xff]
        %v285 = vld [vmem:[%s220 + $0xe0] sm:$0xff]
        %v286 = vld [vmem:[%s220 + $0xe8] sm:$0xff]
        %v287 = vld [vmem:[%s220 + $0xf0] sm:$0xff]
        %v288 = vld [vmem:[%s220 + $0xf8] sm:$0xff]
        %v289 = vld [vmem:[%s220 + $0x100] sm:$0xff]
        %v290 = vld [vmem:[%s220 + $0x108] sm:$0xff]
        %v291 = vld [vmem:[%s220 + $0x110] sm:$0xff]
        %v292 = vld [vmem:[%s220 + $0x118] sm:$0xff]
        %v293 = vld [vmem:[%s220 + $0x120] sm:$0xff]
        %v294 = vld [vmem:[%s220 + $0x128] sm:$0xff]
        %v295 = vld [vmem:[%s220 + $0x130] sm:$0xff]
        %v296 = vld [vmem:[%s220 + $0x138] sm:$0xff]
        %v297 = vld [vmem:[%s220 + $0x140] sm:$0xff]
        %v298 = vld [vmem:[%s220 + $0x148] sm:$0xff]
        %v299 = vld [vmem:[%s220 + $0x150] sm:$0xff]
        %v300 = vld [vmem:[%s220 + $0x158] sm:$0xff]
        %v301 = vld [vmem:[%s220 + $0x160] sm:$0xff]
        %v302 = vld [vmem:[%s220 + $0x168] sm:$0xff]
        %v303 = vld [vmem:[%s220 + $0x170] sm:$0xff]
        %v304 = vld [vmem:[%s220 + $0x178] sm:$0xff]
        %v305 = vld [vmem:[%s220 + $0x180] sm:$0xff]
        %v306 = vld [vmem:[%s220 + $0x188] sm:$0xff]
        %v307 = vld [vmem:[%s220 + $0x190] sm:$0xff]
        %v308 = vld [vmem:[%s220 + $0x198] sm:$0xff]
        %v309 = vld [vmem:[%s220 + $0x1a0] sm:$0xff]
        %v310 = vld [vmem:[%s220 + $0x1a8] sm:$0xff]
        %v311 = vld [vmem:[%s220 + $0x1b0] sm:$0xff]
        %v312 = vld [vmem:[%s220 + $0x1b8] sm:$0xff]
        %v313 = vld [vmem:[%s220 + $0x1c0] sm:$0xff]
        %v314 = vld [vmem:[%s220 + $0x1c8] sm:$0xff]
        %v315 = vld [vmem:[%s220 + $0x1d0] sm:$0xff]
        %v316 = vld [vmem:[%s220 + $0x1d8] sm:$0xff]
        %v317 = vld [vmem:[%s220 + $0x1e0] sm:$0xff]
        %v318 = vld [vmem:[%s220 + $0x1e8] sm:$0xff]
        %v319 = vld [vmem:[%s220 + $0x1f0] sm:$0xff]
        %v320 = vld [vmem:[%s220 + $0x1f8] sm:$0xff]
        %v321 = vld [vmem:[%s220 + $0x200] sm:$0xff]
        %v322 = vld [vmem:[%s220 + $0x208] sm:$0xff]
        %v323 = vld [vmem:[%s220 + $0x210] sm:$0xff]
        %v324 = vld [vmem:[%s220 + $0x218] sm:$0xff]
        %v325 = vld [vmem:[%s220 + $0x220] sm:$0xff]
        %v326 = vld [vmem:[%s220 + $0x228] sm:$0xff]
        %v327 = vld [vmem:[%s220 + $0x230] sm:$0xff]
        %v328 = vld [vmem:[%s220 + $0x238] sm:$0xff]
        %vm329 = vcmask 130048
        %v331 = vsel %vm329, %v250, 0
        %v334 = vsel %vm329, %v252, 0
        %v337 = vsel %vm329, %v254, 0
        %v340 = vsel %vm329, %v256, 0
        %342 = vmatprep.subr.mxu0 %v258
        %343 = vmatpush1.msra.mxu0 %v257
        %344 = vmatprep.subr.mxu0 %v262
        %345 = vmatpush1.msra.mxu0 %v261
        %346 = vmatprep.subr.mxu0 %v266
        %347 = vmatpush1.msra.mxu0 %v265
        %348 = vmatprep.subr.mxu0 %v270
        %349 = vmatpush1.msra.mxu0 %v269
        %350 = vmatprep.subr.mxu0 %v274
        %351 = vmatpush1.msra.mxu0 %v273
        %352 = vmatprep.subr.mxu0 %v278
        %353 = vmatpush1.msra.mxu0 %v277
        %354 = vmatprep.subr.mxu0 %v282
        %355 = vmatpush1.msra.mxu0 %v281
        %356 = vmatprep.subr.mxu0 %v286
        %357 = vmatpush1.msra.mxu0 %v285
        %358 = vmatprep.subr.mxu0 %v290
        %359 = vmatpush1.msra.mxu0 %v289
        %360 = vmatprep.subr.mxu0 %v294
        %361 = vmatpush1.msra.mxu0 %v293
        %362 = vmatprep.subr.mxu0 %v298
        %363 = vmatpush1.msra.mxu0 %v297
        %364 = vmatprep.subr.mxu0 %v302
        %365 = vmatpush1.msra.mxu0 %v301
        %366 = vmatprep.subr.mxu0 %v306
        %367 = vmatpush1.msra.mxu0 %v305
        %368 = vmatprep.subr.mxu0 %v310
        %369 = vmatpush1.msra.mxu0 %v309
        %370 = vmatprep.subr.mxu0 %v314
        %371 = vmatpush1.msra.mxu0 %v313
        %372 = vmatprep.subr.mxu0 %v318
        %373 = vmatpush1.msra.mxu0 %v317
        %374 = vmatprep.subr.mxu0 %v322
        %375 = vmatpush1.msra.mxu0 %v321
        %376 = vmatprep.subr.mxu0 %v326
        %377 = vmatpush1.msra.mxu0 %v325
        %378 = vmatprep.subr.mxu0 0.0
        %379 = vmatpush1.msra.mxu0 0.0
        %380 = vmatprep.subr.mxu0 0.0
        %381 = vmatpush1.msra.mxu0 0.0
        %382 = vmatprep.subr.mxu0 0.0
        %383 = vmatpush1.msra.mxu0 0.0
        %384 = vmatprep.subr.mxu0 0.0
        %385 = vmatpush1.msra.mxu0 0.0
        %386 = vmatprep.subr.mxu0 0.0
        %387 = vmatpush1.msra.mxu0 0.0
        %388 = vmatprep.subr.mxu0 0.0
        %389 = vmatpush1.msra.mxu0 0.0
        %390 = vmatprep.subr.mxu0 0.0
        %391 = vmatpush1.msra.mxu0 0.0
        %392 = vmatprep.subr.mxu0 0.0
        %393 = vmatpush1.msra.mxu0 0.0
        %394 = vmatprep.subr.mxu0 0.0
        %395 = vmatpush1.msra.mxu0 0.0
        %396 = vmatprep.subr.mxu0 0.0
        %397 = vmatpush1.msra.mxu0 0.0
        %398 = vmatprep.subr.mxu0 0.0
        %399 = vmatpush1.msra.mxu0 0.0
        %400 = vmatprep.subr.mxu0 0.0
        %401 = vmatpush1.msra.mxu0 0.0
        %402 = vmatprep.subr.mxu0 0.0
        %403 = vmatpush1.msra.mxu0 0.0
        %404 = vmatprep.subr.mxu0 0.0
        %405 = vmatpush1.msra.mxu0 0.0
        %406 = vmatprep.mubr.f32.mxu0 %v331
        %407 = vmatmul.mubr.f32.gmra.mrb[0].mxu0 %v249
        %v408 = vpop.f32.mrb[0].mxu0
        %v409 = vadd.f32 0.0, %v408
        %v410 = vpop.f32.mrb[0].mxu0
        %v411 = vadd.f32 0.0, %v410
        %412 = vmatprep.mubr.f32.mxu0 %v334
        %413 = vmatmul.mubr.f32.gmra.mrb[0].mxu0 %v251
        %v414 = vpop.f32.mrb[0].mxu0
        %v415 = vadd.f32 0.0, %v414
        %v416 = vpop.f32.mrb[0].mxu0
        %v417 = vadd.f32 0.0, %v416
        %418 = vmatprep.mubr.f32.mxu0 %v337
        %419 = vmatmul.mubr.f32.gmra.mrb[0].mxu0 %v253
        %v420 = vpop.f32.mrb[0].mxu0
        %v421 = vadd.f32 0.0, %v420
        %v422 = vpop.f32.mrb[0].mxu0
        %v423 = vadd.f32 0.0, %v422
        %424 = vmatprep.mubr.f32.mxu0 %v340
        %425 = vmatmul.mubr.f32.gmra.mrb[0].mxu0 %v255
        %v426 = vpop.f32.mrb[0].mxu0
        %v427 = vadd.f32 0.0, %v426
        %v428 = vpop.f32.mrb[0].mxu0
        %v429 = vadd.f32 0.0, %v428
        %430 = vdwg.mxu0
        %431 = vmatprep.subr.mxu0 %v260
        %432 = vmatpush1.msra.mxu0 %v259
        %433 = vmatprep.subr.mxu0 %v264
        %434 = vmatpush1.msra.mxu0 %v263
        %435 = vmatprep.subr.mxu0 %v268
        %436 = vmatpush1.msra.mxu0 %v267
        %437 = vmatprep.subr.mxu0 %v272
        %438 = vmatpush1.msra.mxu0 %v271
        %439 = vmatprep.subr.mxu0 %v276
        %440 = vmatpush1.msra.mxu0 %v275
        %441 = vmatprep.subr.mxu0 %v280
        %442 = vmatpush1.msra.mxu0 %v279
        %443 = vmatprep.subr.mxu0 %v284
        %444 = vmatpush1.msra.mxu0 %v283
        %445 = vmatprep.subr.mxu0 %v288
        %446 = vmatpush1.msra.mxu0 %v287
        %447 = vmatprep.subr.mxu0 %v292
        %448 = vmatpush1.msra.mxu0 %v291
        %449 = vmatprep.subr.mxu0 %v296
        %450 = vmatpush1.msra.mxu0 %v295
        %451 = vmatprep.subr.mxu0 %v300
        %452 = vmatpush1.msra.mxu0 %v299
        %453 = vmatprep.subr.mxu0 %v304
        %454 = vmatpush1.msra.mxu0 %v303
        %455 = vmatprep.subr.mxu0 %v308
        %456 = vmatpush1.msra.mxu0 %v307
        %457 = vmatprep.subr.mxu0 %v312
        %458 = vmatpush1.msra.mxu0 %v311
        %459 = vmatprep.subr.mxu0 %v316
        %460 = vmatpush1.msra.mxu0 %v315
        %461 = vmatprep.subr.mxu0 %v320
        %462 = vmatpush1.msra.mxu0 %v319
        %463 = vmatprep.subr.mxu0 %v324
        %464 = vmatpush1.msra.mxu0 %v323
        %465 = vmatprep.subr.mxu0 %v328
        %466 = vmatpush1.msra.mxu0 %v327
        %467 = vmatprep.subr.mxu0 0.0
        %468 = vmatpush1.msra.mxu0 0.0
        %469 = vmatprep.subr.mxu0 0.0
        %470 = vmatpush1.msra.mxu0 0.0
        %471 = vmatprep.subr.mxu0 0.0
        %472 = vmatpush1.msra.mxu0 0.0
        %473 = vmatprep.subr.mxu0 0.0
        %474 = vmatpush1.msra.mxu0 0.0
        %475 = vmatprep.subr.mxu0 0.0
        %476 = vmatpush1.msra.mxu0 0.0
        %477 = vmatprep.subr.mxu0 0.0
        %478 = vmatpush1.msra.mxu0 0.0
        %479 = vmatprep.subr.mxu0 0.0
        %480 = vmatpush1.msra.mxu0 0.0
        %481 = vmatprep.subr.mxu0 0.0
        %482 = vmatpush1.msra.mxu0 0.0
        %483 = vmatprep.subr.mxu0 0.0
        %484 = vmatpush1.msra.mxu0 0.0
        %485 = vmatprep.subr.mxu0 0.0
        %486 = vmatpush1.msra.mxu0 0.0
        %487 = vmatprep.subr.mxu0 0.0
        %488 = vmatpush1.msra.mxu0 0.0
        %489 = vmatprep.subr.mxu0 0.0
        %490 = vmatpush1.msra.mxu0 0.0
        %491 = vmatprep.subr.mxu0 0.0
        %492 = vmatpush1.msra.mxu0 0.0
        %493 = vmatprep.subr.mxu0 0.0
        %494 = vmatpush1.msra.mxu0 0.0
        %495 = vmatprep.mubr.f32.mxu0 %v331
        %496 = vmatmul.mubr.f32.gmra.mrb[0].mxu0 %v249
        %v497 = vpop.f32.mrb[0].mxu0
        %v498 = vadd.f32 0.0, %v497
        %v499 = vpop.f32.mrb[0].mxu0
        %v500 = vadd.f32 0.0, %v499
        %501 = vmatprep.mubr.f32.mxu0 %v334
        %502 = vmatmul.mubr.f32.gmra.mrb[0].mxu0 %v251
        %v503 = vpop.f32.mrb[0].mxu0
        %v504 = vadd.f32 0.0, %v503
        %v505 = vpop.f32.mrb[0].mxu0
        %v506 = vadd.f32 0.0, %v505
        %507 = vmatprep.mubr.f32.mxu0 %v337
        %508 = vmatmul.mubr.f32.gmra.mrb[0].mxu0 %v253
        %v509 = vpop.f32.mrb[0].mxu0
        %v510 = vadd.f32 0.0, %v509
        %v511 = vpop.f32.mrb[0].mxu0
        %v512 = vadd.f32 0.0, %v511
        %513 = vmatprep.mubr.f32.mxu0 %v340
        %514 = vmatmul.mubr.f32.gmra.mrb[0].mxu0 %v255
        %v515 = vpop.f32.mrb[0].mxu0
        %v516 = vadd.f32 0.0, %v515
        %v517 = vpop.f32.mrb[0].mxu0
        %v518 = vadd.f32 0.0, %v517
        %519 = vdwg.mxu0
        %s520 = smul.u32 %s20, 512
        %s521 = sshra.s32 %s520, 7
        %s522 = sand.u32 %s520, 127
        %s523 = smul.addr %s521, 8
        %s524 = scalar_lea.vmem [#allocation2], %s523
        %525 = vst [vmem:[%s524] sm:$0xff] %v409
        %526 = vst [vmem:[%s524 + $0x8] sm:$0xff] %v411
        %527 = vst [vmem:[%s524 + $0x10] sm:$0xff] %v498
        %528 = vst [vmem:[%s524 + $0x18] sm:$0xff] %v500
        %529 = vst [vmem:[%s524 + $0x20] sm:$0xff] %v415
        %530 = vst [vmem:[%s524 + $0x28] sm:$0xff] %v417
        %531 = vst [vmem:[%s524 + $0x30] sm:$0xff] %v504
        %532 = vst [vmem:[%s524 + $0x38] sm:$0xff] %v506
        %533 = vst [vmem:[%s524 + $0x40] sm:$0xff] %v421
        %534 = vst [vmem:[%s524 + $0x48] sm:$0xff] %v423
        %535 = vst [vmem:[%s524 + $0x50] sm:$0xff] %v510
        %536 = vst [vmem:[%s524 + $0x58] sm:$0xff] %v512
        %537 = vst [vmem:[%s524 + $0x60] sm:$0xff] %v427
        %538 = vst [vmem:[%s524 + $0x68] sm:$0xff] %v429
        %539 = vst [vmem:[%s524 + $0x70] sm:$0xff] %v516
        %540 = vst [vmem:[%s524 + $0x78] sm:$0xff] %v518
        %v541 = vld [vmem:[#allocation3] sm:$0xff]
        %v542 = vld [vmem:[#allocation3 + $0x8] sm:$0xff]
        %v543 = vld [vmem:[#allocation3 + $0x10] sm:$0xff]
        %v544 = vld [vmem:[#allocation3 + $0x18] sm:$0xff]
        %v545 = vadd.f32 %v409, %v411
        %v546 = vadd.f32 %v545, %v498
        %v547 = vadd.f32 %v546, %v500
        %548 = vadd.xlane.f32.xlu0 %v547
        %v549 = vpop.xlane.xlu0 %548
        %v550 = vadd.f32 %v415, %v417
        %v551 = vadd.f32 %v550, %v504
        %v552 = vadd.f32 %v551, %v506
        %553 = vadd.xlane.f32.xlu0 %v552
        %v554 = vpop.xlane.xlu0 %553
        %v555 = vadd.f32 %v421, %v423
        %v556 = vadd.f32 %v555, %v510
        %v557 = vadd.f32 %v556, %v512
        %558 = vadd.xlane.f32.xlu0 %v557
        %v559 = vpop.xlane.xlu0 %558
        %v560 = vadd.f32 %v427, %v429
        %v561 = vadd.f32 %v560, %v516
        %v562 = vadd.f32 %v561, %v518
        %563 = vadd.xlane.f32.xlu0 %v562
        %v564 = vpop.xlane.xlu0 %563
        %v565 = vadd.f32 %v541, %v549
        %v566 = vadd.f32 %v542, %v554
        %v567 = vadd.f32 %v543, %v559
        %v568 = vadd.f32 %v544, %v564
        %vm569 = vcmask 7168
        %570 = vst.msk [vmem:[#allocation3] sm:$0xff] %vm569, %v565
        %571 = vst.msk [vmem:[#allocation3 + $0x8] sm:$0xff] %vm569, %v566
        %572 = vst.msk [vmem:[#allocation3 + $0x10] sm:$0xff] %vm569, %v567
        %573 = vst.msk [vmem:[#allocation3 + $0x18] sm:$0xff] %vm569, %v568
        %v574 = vld [vmem:[#allocation4] sm:$0xff]
        %v575 = vld [vmem:[#allocation4 + $0x8] sm:$0xff]
        %v576 = vld [vmem:[#allocation4 + $0x10] sm:$0xff]
        %v577 = vld [vmem:[#allocation4 + $0x18] sm:$0xff]
        %v578 = vmul.f32 %v409, %v409
        %v579 = vmul.f32 %v411, %v411
        %v580 = vmul.f32 %v498, %v498
        %v581 = vmul.f32 %v500, %v500
        %v582 = vmul.f32 %v415, %v415
        %v583 = vmul.f32 %v417, %v417
        %v584 = vmul.f32 %v504, %v504
        %v585 = vmul.f32 %v506, %v506
        %v586 = vmul.f32 %v421, %v421
        %v587 = vmul.f32 %v423, %v423
        %v588 = vmul.f32 %v510, %v510
        %v589 = vmul.f32 %v512, %v512
        %v590 = vmul.f32 %v427, %v427
        %v591 = vmul.f32 %v429, %v429
        %v592 = vmul.f32 %v516, %v516
        %v593 = vmul.f32 %v518, %v518
        %v594 = vadd.f32 %v578, %v579
        %v595 = vadd.f32 %v594, %v580
        %v596 = vadd.f32 %v595, %v581
        %597 = vadd.xlane.f32.xlu0 %v596
        %v598 = vpop.xlane.xlu0 %597
        %v599 = vadd.f32 %v582, %v583
        %v600 = vadd.f32 %v599, %v584
        %v601 = vadd.f32 %v600, %v585
        %602 = vadd.xlane.f32.xlu0 %v601
        %v603 = vpop.xlane.xlu0 %602
        %v604 = vadd.f32 %v586, %v587
        %v605 = vadd.f32 %v604, %v588
        %v606 = vadd.f32 %v605, %v589
        %607 = vadd.xlane.f32.xlu0 %v606
        %v608 = vpop.xlane.xlu0 %607
        %v609 = vadd.f32 %v590, %v591
        %v610 = vadd.f32 %v609, %v592
        %v611 = vadd.f32 %v610, %v593
        %612 = vadd.xlane.f32.xlu0 %v611
        %v613 = vpop.xlane.xlu0 %612
        %v614 = vadd.f32 %v574, %v598
        %v615 = vadd.f32 %v575, %v603
        %v616 = vadd.f32 %v576, %v608
        %v617 = vadd.f32 %v577, %v613
        %618 = vst.msk [vmem:[#allocation4] sm:$0xff] %vm569, %v614
        %619 = vst.msk [vmem:[#allocation4 + $0x8] sm:$0xff] %vm569, %v615
        %620 = vst.msk [vmem:[#allocation4 + $0x10] sm:$0xff] %vm569, %v616
        %621 = vst.msk [vmem:[#allocation4 + $0x18] sm:$0xff] %vm569, %v617
      $region40: #{generator_forward.8} parent=35 // pred_fallthru
        _
      %p622 = scmp.eq.s32.totalorder %s19, 1
      // Predicated region
      $region45: #{generator_forward.8} parent=35 // pred_check
        %p623 = pneg %p622
      $region46: #{generator_forward.8} parent=35 // pred_check_branch
        %625 = sbr.rel (%p623) target = $region48
      $region47: #{generator_forward.8} parent=35 // pred_region
        %p626 = scmp.eq.s32.totalorder %s20, 0
        // Predicated region
        $region49: #{generator_forward.8} parent=47 // pred_check
          %p627 = pneg %p626
        $region50: #{generator_forward.8} parent=47 // pred_check_branch
          %629 = sbr.rel (%p627) target = $region52
        $region51: #{generator_forward.8} parent=47 // pred_region
          %v630 = vld [vmem:[#allocation3] sm:$0xff]
          %v631 = vld [vmem:[#allocation3 + $0x8] sm:$0xff]
          %v632 = vld [vmem:[#allocation3 + $0x10] sm:$0xff]
          %v633 = vld [vmem:[#allocation3 + $0x18] sm:$0xff]
          %v634 = vld [vmem:[#allocation4] sm:$0xff]
          %v635 = vld [vmem:[#allocation4 + $0x8] sm:$0xff]
          %v636 = vld [vmem:[#allocation4 + $0x10] sm:$0xff]
          %v637 = vld [vmem:[#allocation4 + $0x18] sm:$0xff]
          %v638 = vadd.f32 %v630, %v631
          %v639 = vadd.f32 %v638, %v632
          %v640 = vadd.f32 %v639, %v633
          %v641 = vadd.f32 %v634, %v635
          %v642 = vadd.f32 %v641, %v636
          %v643 = vadd.f32 %v642, %v637
          %v644 = vmul.f32 %v640, 0.00048828125
          %v645 = vmul.f32 %v643, 0.00048828125
          %v646 = vmul.f32 %v644, %v644
          %v647 = vsub.f32 %v645, %v646
          %v648 = vmax.f32 %v647, 0.0
          %v649 = vld [vmem:[%s2] sm:$0xff]
          %v650 = vld [vmem:[%s2 + $0x8] sm:$0xff]
          %v651 = vld [vmem:[%s2 + $0x10] sm:$0xff]
          %v652 = vld [vmem:[%s2 + $0x18] sm:$0xff]
          %v653 = vadd.f32 %v648, 1e-05
          %v654 = vrsqrt.pop %v653
          %v655 = vmul.f32 %v649, %v654
          %v656 = vmul.f32 %v650, %v654
          %v657 = vmul.f32 %v651, %v654
          %v658 = vmul.f32 %v652, %v654
          %v659 = vld [vmem:[%s3] sm:$0xff]
          %v660 = vld [vmem:[%s3 + $0x8] sm:$0xff]
          %v661 = vld [vmem:[%s3 + $0x10] sm:$0xff]
          %v662 = vld [vmem:[%s3 + $0x18] sm:$0xff]
          %v663 = vmul.f32 %v644, %v655
          %v664 = vmul.f32 %v644, %v656
          %v665 = vmul.f32 %v644, %v657
          %v666 = vmul.f32 %v644, %v658
          %v667 = vsub.f32 %v659, %v663
          %v668 = vsub.f32 %v660, %v664
          %v669 = vsub.f32 %v661, %v665
          %v670 = vsub.f32 %v662, %v666
          %vm671 = vcmask 7168
          %672 = vst.msk [vmem:[#allocation3] sm:$0xff] %vm671, %v655
          %673 = vst.msk [vmem:[#allocation3 + $0x8] sm:$0xff] %vm671, %v656
          %674 = vst.msk [vmem:[#allocation3 + $0x10] sm:$0xff] %vm671, %v657
          %675 = vst.msk [vmem:[#allocation3 + $0x18] sm:$0xff] %vm671, %v658
          %676 = vst.msk [vmem:[#allocation4] sm:$0xff] %vm671, %v667
          %677 = vst.msk [vmem:[#allocation4 + $0x8] sm:$0xff] %vm671, %v668
          %678 = vst.msk [vmem:[#allocation4 + $0x10] sm:$0xff] %vm671, %v669
          %679 = vst.msk [vmem:[#allocation4 + $0x18] sm:$0xff] %vm671, %v670
        $region52: #{generator_forward.8} parent=47 // pred_fallthru
          _
        %s680 = smul.u32 %s20, 512
        %s681 = sshra.s32 %s680, 7
        %s682 = sand.u32 %s680, 127
        %s683 = smul.addr %s681, 8
        %s684 = scalar_lea.vmem [#allocation2], %s683
        %v685 = vld [vmem:[%s684] sm:$0xff]
        %v686 = vld [vmem:[%s684 + $0x8] sm:$0xff]
        %v687 = vld [vmem:[%s684 + $0x10] sm:$0xff]
        %v688 = vld [vmem:[%s684 + $0x18] sm:$0xff]
        %v689 = vld [vmem:[%s684 + $0x20] sm:$0xff]
        %v690 = vld [vmem:[%s684 + $0x28] sm:$0xff]
        %v691 = vld [vmem:[%s684 + $0x30] sm:$0xff]
        %v692 = vld [vmem:[%s684 + $0x38] sm:$0xff]
        %v693 = vld [vmem:[%s684 + $0x40] sm:$0xff]
        %v694 = vld [vmem:[%s684 + $0x48] sm:$0xff]
        %v695 = vld [vmem:[%s684 + $0x50] sm:$0xff]
        %v696 = vld [vmem:[%s684 + $0x58] sm:$0xff]
        %v697 = vld [vmem:[%s684 + $0x60] sm:$0xff]
        %v698 = vld [vmem:[%s684 + $0x68] sm:$0xff]
        %v699 = vld [vmem:[%s684 + $0x70] sm:$0xff]
        %v700 = vld [vmem:[%s684 + $0x78] sm:$0xff]
        %v701 = vld [vmem:[#allocation3] sm:$0xff]
        %v702 = vld [vmem:[#allocation3 + $0x8] sm:$0xff]
        %v703 = vld [vmem:[#allocation3 + $0x10] sm:$0xff]
        %v704 = vld [vmem:[#allocation3 + $0x18] sm:$0xff]
        %706 = vset.pattern.permute.xlu0 0
        %707 = vperm.xlu0 %706, %v701
        %v708 = vpop.permute.xlu0 %707
        %711 = vset.pattern.permute.xlu0 0
        %712 = vperm.xlu0 %711, %v702
        %v713 = vpop.permute.xlu0 %712
        %716 = vset.pattern.permute.xlu0 0
        %717 = vperm.xlu0 %716, %v703
        %v718 = vpop.permute.xlu0 %717
        %721 = vset.pattern.permute.xlu0 0
        %722 = vperm.xlu0 %721, %v704
        %v723 = vpop.permute.xlu0 %722
        %v725 = vmul.f32 %v685, %v708
        %v726 = vmul.f32 %v686, %v708
        %v727 = vmul.f32 %v687, %v708
        %v728 = vmul.f32 %v688, %v708
        %v729 = vmul.f32 %v689, %v713
        %v730 = vmul.f32 %v690, %v713
        %v731 = vmul.f32 %v691, %v713
        %v732 = vmul.f32 %v692, %v713
        %v733 = vmul.f32 %v693, %v718
        %v734 = vmul.f32 %v694, %v718
        %v735 = vmul.f32 %v695, %v718
        %v736 = vmul.f32 %v696, %v718
        %v737 = vmul.f32 %v697, %v723
        %v738 = vmul.f32 %v698, %v723
        %v739 = vmul.f32 %v699, %v723
        %v740 = vmul.f32 %v700, %v723
        %v741 = vld [vmem:[#allocation4] sm:$0xff]
        %v742 = vld [vmem:[#allocation4 + $0x8] sm:$0xff]
        %v743 = vld [vmem:[#allocation4 + $0x10] sm:$0xff]
        %v744 = vld [vmem:[#allocation4 + $0x18] sm:$0xff]
        %746 = vset.pattern.permute.xlu0 0
        %747 = vperm.xlu0 %746, %v741
        %v748 = vpop.permute.xlu0 %747
        %751 = vset.pattern.permute.xlu0 0
        %752 = vperm.xlu0 %751, %v742
        %v753 = vpop.permute.xlu0 %752
        %756 = vset.pattern.permute.xlu0 0
        %757 = vperm.xlu0 %756, %v743
        %v758 = vpop.permute.xlu0 %757
        %761 = vset.pattern.permute.xlu0 0
        %762 = vperm.xlu0 %761, %v744
        %v763 = vpop.permute.xlu0 %762
        %v765 = vadd.f32 %v725, %v748
        %v766 = vadd.f32 %v726, %v748
        %v767 = vadd.f32 %v727, %v748
        %v768 = vadd.f32 %v728, %v748
        %v769 = vadd.f32 %v729, %v753
        %v770 = vadd.f32 %v730, %v753
        %v771 = vadd.f32 %v731, %v753
        %v772 = vadd.f32 %v732, %v753
        %v773 = vadd.f32 %v733, %v758
        %v774 = vadd.f32 %v734, %v758
        %v775 = vadd.f32 %v735, %v758
        %v776 = vadd.f32 %v736, %v758
        %v777 = vadd.f32 %v737, %v763
        %v778 = vadd.f32 %v738, %v763
        %v779 = vadd.f32 %v739, %v763
        %v780 = vadd.f32 %v740, %v763
        %v781 = vmax.f32 %v765, 0.0
        %v782 = vmax.f32 %v766, 0.0
        %v783 = vmax.f32 %v767, 0.0
        %v784 = vmax.f32 %v768, 0.0
        %v785 = vmax.f32 %v769, 0.0
        %v786 = vmax.f32 %v770, 0.0
        %v787 = vmax.f32 %v771, 0.0
        %v788 = vmax.f32 %v772, 0.0
        %v789 = vmax.f32 %v773, 0.0
        %v790 = vmax.f32 %v774, 0.0
        %v791 = vmax.f32 %v775, 0.0
        %v792 = vmax.f32 %v776, 0.0
        %v793 = vmax.f32 %v777, 0.0
        %v794 = vmax.f32 %v778, 0.0
        %v795 = vmax.f32 %v779, 0.0
        %v796 = vmax.f32 %v780, 0.0
        %797 = vst [vmem:[%s229] sm:$0xff] %v781
        %798 = vst [vmem:[%s229 + $0x8] sm:$0xff] %v782
        %799 = vst [vmem:[%s229 + $0x10] sm:$0xff] %v783
        %800 = vst [vmem:[%s229 + $0x18] sm:$0xff] %v784
        %801 = vst [vmem:[%s229 + $0x20] sm:$0xff] %v785
        %802 = vst [vmem:[%s229 + $0x28] sm:$0xff] %v786
        %803 = vst [vmem:[%s229 + $0x30] sm:$0xff] %v787
        %804 = vst [vmem:[%s229 + $0x38] sm:$0xff] %v788
        %805 = vst [vmem:[%s229 + $0x40] sm:$0xff] %v789
        %806 = vst [vmem:[%s229 + $0x48] sm:$0xff] %v790
        %807 = vst [vmem:[%s229 + $0x50] sm:$0xff] %v791
        %808 = vst [vmem:[%s229 + $0x58] sm:$0xff] %v792
        %809 = vst [vmem:[%s229 + $0x60] sm:$0xff] %v793
        %810 = vst [vmem:[%s229 + $0x68] sm:$0xff] %v794
        %811 = vst [vmem:[%s229 + $0x70] sm:$0xff] %v795
        %812 = vst [vmem:[%s229 + $0x78] sm:$0xff] %v796
      $region48: #{generator_forward.8} parent=35 // pred_fallthru
        _
      %s813 = smul.u32 %s20, %s19
      %s814 = smul.u32 4, %s813
      %p815 = scmp.lt.s32.totalorder %s814, 3
      %s816 = scalar_select %p815, %s814, 3
      %s817 = smul.addr %s816, 8
      %s818 = scalar_lea.vmem %s4, %s817
      // Predicated region
      $region53: #{generator_forward.8} parent=35 // pred_check
        %p819 = pneg %p140
      $region54: #{generator_forward.8} parent=35 // pred_check_branch
        %821 = sbr.rel (%p819) target = $region56
      $region55: #{generator_forward.8} parent=35 // pred_region
        %s822 = smul.u32 %s20, %s19
        %s823 = smul.u32 4, %s822
      $region56: #{generator_forward.8} parent=35 // pred_fallthru
        _
    $region36: #{generator_forward.8} parent=5 // pred_fallthru
      _
    %p824 = scmp.le.s32.totalorder 2, %s10
    // Predicated region
    $region57: #{generator_forward.8} parent=5 // pred_check
      %p825 = pneg %p824
    $region58: #{generator_forward.8} parent=5 // pred_check_branch
      %827 = sbr.rel (%p825) target = $region60
    $region59: #{generator_forward.8} parent=5 // pred_region
      %s828 = ssub.s32 %s10, 2
      // Predicated region
      $region61: #{generator_forward.8} parent=59 // pred_check
        %p829 = pneg %p146
      $region62: #{generator_forward.8} parent=59 // pred_check_branch
        %831 = sbr.rel (%p829) target = $region64
      $region63: #{generator_forward.8} parent=59 // pred_region
        %s832 = smul.u32 %s22, %s21
        %s833 = smul.u32 4, %s832
        %p834 = scmp.lt.s32.totalorder %s833, 3
        %s835 = scalar_select %p834, %s833, 3
        %s836 = smul.addr %s835, 8
        %s837 = scalar_lea.vmem %s4, %s836
      $region64: #{generator_forward.8} parent=59 // pred_fallthru
        _
    $region60: #{generator_forward.8} parent=5 // pred_fallthru
      _
  $region6: #{generator_forward.8} parent=0 // loop_footer
    %s14 = sadd.s32 1, %s10
  $region7: #{generator_forward.8} parent=0 // loop_footer_branch
    %9 = sbr.rel target = $region3
  $region8: #{generator_forward.8} parent=0 // loop_exit
    _

// kernel: generator_forward.9
$region0: #{generator_forward.9}
  #allocation0 [shape = 'u32[]', space=smem, size = 0x4, offset = 0x4, fixed_abs, tag = 'smem constant byte address 0x4 - core index']
  #allocation1 [shape = 'u32[144,128]{1,0:T(1,128)}', space=vmem, size = 0x12000, scoped, tag = 'internal scratch']
  #allocation2 [shape = 'f32[8,128]{1,0:T(8,128)}', space=vmem, size = 0x1000, scoped, tag = 'scratch operand']
  #allocation3 [shape = 'f32[32,1]{1,0:T(8,128)}', space=vmem, size = 0x4000, scoped, tag = 'scratch operand']
  #allocation4 [shape = 'f32[32,1]{1,0:T(8,128)}', space=vmem, size = 0x4000, scoped, tag = 'scratch operand']
  %s0 = inlined_call_operand.vmem [shape: f32[32,72], index: 0, kind: input, shape index: {}]
  %s1 = inlined_call_operand.vmem [shape: f32[72,2048], index: 1, kind: input, shape index: {}]
  %s2 = inlined_call_operand.vmem [shape: f32[32,1], index: 2, kind: input, shape index: {}]
  %s3 = inlined_call_operand.vmem [shape: f32[32,1], index: 3, kind: input, shape index: {}]
  %s4 = inlined_call_operand.vmem [shape: f32[32,2048], index: 4, kind: output, shape index: {}]
  %s5 = sld [smem:[#allocation0]]
  $region26: #{generator_forward.9} parent=0
    _
  %s7 = ssub.s32 1, %s5
  %s8 = scalar_select 0, %s7, %s5
  // Predicated region
  $region2: #{generator_forward.9} parent=0 // pred_check
    _
  $region3: #{generator_forward.9} parent=0 // pred_check_branch
    %10 = sbr.rel (0) target = $region5
  $region4: #{generator_forward.9} parent=0 // pred_region
    _
  $region5: #{generator_forward.9} parent=0 // pred_fallthru
    _
  // Predicated region
  $region6: #{generator_forward.9} parent=0 // pred_check
    _
  $region7: #{generator_forward.9} parent=0 // pred_check_branch
    %12 = sbr.rel (0) target = $region9
  $region8: #{generator_forward.9} parent=0 // pred_region
    _
  $region9: #{generator_forward.9} parent=0 // pred_fallthru
    _
  // Predicated region
  $region10: #{generator_forward.9} parent=0 // pred_check
    _
  $region11: #{generator_forward.9} parent=0 // pred_check_branch
    %14 = sbr.rel (0) target = $region13
  $region12: #{generator_forward.9} parent=0 // pred_region
    _
  $region13: #{generator_forward.9} parent=0 // pred_fallthru
    _
  // Predicated region
  $region14: #{generator_forward.9} parent=0 // pred_check
    _
  $region15: #{generator_forward.9} parent=0 // pred_check_branch
    %16 = sbr.rel (0) target = $region17
  $region16: #{generator_forward.9} parent=0 // pred_region
    _
  $region17: #{generator_forward.9} parent=0 // pred_fallthru
    _
  %v17 = vld [vmem:[%s0] sm:$0xff]
  %v18 = vld [vmem:[%s0 + $0x8] sm:$0xff]
  %v19 = vld [vmem:[%s0 + $0x10] sm:$0xff]
  %v20 = vld [vmem:[%s0 + $0x18] sm:$0xff]
  %v21 = vld [vmem:[%s1] sm:$0xff]
  %v22 = vld [vmem:[%s1 + $0x8] sm:$0xff]
  %v23 = vld [vmem:[%s1 + $0x10] sm:$0xff]
  %v24 = vld [vmem:[%s1 + $0x18] sm:$0xff]
  %v25 = vld [vmem:[%s1 + $0x20] sm:$0xff]
  %v26 = vld [vmem:[%s1 + $0x28] sm:$0xff]
  %v27 = vld [vmem:[%s1 + $0x30] sm:$0xff]
  %v28 = vld [vmem:[%s1 + $0x38] sm:$0xff]
  %v29 = vld [vmem:[%s1 + $0x40] sm:$0xff]
  %v30 = vld [vmem:[%s1 + $0x48] sm:$0xff]
  %v31 = vld [vmem:[%s1 + $0x50] sm:$0xff]
  %v32 = vld [vmem:[%s1 + $0x58] sm:$0xff]
  %v33 = vld [vmem:[%s1 + $0x60] sm:$0xff]
  %v34 = vld [vmem:[%s1 + $0x68] sm:$0xff]
  %v35 = vld [vmem:[%s1 + $0x70] sm:$0xff]
  %v36 = vld [vmem:[%s1 + $0x78] sm:$0xff]
  %v37 = vld [vmem:[%s1 + $0x80] sm:$0xff]
  %v38 = vld [vmem:[%s1 + $0x88] sm:$0xff]
  %v39 = vld [vmem:[%s1 + $0x90] sm:$0xff]
  %v40 = vld [vmem:[%s1 + $0x98] sm:$0xff]
  %v41 = vld [vmem:[%s1 + $0xa0] sm:$0xff]
  %v42 = vld [vmem:[%s1 + $0xa8] sm:$0xff]
  %v43 = vld [vmem:[%s1 + $0xb0] sm:$0xff]
  %v44 = vld [vmem:[%s1 + $0xb8] sm:$0xff]
  %v45 = vld [vmem:[%s1 + $0xc0] sm:$0xff]
  %v46 = vld [vmem:[%s1 + $0xc8] sm:$0xff]
  %v47 = vld [vmem:[%s1 + $0xd0] sm:$0xff]
  %v48 = vld [vmem:[%s1 + $0xd8] sm:$0xff]
  %v49 = vld [vmem:[%s1 + $0xe0] sm:$0xff]
  %v50 = vld [vmem:[%s1 + $0xe8] sm:$0xff]
  %v51 = vld [vmem:[%s1 + $0xf0] sm:$0xff]
  %v52 = vld [vmem:[%s1 + $0xf8] sm:$0xff]
  %v53 = vld [vmem:[%s1 + $0x100] sm:$0xff]
  %v54 = vld [vmem:[%s1 + $0x108] sm:$0xff]
  %v55 = vld [vmem:[%s1 + $0x110] sm:$0xff]
  %v56 = vld [vmem:[%s1 + $0x118] sm:$0xff]
  %v57 = vld [vmem:[%s1 + $0x120] sm:$0xff]
  %v58 = vld [vmem:[%s1 + $0x128] sm:$0xff]
  %v59 = vld [vmem:[%s1 + $0x130] sm:$0xff]
  %v60 = vld [vmem:[%s1 + $0x138] sm:$0xff]
  %v61 = vld [vmem:[%s1 + $0x140] sm:$0xff]
  %v62 = vld [vmem:[%s1 + $0x148] sm:$0xff]
  %v63 = vld [vmem:[%s1 + $0x150] sm:$0xff]
  %v64 = vld [vmem:[%s1 + $0x158] sm:$0xff]
  %v65 = vld [vmem:[%s1 + $0x160] sm:$0xff]
  %v66 = vld [vmem:[%s1 + $0x168] sm:$0xff]
  %v67 = vld [vmem:[%s1 + $0x170] sm:$0xff]
  %v68 = vld [vmem:[%s1 + $0x178] sm:$0xff]
  %v69 = vld [vmem:[%s1 + $0x180] sm:$0xff]
  %v70 = vld [vmem:[%s1 + $0x188] sm:$0xff]
  %v71 = vld [vmem:[%s1 + $0x190] sm:$0xff]
  %v72 = vld [vmem:[%s1 + $0x198] sm:$0xff]
  %v73 = vld [vmem:[%s1 + $0x1a0] sm:$0xff]
  %v74 = vld [vmem:[%s1 + $0x1a8] sm:$0xff]
  %v75 = vld [vmem:[%s1 + $0x1b0] sm:$0xff]
  %v76 = vld [vmem:[%s1 + $0x1b8] sm:$0xff]
  %v77 = vld [vmem:[%s1 + $0x1c0] sm:$0xff]
  %v78 = vld [vmem:[%s1 + $0x1c8] sm:$0xff]
  %v79 = vld [vmem:[%s1 + $0x1d0] sm:$0xff]
  %v80 = vld [vmem:[%s1 + $0x1d8] sm:$0xff]
  %v81 = vld [vmem:[%s1 + $0x1e0] sm:$0xff]
  %v82 = vld [vmem:[%s1 + $0x1e8] sm:$0xff]
  %v83 = vld [vmem:[%s1 + $0x1f0] sm:$0xff]
  %v84 = vld [vmem:[%s1 + $0x1f8] sm:$0xff]
  %v85 = vld [vmem:[%s1 + $0x200] sm:$0xff]
  %v86 = vld [vmem:[%s1 + $0x208] sm:$0xff]
  %v87 = vld [vmem:[%s1 + $0x210] sm:$0xff]
  %v88 = vld [vmem:[%s1 + $0x218] sm:$0xff]
  %v89 = vld [vmem:[%s1 + $0x220] sm:$0xff]
  %v90 = vld [vmem:[%s1 + $0x228] sm:$0xff]
  %v91 = vld [vmem:[%s1 + $0x230] sm:$0xff]
  %v92 = vld [vmem:[%s1 + $0x238] sm:$0xff]
  %v93 = vld [vmem:[%s1 + $0x240] sm:$0xff]
  %v94 = vld [vmem:[%s1 + $0x248] sm:$0xff]
  %v95 = vld [vmem:[%s1 + $0x250] sm:$0xff]
  %v96 = vld [vmem:[%s1 + $0x258] sm:$0xff]
  %v97 = vld [vmem:[%s1 + $0x260] sm:$0xff]
  %v98 = vld [vmem:[%s1 + $0x268] sm:$0xff]
  %v99 = vld [vmem:[%s1 + $0x270] sm:$0xff]
  %v100 = vld [vmem:[%s1 + $0x278] sm:$0xff]
  %v101 = vld [vmem:[%s1 + $0x280] sm:$0xff]
  %v102 = vld [vmem:[%s1 + $0x288] sm:$0xff]
  %v103 = vld [vmem:[%s1 + $0x290] sm:$0xff]
  %v104 = vld [vmem:[%s1 + $0x298] sm:$0xff]
  %v105 = vld [vmem:[%s1 + $0x2a0] sm:$0xff]
  %v106 = vld [vmem:[%s1 + $0x2a8] sm:$0xff]
  %v107 = vld [vmem:[%s1 + $0x2b0] sm:$0xff]
  %v108 = vld [vmem:[%s1 + $0x2b8] sm:$0xff]
  %v109 = vld [vmem:[%s1 + $0x2c0] sm:$0xff]
  %v110 = vld [vmem:[%s1 + $0x2c8] sm:$0xff]
  %v111 = vld [vmem:[%s1 + $0x2d0] sm:$0xff]
  %v112 = vld [vmem:[%s1 + $0x2d8] sm:$0xff]
  %v113 = vld [vmem:[%s1 + $0x2e0] sm:$0xff]
  %v114 = vld [vmem:[%s1 + $0x2e8] sm:$0xff]
  %v115 = vld [vmem:[%s1 + $0x2f0] sm:$0xff]
  %v116 = vld [vmem:[%s1 + $0x2f8] sm:$0xff]
  %v117 = vld [vmem:[%s1 + $0x300] sm:$0xff]
  %v118 = vld [vmem:[%s1 + $0x308] sm:$0xff]
  %v119 = vld [vmem:[%s1 + $0x310] sm:$0xff]
  %v120 = vld [vmem:[%s1 + $0x318] sm:$0xff]
  %v121 = vld [vmem:[%s1 + $0x320] sm:$0xff]
  %v122 = vld [vmem:[%s1 + $0x328] sm:$0xff]
  %v123 = vld [vmem:[%s1 + $0x330] sm:$0xff]
  %v124 = vld [vmem:[%s1 + $0x338] sm:$0xff]
  %v125 = vld [vmem:[%s1 + $0x340] sm:$0xff]
  %v126 = vld [vmem:[%s1 + $0x348] sm:$0xff]
  %v127 = vld [vmem:[%s1 + $0x350] sm:$0xff]
  %v128 = vld [vmem:[%s1 + $0x358] sm:$0xff]
  %v129 = vld [vmem:[%s1 + $0x360] sm:$0xff]
  %v130 = vld [vmem:[%s1 + $0x368] sm:$0xff]
  %v131 = vld [vmem:[%s1 + $0x370] sm:$0xff]
  %v132 = vld [vmem:[%s1 + $0x378] sm:$0xff]
  %v133 = vld [vmem:[%s1 + $0x380] sm:$0xff]
  %v134 = vld [vmem:[%s1 + $0x388] sm:$0xff]
  %v135 = vld [vmem:[%s1 + $0x390] sm:$0xff]
  %v136 = vld [vmem:[%s1 + $0x398] sm:$0xff]
  %v137 = vld [vmem:[%s1 + $0x3a0] sm:$0xff]
  %v138 = vld [vmem:[%s1 + $0x3a8] sm:$0xff]
  %v139 = vld [vmem:[%s1 + $0x3b0] sm:$0xff]
  %v140 = vld [vmem:[%s1 + $0x3b8] sm:$0xff]
  %v141 = vld [vmem:[%s1 + $0x3c0] sm:$0xff]
  %v142 = vld [vmem:[%s1 + $0x3c8] sm:$0xff]
  %v143 = vld [vmem:[%s1 + $0x3d0] sm:$0xff]
  %v144 = vld [vmem:[%s1 + $0x3d8] sm:$0xff]
  %v145 = vld [vmem:[%s1 + $0x3e0] sm:$0xff]
  %v146 = vld [vmem:[%s1 + $0x3e8] sm:$0xff]
  %v147 = vld [vmem:[%s1 + $0x3f0] sm:$0xff]
  %v148 = vld [vmem:[%s1 + $0x3f8] sm:$0xff]
  %v149 = vld [vmem:[%s1 + $0x400] sm:$0xff]
  %v150 = vld [vmem:[%s1 + $0x408] sm:$0xff]
  %v151 = vld [vmem:[%s1 + $0x410] sm:$0xff]
  %v152 = vld [vmem:[%s1 + $0x418] sm:$0xff]
  %v153 = vld [vmem:[%s1 + $0x420] sm:$0xff]
  %v154 = vld [vmem:[%s1 + $0x428] sm:$0xff]
  %v155 = vld [vmem:[%s1 + $0x430] sm:$0xff]
  %v156 = vld [vmem:[%s1 + $0x438] sm:$0xff]
  %v157 = vld [vmem:[%s1 + $0x440] sm:$0xff]
  %v158 = vld [vmem:[%s1 + $0x448] sm:$0xff]
  %v159 = vld [vmem:[%s1 + $0x450] sm:$0xff]
  %v160 = vld [vmem:[%s1 + $0x458] sm:$0xff]
  %v161 = vld [vmem:[%s1 + $0x460] sm:$0xff]
  %v162 = vld [vmem:[%s1 + $0x468] sm:$0xff]
  %v163 = vld [vmem:[%s1 + $0x470] sm:$0xff]
  %v164 = vld [vmem:[%s1 + $0x478] sm:$0xff]
  %vm165 = vcmask 588800
  %v167 = vsel %vm165, %v17, 0
  %v170 = vsel %vm165, %v18, 0
  %v173 = vsel %vm165, %v19, 0
  %v176 = vsel %vm165, %v20, 0
  %178 = vmatprep.subr.mxu0 %v22
  %179 = vmatpush1.msra.mxu0 %v21
  %180 = vmatprep.subr.mxu0 %v38
  %181 = vmatpush1.msra.mxu0 %v37
  %182 = vmatprep.subr.mxu0 %v54
  %183 = vmatpush1.msra.mxu0 %v53
  %184 = vmatprep.subr.mxu0 %v70
  %185 = vmatpush1.msra.mxu0 %v69
  %186 = vmatprep.subr.mxu0 %v86
  %187 = vmatpush1.msra.mxu0 %v85
  %188 = vmatprep.subr.mxu0 %v102
  %189 = vmatpush1.msra.mxu0 %v101
  %190 = vmatprep.subr.mxu0 %v118
  %191 = vmatpush1.msra.mxu0 %v117
  %192 = vmatprep.subr.mxu0 %v134
  %193 = vmatpush1.msra.mxu0 %v133
  %194 = vmatprep.subr.mxu0 %v150
  %195 = vmatpush1.msra.mxu0 %v149
  %196 = vmatprep.subr.mxu0 0.0
  %197 = vmatpush1.msra.mxu0 0.0
  %198 = vmatprep.subr.mxu0 0.0
  %199 = vmatpush1.msra.mxu0 0.0
  %200 = vmatprep.subr.mxu0 0.0
  %201 = vmatpush1.msra.mxu0 0.0
  %202 = vmatprep.subr.mxu0 0.0
  %203 = vmatpush1.msra.mxu0 0.0
  %204 = vmatprep.subr.mxu0 0.0
  %205 = vmatpush1.msra.mxu0 0.0
  %206 = vmatprep.subr.mxu0 0.0
  %207 = vmatpush1.msra.mxu0 0.0
  %208 = vmatprep.subr.mxu0 0.0
  %209 = vmatpush1.msra.mxu0 0.0
  %210 = vmatprep.subr.mxu0 0.0
  %211 = vmatpush1.msra.mxu0 0.0
  %212 = vmatprep.subr.mxu0 0.0
  %213 = vmatpush1.msra.mxu0 0.0
  %214 = vmatprep.subr.mxu0 0.0
  %215 = vmatpush1.msra.mxu0 0.0
  %216 = vmatprep.subr.mxu0 0.0
  %217 = vmatpush1.msra.mxu0 0.0
  %218 = vmatprep.subr.mxu0 0.0
  %219 = vmatpush1.msra.mxu0 0.0
  %220 = vmatprep.subr.mxu0 0.0
  %221 = vmatpush1.msra.mxu0 0.0
  %222 = vmatprep.subr.mxu0 0.0
  %223 = vmatpush1.msra.mxu0 0.0
  %224 = vmatprep.subr.mxu0 0.0
  %225 = vmatpush1.msra.mxu0 0.0
  %226 = vmatprep.subr.mxu0 0.0
  %227 = vmatpush1.msra.mxu0 0.0
  %228 = vmatprep.subr.mxu0 0.0
  %229 = vmatpush1.msra.mxu0 0.0
  %230 = vmatprep.subr.mxu0 0.0
  %231 = vmatpush1.msra.mxu0 0.0
  %232 = vmatprep.subr.mxu0 0.0
  %233 = vmatpush1.msra.mxu0 0.0
  %234 = vmatprep.subr.mxu0 0.0
  %235 = vmatpush1.msra.mxu0 0.0
  %236 = vmatprep.subr.mxu0 0.0
  %237 = vmatpush1.msra.mxu0 0.0
  %238 = vmatprep.subr.mxu0 0.0
  %239 = vmatpush1.msra.mxu0 0.0
  %240 = vmatprep.subr.mxu0 0.0
  %241 = vmatpush1.msra.mxu0 0.0
  %242 = vmatprep.mubr.f32.mxu0 0.0
  %243 = vmatmul.mubr.f32.gmra.mrb[0].mxu0 %v167
  %v244 = vpop.f32.mrb[0].mxu0
  %v245 = vadd.f32 0.0, %v244
  %v246 = vpop.f32.mrb[0].mxu0
  %v247 = vadd.f32 0.0, %v246
  %248 = vmatprep.mubr.f32.mxu0 0.0
  %249 = vmatmul.mubr.f32.gmra.mrb[0].mxu0 %v170
  %v250 = vpop.f32.mrb[0].mxu0
  %v251 = vadd.f32 0.0, %v250
  %v252 = vpop.f32.mrb[0].mxu0
  %v253 = vadd.f32 0.0, %v252
  %254 = vmatprep.mubr.f32.mxu0 0.0
  %255 = vmatmul.mubr.f32.gmra.mrb[0].mxu0 %v173
  %v256 = vpop.f32.mrb[0].mxu0
  %v257 = vadd.f32 0.0, %v256
  %v258 = vpop.f32.mrb[0].mxu0
  %v259 = vadd.f32 0.0, %v258
  %260 = vmatprep.mubr.f32.mxu0 0.0
  %261 = vmatmul.mubr.f32.gmra.mrb[0].mxu0 %v176
  %v262 = vpop.f32.mrb[0].mxu0
  %v263 = vadd.f32 0.0, %v262
  %v264 = vpop.f32.mrb[0].mxu0
  %v265 = vadd.f32 0.0, %v264
  %266 = vdwg.mxu0
  %267 = vmatprep.subr.mxu0 %v24
  %268 = vmatpush1.msra.mxu0 %v23
  %269 = vmatprep.subr.mxu0 %v40
  %270 = vmatpush1.msra.mxu0 %v39
  %271 = vmatprep.subr.mxu0 %v56
  %272 = vmatpush1.msra.mxu0 %v55
  %273 = vmatprep.subr.mxu0 %v72
  %274 = vmatpush1.msra.mxu0 %v71
  %275 = vmatprep.subr.mxu0 %v88
  %276 = vmatpush1.msra.mxu0 %v87
  %277 = vmatprep.subr.mxu0 %v104
  %278 = vmatpush1.msra.mxu0 %v103
  %279 = vmatprep.subr.mxu0 %v120
  %280 = vmatpush1.msra.mxu0 %v119
  %281 = vmatprep.subr.mxu0 %v136
  %282 = vmatpush1.msra.mxu0 %v135
  %283 = vmatprep.subr.mxu0 %v152
  %284 = vmatpush1.msra.mxu0 %v151
  %285 = vmatprep.subr.mxu0 0.0
  %286 = vmatpush1.msra.mxu0 0.0
  %287 = vmatprep.subr.mxu0 0.0
  %288 = vmatpush1.msra.mxu0 0.0
  %289 = vmatprep.subr.mxu0 0.0
  %290 = vmatpush1.msra.mxu0 0.0
  %291 = vmatprep.subr.mxu0 0.0
  %292 = vmatpush1.msra.mxu0 0.0
  %293 = vmatprep.subr.mxu0 0.0
  %294 = vmatpush1.msra.mxu0 0.0
  %295 = vmatprep.subr.mxu0 0.0
  %296 = vmatpush1.msra.mxu0 0.0
  %297 = vmatprep.subr.mxu0 0.0
  %298 = vmatpush1.msra.mxu0 0.0
  %299 = vmatprep.subr.mxu0 0.0
  %300 = vmatpush1.msra.mxu0 0.0
  %301 = vmatprep.subr.mxu0 0.0
  %302 = vmatpush1.msra.mxu0 0.0
  %303 = vmatprep.subr.mxu0 0.0
  %304 = vmatpush1.msra.mxu0 0.0
  %305 = vmatprep.subr.mxu0 0.0
  %306 = vmatpush1.msra.mxu0 0.0
  %307 = vmatprep.subr.mxu0 0.0
  %308 = vmatpush1.msra.mxu0 0.0
  %309 = vmatprep.subr.mxu0 0.0
  %310 = vmatpush1.msra.mxu0 0.0
  %311 = vmatprep.subr.mxu0 0.0
  %312 = vmatpush1.msra.mxu0 0.0
  %313 = vmatprep.subr.mxu0 0.0
  %314 = vmatpush1.msra.mxu0 0.0
  %315 = vmatprep.subr.mxu0 0.0
  %316 = vmatpush1.msra.mxu0 0.0
  %317 = vmatprep.subr.mxu0 0.0
  %318 = vmatpush1.msra.mxu0 0.0
  %319 = vmatprep.subr.mxu0 0.0
  %320 = vmatpush1.msra.mxu0 0.0
  %321 = vmatprep.subr.mxu0 0.0
  %322 = vmatpush1.msra.mxu0 0.0
  %323 = vmatprep.subr.mxu0 0.0
  %324 = vmatpush1.msra.mxu0 0.0
  %325 = vmatprep.subr.mxu0 0.0
  %326 = vmatpush1.msra.mxu0 0.0
  %327 = vmatprep.subr.mxu0 0.0
  %328 = vmatpush1.msra.mxu0 0.0
  %329 = vmatprep.subr.mxu0 0.0
  %330 = vmatpush1.msra.mxu0 0.0
  %331 = vmatprep.mubr.f32.mxu0 0.0
  %332 = vmatmul.mubr.f32.gmra.mrb[0].mxu0 %v167
  %v333 = vpop.f32.mrb[0].mxu0
  %v334 = vadd.f32 0.0, %v333
  %v335 = vpop.f32.mrb[0].mxu0
  %v336 = vadd.f32 0.0, %v335
  %337 = vmatprep.mubr.f32.mxu0 0.0
  %338 = vmatmul.mubr.f32.gmra.mrb[0].mxu0 %v170
  %v339 = vpop.f32.mrb[0].mxu0
  %v340 = vadd.f32 0.0, %v339
  %v341 = vpop.f32.mrb[0].mxu0
  %v342 = vadd.f32 0.0, %v341
  %343 = vmatprep.mubr.f32.mxu0 0.0
  %344 = vmatmul.mubr.f32.gmra.mrb[0].mxu0 %v173
  %v345 = vpop.f32.mrb[0].mxu0
  %v346 = vadd.f32 0.0, %v345
  %v347 = vpop.f32.mrb[0].mxu0
  %v348 = vadd.f32 0.0, %v347
  %349 = vmatprep.mubr.f32.mxu0 0.0
  %350 = vmatmul.mubr.f32.gmra.mrb[0].mxu0 %v176
  %v351 = vpop.f32.mrb[0].mxu0
  %v352 = vadd.f32 0.0, %v351
  %v353 = vpop.f32.mrb[0].mxu0
  %v354 = vadd.f32 0.0, %v353
  %355 = vdwg.mxu0
  %356 = vmatprep.subr.mxu0 %v26
  %357 = vmatpush1.msra.mxu0 %v25
  %358 = vmatprep.subr.mxu0 %v42
  %359 = vmatpush1.msra.mxu0 %v41
  %360 = vmatprep.subr.mxu0 %v58
  %361 = vmatpush1.msra.mxu0 %v57
  %362 = vmatprep.subr.mxu0 %v74
  %363 = vmatpush1.msra.mxu0 %v73
  %364 = vmatprep.subr.mxu0 %v90
  %365 = vmatpush1.msra.mxu0 %v89
  %366 = vmatprep.subr.mxu0 %v106
  %367 = vmatpush1.msra.mxu0 %v105
  %368 = vmatprep.subr.mxu0 %v122
  %369 = vmatpush1.msra.mxu0 %v121
  %370 = vmatprep.subr.mxu0 %v138
  %371 = vmatpush1.msra.mxu0 %v137
  %372 = vmatprep.subr.mxu0 %v154
  %373 = vmatpush1.msra.mxu0 %v153
  %374 = vmatprep.subr.mxu0 0.0
  %375 = vmatpush1.msra.mxu0 0.0
  %376 = vmatprep.subr.mxu0 0.0
  %377 = vmatpush1.msra.mxu0 0.0
  %378 = vmatprep.subr.mxu0 0.0
  %379 = vmatpush1.msra.mxu0 0.0
  %380 = vmatprep.subr.mxu0 0.0
  %381 = vmatpush1.msra.mxu0 0.0
  %382 = vmatprep.subr.mxu0 0.0
  %383 = vmatpush1.msra.mxu0 0.0
  %384 = vmatprep.subr.mxu0 0.0
  %385 = vmatpush1.msra.mxu0 0.0
  %386 = vmatprep.subr.mxu0 0.0
  %387 = vmatpush1.msra.mxu0 0.0
  %388 = vmatprep.subr.mxu0 0.0
  %389 = vmatpush1.msra.mxu0 0.0
  %390 = vmatprep.subr.mxu0 0.0
  %391 = vmatpush1.msra.mxu0 0.0
  %392 = vmatprep.subr.mxu0 0.0
  %393 = vmatpush1.msra.mxu0 0.0
  %394 = vmatprep.subr.mxu0 0.0
  %395 = vmatpush1.msra.mxu0 0.0
  %396 = vmatprep.subr.mxu0 0.0
  %397 = vmatpush1.msra.mxu0 0.0
  %398 = vmatprep.subr.mxu0 0.0
  %399 = vmatpush1.msra.mxu0 0.0
  %400 = vmatprep.subr.mxu0 0.0
  %401 = vmatpush1.msra.mxu0 0.0
  %402 = vmatprep.subr.mxu0 0.0
  %403 = vmatpush1.msra.mxu0 0.0
  %404 = vmatprep.subr.mxu0 0.0
  %405 = vmatpush1.msra.mxu0 0.0
  %406 = vmatprep.subr.mxu0 0.0
  %407 = vmatpush1.msra.mxu0 0.0
  %408 = vmatprep.subr.mxu0 0.0
  %409 = vmatpush1.msra.mxu0 0.0
  %410 = vmatprep.subr.mxu0 0.0
  %411 = vmatpush1.msra.mxu0 0.0
  %412 = vmatprep.subr.mxu0 0.0
  %413 = vmatpush1.msra.mxu0 0.0
  %414 = vmatprep.subr.mxu0 0.0
  %415 = vmatpush1.msra.mxu0 0.0
  %416 = vmatprep.subr.mxu0 0.0
  %417 = vmatpush1.msra.mxu0 0.0
  %418 = vmatprep.subr.mxu0 0.0
  %419 = vmatpush1.msra.mxu0 0.0
  %420 = vmatprep.mubr.f32.mxu0 0.0
  %421 = vmatmul.mubr.f32.gmra.mrb[0].mxu0 %v167
  %v422 = vpop.f32.mrb[0].mxu0
  %v423 = vadd.f32 0.0, %v422
  %v424 = vpop.f32.mrb[0].mxu0
  %v425 = vadd.f32 0.0, %v424
  %426 = vmatprep.mubr.f32.mxu0 0.0
  %427 = vmatmul.mubr.f32.gmra.mrb[0].mxu0 %v170
  %v428 = vpop.f32.mrb[0].mxu0
  %v429 = vadd.f32 0.0, %v428
  %v430 = vpop.f32.mrb[0].mxu0
  %v431 = vadd.f32 0.0, %v430
  %432 = vmatprep.mubr.f32.mxu0 0.0
  %433 = vmatmul.mubr.f32.gmra.mrb[0].mxu0 %v173
  %v434 = vpop.f32.mrb[0].mxu0
  %v435 = vadd.f32 0.0, %v434
  %v436 = vpop.f32.mrb[0].mxu0
  %v437 = vadd.f32 0.0, %v436
  %438 = vmatprep.mubr.f32.mxu0 0.0
  %439 = vmatmul.mubr.f32.gmra.mrb[0].mxu0 %v176
  %v440 = vpop.f32.mrb[0].mxu0
  %v441 = vadd.f32 0.0, %v440
  %v442 = vpop.f32.mrb[0].mxu0
  %v443 = vadd.f32 0.0, %v442
  %444 = vdwg.mxu0
  %445 = vmatprep.subr.mxu0 %v28
  %446 = vmatpush1.msra.mxu0 %v27
  %447 = vmatprep.subr.mxu0 %v44
  %448 = vmatpush1.msra.mxu0 %v43
  %449 = vmatprep.subr.mxu0 %v60
  %450 = vmatpush1.msra.mxu0 %v59
  %451 = vmatprep.subr.mxu0 %v76
  %452 = vmatpush1.msra.mxu0 %v75
  %453 = vmatprep.subr.mxu0 %v92
  %454 = vmatpush1.msra.mxu0 %v91
  %455 = vmatprep.subr.mxu0 %v108
  %456 = vmatpush1.msra.mxu0 %v107
  %457 = vmatprep.subr.mxu0 %v124
  %458 = vmatpush1.msra.mxu0 %v123
  %459 = vmatprep.subr.mxu0 %v140
  %460 = vmatpush1.msra.mxu0 %v139
  %461 = vmatprep.subr.mxu0 %v156
  %462 = vmatpush1.msra.mxu0 %v155
  %463 = vmatprep.subr.mxu0 0.0
  %464 = vmatpush1.msra.mxu0 0.0
  %465 = vmatprep.subr.mxu0 0.0
  %466 = vmatpush1.msra.mxu0 0.0
  %467 = vmatprep.subr.mxu0 0.0
  %468 = vmatpush1.msra.mxu0 0.0
  %469 = vmatprep.subr.mxu0 0.0
  %470 = vmatpush1.msra.mxu0 0.0
  %471 = vmatprep.subr.mxu0 0.0
  %472 = vmatpush1.msra.mxu0 0.0
  %473 = vmatprep.subr.mxu0 0.0
  %474 = vmatpush1.msra.mxu0 0.0
  %475 = vmatprep.subr.mxu0 0.0
  %476 = vmatpush1.msra.mxu0 0.0
  %477 = vmatprep.subr.mxu0 0.0
  %478 = vmatpush1.msra.mxu0 0.0
  %479 = vmatprep.subr.mxu0 0.0
  %480 = vmatpush1.msra.mxu0 0.0
  %481 = vmatprep.subr.mxu0 0.0
  %482 = vmatpush1.msra.mxu0 0.0
  %483 = vmatprep.subr.mxu0 0.0
  %484 = vmatpush1.msra.mxu0 0.0
  %485 = vmatprep.subr.mxu0 0.0
  %486 = vmatpush1.msra.mxu0 0.0
  %487 = vmatprep.subr.mxu0 0.0
  %488 = vmatpush1.msra.mxu0 0.0
  %489 = vmatprep.subr.mxu0 0.0
  %490 = vmatpush1.msra.mxu0 0.0
  %491 = vmatprep.subr.mxu0 0.0
  %492 = vmatpush1.msra.mxu0 0.0
  %493 = vmatprep.subr.mxu0 0.0
  %494 = vmatpush1.msra.mxu0 0.0
  %495 = vmatprep.subr.mxu0 0.0
  %496 = vmatpush1.msra.mxu0 0.0
  %497 = vmatprep.subr.mxu0 0.0
  %498 = vmatpush1.msra.mxu0 0.0
  %499 = vmatprep.subr.mxu0 0.0
  %500 = vmatpush1.msra.mxu0 0.0
  %501 = vmatprep.subr.mxu0 0.0
  %502 = vmatpush1.msra.mxu0 0.0
  %503 = vmatprep.subr.mxu0 0.0
  %504 = vmatpush1.msra.mxu0 0.0
  %505 = vmatprep.subr.mxu0 0.0
  %506 = vmatpush1.msra.mxu0 0.0
  %507 = vmatprep.subr.mxu0 0.0
  %508 = vmatpush1.msra.mxu0 0.0
  %509 = vmatprep.mubr.f32.mxu0 0.0
  %510 = vmatmul.mubr.f32.gmra.mrb[0].mxu0 %v167
  %v511 = vpop.f32.mrb[0].mxu0
  %v512 = vadd.f32 0.0, %v511
  %v513 = vpop.f32.mrb[0].mxu0
  %v514 = vadd.f32 0.0, %v513
  %515 = vmatprep.mubr.f32.mxu0 0.0
  %516 = vmatmul.mubr.f32.gmra.mrb[0].mxu0 %v170
  %v517 = vpop.f32.mrb[0].mxu0
  %v518 = vadd.f32 0.0, %v517
  %v519 = vpop.f32.mrb[0].mxu0
  %v520 = vadd.f32 0.0, %v519
  %521 = vmatprep.mubr.f32.mxu0 0.0
  %522 = vmatmul.mubr.f32.gmra.mrb[0].mxu0 %v173
  %v523 = vpop.f32.mrb[0].mxu0
  %v524 = vadd.f32 0.0, %v523
  %v525 = vpop.f32.mrb[0].mxu0
  %v526 = vadd.f32 0.0, %v525
  %527 = vmatprep.mubr.f32.mxu0 0.0
  %528 = vmatmul.mubr.f32.gmra.mrb[0].mxu0 %v176
  %v529 = vpop.f32.mrb[0].mxu0
  %v530 = vadd.f32 0.0, %v529
  %v531 = vpop.f32.mrb[0].mxu0
  %v532 = vadd.f32 0.0, %v531
  %533 = vdwg.mxu0
  %534 = vmatprep.subr.mxu0 %v30
  %535 = vmatpush1.msra.mxu0 %v29
  %536 = vmatprep.subr.mxu0 %v46
  %537 = vmatpush1.msra.mxu0 %v45
  %538 = vmatprep.subr.mxu0 %v62
  %539 = vmatpush1.msra.mxu0 %v61
  %540 = vmatprep.subr.mxu0 %v78
  %541 = vmatpush1.msra.mxu0 %v77
  %542 = vmatprep.subr.mxu0 %v94
  %543 = vmatpush1.msra.mxu0 %v93
  %544 = vmatprep.subr.mxu0 %v110
  %545 = vmatpush1.msra.mxu0 %v109
  %546 = vmatprep.subr.mxu0 %v126
  %547 = vmatpush1.msra.mxu0 %v125
  %548 = vmatprep.subr.mxu0 %v142
  %549 = vmatpush1.msra.mxu0 %v141
  %550 = vmatprep.subr.mxu0 %v158
  %551 = vmatpush1.msra.mxu0 %v157
  %552 = vmatprep.subr.mxu0 0.0
  %553 = vmatpush1.msra.mxu0 0.0
  %554 = vmatprep.subr.mxu0 0.0
  %555 = vmatpush1.msra.mxu0 0.0
  %556 = vmatprep.subr.mxu0 0.0
  %557 = vmatpush1.msra.mxu0 0.0
  %558 = vmatprep.subr.mxu0 0.0
  %559 = vmatpush1.msra.mxu0 0.0
  %560 = vmatprep.subr.mxu0 0.0
  %561 = vmatpush1.msra.mxu0 0.0
  %562 = vmatprep.subr.mxu0 0.0
  %563 = vmatpush1.msra.mxu0 0.0
  %564 = vmatprep.subr.mxu0 0.0
  %565 = vmatpush1.msra.mxu0 0.0
  %566 = vmatprep.subr.mxu0 0.0
  %567 = vmatpush1.msra.mxu0 0.0
  %568 = vmatprep.subr.mxu0 0.0
  %569 = vmatpush1.msra.mxu0 0.0
  %570 = vmatprep.subr.mxu0 0.0
  %571 = vmatpush1.msra.mxu0 0.0
  %572 = vmatprep.subr.mxu0 0.0
  %573 = vmatpush1.msra.mxu0 0.0
  %574 = vmatprep.subr.mxu0 0.0
  %575 = vmatpush1.msra.mxu0 0.0
  %576 = vmatprep.subr.mxu0 0.0
  %577 = vmatpush1.msra.mxu0 0.0
  %578 = vmatprep.subr.mxu0 0.0
  %579 = vmatpush1.msra.mxu0 0.0
  %580 = vmatprep.subr.mxu0 0.0
  %581 = vmatpush1.msra.mxu0 0.0
  %582 = vmatprep.subr.mxu0 0.0
  %583 = vmatpush1.msra.mxu0 0.0
  %584 = vmatprep.subr.mxu0 0.0
  %585 = vmatpush1.msra.mxu0 0.0
  %586 = vmatprep.subr.mxu0 0.0
  %587 = vmatpush1.msra.mxu0 0.0
  %588 = vmatprep.subr.mxu0 0.0
  %589 = vmatpush1.msra.mxu0 0.0
  %590 = vmatprep.subr.mxu0 0.0
  %591 = vmatpush1.msra.mxu0 0.0
  %592 = vmatprep.subr.mxu0 0.0
  %593 = vmatpush1.msra.mxu0 0.0
  %594 = vmatprep.subr.mxu0 0.0
  %595 = vmatpush1.msra.mxu0 0.0
  %596 = vmatprep.subr.mxu0 0.0
  %597 = vmatpush1.msra.mxu0 0.0
  %598 = vmatprep.mubr.f32.mxu0 0.0
  %599 = vmatmul.mubr.f32.gmra.mrb[0].mxu0 %v167
  %v600 = vpop.f32.mrb[0].mxu0
  %v601 = vadd.f32 0.0, %v600
  %v602 = vpop.f32.mrb[0].mxu0
  %v603 = vadd.f32 0.0, %v602
  %604 = vmatprep.mubr.f32.mxu0 0.0
  %605 = vmatmul.mubr.f32.gmra.mrb[0].mxu0 %v170
  %v606 = vpop.f32.mrb[0].mxu0
  %v607 = vadd.f32 0.0, %v606
  %v608 = vpop.f32.mrb[0].mxu0
  %v609 = vadd.f32 0.0, %v608
  %610 = vmatprep.mubr.f32.mxu0 0.0
  %611 = vmatmul.mubr.f32.gmra.mrb[0].mxu0 %v173
  %v612 = vpop.f32.mrb[0].mxu0
  %v613 = vadd.f32 0.0, %v612
  %v614 = vpop.f32.mrb[0].mxu0
  %v615 = vadd.f32 0.0, %v614
  %616 = vmatprep.mubr.f32.mxu0 0.0
  %617 = vmatmul.mubr.f32.gmra.mrb[0].mxu0 %v176
  %v618 = vpop.f32.mrb[0].mxu0
  %v619 = vadd.f32 0.0, %v618
  %v620 = vpop.f32.mrb[0].mxu0
  %v621 = vadd.f32 0.0, %v620
  %622 = vdwg.mxu0
  %623 = vmatprep.subr.mxu0 %v32
  %624 = vmatpush1.msra.mxu0 %v31
  %625 = vmatprep.subr.mxu0 %v48
  %626 = vmatpush1.msra.mxu0 %v47
  %627 = vmatprep.subr.mxu0 %v64
  %628 = vmatpush1.msra.mxu0 %v63
  %629 = vmatprep.subr.mxu0 %v80
  %630 = vmatpush1.msra.mxu0 %v79
  %631 = vmatprep.subr.mxu0 %v96
  %632 = vmatpush1.msra.mxu0 %v95
  %633 = vmatprep.subr.mxu0 %v112
  %634 = vmatpush1.msra.mxu0 %v111
  %635 = vmatprep.subr.mxu0 %v128
  %636 = vmatpush1.msra.mxu0 %v127
  %637 = vmatprep.subr.mxu0 %v144
  %638 = vmatpush1.msra.mxu0 %v143
  %639 = vmatprep.subr.mxu0 %v160
  %640 = vmatpush1.msra.mxu0 %v159
  %641 = vmatprep.subr.mxu0 0.0
  %642 = vmatpush1.msra.mxu0 0.0
  %643 = vmatprep.subr.mxu0 0.0
  %644 = vmatpush1.msra.mxu0 0.0
  %645 = vmatprep.subr.mxu0 0.0
  %646 = vmatpush1.msra.mxu0 0.0
  %647 = vmatprep.subr.mxu0 0.0
  %648 = vmatpush1.msra.mxu0 0.0
  %649 = vmatprep.subr.mxu0 0.0
  %650 = vmatpush1.msra.mxu0 0.0
  %651 = vmatprep.subr.mxu0 0.0
  %652 = vmatpush1.msra.mxu0 0.0
  %653 = vmatprep.subr.mxu0 0.0
  %654 = vmatpush1.msra.mxu0 0.0
  %655 = vmatprep.subr.mxu0 0.0
  %656 = vmatpush1.msra.mxu0 0.0
  %657 = vmatprep.subr.mxu0 0.0
  %658 = vmatpush1.msra.mxu0 0.0
  %659 = vmatprep.subr.mxu0 0.0
  %660 = vmatpush1.msra.mxu0 0.0
  %661 = vmatprep.subr.mxu0 0.0
  %662 = vmatpush1.msra.mxu0 0.0
  %663 = vmatprep.subr.mxu0 0.0
  %664 = vmatpush1.msra.mxu0 0.0
  %665 = vmatprep.subr.mxu0 0.0
  %666 = vmatpush1.msra.mxu0 0.0
  %667 = vmatprep.subr.mxu0 0.0
  %668 = vmatpush1.msra.mxu0 0.0
  %669 = vmatprep.subr.mxu0 0.0
  %670 = vmatpush1.msra.mxu0 0.0
  %671 = vmatprep.subr.mxu0 0.0
  %672 = vmatpush1.msra.mxu0 0.0
  %673 = vmatprep.subr.mxu0 0.0
  %674 = vmatpush1.msra.mxu0 0.0
  %675 = vmatprep.subr.mxu0 0.0
  %676 = vmatpush1.msra.mxu0 0.0
  %677 = vmatprep.subr.mxu0 0.0
  %678 = vmatpush1.msra.mxu0 0.0
  %679 = vmatprep.subr.mxu0 0.0
  %680 = vmatpush1.msra.mxu0 0.0
  %681 = vmatprep.subr.mxu0 0.0
  %682 = vmatpush1.msra.mxu0 0.0
  %683 = vmatprep.subr.mxu0 0.0
  %684 = vmatpush1.msra.mxu0 0.0
  %685 = vmatprep.subr.mxu0 0.0
  %686 = vmatpush1.msra.mxu0 0.0
  %687 = vmatprep.mubr.f32.mxu0 0.0
  %688 = vmatmul.mubr.f32.gmra.mrb[0].mxu0 %v167
  %v689 = vpop.f32.mrb[0].mxu0
  %v690 = vadd.f32 0.0, %v689
  %v691 = vpop.f32.mrb[0].mxu0
  %v692 = vadd.f32 0.0, %v691
  %693 = vmatprep.mubr.f32.mxu0 0.0
  %694 = vmatmul.mubr.f32.gmra.mrb[0].mxu0 %v170
  %v695 = vpop.f32.mrb[0].mxu0
  %v696 = vadd.f32 0.0, %v695
  %v697 = vpop.f32.mrb[0].mxu0
  %v698 = vadd.f32 0.0, %v697
  %699 = vmatprep.mubr.f32.mxu0 0.0
  %700 = vmatmul.mubr.f32.gmra.mrb[0].mxu0 %v173
  %v701 = vpop.f32.mrb[0].mxu0
  %v702 = vadd.f32 0.0, %v701
  %v703 = vpop.f32.mrb[0].mxu0
  %v704 = vadd.f32 0.0, %v703
  %705 = vmatprep.mubr.f32.mxu0 0.0
  %706 = vmatmul.mubr.f32.gmra.mrb[0].mxu0 %v176
  %v707 = vpop.f32.mrb[0].mxu0
  %v708 = vadd.f32 0.0, %v707
  %v709 = vpop.f32.mrb[0].mxu0
  %v710 = vadd.f32 0.0, %v709
  %711 = vdwg.mxu0
  %712 = vmatprep.subr.mxu0 %v34
  %713 = vmatpush1.msra.mxu0 %v33
  %714 = vmatprep.subr.mxu0 %v50
  %715 = vmatpush1.msra.mxu0 %v49
  %716 = vmatprep.subr.mxu0 %v66
  %717 = vmatpush1.msra.mxu0 %v65
  %718 = vmatprep.subr.mxu0 %v82
  %719 = vmatpush1.msra.mxu0 %v81
  %720 = vmatprep.subr.mxu0 %v98
  %721 = vmatpush1.msra.mxu0 %v97
  %722 = vmatprep.subr.mxu0 %v114
  %723 = vmatpush1.msra.mxu0 %v113
  %724 = vmatprep.subr.mxu0 %v130
  %725 = vmatpush1.msra.mxu0 %v129
  %726 = vmatprep.subr.mxu0 %v146
  %727 = vmatpush1.msra.mxu0 %v145
  %728 = vmatprep.subr.mxu0 %v162
  %729 = vmatpush1.msra.mxu0 %v161
  %730 = vmatprep.subr.mxu0 0.0
  %731 = vmatpush1.msra.mxu0 0.0
  %732 = vmatprep.subr.mxu0 0.0
  %733 = vmatpush1.msra.mxu0 0.0
  %734 = vmatprep.subr.mxu0 0.0
  %735 = vmatpush1.msra.mxu0 0.0
  %736 = vmatprep.subr.mxu0 0.0
  %737 = vmatpush1.msra.mxu0 0.0
  %738 = vmatprep.subr.mxu0 0.0
  %739 = vmatpush1.msra.mxu0 0.0
  %740 = vmatprep.subr.mxu0 0.0
  %741 = vmatpush1.msra.mxu0 0.0
  %742 = vmatprep.subr.mxu0 0.0
  %743 = vmatpush1.msra.mxu0 0.0
  %744 = vmatprep.subr.mxu0 0.0
  %745 = vmatpush1.msra.mxu0 0.0
  %746 = vmatprep.subr.mxu0 0.0
  %747 = vmatpush1.msra.mxu0 0.0
  %748 = vmatprep.subr.mxu0 0.0
  %749 = vmatpush1.msra.mxu0 0.0
  %750 = vmatprep.subr.mxu0 0.0
  %751 = vmatpush1.msra.mxu0 0.0
  %752 = vmatprep.subr.mxu0 0.0
  %753 = vmatpush1.msra.mxu0 0.0
  %754 = vmatprep.subr.mxu0 0.0
  %755 = vmatpush1.msra.mxu0 0.0
  %756 = vmatprep.subr.mxu0 0.0
  %757 = vmatpush1.msra.mxu0 0.0
  %758 = vmatprep.subr.mxu0 0.0
  %759 = vmatpush1.msra.mxu0 0.0
  %760 = vmatprep.subr.mxu0 0.0
  %761 = vmatpush1.msra.mxu0 0.0
  %762 = vmatprep.subr.mxu0 0.0
  %763 = vmatpush1.msra.mxu0 0.0
  %764 = vmatprep.subr.mxu0 0.0
  %765 = vmatpush1.msra.mxu0 0.0
  %766 = vmatprep.subr.mxu0 0.0
  %767 = vmatpush1.msra.mxu0 0.0
  %768 = vmatprep.subr.mxu0 0.0
  %769 = vmatpush1.msra.mxu0 0.0
  %770 = vmatprep.subr.mxu0 0.0
  %771 = vmatpush1.msra.mxu0 0.0
  %772 = vmatprep.subr.mxu0 0.0
  %773 = vmatpush1.msra.mxu0 0.0
  %774 = vmatprep.subr.mxu0 0.0
  %775 = vmatpush1.msra.mxu0 0.0
  %776 = vmatprep.mubr.f32.mxu0 0.0
  %777 = vmatmul.mubr.f32.gmra.mrb[0].mxu0 %v167
  %v778 = vpop.f32.mrb[0].mxu0
  %v779 = vadd.f32 0.0, %v778
  %v780 = vpop.f32.mrb[0].mxu0
  %v781 = vadd.f32 0.0, %v780
  %782 = vmatprep.mubr.f32.mxu0 0.0
  %783 = vmatmul.mubr.f32.gmra.mrb[0].mxu0 %v170
  %v784 = vpop.f32.mrb[0].mxu0
  %v785 = vadd.f32 0.0, %v784
  %v786 = vpop.f32.mrb[0].mxu0
  %v787 = vadd.f32 0.0, %v786
  %788 = vmatprep.mubr.f32.mxu0 0.0
  %789 = vmatmul.mubr.f32.gmra.mrb[0].mxu0 %v173
  %v790 = vpop.f32.mrb[0].mxu0
  %v791 = vadd.f32 0.0, %v790
  %v792 = vpop.f32.mrb[0].mxu0
  %v793 = vadd.f32 0.0, %v792
  %794 = vmatprep.mubr.f32.mxu0 0.0
  %795 = vmatmul.mubr.f32.gmra.mrb[0].mxu0 %v176
  %v796 = vpop.f32.mrb[0].mxu0
  %v797 = vadd.f32 0.0, %v796
  %v798 = vpop.f32.mrb[0].mxu0
  %v799 = vadd.f32 0.0, %v798
  %800 = vdwg.mxu0
  %801 = vmatprep.subr.mxu0 %v36
  %802 = vmatpush1.msra.mxu0 %v35
  %803 = vmatprep.subr.mxu0 %v52
  %804 = vmatpush1.msra.mxu0 %v51
  %805 = vmatprep.subr.mxu0 %v68
  %806 = vmatpush1.msra.mxu0 %v67
  %807 = vmatprep.subr.mxu0 %v84
  %808 = vmatpush1.msra.mxu0 %v83
  %809 = vmatprep.subr.mxu0 %v100
  %810 = vmatpush1.msra.mxu0 %v99
  %811 = vmatprep.subr.mxu0 %v116
  %812 = vmatpush1.msra.mxu0 %v115
  %813 = vmatprep.subr.mxu0 %v132
  %814 = vmatpush1.msra.mxu0 %v131
  %815 = vmatprep.subr.mxu0 %v148
  %816 = vmatpush1.msra.mxu0 %v147
  %817 = vmatprep.subr.mxu0 %v164
  %818 = vmatpush1.msra.mxu0 %v163
  %819 = vmatprep.subr.mxu0 0.0
  %820 = vmatpush1.msra.mxu0 0.0
  %821 = vmatprep.subr.mxu0 0.0
  %822 = vmatpush1.msra.mxu0 0.0
  %823 = vmatprep.subr.mxu0 0.0
  %824 = vmatpush1.msra.mxu0 0.0
  %825 = vmatprep.subr.mxu0 0.0
  %826 = vmatpush1.msra.mxu0 0.0
  %827 = vmatprep.subr.mxu0 0.0
  %828 = vmatpush1.msra.mxu0 0.0
  %829 = vmatprep.subr.mxu0 0.0
  %830 = vmatpush1.msra.mxu0 0.0
  %831 = vmatprep.subr.mxu0 0.0
  %832 = vmatpush1.msra.mxu0 0.0
  %833 = vmatprep.subr.mxu0 0.0
  %834 = vmatpush1.msra.mxu0 0.0
  %835 = vmatprep.subr.mxu0 0.0
  %836 = vmatpush1.msra.mxu0 0.0
  %837 = vmatprep.subr.mxu0 0.0
  %838 = vmatpush1.msra.mxu0 0.0
  %839 = vmatprep.subr.mxu0 0.0
  %840 = vmatpush1.msra.mxu0 0.0
  %841 = vmatprep.subr.mxu0 0.0
  %842 = vmatpush1.msra.mxu0 0.0
  %843 = vmatprep.subr.mxu0 0.0
  %844 = vmatpush1.msra.mxu0 0.0
  %845 = vmatprep.subr.mxu0 0.0
  %846 = vmatpush1.msra.mxu0 0.0
  %847 = vmatprep.subr.mxu0 0.0
  %848 = vmatpush1.msra.mxu0 0.0
  %849 = vmatprep.subr.mxu0 0.0
  %850 = vmatpush1.msra.mxu0 0.0
  %851 = vmatprep.subr.mxu0 0.0
  %852 = vmatpush1.msra.mxu0 0.0
  %853 = vmatprep.subr.mxu0 0.0
  %854 = vmatpush1.msra.mxu0 0.0
  %855 = vmatprep.subr.mxu0 0.0
  %856 = vmatpush1.msra.mxu0 0.0
  %857 = vmatprep.subr.mxu0 0.0
  %858 = vmatpush1.msra.mxu0 0.0
  %859 = vmatprep.subr.mxu0 0.0
  %860 = vmatpush1.msra.mxu0 0.0
  %861 = vmatprep.subr.mxu0 0.0
  %862 = vmatpush1.msra.mxu0 0.0
  %863 = vmatprep.subr.mxu0 0.0
  %864 = vmatpush1.msra.mxu0 0.0
  %865 = vmatprep.mubr.f32.mxu0 0.0
  %866 = vmatmul.mubr.f32.gmra.mrb[0].mxu0 %v167
  %v867 = vpop.f32.mrb[0].mxu0
  %v868 = vadd.f32 0.0, %v867
  %v869 = vpop.f32.mrb[0].mxu0
  %v870 = vadd.f32 0.0, %v869
  %871 = vmatprep.mubr.f32.mxu0 0.0
  %872 = vmatmul.mubr.f32.gmra.mrb[0].mxu0 %v170
  %v873 = vpop.f32.mrb[0].mxu0
  %v874 = vadd.f32 0.0, %v873
  %v875 = vpop.f32.mrb[0].mxu0
  %v876 = vadd.f32 0.0, %v875
  %877 = vmatprep.mubr.f32.mxu0 0.0
  %878 = vmatmul.mubr.f32.gmra.mrb[0].mxu0 %v173
  %v879 = vpop.f32.mrb[0].mxu0
  %v880 = vadd.f32 0.0, %v879
  %v881 = vpop.f32.mrb[0].mxu0
  %v882 = vadd.f32 0.0, %v881
  %883 = vmatprep.mubr.f32.mxu0 0.0
  %884 = vmatmul.mubr.f32.gmra.mrb[0].mxu0 %v176
  %v885 = vpop.f32.mrb[0].mxu0
  %v886 = vadd.f32 0.0, %v885
  %v887 = vpop.f32.mrb[0].mxu0
  %v888 = vadd.f32 0.0, %v887
  %889 = vdwg.mxu0
  %v890 = vtanh.pop %v245
  %v891 = vtanh.pop %v247
  %v892 = vtanh.pop %v334
  %v893 = vtanh.pop %v336
  %v894 = vtanh.pop %v423
  %v895 = vtanh.pop %v425
  %v896 = vtanh.pop %v512
  %v897 = vtanh.pop %v514
  %v898 = vtanh.pop %v601
  %v899 = vtanh.pop %v603
  %v900 = vtanh.pop %v690
  %v901 = vtanh.pop %v692
  %v902 = vtanh.pop %v779
  %v903 = vtanh.pop %v781
  %v904 = vtanh.pop %v868
  %v905 = vtanh.pop %v870
  %v906 = vtanh.pop %v251
  %v907 = vtanh.pop %v253
  %v908 = vtanh.pop %v340
  %v909 = vtanh.pop %v342
  %v910 = vtanh.pop %v429
  %v911 = vtanh.pop %v431
  %v912 = vtanh.pop %v518
  %v913 = vtanh.pop %v520
  %v914 = vtanh.pop %v607
  %v915 = vtanh.pop %v609
  %v916 = vtanh.pop %v696
  %v917 = vtanh.pop %v698
  %v918 = vtanh.pop %v785
  %v919 = vtanh.pop %v787
  %v920 = vtanh.pop %v874
  %v921 = vtanh.pop %v876
  %v922 = vtanh.pop %v257
  %v923 = vtanh.pop %v259
  %v924 = vtanh.pop %v346
  %v925 = vtanh.pop %v348
  %v926 = vtanh.pop %v435
  %v927 = vtanh.pop %v437
  %v928 = vtanh.pop %v524
  %v929 = vtanh.pop %v526
  %v930 = vtanh.pop %v613
  %v931 = vtanh.pop %v615
  %v932 = vtanh.pop %v702
  %v933 = vtanh.pop %v704
  %v934 = vtanh.pop %v791
  %v935 = vtanh.pop %v793
  %v936 = vtanh.pop %v880
  %v937 = vtanh.pop %v882
  %v938 = vtanh.pop %v263
  %v939 = vtanh.pop %v265
  %v940 = vtanh.pop %v352
  %v941 = vtanh.pop %v354
  %v942 = vtanh.pop %v441
  %v943 = vtanh.pop %v443
  %v944 = vtanh.pop %v530
  %v945 = vtanh.pop %v532
  %v946 = vtanh.pop %v619
  %v947 = vtanh.pop %v621
  %v948 = vtanh.pop %v708
  %v949 = vtanh.pop %v710
  %v950 = vtanh.pop %v797
  %v951 = vtanh.pop %v799
  %v952 = vtanh.pop %v886
  %v953 = vtanh.pop %v888
  %954 = vst [vmem:[%s4] sm:$0xff] %v890
  %955 = vst [vmem:[%s4 + $0x8] sm:$0xff] %v891
  %956 = vst [vmem:[%s4 + $0x10] sm:$0xff] %v892
  %957 = vst [vmem:[%s4 + $0x18] sm:$0xff] %v893
  %958 = vst [vmem:[%s4 + $0x20] sm:$0xff] %v894
  %959 = vst [vmem:[%s4 + $0x28] sm:$0xff] %v895
  %960 = vst [vmem:[%s4 + $0x30] sm:$0xff] %v896
  %961 = vst [vmem:[%s4 + $0x38] sm:$0xff] %v897
  %962 = vst [vmem:[%s4 + $0x40] sm:$0xff] %v898
  %963 = vst [vmem:[%s4 + $0x48] sm:$0xff] %v899
  %964 = vst [vmem:[%s4 + $0x50] sm:$0xff] %v900
  %965 = vst [vmem:[%s4 + $0x58] sm:$0xff] %v901
  %966 = vst [vmem:[%s4 + $0x60] sm:$0xff] %v902
  %967 = vst [vmem:[%s4 + $0x68] sm:$0xff] %v903
  %968 = vst [vmem:[%s4 + $0x70] sm:$0xff] %v904
  %969 = vst [vmem:[%s4 + $0x78] sm:$0xff] %v905
  %970 = vst [vmem:[%s4 + $0x80] sm:$0xff] %v906
  %971 = vst [vmem:[%s4 + $0x88] sm:$0xff] %v907
  %972 = vst [vmem:[%s4 + $0x90] sm:$0xff] %v908
  %973 = vst [vmem:[%s4 + $0x98] sm:$0xff] %v909
  %974 = vst [vmem:[%s4 + $0xa0] sm:$0xff] %v910
  %975 = vst [vmem:[%s4 + $0xa8] sm:$0xff] %v911
  %976 = vst [vmem:[%s4 + $0xb0] sm:$0xff] %v912
  %977 = vst [vmem:[%s4 + $0xb8] sm:$0xff] %v913
  %978 = vst [vmem:[%s4 + $0xc0] sm:$0xff] %v914
  %979 = vst [vmem:[%s4 + $0xc8] sm:$0xff] %v915
  %980 = vst [vmem:[%s4 + $0xd0] sm:$0xff] %v916
  %981 = vst [vmem:[%s4 + $0xd8] sm:$0xff] %v917
  %982 = vst [vmem:[%s4 + $0xe0] sm:$0xff] %v918
  %983 = vst [vmem:[%s4 + $0xe8] sm:$0xff] %v919
  %984 = vst [vmem:[%s4 + $0xf0] sm:$0xff] %v920
  %985 = vst [vmem:[%s4 + $0xf8] sm:$0xff] %v921
  %986 = vst [vmem:[%s4 + $0x100] sm:$0xff] %v922
  %987 = vst [vmem:[%s4 + $0x108] sm:$0xff] %v923
  %988 = vst [vmem:[%s4 + $0x110] sm:$0xff] %v924
  %989 = vst [vmem:[%s4 + $0x118] sm:$0xff] %v925
  %990 = vst [vmem:[%s4 + $0x120] sm:$0xff] %v926
  %991 = vst [vmem:[%s4 + $0x128] sm:$0xff] %v927
  %992 = vst [vmem:[%s4 + $0x130] sm:$0xff] %v928
  %993 = vst [vmem:[%s4 + $0x138] sm:$0xff] %v929
  %994 = vst [vmem:[%s4 + $0x140] sm:$0xff] %v930
  %995 = vst [vmem:[%s4 + $0x148] sm:$0xff] %v931
  %996 = vst [vmem:[%s4 + $0x150] sm:$0xff] %v932
  %997 = vst [vmem:[%s4 + $0x158] sm:$0xff] %v933
  %998 = vst [vmem:[%s4 + $0x160] sm:$0xff] %v934
  %999 = vst [vmem:[%s4 + $0x168] sm:$0xff] %v935
  %1000 = vst [vmem:[%s4 + $0x170] sm:$0xff] %v936
  %1001 = vst [vmem:[%s4 + $0x178] sm:$0xff] %v937
  %1002 = vst [vmem:[%s4 + $0x180] sm:$0xff] %v938
  %1003 = vst [vmem:[%s4 + $0x188] sm:$0xff] %v939
  %1004 = vst [vmem:[%s4 + $0x190] sm:$0xff] %v940
  %1005 = vst [vmem:[%s4 + $0x198] sm:$0xff] %v941
  %1006 = vst [vmem:[%s4 + $0x1a0] sm:$0xff] %v942
  %1007 = vst [vmem:[%s4 + $0x1a8] sm:$0xff] %v943
  %1008 = vst [vmem:[%s4 + $0x1b0] sm:$0xff] %v944
  %1009 = vst [vmem:[%s4 + $0x1b8] sm:$0xff] %v945
  %1010 = vst [vmem:[%s4 + $0x1c0] sm:$0xff] %v946
  %1011 = vst [vmem:[%s4 + $0x1c8] sm:$0xff] %v947
  %1012 = vst [vmem:[%s4 + $0x1d0] sm:$0xff] %v948
  %1013 = vst [vmem:[%s4 + $0x1d8] sm:$0xff] %v949
  %1014 = vst [vmem:[%s4 + $0x1e0] sm:$0xff] %v950
  %1015 = vst [vmem:[%s4 + $0x1e8] sm:$0xff] %v951
  %1016 = vst [vmem:[%s4 + $0x1f0] sm:$0xff] %v952
  %1017 = vst [vmem:[%s4 + $0x1f8] sm:$0xff] %v953
  // Predicated region
  $region18: #{generator_forward.9} parent=0 // pred_check
    _
  $region19: #{generator_forward.9} parent=0 // pred_check_branch
    %1019 = sbr.rel (0) target = $region21
  $region20: #{generator_forward.9} parent=0 // pred_region
    _
  $region21: #{generator_forward.9} parent=0 // pred_fallthru
    _
  // Predicated region
  $region22: #{generator_forward.9} parent=0 // pred_check
    _
  $region23: #{generator_forward.9} parent=0 // pred_check_branch
    %1021 = sbr.rel (0) target = $region25
  $region24: #{generator_forward.9} parent=0 // pred_region
    _
  $region25: #{generator_forward.9} parent=0 // pred_fallthru
    _

</llo_original>
